<compile_context>
chip_gen: v7x
topology: tpu7x:2x2x1
jax: 0.10.0
libtpu: 0.0.40
codegen_flags: <defaults>
</compile_context>

<pallas_src>
import functools

import numpy as np
import jax
import jax.numpy as jnp
from jax.experimental import pallas as pl
from jax.experimental.pallas import tpu as pltpu

_EPS = 1e-5  # nn.LayerNorm default


# ----------------------------------------------------------------------------
# Kernel 1: DWConvPE (3x3 depthwise) + residual, via padded VMEM scratch
# ----------------------------------------------------------------------------
def _pe_kernel(x_ref, w_ref, b_ref, o_ref, pad_ref):
    x = x_ref[0]                                            # (H, W, C) f32
    H, W, C = x.shape
    pad_ref[...] = jnp.zeros(pad_ref.shape, pad_ref.dtype)
    pad_ref[1:H + 1, 1:W + 1, :] = x
    w = w_ref[...]                                          # (3, 3, C) f32
    acc = x + b_ref[...].reshape(1, 1, C)                   # residual + bias
    for di in range(3):
        for dj in range(3):
            tap = pad_ref[di:di + H, dj:dj + W, :]          # static slice load
            acc = acc + tap * w[di:di + 1, dj:dj + 1, :]
    o_ref[0] = acc.astype(o_ref.dtype)                      # x + pe(x)


def pe_residual(x_nhwc, w_pe, b_pe):
    B, H, W, C = x_nhwc.shape
    return pl.pallas_call(
        _pe_kernel,
        out_shape=jax.ShapeDtypeStruct((B, H, W, C), jnp.float32),
        grid=(B,),
        in_specs=[
            pl.BlockSpec((1, H, W, C), lambda b: (b, 0, 0, 0)),
            pl.BlockSpec((3, 3, C), lambda b: (0, 0, 0)),
            pl.BlockSpec((1, C), lambda b: (0, 0)),
        ],
        out_specs=pl.BlockSpec((1, H, W, C), lambda b: (b, 0, 0, 0)),
        scratch_shapes=[pltpu.VMEM((H + 2, W + 2, C), jnp.float32)],
        compiler_params=pltpu.CompilerParams(dimension_semantics=("parallel",)),
    )(x_nhwc.astype(jnp.float32), w_pe.astype(jnp.float32),
      b_pe.reshape(1, -1).astype(jnp.float32))


# ----------------------------------------------------------------------------
# Kernel 2: LN -> stacked spatial reduction (N-chunked) -> K/V (block-diag)
# ----------------------------------------------------------------------------
def _kv_kernel(x_ref, pool_ref, wkv_ref, bkv_ref, ok_ref, ov_ref, acc_ref,
               *, n_heads, s_tokens, g_pad):
    t = pl.program_id(1)
    x = x_ref[0].astype(jnp.float32)                        # (TN, C)
    TN, C = x.shape

    # Shared LN stats for norm1/norm2 (affines folded into wkv host-side).
    mu = jnp.mean(x, axis=-1, keepdims=True)
    var = jnp.mean(x * x, axis=-1, keepdims=True) - mu * mu
    xn16 = ((x - mu) * jax.lax.rsqrt(var + _EPS)).astype(jnp.bfloat16)

    @pl.when(t == 0)
    def _():
        acc_ref[...] = jnp.zeros_like(acc_ref)

    # Stacked (bilinear; adaptive-avg) pooling matmul, bf16 operands.
    acc_ref[...] += jnp.dot(pool_ref[...], xn16,
                            preferred_element_type=jnp.float32)   # (2S, C)

    @pl.when(t == pl.num_programs(1) - 1)
    def _():
        S = s_tokens
        hd = C // n_heads
        nhS = n_heads * S
        pooled = acc_ref[...]                               # (2S, C) f32
        colC = jax.lax.broadcasted_iota(jnp.int32, (S, C), 1)
        for br in range(2):                                 # 0: bilinear, 1: avg
            pb = pooled[br * S:(br + 1) * S].astype(jnp.bfloat16)   # (S, C)
            kv = jnp.dot(pb, wkv_ref[br],
                         preferred_element_type=jnp.float32) + bkv_ref[br]
            k = kv[:, :C]                                   # (S, C)  scale folded
            v = kv[:, C:]                                   # (S, C)
            k_parts, v_parts = [], []
            for h in range(n_heads):
                cm = (colC >= h * hd) & (colC < (h + 1) * hd)
                k_parts.append(jnp.where(cm, k, 0.0))
                v_parts.append(jnp.where(cm, v, 0.0))
            if g_pad > nhS:
                pad = jnp.zeros((g_pad - nhS, C), jnp.float32)
                k_parts.append(pad)
                v_parts.append(pad)
            km = jnp.concatenate(k_parts, axis=0)           # (G, C) block-diag
            vm = jnp.concatenate(v_parts, axis=0)           # (G, C) block-diag
            ok_ref[0, br] = jnp.transpose(km, (1, 0)).astype(jnp.bfloat16)  # (C, G)
            ov_ref[0, br] = vm.astype(jnp.bfloat16)


def kv_precompute(x_tok, pools, fp, n_heads, s_tokens):
    B, N, C = x_tok.shape
    S2 = pools.shape[0]                                     # 2*S
    nhS = n_heads * s_tokens
    G = max(64, -(-nhS // 8) * 8)                           # padded group width
    TN = _pick_chunk(N, 512)
    nT = N // TN
    kernel = functools.partial(_kv_kernel, n_heads=n_heads,
                               s_tokens=s_tokens, g_pad=G)
    return pl.pallas_call(
        kernel,
        out_shape=(jax.ShapeDtypeStruct((B, 2, C, G), jnp.bfloat16),
                   jax.ShapeDtypeStruct((B, 2, G, C), jnp.bfloat16)),
        grid=(B, nT),
        in_specs=[
            pl.BlockSpec((1, TN, C), lambda b, t: (b, t, 0)),
            pl.BlockSpec((S2, TN), lambda b, t: (0, t)),
            pl.BlockSpec((2, C, 2 * C), lambda b, t: (0, 0, 0)),
            pl.BlockSpec((2, 1, 2 * C), lambda b, t: (0, 0, 0)),
        ],
        out_specs=(pl.BlockSpec((1, 2, C, G), lambda b, t: (b, 0, 0, 0)),
                   pl.BlockSpec((1, 2, G, C), lambda b, t: (b, 0, 0, 0))),
        scratch_shapes=[pltpu.VMEM((S2, C), jnp.float32)],
        compiler_params=pltpu.CompilerParams(
            dimension_semantics=("parallel", "arbitrary")),
    )(x_tok, pools.astype(jnp.bfloat16), fp["wkv"], fp["bkv"])


# ----------------------------------------------------------------------------
# Kernel 3: fused attn1/attn2 + norm_trans + transition + norm + FFN
# ----------------------------------------------------------------------------
def _main_kernel(x_ref, k_ref, v_ref, wq_ref, bq_ref, wt1_ref, wt2_ref, bt_ref,
                 w1_ref, b1_ref, w2_ref, b2_ref, o_ref, *, n_heads, s_tokens):
    x = x_ref[0]                                            # (TM, C) f32
    TM, C = x.shape
    hd = C // n_heads
    S = s_tokens
    G = k_ref.shape[-1]

    colG = jax.lax.broadcasted_iota(jnp.int32, (TM, G), 1)
    colC = jax.lax.broadcasted_iota(jnp.int32, (TM, C), 1)

    # One LN-stat pass shared by norm1/norm2 (affines folded into wq).
    mu = jnp.mean(x, axis=-1, keepdims=True)
    var = jnp.mean(x * x, axis=-1, keepdims=True) - mu * mu
    xn16 = ((x - mu) * jax.lax.rsqrt(var + _EPS)).astype(jnp.bfloat16)

    # Both Q projections in one (TM,C)x(C,2C) matmul.
    q12 = jnp.dot(xn16, wq_ref[...],
                  preferred_element_type=jnp.float32) + bq_ref[...]   # (TM, 2C)

    def attn(q, kbd, vbd):
        # One QK^T matmul against block-diagonal K (scale folded).
        s = jnp.dot(q.astype(jnp.bfloat16), kbd,
                    preferred_element_type=jnp.float32)     # (TM, G)
        # Per-head (segmented) max for a numerically safe softmax.
        m = jnp.zeros_like(s)
        for h in range(n_heads):
            gm = (colG >= h * S) & (colG < (h + 1) * S)
            mh = jnp.max(jnp.where(gm, s, -jnp.inf), axis=-1, keepdims=True)
            m = m + jnp.where(gm, mh, 0.0)
        p = jnp.exp(s - m)
        # One PV matmul against block-diagonal V, then per-head normalization.
        o_un = jnp.dot(p.astype(jnp.bfloat16), vbd,
                       preferred_element_type=jnp.float32)  # (TM, C)
        out = jnp.zeros((TM, C), jnp.float32)
        for h in range(n_heads):
            gm = (colG >= h * S) & (colG < (h + 1) * S)
            dh = jnp.sum(jnp.where(gm, p, 0.0), axis=-1, keepdims=True)
            cm = (colC >= h * hd) & (colC < (h + 1) * hd)
            out = out + jnp.where(cm, o_un, 0.0) * pl.reciprocal(dh)
        return out

    sa1 = x + attn(q12[:, :C], k_ref[0, 0], v_ref[0, 0])
    sa2 = x + attn(q12[:, C:], k_ref[0, 1], v_ref[0, 1])

    # norm_trans over the virtual concat [sa1 | sa2] without materializing it.
    inv2c = 1.0 / (2 * C)
    mu_t = (jnp.sum(sa1, -1, keepdims=True) + jnp.sum(sa2, -1, keepdims=True)) * inv2c
    ex2 = (jnp.sum(sa1 * sa1, -1, keepdims=True)
           + jnp.sum(sa2 * sa2, -1, keepdims=True)) * inv2c
    rstd = jax.lax.rsqrt(ex2 - mu_t * mu_t + _EPS)
    sa1n = ((sa1 - mu_t) * rstd).astype(jnp.bfloat16)
    sa2n = ((sa2 - mu_t) * rstd).astype(jnp.bfloat16)
    t = (jnp.dot(sa1n, wt1_ref[...], preferred_element_type=jnp.float32)
         + jnp.dot(sa2n, wt2_ref[...], preferred_element_type=jnp.float32)
         + bt_ref[...])                                     # (TM, C)

    # norm (affine folded into w1) + ConvFFN (1x1 -> GELU -> 1x1) + residual.
    mu_f = jnp.mean(t, axis=-1, keepdims=True)
    var_f = jnp.mean(t * t, axis=-1, keepdims=True) - mu_f * mu_f
    tn16 = ((t - mu_f) * jax.lax.rsqrt(var_f + _EPS)).astype(jnp.bfloat16)
    h1 = jnp.dot(tn16, w1_ref[...],
                 preferred_element_type=jnp.float32) + b1_ref[...]
    # TODO(synk): PyTorch nn.GELU default is exact erf; tanh approx used here.
    h1 = jax.nn.gelu(h1, approximate=True)
    f = jnp.dot(h1.astype(jnp.bfloat16), w2_ref[...],
                preferred_element_type=jnp.float32) + b2_ref[...]

    res = t + f                                             # (TM, C)
    # Emit pre-transposed so the result is already channel-major (B, C, N).
    o_ref[0] = jnp.transpose(res, (1, 0)).astype(o_ref.dtype)   # (C, TM)


def _pick_tile(n, cap=512):
    cap = min(cap, max(128, n // 2))                        # >=2 tiles per batch
    for t in (512, 256, 128, 64, 32, 16, 8):
        if t <= cap and n % t == 0:
            return t
    return n


def _pick_chunk(n, cap=512):
    for t in (1024, 512, 256, 128, 64, 32, 16, 8):
        if t <= cap and n % t == 0:
            return t
    return n


def fused_block(x_tok, kbd, vbd, fp, n_heads, s_tokens):
    B, N, C = x_tok.shape
    G = kbd.shape[-1]
    Ch = fp["w1"].shape[1]
    TM = _pick_tile(N)
    nT = N // TM
    kernel = functools.partial(_main_kernel, n_heads=n_heads, s_tokens=s_tokens)
    const = lambda b, t: (0, 0)

    flops = 2 * B * N * (2 * C * C            # fused Q projection
                         + 2 * (2 * C * G)    # QK^T + PV per branch
                         + 2 * C * C          # transition (two halves)
                         + 2 * C * Ch)        # FFN
    cost = pl.CostEstimate(
        flops=int(flops),
        transcendentals=int(B * N * (2 * G + Ch + 8)),
        bytes_accessed=int(B * N * C * 4 * 2 + B * 2 * 2 * C * G * 2 * 2
                           + 2 * (2 * C * C * 2 + 2 * C * C * 2 + 4 * C * Ch)),
    )
    return pl.pallas_call(
        kernel,
        out_shape=jax.ShapeDtypeStruct((B, C, N), jnp.float32),
        grid=(B, nT),
        in_specs=[
            pl.BlockSpec((1, TM, C), lambda b, t: (b, t, 0)),
            pl.BlockSpec((1, 2, C, G), lambda b, t: (b, 0, 0, 0)),
            pl.BlockSpec((1, 2, G, C), lambda b, t: (b, 0, 0, 0)),
            pl.BlockSpec((C, 2 * C), const),    # wq  (LN affines folded)
            pl.BlockSpec((1, 2 * C), const),    # bq
            pl.BlockSpec((C, C), const),        # transition top half
            pl.BlockSpec((C, C), const),        # transition bottom half
            pl.BlockSpec((1, C), const),        # transition bias (folded)
            pl.BlockSpec((C, Ch), const),       # ffn w1 (norm affine folded)
            pl.BlockSpec((1, Ch), const),       # ffn b1 (folded)
            pl.BlockSpec((Ch, C), const),       # ffn w2
            pl.BlockSpec((1, C), const),        # ffn b2
        ],
        out_specs=pl.BlockSpec((1, C, TM), lambda b, t: (b, 0, t)),
        compiler_params=pltpu.CompilerParams(
            dimension_semantics=("parallel", "parallel")),
        cost_estimate=cost,
    )(x_tok, kbd, vbd, fp["wq"], fp["bq"], fp["wt1"], fp["wt2"], fp["bt"],
      fp["w1"], fp["b1"], fp["w2"], fp["b2"])


# ----------------------------------------------------------------------------
# Host-side weight folding (LN affines / qk scale folded into matmul weights)
# ----------------------------------------------------------------------------
def _fold_params(p, n_heads):
    C = p["ln1_g"].shape[0]
    hd = C // n_heads
    scale = hd ** -0.5
    b16 = lambda a: a.astype(jnp.bfloat16)
    r1 = lambda a: a.reshape(1, -1).astype(jnp.float32)

    g1, b1 = p["ln1_g"], p["ln1_b"]
    g2, b2 = p["ln2_g"], p["ln2_b"]

    wq = jnp.concatenate([g1[:, None] * p["wq1"], g2[:, None] * p["wq2"]], axis=1)
    bq = jnp.concatenate([b1 @ p["wq1"], b2 @ p["wq2"]])

    wkv1 = jnp.concatenate([g1[:, None] * p["wk1"] * scale,
                            g1[:, None] * p["wv1"]], axis=1)
    bkv1 = jnp.concatenate([(b1 @ p["wk1"]) * scale, b1 @ p["wv1"]])
    wkv2 = jnp.concatenate([g2[:, None] * p["wk2"] * scale,
                            g2[:, None] * p["wv2"]], axis=1)
    bkv2 = jnp.concatenate([(b2 @ p["wk2"]) * scale, b2 @ p["wv2"]])

    gt, bt = p["lnt_g"], p["lnt_b"]
    wt = p["trans_w"]                                       # (2C, C)
    wt1 = gt[:C, None] * wt[:C]
    wt2 = gt[C:, None] * wt[C:]
    btr = bt @ wt + p["trans_b"]

    gn, bn = p["ln_g"], p["ln_b"]
    w1 = gn[:, None] * p["ffn_w1"]
    b1f = bn @ p["ffn_w1"] + p["ffn_b1"]

    return {
        "wq": b16(wq), "bq": r1(bq),
        "wkv": b16(jnp.stack([wkv1, wkv2])),                        # (2, C, 2C)
        "bkv": jnp.stack([bkv1.reshape(1, -1),
                          bkv2.reshape(1, -1)]).astype(jnp.float32),  # (2, 1, 2C)
        "wt1": b16(wt1), "wt2": b16(wt2), "bt": r1(btr),
        "w1": b16(w1), "b1": r1(b1f),
        "w2": b16(p["ffn_w2"]), "b2": r1(p["ffn_b2"]),
    }


# ----------------------------------------------------------------------------
# Spatial-reduction pooling matrices (static, built with numpy)
# ----------------------------------------------------------------------------
def _bilinear_1d(size_in, size_out):
    m = np.zeros((size_out, size_in), np.float32)
    if size_in == 1:
        m[:, 0] = 1.0
        return m
    src = (np.arange(size_out) + 0.5) * (size_in / size_out) - 0.5
    src = np.clip(src, 0.0, size_in - 1.0)
    i0 = np.floor(src).astype(np.int64)
    i1 = np.minimum(i0 + 1, size_in - 1)
    w1 = (src - i0).astype(np.float32)
    for o in range(size_out):
        m[o, i0[o]] += 1.0 - w1[o]
        m[o, i1[o]] += w1[o]
    return m


def _adaptive_avg_1d(size_in, size_out):
    m = np.zeros((size_out, size_in), np.float32)
    for o in range(size_out):
        s = (o * size_in) // size_out
        e = -((-(o + 1) * size_in) // size_out)             # ceil
        m[o, s:e] = 1.0 / (e - s)
    return m


def _pool_matrix(rows_1d, cols_1d):
    m = np.einsum("ir,jc->ijrc", rows_1d, cols_1d)
    so_h, si_h = rows_1d.shape
    so_w, si_w = cols_1d.shape
    return jnp.asarray(m.reshape(so_h * so_w, si_h * si_w))


# ----------------------------------------------------------------------------
# Forward
# ----------------------------------------------------------------------------
def context_self_block(params, x, *, n_heads=4, spatial_size=(3, 3)):
    B, C, H, W = x.shape
    N = H * W
    sh, sw = spatial_size
    S = sh * sw

    x_nhwc = jnp.transpose(x, (0, 2, 3, 1))
    x_pe = pe_residual(x_nhwc, params["pe_w"], params["pe_b"])      # (B,H,W,C) f32
    x_tok = x_pe.reshape(B, N, C)

    pools = jnp.concatenate(
        [_pool_matrix(_bilinear_1d(H, sh), _bilinear_1d(W, sw)),
         _pool_matrix(_adaptive_avg_1d(H, sh), _adaptive_avg_1d(W, sw))],
        axis=0)                                                      # (2S, N)

    fp = _fold_params(params, n_heads)
    kbd, vbd = kv_precompute(x_tok, pools, fp, n_heads, S)           # bf16 block-diag
    out_cn = fused_block(x_tok, kbd, vbd, fp, n_heads, S)            # (B, C, N) f32
    return out_cn.reshape(B, C, H, W)                                # free reshape


# ----------------------------------------------------------------------------
# Parameters
# ----------------------------------------------------------------------------
def init_params(key, dim, expansion_factor=4.0):
    C, C2 = dim, 2 * dim
    Ch = int(expansion_factor * dim)
    ks = jax.random.split(key, 10)
    s, s2, shd = 1.0 / np.sqrt(C), 1.0 / np.sqrt(C2), 1.0 / np.sqrt(Ch)
    nrm = lambda k, shape, sc: jax.random.normal(k, shape, jnp.float32) * sc
    return {
        "pe_w": nrm(ks[0], (3, 3, C), 1.0 / 3.0),
        "pe_b": jnp.zeros((C,), jnp.float32),
        "ln1_g": jnp.ones((C,), jnp.float32), "ln1_b": jnp.zeros((C,), jnp.float32),
        "ln2_g": jnp.ones((C,), jnp.float32), "ln2_b": jnp.zeros((C,), jnp.float32),
        "wq1": nrm(ks[1], (C, C), s), "wk1": nrm(ks[2], (C, C), s),
        "wv1": nrm(ks[3], (C, C), s),
        "wq2": nrm(ks[4], (C, C), s), "wk2": nrm(ks[5], (C, C), s),
        "wv2": nrm(ks[6], (C, C), s),
        "lnt_g": jnp.ones((C2,), jnp.float32), "lnt_b": jnp.zeros((C2,), jnp.float32),
        "trans_w": nrm(ks[7], (C2, C), s2),
        "trans_b": jnp.zeros((C,), jnp.float32),
        "ln_g": jnp.ones((C,), jnp.float32), "ln_b": jnp.zeros((C,), jnp.float32),
        "ffn_w1": nrm(ks[8], (C, Ch), s),
        "ffn_b1": jnp.zeros((Ch,), jnp.float32),
        "ffn_w2": nrm(ks[9], (Ch, C), shd),
        "ffn_b2": jnp.zeros((C,), jnp.float32),
    }


# ----------------------------------------------------------------------------
if __name__ == "__main__":
    B, dim, H, W = 2, 128, 16, 16          # lane-dense channels (MXU friendly)
    n_heads = 4

    key = jax.random.PRNGKey(0)
    kx, kp = jax.random.split(key)
    x = jax.random.normal(kx, (B, dim, H, W), jnp.float32)
    params = init_params(kp, dim)

    fwd = jax.jit(functools.partial(context_self_block, n_heads=n_heads,
                                    spatial_size=(3, 3)))
    out = jax.block_until_ready(fwd(params, x))
    assert out.shape == (B, dim, H, W), out.shape
    assert bool(jnp.all(jnp.isfinite(out)))
    print("KERNEL_OK")
</pallas_src>

<mosaic_0001>
module attributes {stable_mosaic.version = 11 : i64} {
  func.func @_pe_kernel(%arg0: i32, %arg1: memref<1x16x16x128xf32, #tpu.memory_space<vmem>>, %arg2: memref<3x3x128xf32, #tpu.memory_space<vmem>>, %arg3: memref<1x128xf32, #tpu.memory_space<vmem>>, %arg4: memref<1x16x16x128xf32, #tpu.memory_space<vmem>>, %arg5: memref<18x18x128xf32, #tpu.memory_space<vmem>>) attributes {dimension_semantics = [#tpu.dimension_semantics<parallel>], iteration_bounds = array<i64: 2>, scalar_prefetch = 0 : i64, scratch_operands = 1 : i64, tpu.core_type = #tpu.core_type<tc>, window_params = [{transform_indices = @transform_0, window_bounds = array<i64: 1, 16, 16, 128>}, {pipeline_mode = #tpu.pipeline_mode<synchronous>, transform_indices = @transform_1, window_bounds = array<i64: 3, 3, 128>}, {pipeline_mode = #tpu.pipeline_mode<synchronous>, transform_indices = @transform_2, window_bounds = array<i64: 1, 128>}, {transform_indices = @transform_3, window_bounds = array<i64: 1, 16, 16, 128>}]} {
    %c0 = arith.constant 0 : index
    %c0_0 = arith.constant 0 : index
    %c0_1 = arith.constant 0 : index
    %c0_2 = arith.constant 0 : index
    %0 = vector.load %arg1[%c0, %c0_0, %c0_1, %c0_2] : memref<1x16x16x128xf32, #tpu.memory_space<vmem>>, vector<1x16x16x128xf32>
    %1 = vector.shape_cast %0 : vector<1x16x16x128xf32> to vector<16x16x128xf32>
    %cst = arith.constant 0.000000e+00 : f32
    %2 = vector.broadcast %cst : f32 to vector<18x18x128xf32>
    %c0_3 = arith.constant 0 : index
    %c0_4 = arith.constant 0 : index
    %c0_5 = arith.constant 0 : index
    %3 = vector.load %arg5[%c0_3, %c0_4, %c0_5] : memref<18x18x128xf32, #tpu.memory_space<vmem>>, vector<18x18x128xf32>
    tpu.vector_store %arg5[%c0_3, %c0_4, %c0_5], %2 {strides = array<i32>} : memref<18x18x128xf32, #tpu.memory_space<vmem>>, vector<18x18x128xf32>,
    %c1 = arith.constant 1 : index
    %c1_6 = arith.constant 1 : index
    %c0_7 = arith.constant 0 : index
    %4 = vector.load %arg5[%c1, %c1_6, %c0_7] : memref<18x18x128xf32, #tpu.memory_space<vmem>>, vector<16x16x128xf32>
    tpu.vector_store %arg5[%c1, %c1_6, %c0_7], %1 {strides = array<i32>} : memref<18x18x128xf32, #tpu.memory_space<vmem>>, vector<16x16x128xf32>,
    %c0_8 = arith.constant 0 : index
    %c0_9 = arith.constant 0 : index
    %c0_10 = arith.constant 0 : index
    %5 = vector.load %arg2[%c0_8, %c0_9, %c0_10] : memref<3x3x128xf32, #tpu.memory_space<vmem>>, vector<3x3x128xf32>
    %c0_11 = arith.constant 0 : index
    %c0_12 = arith.constant 0 : index
    %6 = vector.load %arg3[%c0_11, %c0_12] : memref<1x128xf32, #tpu.memory_space<vmem>>, vector<1x128xf32>
    %7 = vector.shape_cast %6 : vector<1x128xf32> to vector<1x1x128xf32>
    %8 = vector.broadcast %7 : vector<1x1x128xf32> to vector<16x16x128xf32>
    %9 = arith.addf %1, %8 : vector<16x16x128xf32>
    %c0_13 = arith.constant 0 : index
    %c0_14 = arith.constant 0 : index
    %c0_15 = arith.constant 0 : index
    %10 = vector.load %arg5[%c0_13, %c0_14, %c0_15] : memref<18x18x128xf32, #tpu.memory_space<vmem>>, vector<16x16x128xf32>
    %11 = vector.extract_strided_slice %5 {offsets = [0, 0, 0], sizes = [1, 1, 128], strides = [1, 1, 1]} : vector<3x3x128xf32> to vector<1x1x128xf32>
    %12 = vector.broadcast %11 : vector<1x1x128xf32> to vector<16x16x128xf32>
    %13 = arith.mulf %10, %12 : vector<16x16x128xf32>
    %14 = arith.addf %9, %13 : vector<16x16x128xf32>
    %c0_16 = arith.constant 0 : index
    %c1_17 = arith.constant 1 : index
    %c0_18 = arith.constant 0 : index
    %15 = vector.load %arg5[%c0_16, %c1_17, %c0_18] : memref<18x18x128xf32, #tpu.memory_space<vmem>>, vector<16x16x128xf32>
    %16 = vector.extract_strided_slice %5 {offsets = [0, 1, 0], sizes = [1, 1, 128], strides = [1, 1, 1]} : vector<3x3x128xf32> to vector<1x1x128xf32>
    %17 = vector.broadcast %16 : vector<1x1x128xf32> to vector<16x16x128xf32>
    %18 = arith.mulf %15, %17 : vector<16x16x128xf32>
    %19 = arith.addf %14, %18 : vector<16x16x128xf32>
    %c0_19 = arith.constant 0 : index
    %c2 = arith.constant 2 : index
    %c0_20 = arith.constant 0 : index
    %20 = vector.load %arg5[%c0_19, %c2, %c0_20] : memref<18x18x128xf32, #tpu.memory_space<vmem>>, vector<16x16x128xf32>
    %21 = vector.extract_strided_slice %5 {offsets = [0, 2, 0], sizes = [1, 1, 128], strides = [1, 1, 1]} : vector<3x3x128xf32> to vector<1x1x128xf32>
    %22 = vector.broadcast %21 : vector<1x1x128xf32> to vector<16x16x128xf32>
    %23 = arith.mulf %20, %22 : vector<16x16x128xf32>
    %24 = arith.addf %19, %23 : vector<16x16x128xf32>
    %c1_21 = arith.constant 1 : index
    %c0_22 = arith.constant 0 : index
    %c0_23 = arith.constant 0 : index
    %25 = vector.load %arg5[%c1_21, %c0_22, %c0_23] : memref<18x18x128xf32, #tpu.memory_space<vmem>>, vector<16x16x128xf32>
    %26 = vector.extract_strided_slice %5 {offsets = [1, 0, 0], sizes = [1, 1, 128], strides = [1, 1, 1]} : vector<3x3x128xf32> to vector<1x1x128xf32>
    %27 = vector.broadcast %26 : vector<1x1x128xf32> to vector<16x16x128xf32>
    %28 = arith.mulf %25, %27 : vector<16x16x128xf32>
    %29 = arith.addf %24, %28 : vector<16x16x128xf32>
    %c1_24 = arith.constant 1 : index
    %c1_25 = arith.constant 1 : index
    %c0_26 = arith.constant 0 : index
    %30 = vector.load %arg5[%c1_24, %c1_25, %c0_26] : memref<18x18x128xf32, #tpu.memory_space<vmem>>, vector<16x16x128xf32>
    %31 = vector.extract_strided_slice %5 {offsets = [1, 1, 0], sizes = [1, 1, 128], strides = [1, 1, 1]} : vector<3x3x128xf32> to vector<1x1x128xf32>
    %32 = vector.broadcast %31 : vector<1x1x128xf32> to vector<16x16x128xf32>
    %33 = arith.mulf %30, %32 : vector<16x16x128xf32>
    %34 = arith.addf %29, %33 : vector<16x16x128xf32>
    %c1_27 = arith.constant 1 : index
    %c2_28 = arith.constant 2 : index
    %c0_29 = arith.constant 0 : index
    %35 = vector.load %arg5[%c1_27, %c2_28, %c0_29] : memref<18x18x128xf32, #tpu.memory_space<vmem>>, vector<16x16x128xf32>
    %36 = vector.extract_strided_slice %5 {offsets = [1, 2, 0], sizes = [1, 1, 128], strides = [1, 1, 1]} : vector<3x3x128xf32> to vector<1x1x128xf32>
    %37 = vector.broadcast %36 : vector<1x1x128xf32> to vector<16x16x128xf32>
    %38 = arith.mulf %35, %37 : vector<16x16x128xf32>
    %39 = arith.addf %34, %38 : vector<16x16x128xf32>
    %c2_30 = arith.constant 2 : index
    %c0_31 = arith.constant 0 : index
    %c0_32 = arith.constant 0 : index
    %40 = vector.load %arg5[%c2_30, %c0_31, %c0_32] : memref<18x18x128xf32, #tpu.memory_space<vmem>>, vector<16x16x128xf32>
    %41 = vector.extract_strided_slice %5 {offsets = [2, 0, 0], sizes = [1, 1, 128], strides = [1, 1, 1]} : vector<3x3x128xf32> to vector<1x1x128xf32>
    %42 = vector.broadcast %41 : vector<1x1x128xf32> to vector<16x16x128xf32>
    %43 = arith.mulf %40, %42 : vector<16x16x128xf32>
    %44 = arith.addf %39, %43 : vector<16x16x128xf32>
    %c2_33 = arith.constant 2 : index
    %c1_34 = arith.constant 1 : index
    %c0_35 = arith.constant 0 : index
    %45 = vector.load %arg5[%c2_33, %c1_34, %c0_35] : memref<18x18x128xf32, #tpu.memory_space<vmem>>, vector<16x16x128xf32>
    %46 = vector.extract_strided_slice %5 {offsets = [2, 1, 0], sizes = [1, 1, 128], strides = [1, 1, 1]} : vector<3x3x128xf32> to vector<1x1x128xf32>
    %47 = vector.broadcast %46 : vector<1x1x128xf32> to vector<16x16x128xf32>
    %48 = arith.mulf %45, %47 : vector<16x16x128xf32>
    %49 = arith.addf %44, %48 : vector<16x16x128xf32>
    %c2_36 = arith.constant 2 : index
    %c2_37 = arith.constant 2 : index
    %c0_38 = arith.constant 0 : index
    %50 = vector.load %arg5[%c2_36, %c2_37, %c0_38] : memref<18x18x128xf32, #tpu.memory_space<vmem>>, vector<16x16x128xf32>
    %51 = vector.extract_strided_slice %5 {offsets = [2, 2, 0], sizes = [1, 1, 128], strides = [1, 1, 1]} : vector<3x3x128xf32> to vector<1x1x128xf32>
    %52 = vector.broadcast %51 : vector<1x1x128xf32> to vector<16x16x128xf32>
    %53 = arith.mulf %50, %52 : vector<16x16x128xf32>
    %54 = arith.addf %49, %53 : vector<16x16x128xf32>
    %c0_39 = arith.constant 0 : index
    %c0_40 = arith.constant 0 : index
    %c0_41 = arith.constant 0 : index
    %c0_42 = arith.constant 0 : index
    %55 = vector.load %arg4[%c0_39, %c0_40, %c0_41, %c0_42] : memref<1x16x16x128xf32, #tpu.memory_space<vmem>>, vector<1x16x16x128xf32>
    %56 = vector.shape_cast %55 : vector<1x16x16x128xf32> to vector<16x16x128xf32>
    %57 = vector.shape_cast %54 : vector<16x16x128xf32> to vector<1x16x16x128xf32>
    tpu.vector_store %arg4[%c0_39, %c0_40, %c0_41, %c0_42], %57 {strides = array<i32>} : memref<1x16x16x128xf32, #tpu.memory_space<vmem>>, vector<1x16x16x128xf32>,
    return
  }
  func.func @transform_0(%arg0: i32) -> (i32, i32, i32, i32) {
    %c0_i32 = arith.constant 0 : i32
    %c0_i32_0 = arith.constant 0 : i32
    %c0_i32_1 = arith.constant 0 : i32
    %c0_i32_2 = arith.constant 0 : i32
    return %arg0, %c0_i32, %c0_i32_0, %c0_i32_1 : i32, i32, i32, i32
  }
  func.func @transform_1(%arg0: i32) -> (i32, i32, i32) {
    %c0_i32 = arith.constant 0 : i32
    %c0_i32_0 = arith.constant 0 : i32
    %c0_i32_1 = arith.constant 0 : i32
    %c0_i32_2 = arith.constant 0 : i32
    return %c0_i32, %c0_i32_0, %c0_i32_1 : i32, i32, i32
  }
  func.func @transform_2(%arg0: i32) -> (i32, i32) {
    %c0_i32 = arith.constant 0 : i32
    %c0_i32_0 = arith.constant 0 : i32
    %c0_i32_1 = arith.constant 0 : i32
    return %c0_i32, %c0_i32_0 : i32, i32
  }
  func.func @transform_3(%arg0: i32) -> (i32, i32, i32, i32) {
    %c0_i32 = arith.constant 0 : i32
    %c0_i32_0 = arith.constant 0 : i32
    %c0_i32_1 = arith.constant 0 : i32
    %c0_i32_2 = arith.constant 0 : i32
    return %arg0, %c0_i32, %c0_i32_0, %c0_i32_1 : i32, i32, i32, i32
  }
}

module attributes {stable_mosaic.version = 11 : i64} {
  func.func @_kv_kernel(%arg0: i32, %arg1: i32, %arg2: memref<1x256x128xf32, #tpu.memory_space<vmem>>, %arg3: memref<18x256xbf16, #tpu.memory_space<vmem>>, %arg4: memref<2x128x256xbf16, #tpu.memory_space<vmem>>, %arg5: memref<2x1x256xf32, #tpu.memory_space<vmem>>, %arg6: memref<1x2x128x64xbf16, #tpu.memory_space<vmem>>, %arg7: memref<1x2x64x128xbf16, #tpu.memory_space<vmem>>, %arg8: memref<18x128xf32, #tpu.memory_space<vmem>>) attributes {dimension_semantics = [#tpu.dimension_semantics<parallel>, #tpu.dimension_semantics<arbitrary>], iteration_bounds = array<i64: 2, 1>, scalar_prefetch = 0 : i64, scratch_operands = 1 : i64, tpu.core_type = #tpu.core_type<tc>, window_params = [{transform_indices = @transform_0, window_bounds = array<i64: 1, 256, 128>}, {transform_indices = @transform_1, window_bounds = array<i64: 18, 256>}, {pipeline_mode = #tpu.pipeline_mode<synchronous>, transform_indices = @transform_2, window_bounds = array<i64: 2, 128, 256>}, {pipeline_mode = #tpu.pipeline_mode<synchronous>, transform_indices = @transform_3, window_bounds = array<i64: 2, 1, 256>}, {transform_indices = @transform_4, window_bounds = array<i64: 1, 2, 128, 64>}, {transform_indices = @transform_5, window_bounds = array<i64: 1, 2, 64, 128>}]} {
    %c0 = arith.constant 0 : index
    %c0_0 = arith.constant 0 : index
    %c0_1 = arith.constant 0 : index
    %0 = vector.load %arg2[%c0, %c0_0, %c0_1] : memref<1x256x128xf32, #tpu.memory_space<vmem>>, vector<1x256x128xf32>
    %1 = vector.shape_cast %0 : vector<1x256x128xf32> to vector<256x128xf32>
    %cst = arith.constant dense<0.000000e+00> : vector<256xf32>
    %2 = vector.multi_reduction <add>, %1, %cst [1] : vector<256x128xf32> to vector<256xf32>
    %3 = vector.shape_cast %2 : vector<256xf32> to vector<256x1xf32>
    %cst_2 = arith.constant 1.280000e+02 : f32
    %4 = vector.broadcast %cst_2 : f32 to vector<256x1xf32>
    %5 = arith.divf %3, %4 : vector<256x1xf32>
    %6 = arith.mulf %1, %1 : vector<256x128xf32>
    %cst_3 = arith.constant dense<0.000000e+00> : vector<256xf32>
    %7 = vector.multi_reduction <add>, %6, %cst_3 [1] : vector<256x128xf32> to vector<256xf32>
    %8 = vector.shape_cast %7 : vector<256xf32> to vector<256x1xf32>
    %cst_4 = arith.constant 1.280000e+02 : f32
    %9 = vector.broadcast %cst_4 : f32 to vector<256x1xf32>
    %10 = arith.divf %8, %9 : vector<256x1xf32>
    %11 = arith.mulf %5, %5 : vector<256x1xf32>
    %12 = arith.subf %10, %11 : vector<256x1xf32>
    %13 = vector.broadcast %5 : vector<256x1xf32> to vector<256x128xf32>
    %14 = arith.subf %1, %13 : vector<256x128xf32>
    %cst_5 = arith.constant 9.99999974E-6 : f32
    %15 = vector.broadcast %cst_5 : f32 to vector<256x1xf32>
    %16 = arith.addf %12, %15 : vector<256x1xf32>
    %17 = math.rsqrt %16 : vector<256x1xf32>
    %18 = vector.broadcast %17 : vector<256x1xf32> to vector<256x128xf32>
    %19 = arith.mulf %14, %18 : vector<256x128xf32>
    %20 = arith.truncf %19 : vector<256x128xf32> to vector<256x128xbf16>
    %c0_i32 = arith.constant 0 : i32
    %21 = arith.cmpi eq, %arg1, %c0_i32 : i32
    %22 = arith.extui %21 : i1 to i32
    %c0_i32_6 = arith.constant 0 : i32
    %23 = arith.cmpi ne, %22, %c0_i32_6 : i32
    scf.if %23 {
      %cst_16 = arith.constant 0.000000e+00 : f32
      %32 = vector.broadcast %cst_16 : f32 to vector<18x128xf32>
      %c0_17 = arith.constant 0 : index
      %c0_18 = arith.constant 0 : index
      %33 = vector.load %arg8[%c0_17, %c0_18] : memref<18x128xf32, #tpu.memory_space<vmem>>, vector<18x128xf32>
      tpu.vector_store %arg8[%c0_17, %c0_18], %32 {strides = array<i32>} : memref<18x128xf32, #tpu.memory_space<vmem>>, vector<18x128xf32>,
    } else {
    }
    %c0_7 = arith.constant 0 : index
    %c0_8 = arith.constant 0 : index
    %24 = vector.load %arg8[%c0_7, %c0_8] : memref<18x128xf32, #tpu.memory_space<vmem>>, vector<18x128xf32>
    %c0_9 = arith.constant 0 : index
    %c0_10 = arith.constant 0 : index
    %25 = vector.load %arg3[%c0_9, %c0_10] : memref<18x256xbf16, #tpu.memory_space<vmem>>, vector<18x256xbf16>
    %cst_11 = arith.constant dense<0.000000e+00> : vector<18x128xf32>
    %26 = tpu.matmul %25, %20, %cst_11 {dimension_numbers = #tpu.dot_dimension_numbers<[1], [0], [0], [1], [0, 0, 1, 1], [], []>} : vector<18x256xbf16>, vector<256x128xbf16>, vector<18x128xf32> -> vector<18x128xf32>
    %27 = arith.addf %24, %26 : vector<18x128xf32>
    %c0_12 = arith.constant 0 : index
    %c0_13 = arith.constant 0 : index
    %28 = vector.load %arg8[%c0_12, %c0_13] : memref<18x128xf32, #tpu.memory_space<vmem>>, vector<18x128xf32>
    tpu.vector_store %arg8[%c0_12, %c0_13], %27 {strides = array<i32>} : memref<18x128xf32, #tpu.memory_space<vmem>>, vector<18x128xf32>,
    %c0_i32_14 = arith.constant 0 : i32
    %29 = arith.cmpi eq, %arg1, %c0_i32_14 : i32
    %30 = arith.extui %29 : i1 to i32
    %c0_i32_15 = arith.constant 0 : i32
    %31 = arith.cmpi ne, %30, %c0_i32_15 : i32
    scf.if %31 {
      %c0_16 = arith.constant 0 : index
      %c0_17 = arith.constant 0 : index
      %32 = vector.load %arg8[%c0_16, %c0_17] : memref<18x128xf32, #tpu.memory_space<vmem>>, vector<18x128xf32>
      %33 = tpu.iota {dimensions = array<i32: 1>} : vector<9x128xi32>
      %34 = vector.extract_strided_slice %32 {offsets = [0, 0], sizes = [9, 128], strides = [1, 1]} : vector<18x128xf32> to vector<9x128xf32>
      %35 = arith.truncf %34 : vector<9x128xf32> to vector<9x128xbf16>
      %c0_18 = arith.constant 0 : index
      %c0_19 = arith.constant 0 : index
      %c0_20 = arith.constant 0 : index
      %36 = vector.load %arg4[%c0_18, %c0_19, %c0_20] : memref<2x128x256xbf16, #tpu.memory_space<vmem>>, vector<1x128x256xbf16>
      %37 = vector.shape_cast %36 : vector<1x128x256xbf16> to vector<128x256xbf16>
      %cst_21 = arith.constant dense<0.000000e+00> : vector<9x256xf32>
      %38 = tpu.matmul %35, %37, %cst_21 {dimension_numbers = #tpu.dot_dimension_numbers<[1], [0], [0], [1], [0, 0, 1, 1], [], []>} : vector<9x128xbf16>, vector<128x256xbf16>, vector<9x256xf32> -> vector<9x256xf32>
      %c0_22 = arith.constant 0 : index
      %c0_23 = arith.constant 0 : index
      %c0_24 = arith.constant 0 : index
      %39 = vector.load %arg5[%c0_22, %c0_23, %c0_24] : memref<2x1x256xf32, #tpu.memory_space<vmem>>, vector<1x1x256xf32>
      %40 = vector.shape_cast %39 : vector<1x1x256xf32> to vector<1x256xf32>
      %41 = vector.broadcast %40 : vector<1x256xf32> to vector<9x256xf32>
      %42 = arith.addf %38, %41 : vector<9x256xf32>
      %43 = vector.extract_strided_slice %42 {offsets = [0, 0], sizes = [9, 128], strides = [1, 1]} : vector<9x256xf32> to vector<9x128xf32>
      %44 = vector.extract_strided_slice %42 {offsets = [0, 128], sizes = [9, 128], strides = [1, 1]} : vector<9x256xf32> to vector<9x128xf32>
      %c0_i32_25 = arith.constant 0 : i32
      %45 = vector.broadcast %c0_i32_25 : i32 to vector<9x128xi32>
      %46 = arith.cmpi sge, %33, %45 : vector<9x128xi32>
      %c32_i32 = arith.constant 32 : i32
      %47 = vector.broadcast %c32_i32 : i32 to vector<9x128xi32>
      %48 = arith.cmpi slt, %33, %47 : vector<9x128xi32>
      %49 = arith.andi %46, %48 : vector<9x128xi1>
      %cst_26 = arith.constant 0.000000e+00 : f32
      %50 = vector.broadcast %cst_26 : f32 to vector<9x128xf32>
      %51 = arith.select %49, %43, %50 : vector<9x128xi1>, vector<9x128xf32>
      %cst_27 = arith.constant 0.000000e+00 : f32
      %52 = vector.broadcast %cst_27 : f32 to vector<9x128xf32>
      %53 = arith.select %49, %44, %52 : vector<9x128xi1>, vector<9x128xf32>
      %c32_i32_28 = arith.constant 32 : i32
      %54 = vector.broadcast %c32_i32_28 : i32 to vector<9x128xi32>
      %55 = arith.cmpi sge, %33, %54 : vector<9x128xi32>
      %c64_i32 = arith.constant 64 : i32
      %56 = vector.broadcast %c64_i32 : i32 to vector<9x128xi32>
      %57 = arith.cmpi slt, %33, %56 : vector<9x128xi32>
      %58 = arith.andi %55, %57 : vector<9x128xi1>
      %cst_29 = arith.constant 0.000000e+00 : f32
      %59 = vector.broadcast %cst_29 : f32 to vector<9x128xf32>
      %60 = arith.select %58, %43, %59 : vector<9x128xi1>, vector<9x128xf32>
      %cst_30 = arith.constant 0.000000e+00 : f32
      %61 = vector.broadcast %cst_30 : f32 to vector<9x128xf32>
      %62 = arith.select %58, %44, %61 : vector<9x128xi1>, vector<9x128xf32>
      %c64_i32_31 = arith.constant 64 : i32
      %63 = vector.broadcast %c64_i32_31 : i32 to vector<9x128xi32>
      %64 = arith.cmpi sge, %33, %63 : vector<9x128xi32>
      %c96_i32 = arith.constant 96 : i32
      %65 = vector.broadcast %c96_i32 : i32 to vector<9x128xi32>
      %66 = arith.cmpi slt, %33, %65 : vector<9x128xi32>
      %67 = arith.andi %64, %66 : vector<9x128xi1>
      %cst_32 = arith.constant 0.000000e+00 : f32
      %68 = vector.broadcast %cst_32 : f32 to vector<9x128xf32>
      %69 = arith.select %67, %43, %68 : vector<9x128xi1>, vector<9x128xf32>
      %cst_33 = arith.constant 0.000000e+00 : f32
      %70 = vector.broadcast %cst_33 : f32 to vector<9x128xf32>
      %71 = arith.select %67, %44, %70 : vector<9x128xi1>, vector<9x128xf32>
      %c96_i32_34 = arith.constant 96 : i32
      %72 = vector.broadcast %c96_i32_34 : i32 to vector<9x128xi32>
      %73 = arith.cmpi sge, %33, %72 : vector<9x128xi32>
      %c128_i32 = arith.constant 128 : i32
      %74 = vector.broadcast %c128_i32 : i32 to vector<9x128xi32>
      %75 = arith.cmpi slt, %33, %74 : vector<9x128xi32>
      %76 = arith.andi %73, %75 : vector<9x128xi1>
      %cst_35 = arith.constant 0.000000e+00 : f32
      %77 = vector.broadcast %cst_35 : f32 to vector<9x128xf32>
      %78 = arith.select %76, %43, %77 : vector<9x128xi1>, vector<9x128xf32>
      %cst_36 = arith.constant 0.000000e+00 : f32
      %79 = vector.broadcast %cst_36 : f32 to vector<9x128xf32>
      %80 = arith.select %76, %44, %79 : vector<9x128xi1>, vector<9x128xf32>
      %cst_37 = arith.constant 0.000000e+00 : f32
      %81 = vector.broadcast %cst_37 : f32 to vector<28x128xf32>
      %82 = tpu.concatenate %51, %60, %69, %78, %81 in 0 : vector<9x128xf32>, vector<9x128xf32>, vector<9x128xf32>, vector<9x128xf32>, vector<28x128xf32> -> vector<64x128xf32>
      %83 = tpu.concatenate %53, %62, %71, %80, %81 in 0 : vector<9x128xf32>, vector<9x128xf32>, vector<9x128xf32>, vector<9x128xf32>, vector<28x128xf32> -> vector<64x128xf32>
      %84 = tpu.transpose %82, [1, 0] : vector<64x128xf32> -> vector<128x64xf32>
      %85 = arith.truncf %84 : vector<128x64xf32> to vector<128x64xbf16>
      %c0_38 = arith.constant 0 : index
      %c0_39 = arith.constant 0 : index
      %c0_40 = arith.constant 0 : index
      %c0_41 = arith.constant 0 : index
      %86 = vector.load %arg6[%c0_38, %c0_39, %c0_40, %c0_41] : memref<1x2x128x64xbf16, #tpu.memory_space<vmem>>, vector<1x1x128x64xbf16>
      %87 = vector.shape_cast %86 : vector<1x1x128x64xbf16> to vector<128x64xbf16>
      %88 = vector.shape_cast %85 : vector<128x64xbf16> to vector<1x1x128x64xbf16>
      tpu.vector_store %arg6[%c0_38, %c0_39, %c0_40, %c0_41], %88 {strides = array<i32>} : memref<1x2x128x64xbf16, #tpu.memory_space<vmem>>, vector<1x1x128x64xbf16>,
      %89 = arith.truncf %83 : vector<64x128xf32> to vector<64x128xbf16>
      %c0_42 = arith.constant 0 : index
      %c0_43 = arith.constant 0 : index
      %c0_44 = arith.constant 0 : index
      %c0_45 = arith.constant 0 : index
      %90 = vector.load %arg7[%c0_42, %c0_43, %c0_44, %c0_45] : memref<1x2x64x128xbf16, #tpu.memory_space<vmem>>, vector<1x1x64x128xbf16>
      %91 = vector.shape_cast %90 : vector<1x1x64x128xbf16> to vector<64x128xbf16>
      %92 = vector.shape_cast %89 : vector<64x128xbf16> to vector<1x1x64x128xbf16>
      tpu.vector_store %arg7[%c0_42, %c0_43, %c0_44, %c0_45], %92 {strides = array<i32>} : memref<1x2x64x128xbf16, #tpu.memory_space<vmem>>, vector<1x1x64x128xbf16>,
      %93 = vector.extract_strided_slice %32 {offsets = [9, 0], sizes = [9, 128], strides = [1, 1]} : vector<18x128xf32> to vector<9x128xf32>
      %94 = arith.truncf %93 : vector<9x128xf32> to vector<9x128xbf16>
      %c1 = arith.constant 1 : index
      %c0_46 = arith.constant 0 : index
      %c0_47 = arith.constant 0 : index
      %95 = vector.load %arg4[%c1, %c0_46, %c0_47] : memref<2x128x256xbf16, #tpu.memory_space<vmem>>, vector<1x128x256xbf16>
      %96 = vector.shape_cast %95 : vector<1x128x256xbf16> to vector<128x256xbf16>
      %cst_48 = arith.constant dense<0.000000e+00> : vector<9x256xf32>
      %97 = tpu.matmul %94, %96, %cst_48 {dimension_numbers = #tpu.dot_dimension_numbers<[1], [0], [0], [1], [0, 0, 1, 1], [], []>} : vector<9x128xbf16>, vector<128x256xbf16>, vector<9x256xf32> -> vector<9x256xf32>
      %c1_49 = arith.constant 1 : index
      %c0_50 = arith.constant 0 : index
      %c0_51 = arith.constant 0 : index
      %98 = vector.load %arg5[%c1_49, %c0_50, %c0_51] : memref<2x1x256xf32, #tpu.memory_space<vmem>>, vector<1x1x256xf32>
      %99 = vector.shape_cast %98 : vector<1x1x256xf32> to vector<1x256xf32>
      %100 = vector.broadcast %99 : vector<1x256xf32> to vector<9x256xf32>
      %101 = arith.addf %97, %100 : vector<9x256xf32>
      %102 = vector.extract_strided_slice %101 {offsets = [0, 0], sizes = [9, 128], strides = [1, 1]} : vector<9x256xf32> to vector<9x128xf32>
      %103 = vector.extract_strided_slice %101 {offsets = [0, 128], sizes = [9, 128], strides = [1, 1]} : vector<9x256xf32> to vector<9x128xf32>
      %c0_i32_52 = arith.constant 0 : i32
      %104 = vector.broadcast %c0_i32_52 : i32 to vector<9x128xi32>
      %105 = arith.cmpi sge, %33, %104 : vector<9x128xi32>
      %c32_i32_53 = arith.constant 32 : i32
      %106 = vector.broadcast %c32_i32_53 : i32 to vector<9x128xi32>
      %107 = arith.cmpi slt, %33, %106 : vector<9x128xi32>
      %108 = arith.andi %105, %107 : vector<9x128xi1>
      %cst_54 = arith.constant 0.000000e+00 : f32
      %109 = vector.broadcast %cst_54 : f32 to vector<9x128xf32>
      %110 = arith.select %108, %102, %109 : vector<9x128xi1>, vector<9x128xf32>
      %cst_55 = arith.constant 0.000000e+00 : f32
      %111 = vector.broadcast %cst_55 : f32 to vector<9x128xf32>
      %112 = arith.select %108, %103, %111 : vector<9x128xi1>, vector<9x128xf32>
      %c32_i32_56 = arith.constant 32 : i32
      %113 = vector.broadcast %c32_i32_56 : i32 to vector<9x128xi32>
      %114 = arith.cmpi sge, %33, %113 : vector<9x128xi32>
      %c64_i32_57 = arith.constant 64 : i32
      %115 = vector.broadcast %c64_i32_57 : i32 to vector<9x128xi32>
      %116 = arith.cmpi slt, %33, %115 : vector<9x128xi32>
      %117 = arith.andi %114, %116 : vector<9x128xi1>
      %cst_58 = arith.constant 0.000000e+00 : f32
      %118 = vector.broadcast %cst_58 : f32 to vector<9x128xf32>
      %119 = arith.select %117, %102, %118 : vector<9x128xi1>, vector<9x128xf32>
      %cst_59 = arith.constant 0.000000e+00 : f32
      %120 = vector.broadcast %cst_59 : f32 to vector<9x128xf32>
      %121 = arith.select %117, %103, %120 : vector<9x128xi1>, vector<9x128xf32>
      %c64_i32_60 = arith.constant 64 : i32
      %122 = vector.broadcast %c64_i32_60 : i32 to vector<9x128xi32>
      %123 = arith.cmpi sge, %33, %122 : vector<9x128xi32>
      %c96_i32_61 = arith.constant 96 : i32
      %124 = vector.broadcast %c96_i32_61 : i32 to vector<9x128xi32>
      %125 = arith.cmpi slt, %33, %124 : vector<9x128xi32>
      %126 = arith.andi %123, %125 : vector<9x128xi1>
      %cst_62 = arith.constant 0.000000e+00 : f32
      %127 = vector.broadcast %cst_62 : f32 to vector<9x128xf32>
      %128 = arith.select %126, %102, %127 : vector<9x128xi1>, vector<9x128xf32>
      %cst_63 = arith.constant 0.000000e+00 : f32
      %129 = vector.broadcast %cst_63 : f32 to vector<9x128xf32>
      %130 = arith.select %126, %103, %129 : vector<9x128xi1>, vector<9x128xf32>
      %c96_i32_64 = arith.constant 96 : i32
      %131 = vector.broadcast %c96_i32_64 : i32 to vector<9x128xi32>
      %132 = arith.cmpi sge, %33, %131 : vector<9x128xi32>
      %c128_i32_65 = arith.constant 128 : i32
      %133 = vector.broadcast %c128_i32_65 : i32 to vector<9x128xi32>
      %134 = arith.cmpi slt, %33, %133 : vector<9x128xi32>
      %135 = arith.andi %132, %134 : vector<9x128xi1>
      %cst_66 = arith.constant 0.000000e+00 : f32
      %136 = vector.broadcast %cst_66 : f32 to vector<9x128xf32>
      %137 = arith.select %135, %102, %136 : vector<9x128xi1>, vector<9x128xf32>
      %cst_67 = arith.constant 0.000000e+00 : f32
      %138 = vector.broadcast %cst_67 : f32 to vector<9x128xf32>
      %139 = arith.select %135, %103, %138 : vector<9x128xi1>, vector<9x128xf32>
      %cst_68 = arith.constant 0.000000e+00 : f32
      %140 = vector.broadcast %cst_68 : f32 to vector<28x128xf32>
      %141 = tpu.concatenate %110, %119, %128, %137, %140 in 0 : vector<9x128xf32>, vector<9x128xf32>, vector<9x128xf32>, vector<9x128xf32>, vector<28x128xf32> -> vector<64x128xf32>
      %142 = tpu.concatenate %112, %121, %130, %139, %140 in 0 : vector<9x128xf32>, vector<9x128xf32>, vector<9x128xf32>, vector<9x128xf32>, vector<28x128xf32> -> vector<64x128xf32>
      %143 = tpu.transpose %141, [1, 0] : vector<64x128xf32> -> vector<128x64xf32>
      %144 = arith.truncf %143 : vector<128x64xf32> to vector<128x64xbf16>
      %c0_69 = arith.constant 0 : index
      %c1_70 = arith.constant 1 : index
      %c0_71 = arith.constant 0 : index
      %c0_72 = arith.constant 0 : index
      %145 = vector.load %arg6[%c0_69, %c1_70, %c0_71, %c0_72] : memref<1x2x128x64xbf16, #tpu.memory_space<vmem>>, vector<1x1x128x64xbf16>
      %146 = vector.shape_cast %145 : vector<1x1x128x64xbf16> to vector<128x64xbf16>
      %147 = vector.shape_cast %144 : vector<128x64xbf16> to vector<1x1x128x64xbf16>
      tpu.vector_store %arg6[%c0_69, %c1_70, %c0_71, %c0_72], %147 {strides = array<i32>} : memref<1x2x128x64xbf16, #tpu.memory_space<vmem>>, vector<1x1x128x64xbf16>,
      %148 = arith.truncf %142 : vector<64x128xf32> to vector<64x128xbf16>
      %c0_73 = arith.constant 0 : index
      %c1_74 = arith.constant 1 : index
      %c0_75 = arith.constant 0 : index
      %c0_76 = arith.constant 0 : index
      %149 = vector.load %arg7[%c0_73, %c1_74, %c0_75, %c0_76] : memref<1x2x64x128xbf16, #tpu.memory_space<vmem>>, vector<1x1x64x128xbf16>
      %150 = vector.shape_cast %149 : vector<1x1x64x128xbf16> to vector<64x128xbf16>
      %151 = vector.shape_cast %148 : vector<64x128xbf16> to vector<1x1x64x128xbf16>
      tpu.vector_store %arg7[%c0_73, %c1_74, %c0_75, %c0_76], %151 {strides = array<i32>} : memref<1x2x64x128xbf16, #tpu.memory_space<vmem>>, vector<1x1x64x128xbf16>,
    } else {
    }
    return
  }
  func.func @transform_0(%arg0: i32, %arg1: i32) -> (i32, i32, i32) {
    %c0_i32 = arith.constant 0 : i32
    %c0_i32_0 = arith.constant 0 : i32
    return %arg0, %arg1, %c0_i32 : i32, i32, i32
  }
  func.func @transform_1(%arg0: i32, %arg1: i32) -> (i32, i32) {
    %c0_i32 = arith.constant 0 : i32
    %c0_i32_0 = arith.constant 0 : i32
    return %c0_i32, %arg1 : i32, i32
  }
  func.func @transform_2(%arg0: i32, %arg1: i32) -> (i32, i32, i32) {
    %c0_i32 = arith.constant 0 : i32
    %c0_i32_0 = arith.constant 0 : i32
    %c0_i32_1 = arith.constant 0 : i32
    %c0_i32_2 = arith.constant 0 : i32
    return %c0_i32, %c0_i32_0, %c0_i32_1 : i32, i32, i32
  }
  func.func @transform_3(%arg0: i32, %arg1: i32) -> (i32, i32, i32) {
    %c0_i32 = arith.constant 0 : i32
    %c0_i32_0 = arith.constant 0 : i32
    %c0_i32_1 = arith.constant 0 : i32
    %c0_i32_2 = arith.constant 0 : i32
    return %c0_i32, %c0_i32_0, %c0_i32_1 : i32, i32, i32
  }
  func.func @transform_4(%arg0: i32, %arg1: i32) -> (i32, i32, i32, i32) {
    %c0_i32 = arith.constant 0 : i32
    %c0_i32_0 = arith.constant 0 : i32
    %c0_i32_1 = arith.constant 0 : i32
    %c0_i32_2 = arith.constant 0 : i32
    return %arg0, %c0_i32, %c0_i32_0, %c0_i32_1 : i32, i32, i32, i32
  }
  func.func @transform_5(%arg0: i32, %arg1: i32) -> (i32, i32, i32, i32) {
    %c0_i32 = arith.constant 0 : i32
    %c0_i32_0 = arith.constant 0 : i32
    %c0_i32_1 = arith.constant 0 : i32
    %c0_i32_2 = arith.constant 0 : i32
    return %arg0, %c0_i32, %c0_i32_0, %c0_i32_1 : i32, i32, i32, i32
  }
}

module attributes {stable_mosaic.version = 11 : i64} {
  func.func @_main_kernel(%arg0: i32, %arg1: i32, %arg2: memref<1x128x128xf32, #tpu.memory_space<vmem>>, %arg3: memref<1x2x128x64xbf16, #tpu.memory_space<vmem>>, %arg4: memref<1x2x64x128xbf16, #tpu.memory_space<vmem>>, %arg5: memref<128x256xbf16, #tpu.memory_space<vmem>>, %arg6: memref<1x256xf32, #tpu.memory_space<vmem>>, %arg7: memref<128x128xbf16, #tpu.memory_space<vmem>>, %arg8: memref<128x128xbf16, #tpu.memory_space<vmem>>, %arg9: memref<1x128xf32, #tpu.memory_space<vmem>>, %arg10: memref<128x512xbf16, #tpu.memory_space<vmem>>, %arg11: memref<1x512xf32, #tpu.memory_space<vmem>>, %arg12: memref<512x128xbf16, #tpu.memory_space<vmem>>, %arg13: memref<1x128xf32, #tpu.memory_space<vmem>>, %arg14: memref<1x128x128xf32, #tpu.memory_space<vmem>>) attributes {dimension_semantics = [#tpu.dimension_semantics<parallel>, #tpu.dimension_semantics<parallel>], iteration_bounds = array<i64: 2, 2>, scalar_prefetch = 0 : i64, scratch_operands = 0 : i64, tpu.core_type = #tpu.core_type<tc>, window_params = [{transform_indices = @transform_0, window_bounds = array<i64: 1, 128, 128>}, {transform_indices = @transform_1, window_bounds = array<i64: 1, 2, 128, 64>}, {transform_indices = @transform_2, window_bounds = array<i64: 1, 2, 64, 128>}, {pipeline_mode = #tpu.pipeline_mode<synchronous>, transform_indices = @transform_3, window_bounds = array<i64: 128, 256>}, {pipeline_mode = #tpu.pipeline_mode<synchronous>, transform_indices = @transform_4, window_bounds = array<i64: 1, 256>}, {pipeline_mode = #tpu.pipeline_mode<synchronous>, transform_indices = @transform_5, window_bounds = array<i64: 128, 128>}, {pipeline_mode = #tpu.pipeline_mode<synchronous>, transform_indices = @transform_6, window_bounds = array<i64: 128, 128>}, {pipeline_mode = #tpu.pipeline_mode<synchronous>, transform_indices = @transform_7, window_bounds = array<i64: 1, 128>}, {pipeline_mode = #tpu.pipeline_mode<synchronous>, transform_indices = @transform_8, window_bounds = array<i64: 128, 512>}, {pipeline_mode = #tpu.pipeline_mode<synchronous>, transform_indices = @transform_9, window_bounds = array<i64: 1, 512>}, {pipeline_mode = #tpu.pipeline_mode<synchronous>, transform_indices = @transform_10, window_bounds = array<i64: 512, 128>}, {pipeline_mode = #tpu.pipeline_mode<synchronous>, transform_indices = @transform_11, window_bounds = array<i64: 1, 128>}, {transform_indices = @transform_12, window_bounds = array<i64: 1, 128, 128>}]} {
    %c0 = arith.constant 0 : index
    %c0_0 = arith.constant 0 : index
    %c0_1 = arith.constant 0 : index
    %0 = vector.load %arg2[%c0, %c0_0, %c0_1] : memref<1x128x128xf32, #tpu.memory_space<vmem>>, vector<1x128x128xf32>
    %1 = vector.shape_cast %0 : vector<1x128x128xf32> to vector<128x128xf32>
    %2 = tpu.iota {dimensions = array<i32: 1>} : vector<128x64xi32>
    %3 = tpu.iota {dimensions = array<i32: 1>} : vector<128x128xi32>
    %cst = arith.constant dense<0.000000e+00> : vector<128xf32>
    %4 = vector.multi_reduction <add>, %1, %cst [1] : vector<128x128xf32> to vector<128xf32>
    %5 = vector.shape_cast %4 : vector<128xf32> to vector<128x1xf32>
    %cst_2 = arith.constant 1.280000e+02 : f32
    %6 = vector.broadcast %cst_2 : f32 to vector<128x1xf32>
    %7 = arith.divf %5, %6 : vector<128x1xf32>
    %8 = arith.mulf %1, %1 : vector<128x128xf32>
    %cst_3 = arith.constant dense<0.000000e+00> : vector<128xf32>
    %9 = vector.multi_reduction <add>, %8, %cst_3 [1] : vector<128x128xf32> to vector<128xf32>
    %10 = vector.shape_cast %9 : vector<128xf32> to vector<128x1xf32>
    %cst_4 = arith.constant 1.280000e+02 : f32
    %11 = vector.broadcast %cst_4 : f32 to vector<128x1xf32>
    %12 = arith.divf %10, %11 : vector<128x1xf32>
    %13 = arith.mulf %7, %7 : vector<128x1xf32>
    %14 = arith.subf %12, %13 : vector<128x1xf32>
    %15 = vector.broadcast %7 : vector<128x1xf32> to vector<128x128xf32>
    %16 = arith.subf %1, %15 : vector<128x128xf32>
    %cst_5 = arith.constant 9.99999974E-6 : f32
    %17 = vector.broadcast %cst_5 : f32 to vector<128x1xf32>
    %18 = arith.addf %14, %17 : vector<128x1xf32>
    %19 = math.rsqrt %18 : vector<128x1xf32>
    %20 = vector.broadcast %19 : vector<128x1xf32> to vector<128x128xf32>
    %21 = arith.mulf %16, %20 : vector<128x128xf32>
    %22 = arith.truncf %21 : vector<128x128xf32> to vector<128x128xbf16>
    %c0_6 = arith.constant 0 : index
    %c0_7 = arith.constant 0 : index
    %23 = vector.load %arg5[%c0_6, %c0_7] : memref<128x256xbf16, #tpu.memory_space<vmem>>, vector<128x256xbf16>
    %cst_8 = arith.constant dense<0.000000e+00> : vector<128x256xf32>
    %24 = tpu.matmul %22, %23, %cst_8 {dimension_numbers = #tpu.dot_dimension_numbers<[1], [0], [0], [1], [0, 0, 1, 1], [], []>} : vector<128x128xbf16>, vector<128x256xbf16>, vector<128x256xf32> -> vector<128x256xf32>
    %c0_9 = arith.constant 0 : index
    %c0_10 = arith.constant 0 : index
    %25 = vector.load %arg6[%c0_9, %c0_10] : memref<1x256xf32, #tpu.memory_space<vmem>>, vector<1x256xf32>
    %26 = vector.broadcast %25 : vector<1x256xf32> to vector<128x256xf32>
    %27 = arith.addf %24, %26 : vector<128x256xf32>
    %28 = vector.extract_strided_slice %27 {offsets = [0, 0], sizes = [128, 128], strides = [1, 1]} : vector<128x256xf32> to vector<128x128xf32>
    %c0_11 = arith.constant 0 : index
    %c0_12 = arith.constant 0 : index
    %c0_13 = arith.constant 0 : index
    %c0_14 = arith.constant 0 : index
    %29 = vector.load %arg3[%c0_11, %c0_12, %c0_13, %c0_14] : memref<1x2x128x64xbf16, #tpu.memory_space<vmem>>, vector<1x1x128x64xbf16>
    %30 = vector.shape_cast %29 : vector<1x1x128x64xbf16> to vector<128x64xbf16>
    %c0_15 = arith.constant 0 : index
    %c0_16 = arith.constant 0 : index
    %c0_17 = arith.constant 0 : index
    %c0_18 = arith.constant 0 : index
    %31 = vector.load %arg4[%c0_15, %c0_16, %c0_17, %c0_18] : memref<1x2x64x128xbf16, #tpu.memory_space<vmem>>, vector<1x1x64x128xbf16>
    %32 = vector.shape_cast %31 : vector<1x1x64x128xbf16> to vector<64x128xbf16>
    %33 = arith.truncf %28 : vector<128x128xf32> to vector<128x128xbf16>
    %cst_19 = arith.constant dense<0.000000e+00> : vector<128x64xf32>
    %34 = tpu.matmul %33, %30, %cst_19 {dimension_numbers = #tpu.dot_dimension_numbers<[1], [0], [0], [1], [0, 0, 1, 1], [], []>} : vector<128x128xbf16>, vector<128x64xbf16>, vector<128x64xf32> -> vector<128x64xf32>
    %cst_20 = arith.constant 0.000000e+00 : f32
    %35 = vector.broadcast %cst_20 : f32 to vector<128x64xf32>
    %c0_i32 = arith.constant 0 : i32
    %36 = vector.broadcast %c0_i32 : i32 to vector<128x64xi32>
    %37 = arith.cmpi sge, %2, %36 : vector<128x64xi32>
    %c9_i32 = arith.constant 9 : i32
    %38 = vector.broadcast %c9_i32 : i32 to vector<128x64xi32>
    %39 = arith.cmpi slt, %2, %38 : vector<128x64xi32>
    %40 = arith.andi %37, %39 : vector<128x64xi1>
    %cst_21 = arith.constant 0xFF800000 : f32
    %41 = vector.broadcast %cst_21 : f32 to vector<128x64xf32>
    %42 = arith.select %40, %34, %41 : vector<128x64xi1>, vector<128x64xf32>
    %cst_22 = arith.constant dense<0xFF800000> : vector<128xf32>
    %43 = vector.multi_reduction <maximumf>, %42, %cst_22 [1] : vector<128x64xf32> to vector<128xf32>
    %44 = vector.shape_cast %43 : vector<128xf32> to vector<128x1xf32>
    %cst_23 = arith.constant 0.000000e+00 : f32
    %45 = vector.shape_cast %44 : vector<128x1xf32> to vector<128x1xf32>
    %46 = vector.broadcast %45 : vector<128x1xf32> to vector<128x64xf32>
    %47 = vector.broadcast %cst_23 : f32 to vector<128x64xf32>
    %48 = arith.select %40, %46, %47 : vector<128x64xi1>, vector<128x64xf32>
    %49 = arith.addf %35, %48 : vector<128x64xf32>
    %c9_i32_24 = arith.constant 9 : i32
    %50 = vector.broadcast %c9_i32_24 : i32 to vector<128x64xi32>
    %51 = arith.cmpi sge, %2, %50 : vector<128x64xi32>
    %c18_i32 = arith.constant 18 : i32
    %52 = vector.broadcast %c18_i32 : i32 to vector<128x64xi32>
    %53 = arith.cmpi slt, %2, %52 : vector<128x64xi32>
    %54 = arith.andi %51, %53 : vector<128x64xi1>
    %cst_25 = arith.constant 0xFF800000 : f32
    %55 = vector.broadcast %cst_25 : f32 to vector<128x64xf32>
    %56 = arith.select %54, %34, %55 : vector<128x64xi1>, vector<128x64xf32>
    %cst_26 = arith.constant dense<0xFF800000> : vector<128xf32>
    %57 = vector.multi_reduction <maximumf>, %56, %cst_26 [1] : vector<128x64xf32> to vector<128xf32>
    %58 = vector.shape_cast %57 : vector<128xf32> to vector<128x1xf32>
    %cst_27 = arith.constant 0.000000e+00 : f32
    %59 = vector.shape_cast %58 : vector<128x1xf32> to vector<128x1xf32>
    %60 = vector.broadcast %59 : vector<128x1xf32> to vector<128x64xf32>
    %61 = vector.broadcast %cst_27 : f32 to vector<128x64xf32>
    %62 = arith.select %54, %60, %61 : vector<128x64xi1>, vector<128x64xf32>
    %63 = arith.addf %49, %62 : vector<128x64xf32>
    %c18_i32_28 = arith.constant 18 : i32
    %64 = vector.broadcast %c18_i32_28 : i32 to vector<128x64xi32>
    %65 = arith.cmpi sge, %2, %64 : vector<128x64xi32>
    %c27_i32 = arith.constant 27 : i32
    %66 = vector.broadcast %c27_i32 : i32 to vector<128x64xi32>
    %67 = arith.cmpi slt, %2, %66 : vector<128x64xi32>
    %68 = arith.andi %65, %67 : vector<128x64xi1>
    %cst_29 = arith.constant 0xFF800000 : f32
    %69 = vector.broadcast %cst_29 : f32 to vector<128x64xf32>
    %70 = arith.select %68, %34, %69 : vector<128x64xi1>, vector<128x64xf32>
    %cst_30 = arith.constant dense<0xFF800000> : vector<128xf32>
    %71 = vector.multi_reduction <maximumf>, %70, %cst_30 [1] : vector<128x64xf32> to vector<128xf32>
    %72 = vector.shape_cast %71 : vector<128xf32> to vector<128x1xf32>
    %cst_31 = arith.constant 0.000000e+00 : f32
    %73 = vector.shape_cast %72 : vector<128x1xf32> to vector<128x1xf32>
    %74 = vector.broadcast %73 : vector<128x1xf32> to vector<128x64xf32>
    %75 = vector.broadcast %cst_31 : f32 to vector<128x64xf32>
    %76 = arith.select %68, %74, %75 : vector<128x64xi1>, vector<128x64xf32>
    %77 = arith.addf %63, %76 : vector<128x64xf32>
    %c27_i32_32 = arith.constant 27 : i32
    %78 = vector.broadcast %c27_i32_32 : i32 to vector<128x64xi32>
    %79 = arith.cmpi sge, %2, %78 : vector<128x64xi32>
    %c36_i32 = arith.constant 36 : i32
    %80 = vector.broadcast %c36_i32 : i32 to vector<128x64xi32>
    %81 = arith.cmpi slt, %2, %80 : vector<128x64xi32>
    %82 = arith.andi %79, %81 : vector<128x64xi1>
    %cst_33 = arith.constant 0xFF800000 : f32
    %83 = vector.broadcast %cst_33 : f32 to vector<128x64xf32>
    %84 = arith.select %82, %34, %83 : vector<128x64xi1>, vector<128x64xf32>
    %cst_34 = arith.constant dense<0xFF800000> : vector<128xf32>
    %85 = vector.multi_reduction <maximumf>, %84, %cst_34 [1] : vector<128x64xf32> to vector<128xf32>
    %86 = vector.shape_cast %85 : vector<128xf32> to vector<128x1xf32>
    %cst_35 = arith.constant 0.000000e+00 : f32
    %87 = vector.shape_cast %86 : vector<128x1xf32> to vector<128x1xf32>
    %88 = vector.broadcast %87 : vector<128x1xf32> to vector<128x64xf32>
    %89 = vector.broadcast %cst_35 : f32 to vector<128x64xf32>
    %90 = arith.select %82, %88, %89 : vector<128x64xi1>, vector<128x64xf32>
    %91 = arith.addf %77, %90 : vector<128x64xf32>
    %92 = arith.subf %34, %91 : vector<128x64xf32>
    %93 = math.exp %92 : vector<128x64xf32>
    %94 = arith.truncf %93 : vector<128x64xf32> to vector<128x64xbf16>
    %cst_36 = arith.constant dense<0.000000e+00> : vector<128x128xf32>
    %95 = tpu.matmul %94, %32, %cst_36 {dimension_numbers = #tpu.dot_dimension_numbers<[1], [0], [0], [1], [0, 0, 1, 1], [], []>} : vector<128x64xbf16>, vector<64x128xbf16>, vector<128x128xf32> -> vector<128x128xf32>
    %cst_37 = arith.constant 0.000000e+00 : f32
    %96 = vector.broadcast %cst_37 : f32 to vector<128x128xf32>
    %c0_i32_38 = arith.constant 0 : i32
    %97 = vector.broadcast %c0_i32_38 : i32 to vector<128x64xi32>
    %98 = arith.cmpi sge, %2, %97 : vector<128x64xi32>
    %c9_i32_39 = arith.constant 9 : i32
    %99 = vector.broadcast %c9_i32_39 : i32 to vector<128x64xi32>
    %100 = arith.cmpi slt, %2, %99 : vector<128x64xi32>
    %101 = arith.andi %98, %100 : vector<128x64xi1>
    %cst_40 = arith.constant 0.000000e+00 : f32
    %102 = vector.broadcast %cst_40 : f32 to vector<128x64xf32>
    %103 = arith.select %101, %93, %102 : vector<128x64xi1>, vector<128x64xf32>
    %cst_41 = arith.constant dense<0.000000e+00> : vector<128xf32>
    %104 = vector.multi_reduction <add>, %103, %cst_41 [1] : vector<128x64xf32> to vector<128xf32>
    %105 = vector.shape_cast %104 : vector<128xf32> to vector<128x1xf32>
    %c0_i32_42 = arith.constant 0 : i32
    %106 = vector.broadcast %c0_i32_42 : i32 to vector<128x128xi32>
    %107 = arith.cmpi sge, %3, %106 : vector<128x128xi32>
    %c32_i32 = arith.constant 32 : i32
    %108 = vector.broadcast %c32_i32 : i32 to vector<128x128xi32>
    %109 = arith.cmpi slt, %3, %108 : vector<128x128xi32>
    %110 = arith.andi %107, %109 : vector<128x128xi1>
    %cst_43 = arith.constant 0.000000e+00 : f32
    %111 = vector.broadcast %cst_43 : f32 to vector<128x128xf32>
    %112 = arith.select %110, %95, %111 : vector<128x128xi1>, vector<128x128xf32>
    %113 = tpu.reciprocal %105 : vector<128x1xf32> -> vector<128x1xf32>
    %114 = vector.broadcast %113 : vector<128x1xf32> to vector<128x128xf32>
    %115 = arith.mulf %112, %114 : vector<128x128xf32>
    %116 = arith.addf %96, %115 : vector<128x128xf32>
    %c9_i32_44 = arith.constant 9 : i32
    %117 = vector.broadcast %c9_i32_44 : i32 to vector<128x64xi32>
    %118 = arith.cmpi sge, %2, %117 : vector<128x64xi32>
    %c18_i32_45 = arith.constant 18 : i32
    %119 = vector.broadcast %c18_i32_45 : i32 to vector<128x64xi32>
    %120 = arith.cmpi slt, %2, %119 : vector<128x64xi32>
    %121 = arith.andi %118, %120 : vector<128x64xi1>
    %cst_46 = arith.constant 0.000000e+00 : f32
    %122 = vector.broadcast %cst_46 : f32 to vector<128x64xf32>
    %123 = arith.select %121, %93, %122 : vector<128x64xi1>, vector<128x64xf32>
    %cst_47 = arith.constant dense<0.000000e+00> : vector<128xf32>
    %124 = vector.multi_reduction <add>, %123, %cst_47 [1] : vector<128x64xf32> to vector<128xf32>
    %125 = vector.shape_cast %124 : vector<128xf32> to vector<128x1xf32>
    %c32_i32_48 = arith.constant 32 : i32
    %126 = vector.broadcast %c32_i32_48 : i32 to vector<128x128xi32>
    %127 = arith.cmpi sge, %3, %126 : vector<128x128xi32>
    %c64_i32 = arith.constant 64 : i32
    %128 = vector.broadcast %c64_i32 : i32 to vector<128x128xi32>
    %129 = arith.cmpi slt, %3, %128 : vector<128x128xi32>
    %130 = arith.andi %127, %129 : vector<128x128xi1>
    %cst_49 = arith.constant 0.000000e+00 : f32
    %131 = vector.broadcast %cst_49 : f32 to vector<128x128xf32>
    %132 = arith.select %130, %95, %131 : vector<128x128xi1>, vector<128x128xf32>
    %133 = tpu.reciprocal %125 : vector<128x1xf32> -> vector<128x1xf32>
    %134 = vector.broadcast %133 : vector<128x1xf32> to vector<128x128xf32>
    %135 = arith.mulf %132, %134 : vector<128x128xf32>
    %136 = arith.addf %116, %135 : vector<128x128xf32>
    %c18_i32_50 = arith.constant 18 : i32
    %137 = vector.broadcast %c18_i32_50 : i32 to vector<128x64xi32>
    %138 = arith.cmpi sge, %2, %137 : vector<128x64xi32>
    %c27_i32_51 = arith.constant 27 : i32
    %139 = vector.broadcast %c27_i32_51 : i32 to vector<128x64xi32>
    %140 = arith.cmpi slt, %2, %139 : vector<128x64xi32>
    %141 = arith.andi %138, %140 : vector<128x64xi1>
    %cst_52 = arith.constant 0.000000e+00 : f32
    %142 = vector.broadcast %cst_52 : f32 to vector<128x64xf32>
    %143 = arith.select %141, %93, %142 : vector<128x64xi1>, vector<128x64xf32>
    %cst_53 = arith.constant dense<0.000000e+00> : vector<128xf32>
    %144 = vector.multi_reduction <add>, %143, %cst_53 [1] : vector<128x64xf32> to vector<128xf32>
    %145 = vector.shape_cast %144 : vector<128xf32> to vector<128x1xf32>
    %c64_i32_54 = arith.constant 64 : i32
    %146 = vector.broadcast %c64_i32_54 : i32 to vector<128x128xi32>
    %147 = arith.cmpi sge, %3, %146 : vector<128x128xi32>
    %c96_i32 = arith.constant 96 : i32
    %148 = vector.broadcast %c96_i32 : i32 to vector<128x128xi32>
    %149 = arith.cmpi slt, %3, %148 : vector<128x128xi32>
    %150 = arith.andi %147, %149 : vector<128x128xi1>
    %cst_55 = arith.constant 0.000000e+00 : f32
    %151 = vector.broadcast %cst_55 : f32 to vector<128x128xf32>
    %152 = arith.select %150, %95, %151 : vector<128x128xi1>, vector<128x128xf32>
    %153 = tpu.reciprocal %145 : vector<128x1xf32> -> vector<128x1xf32>
    %154 = vector.broadcast %153 : vector<128x1xf32> to vector<128x128xf32>
    %155 = arith.mulf %152, %154 : vector<128x128xf32>
    %156 = arith.addf %136, %155 : vector<128x128xf32>
    %c27_i32_56 = arith.constant 27 : i32
    %157 = vector.broadcast %c27_i32_56 : i32 to vector<128x64xi32>
    %158 = arith.cmpi sge, %2, %157 : vector<128x64xi32>
    %c36_i32_57 = arith.constant 36 : i32
    %159 = vector.broadcast %c36_i32_57 : i32 to vector<128x64xi32>
    %160 = arith.cmpi slt, %2, %159 : vector<128x64xi32>
    %161 = arith.andi %158, %160 : vector<128x64xi1>
    %cst_58 = arith.constant 0.000000e+00 : f32
    %162 = vector.broadcast %cst_58 : f32 to vector<128x64xf32>
    %163 = arith.select %161, %93, %162 : vector<128x64xi1>, vector<128x64xf32>
    %cst_59 = arith.constant dense<0.000000e+00> : vector<128xf32>
    %164 = vector.multi_reduction <add>, %163, %cst_59 [1] : vector<128x64xf32> to vector<128xf32>
    %165 = vector.shape_cast %164 : vector<128xf32> to vector<128x1xf32>
    %c96_i32_60 = arith.constant 96 : i32
    %166 = vector.broadcast %c96_i32_60 : i32 to vector<128x128xi32>
    %167 = arith.cmpi sge, %3, %166 : vector<128x128xi32>
    %c128_i32 = arith.constant 128 : i32
    %168 = vector.broadcast %c128_i32 : i32 to vector<128x128xi32>
    %169 = arith.cmpi slt, %3, %168 : vector<128x128xi32>
    %170 = arith.andi %167, %169 : vector<128x128xi1>
    %cst_61 = arith.constant 0.000000e+00 : f32
    %171 = vector.broadcast %cst_61 : f32 to vector<128x128xf32>
    %172 = arith.select %170, %95, %171 : vector<128x128xi1>, vector<128x128xf32>
    %173 = tpu.reciprocal %165 : vector<128x1xf32> -> vector<128x1xf32>
    %174 = vector.broadcast %173 : vector<128x1xf32> to vector<128x128xf32>
    %175 = arith.mulf %172, %174 : vector<128x128xf32>
    %176 = arith.addf %156, %175 : vector<128x128xf32>
    %177 = arith.addf %1, %176 : vector<128x128xf32>
    %178 = vector.extract_strided_slice %27 {offsets = [0, 128], sizes = [128, 128], strides = [1, 1]} : vector<128x256xf32> to vector<128x128xf32>
    %c0_62 = arith.constant 0 : index
    %c1 = arith.constant 1 : index
    %c0_63 = arith.constant 0 : index
    %c0_64 = arith.constant 0 : index
    %179 = vector.load %arg3[%c0_62, %c1, %c0_63, %c0_64] : memref<1x2x128x64xbf16, #tpu.memory_space<vmem>>, vector<1x1x128x64xbf16>
    %180 = vector.shape_cast %179 : vector<1x1x128x64xbf16> to vector<128x64xbf16>
    %c0_65 = arith.constant 0 : index
    %c1_66 = arith.constant 1 : index
    %c0_67 = arith.constant 0 : index
    %c0_68 = arith.constant 0 : index
    %181 = vector.load %arg4[%c0_65, %c1_66, %c0_67, %c0_68] : memref<1x2x64x128xbf16, #tpu.memory_space<vmem>>, vector<1x1x64x128xbf16>
    %182 = vector.shape_cast %181 : vector<1x1x64x128xbf16> to vector<64x128xbf16>
    %183 = arith.truncf %178 : vector<128x128xf32> to vector<128x128xbf16>
    %cst_69 = arith.constant dense<0.000000e+00> : vector<128x64xf32>
    %184 = tpu.matmul %183, %180, %cst_69 {dimension_numbers = #tpu.dot_dimension_numbers<[1], [0], [0], [1], [0, 0, 1, 1], [], []>} : vector<128x128xbf16>, vector<128x64xbf16>, vector<128x64xf32> -> vector<128x64xf32>
    %cst_70 = arith.constant 0.000000e+00 : f32
    %185 = vector.broadcast %cst_70 : f32 to vector<128x64xf32>
    %c0_i32_71 = arith.constant 0 : i32
    %186 = vector.broadcast %c0_i32_71 : i32 to vector<128x64xi32>
    %187 = arith.cmpi sge, %2, %186 : vector<128x64xi32>
    %c9_i32_72 = arith.constant 9 : i32
    %188 = vector.broadcast %c9_i32_72 : i32 to vector<128x64xi32>
    %189 = arith.cmpi slt, %2, %188 : vector<128x64xi32>
    %190 = arith.andi %187, %189 : vector<128x64xi1>
    %cst_73 = arith.constant 0xFF800000 : f32
    %191 = vector.broadcast %cst_73 : f32 to vector<128x64xf32>
    %192 = arith.select %190, %184, %191 : vector<128x64xi1>, vector<128x64xf32>
    %cst_74 = arith.constant dense<0xFF800000> : vector<128xf32>
    %193 = vector.multi_reduction <maximumf>, %192, %cst_74 [1] : vector<128x64xf32> to vector<128xf32>
    %194 = vector.shape_cast %193 : vector<128xf32> to vector<128x1xf32>
    %cst_75 = arith.constant 0.000000e+00 : f32
    %195 = vector.shape_cast %194 : vector<128x1xf32> to vector<128x1xf32>
    %196 = vector.broadcast %195 : vector<128x1xf32> to vector<128x64xf32>
    %197 = vector.broadcast %cst_75 : f32 to vector<128x64xf32>
    %198 = arith.select %190, %196, %197 : vector<128x64xi1>, vector<128x64xf32>
    %199 = arith.addf %185, %198 : vector<128x64xf32>
    %c9_i32_76 = arith.constant 9 : i32
    %200 = vector.broadcast %c9_i32_76 : i32 to vector<128x64xi32>
    %201 = arith.cmpi sge, %2, %200 : vector<128x64xi32>
    %c18_i32_77 = arith.constant 18 : i32
    %202 = vector.broadcast %c18_i32_77 : i32 to vector<128x64xi32>
    %203 = arith.cmpi slt, %2, %202 : vector<128x64xi32>
    %204 = arith.andi %201, %203 : vector<128x64xi1>
    %cst_78 = arith.constant 0xFF800000 : f32
    %205 = vector.broadcast %cst_78 : f32 to vector<128x64xf32>
    %206 = arith.select %204, %184, %205 : vector<128x64xi1>, vector<128x64xf32>
    %cst_79 = arith.constant dense<0xFF800000> : vector<128xf32>
    %207 = vector.multi_reduction <maximumf>, %206, %cst_79 [1] : vector<128x64xf32> to vector<128xf32>
    %208 = vector.shape_cast %207 : vector<128xf32> to vector<128x1xf32>
    %cst_80 = arith.constant 0.000000e+00 : f32
    %209 = vector.shape_cast %208 : vector<128x1xf32> to vector<128x1xf32>
    %210 = vector.broadcast %209 : vector<128x1xf32> to vector<128x64xf32>
    %211 = vector.broadcast %cst_80 : f32 to vector<128x64xf32>
    %212 = arith.select %204, %210, %211 : vector<128x64xi1>, vector<128x64xf32>
    %213 = arith.addf %199, %212 : vector<128x64xf32>
    %c18_i32_81 = arith.constant 18 : i32
    %214 = vector.broadcast %c18_i32_81 : i32 to vector<128x64xi32>
    %215 = arith.cmpi sge, %2, %214 : vector<128x64xi32>
    %c27_i32_82 = arith.constant 27 : i32
    %216 = vector.broadcast %c27_i32_82 : i32 to vector<128x64xi32>
    %217 = arith.cmpi slt, %2, %216 : vector<128x64xi32>
    %218 = arith.andi %215, %217 : vector<128x64xi1>
    %cst_83 = arith.constant 0xFF800000 : f32
    %219 = vector.broadcast %cst_83 : f32 to vector<128x64xf32>
    %220 = arith.select %218, %184, %219 : vector<128x64xi1>, vector<128x64xf32>
    %cst_84 = arith.constant dense<0xFF800000> : vector<128xf32>
    %221 = vector.multi_reduction <maximumf>, %220, %cst_84 [1] : vector<128x64xf32> to vector<128xf32>
    %222 = vector.shape_cast %221 : vector<128xf32> to vector<128x1xf32>
    %cst_85 = arith.constant 0.000000e+00 : f32
    %223 = vector.shape_cast %222 : vector<128x1xf32> to vector<128x1xf32>
    %224 = vector.broadcast %223 : vector<128x1xf32> to vector<128x64xf32>
    %225 = vector.broadcast %cst_85 : f32 to vector<128x64xf32>
    %226 = arith.select %218, %224, %225 : vector<128x64xi1>, vector<128x64xf32>
    %227 = arith.addf %213, %226 : vector<128x64xf32>
    %c27_i32_86 = arith.constant 27 : i32
    %228 = vector.broadcast %c27_i32_86 : i32 to vector<128x64xi32>
    %229 = arith.cmpi sge, %2, %228 : vector<128x64xi32>
    %c36_i32_87 = arith.constant 36 : i32
    %230 = vector.broadcast %c36_i32_87 : i32 to vector<128x64xi32>
    %231 = arith.cmpi slt, %2, %230 : vector<128x64xi32>
    %232 = arith.andi %229, %231 : vector<128x64xi1>
    %cst_88 = arith.constant 0xFF800000 : f32
    %233 = vector.broadcast %cst_88 : f32 to vector<128x64xf32>
    %234 = arith.select %232, %184, %233 : vector<128x64xi1>, vector<128x64xf32>
    %cst_89 = arith.constant dense<0xFF800000> : vector<128xf32>
    %235 = vector.multi_reduction <maximumf>, %234, %cst_89 [1] : vector<128x64xf32> to vector<128xf32>
    %236 = vector.shape_cast %235 : vector<128xf32> to vector<128x1xf32>
    %cst_90 = arith.constant 0.000000e+00 : f32
    %237 = vector.shape_cast %236 : vector<128x1xf32> to vector<128x1xf32>
    %238 = vector.broadcast %237 : vector<128x1xf32> to vector<128x64xf32>
    %239 = vector.broadcast %cst_90 : f32 to vector<128x64xf32>
    %240 = arith.select %232, %238, %239 : vector<128x64xi1>, vector<128x64xf32>
    %241 = arith.addf %227, %240 : vector<128x64xf32>
    %242 = arith.subf %184, %241 : vector<128x64xf32>
    %243 = math.exp %242 : vector<128x64xf32>
    %244 = arith.truncf %243 : vector<128x64xf32> to vector<128x64xbf16>
    %cst_91 = arith.constant dense<0.000000e+00> : vector<128x128xf32>
    %245 = tpu.matmul %244, %182, %cst_91 {dimension_numbers = #tpu.dot_dimension_numbers<[1], [0], [0], [1], [0, 0, 1, 1], [], []>} : vector<128x64xbf16>, vector<64x128xbf16>, vector<128x128xf32> -> vector<128x128xf32>
    %cst_92 = arith.constant 0.000000e+00 : f32
    %246 = vector.broadcast %cst_92 : f32 to vector<128x128xf32>
    %c0_i32_93 = arith.constant 0 : i32
    %247 = vector.broadcast %c0_i32_93 : i32 to vector<128x64xi32>
    %248 = arith.cmpi sge, %2, %247 : vector<128x64xi32>
    %c9_i32_94 = arith.constant 9 : i32
    %249 = vector.broadcast %c9_i32_94 : i32 to vector<128x64xi32>
    %250 = arith.cmpi slt, %2, %249 : vector<128x64xi32>
    %251 = arith.andi %248, %250 : vector<128x64xi1>
    %cst_95 = arith.constant 0.000000e+00 : f32
    %252 = vector.broadcast %cst_95 : f32 to vector<128x64xf32>
    %253 = arith.select %251, %243, %252 : vector<128x64xi1>, vector<128x64xf32>
    %cst_96 = arith.constant dense<0.000000e+00> : vector<128xf32>
    %254 = vector.multi_reduction <add>, %253, %cst_96 [1] : vector<128x64xf32> to vector<128xf32>
    %255 = vector.shape_cast %254 : vector<128xf32> to vector<128x1xf32>
    %c0_i32_97 = arith.constant 0 : i32
    %256 = vector.broadcast %c0_i32_97 : i32 to vector<128x128xi32>
    %257 = arith.cmpi sge, %3, %256 : vector<128x128xi32>
    %c32_i32_98 = arith.constant 32 : i32
    %258 = vector.broadcast %c32_i32_98 : i32 to vector<128x128xi32>
    %259 = arith.cmpi slt, %3, %258 : vector<128x128xi32>
    %260 = arith.andi %257, %259 : vector<128x128xi1>
    %cst_99 = arith.constant 0.000000e+00 : f32
    %261 = vector.broadcast %cst_99 : f32 to vector<128x128xf32>
    %262 = arith.select %260, %245, %261 : vector<128x128xi1>, vector<128x128xf32>
    %263 = tpu.reciprocal %255 : vector<128x1xf32> -> vector<128x1xf32>
    %264 = vector.broadcast %263 : vector<128x1xf32> to vector<128x128xf32>
    %265 = arith.mulf %262, %264 : vector<128x128xf32>
    %266 = arith.addf %246, %265 : vector<128x128xf32>
    %c9_i32_100 = arith.constant 9 : i32
    %267 = vector.broadcast %c9_i32_100 : i32 to vector<128x64xi32>
    %268 = arith.cmpi sge, %2, %267 : vector<128x64xi32>
    %c18_i32_101 = arith.constant 18 : i32
    %269 = vector.broadcast %c18_i32_101 : i32 to vector<128x64xi32>
    %270 = arith.cmpi slt, %2, %269 : vector<128x64xi32>
    %271 = arith.andi %268, %270 : vector<128x64xi1>
    %cst_102 = arith.constant 0.000000e+00 : f32
    %272 = vector.broadcast %cst_102 : f32 to vector<128x64xf32>
    %273 = arith.select %271, %243, %272 : vector<128x64xi1>, vector<128x64xf32>
    %cst_103 = arith.constant dense<0.000000e+00> : vector<128xf32>
    %274 = vector.multi_reduction <add>, %273, %cst_103 [1] : vector<128x64xf32> to vector<128xf32>
    %275 = vector.shape_cast %274 : vector<128xf32> to vector<128x1xf32>
    %c32_i32_104 = arith.constant 32 : i32
    %276 = vector.broadcast %c32_i32_104 : i32 to vector<128x128xi32>
    %277 = arith.cmpi sge, %3, %276 : vector<128x128xi32>
    %c64_i32_105 = arith.constant 64 : i32
    %278 = vector.broadcast %c64_i32_105 : i32 to vector<128x128xi32>
    %279 = arith.cmpi slt, %3, %278 : vector<128x128xi32>
    %280 = arith.andi %277, %279 : vector<128x128xi1>
    %cst_106 = arith.constant 0.000000e+00 : f32
    %281 = vector.broadcast %cst_106 : f32 to vector<128x128xf32>
    %282 = arith.select %280, %245, %281 : vector<128x128xi1>, vector<128x128xf32>
    %283 = tpu.reciprocal %275 : vector<128x1xf32> -> vector<128x1xf32>
    %284 = vector.broadcast %283 : vector<128x1xf32> to vector<128x128xf32>
    %285 = arith.mulf %282, %284 : vector<128x128xf32>
    %286 = arith.addf %266, %285 : vector<128x128xf32>
    %c18_i32_107 = arith.constant 18 : i32
    %287 = vector.broadcast %c18_i32_107 : i32 to vector<128x64xi32>
    %288 = arith.cmpi sge, %2, %287 : vector<128x64xi32>
    %c27_i32_108 = arith.constant 27 : i32
    %289 = vector.broadcast %c27_i32_108 : i32 to vector<128x64xi32>
    %290 = arith.cmpi slt, %2, %289 : vector<128x64xi32>
    %291 = arith.andi %288, %290 : vector<128x64xi1>
    %cst_109 = arith.constant 0.000000e+00 : f32
    %292 = vector.broadcast %cst_109 : f32 to vector<128x64xf32>
    %293 = arith.select %291, %243, %292 : vector<128x64xi1>, vector<128x64xf32>
    %cst_110 = arith.constant dense<0.000000e+00> : vector<128xf32>
    %294 = vector.multi_reduction <add>, %293, %cst_110 [1] : vector<128x64xf32> to vector<128xf32>
    %295 = vector.shape_cast %294 : vector<128xf32> to vector<128x1xf32>
    %c64_i32_111 = arith.constant 64 : i32
    %296 = vector.broadcast %c64_i32_111 : i32 to vector<128x128xi32>
    %297 = arith.cmpi sge, %3, %296 : vector<128x128xi32>
    %c96_i32_112 = arith.constant 96 : i32
    %298 = vector.broadcast %c96_i32_112 : i32 to vector<128x128xi32>
    %299 = arith.cmpi slt, %3, %298 : vector<128x128xi32>
    %300 = arith.andi %297, %299 : vector<128x128xi1>
    %cst_113 = arith.constant 0.000000e+00 : f32
    %301 = vector.broadcast %cst_113 : f32 to vector<128x128xf32>
    %302 = arith.select %300, %245, %301 : vector<128x128xi1>, vector<128x128xf32>
    %303 = tpu.reciprocal %295 : vector<128x1xf32> -> vector<128x1xf32>
    %304 = vector.broadcast %303 : vector<128x1xf32> to vector<128x128xf32>
    %305 = arith.mulf %302, %304 : vector<128x128xf32>
    %306 = arith.addf %286, %305 : vector<128x128xf32>
    %c27_i32_114 = arith.constant 27 : i32
    %307 = vector.broadcast %c27_i32_114 : i32 to vector<128x64xi32>
    %308 = arith.cmpi sge, %2, %307 : vector<128x64xi32>
    %c36_i32_115 = arith.constant 36 : i32
    %309 = vector.broadcast %c36_i32_115 : i32 to vector<128x64xi32>
    %310 = arith.cmpi slt, %2, %309 : vector<128x64xi32>
    %311 = arith.andi %308, %310 : vector<128x64xi1>
    %cst_116 = arith.constant 0.000000e+00 : f32
    %312 = vector.broadcast %cst_116 : f32 to vector<128x64xf32>
    %313 = arith.select %311, %243, %312 : vector<128x64xi1>, vector<128x64xf32>
    %cst_117 = arith.constant dense<0.000000e+00> : vector<128xf32>
    %314 = vector.multi_reduction <add>, %313, %cst_117 [1] : vector<128x64xf32> to vector<128xf32>
    %315 = vector.shape_cast %314 : vector<128xf32> to vector<128x1xf32>
    %c96_i32_118 = arith.constant 96 : i32
    %316 = vector.broadcast %c96_i32_118 : i32 to vector<128x128xi32>
    %317 = arith.cmpi sge, %3, %316 : vector<128x128xi32>
    %c128_i32_119 = arith.constant 128 : i32
    %318 = vector.broadcast %c128_i32_119 : i32 to vector<128x128xi32>
    %319 = arith.cmpi slt, %3, %318 : vector<128x128xi32>
    %320 = arith.andi %317, %319 : vector<128x128xi1>
    %cst_120 = arith.constant 0.000000e+00 : f32
    %321 = vector.broadcast %cst_120 : f32 to vector<128x128xf32>
    %322 = arith.select %320, %245, %321 : vector<128x128xi1>, vector<128x128xf32>
    %323 = tpu.reciprocal %315 : vector<128x1xf32> -> vector<128x1xf32>
    %324 = vector.broadcast %323 : vector<128x1xf32> to vector<128x128xf32>
    %325 = arith.mulf %322, %324 : vector<128x128xf32>
    %326 = arith.addf %306, %325 : vector<128x128xf32>
    %327 = arith.addf %1, %326 : vector<128x128xf32>
    %cst_121 = arith.constant dense<0.000000e+00> : vector<128xf32>
    %328 = vector.multi_reduction <add>, %177, %cst_121 [1] : vector<128x128xf32> to vector<128xf32>
    %329 = vector.shape_cast %328 : vector<128xf32> to vector<128x1xf32>
    %cst_122 = arith.constant dense<0.000000e+00> : vector<128xf32>
    %330 = vector.multi_reduction <add>, %327, %cst_122 [1] : vector<128x128xf32> to vector<128xf32>
    %331 = vector.shape_cast %330 : vector<128xf32> to vector<128x1xf32>
    %332 = arith.addf %329, %331 : vector<128x1xf32>
    %cst_123 = arith.constant 3.906250e-03 : f32
    %333 = vector.broadcast %cst_123 : f32 to vector<128x1xf32>
    %334 = arith.mulf %332, %333 : vector<128x1xf32>
    %335 = arith.mulf %177, %177 : vector<128x128xf32>
    %cst_124 = arith.constant dense<0.000000e+00> : vector<128xf32>
    %336 = vector.multi_reduction <add>, %335, %cst_124 [1] : vector<128x128xf32> to vector<128xf32>
    %337 = vector.shape_cast %336 : vector<128xf32> to vector<128x1xf32>
    %338 = arith.mulf %327, %327 : vector<128x128xf32>
    %cst_125 = arith.constant dense<0.000000e+00> : vector<128xf32>
    %339 = vector.multi_reduction <add>, %338, %cst_125 [1] : vector<128x128xf32> to vector<128xf32>
    %340 = vector.shape_cast %339 : vector<128xf32> to vector<128x1xf32>
    %341 = arith.addf %337, %340 : vector<128x1xf32>
    %cst_126 = arith.constant 3.906250e-03 : f32
    %342 = vector.broadcast %cst_126 : f32 to vector<128x1xf32>
    %343 = arith.mulf %341, %342 : vector<128x1xf32>
    %344 = arith.mulf %334, %334 : vector<128x1xf32>
    %345 = arith.subf %343, %344 : vector<128x1xf32>
    %cst_127 = arith.constant 9.99999974E-6 : f32
    %346 = vector.broadcast %cst_127 : f32 to vector<128x1xf32>
    %347 = arith.addf %345, %346 : vector<128x1xf32>
    %348 = math.rsqrt %347 : vector<128x1xf32>
    %349 = vector.broadcast %334 : vector<128x1xf32> to vector<128x128xf32>
    %350 = arith.subf %177, %349 : vector<128x128xf32>
    %351 = vector.broadcast %348 : vector<128x1xf32> to vector<128x128xf32>
    %352 = arith.mulf %350, %351 : vector<128x128xf32>
    %353 = arith.truncf %352 : vector<128x128xf32> to vector<128x128xbf16>
    %354 = vector.broadcast %334 : vector<128x1xf32> to vector<128x128xf32>
    %355 = arith.subf %327, %354 : vector<128x128xf32>
    %356 = vector.broadcast %348 : vector<128x1xf32> to vector<128x128xf32>
    %357 = arith.mulf %355, %356 : vector<128x128xf32>
    %358 = arith.truncf %357 : vector<128x128xf32> to vector<128x128xbf16>
    %c0_128 = arith.constant 0 : index
    %c0_129 = arith.constant 0 : index
    %359 = vector.load %arg7[%c0_128, %c0_129] : memref<128x128xbf16, #tpu.memory_space<vmem>>, vector<128x128xbf16>
    %cst_130 = arith.constant dense<0.000000e+00> : vector<128x128xf32>
    %360 = tpu.matmul %353, %359, %cst_130 {dimension_numbers = #tpu.dot_dimension_numbers<[1], [0], [0], [1], [0, 0, 1, 1], [], []>} : vector<128x128xbf16>, vector<128x128xbf16>, vector<128x128xf32> -> vector<128x128xf32>
    %c0_131 = arith.constant 0 : index
    %c0_132 = arith.constant 0 : index
    %361 = vector.load %arg8[%c0_131, %c0_132] : memref<128x128xbf16, #tpu.memory_space<vmem>>, vector<128x128xbf16>
    %cst_133 = arith.constant dense<0.000000e+00> : vector<128x128xf32>
    %362 = tpu.matmul %358, %361, %cst_133 {dimension_numbers = #tpu.dot_dimension_numbers<[1], [0], [0], [1], [0, 0, 1, 1], [], []>} : vector<128x128xbf16>, vector<128x128xbf16>, vector<128x128xf32> -> vector<128x128xf32>
    %363 = arith.addf %360, %362 : vector<128x128xf32>
    %c0_134 = arith.constant 0 : index
    %c0_135 = arith.constant 0 : index
    %364 = vector.load %arg9[%c0_134, %c0_135] : memref<1x128xf32, #tpu.memory_space<vmem>>, vector<1x128xf32>
    %365 = vector.broadcast %364 : vector<1x128xf32> to vector<128x128xf32>
    %366 = arith.addf %363, %365 : vector<128x128xf32>
    %cst_136 = arith.constant dense<0.000000e+00> : vector<128xf32>
    %367 = vector.multi_reduction <add>, %366, %cst_136 [1] : vector<128x128xf32> to vector<128xf32>
    %368 = vector.shape_cast %367 : vector<128xf32> to vector<128x1xf32>
    %cst_137 = arith.constant 1.280000e+02 : f32
    %369 = vector.broadcast %cst_137 : f32 to vector<128x1xf32>
    %370 = arith.divf %368, %369 : vector<128x1xf32>
    %371 = arith.mulf %366, %366 : vector<128x128xf32>
    %cst_138 = arith.constant dense<0.000000e+00> : vector<128xf32>
    %372 = vector.multi_reduction <add>, %371, %cst_138 [1] : vector<128x128xf32> to vector<128xf32>
    %373 = vector.shape_cast %372 : vector<128xf32> to vector<128x1xf32>
    %cst_139 = arith.constant 1.280000e+02 : f32
    %374 = vector.broadcast %cst_139 : f32 to vector<128x1xf32>
    %375 = arith.divf %373, %374 : vector<128x1xf32>
    %376 = arith.mulf %370, %370 : vector<128x1xf32>
    %377 = arith.subf %375, %376 : vector<128x1xf32>
    %378 = vector.broadcast %370 : vector<128x1xf32> to vector<128x128xf32>
    %379 = arith.subf %366, %378 : vector<128x128xf32>
    %cst_140 = arith.constant 9.99999974E-6 : f32
    %380 = vector.broadcast %cst_140 : f32 to vector<128x1xf32>
    %381 = arith.addf %377, %380 : vector<128x1xf32>
    %382 = math.rsqrt %381 : vector<128x1xf32>
    %383 = vector.broadcast %382 : vector<128x1xf32> to vector<128x128xf32>
    %384 = arith.mulf %379, %383 : vector<128x128xf32>
    %385 = arith.truncf %384 : vector<128x128xf32> to vector<128x128xbf16>
    %c0_141 = arith.constant 0 : index
    %c0_142 = arith.constant 0 : index
    %386 = vector.load %arg10[%c0_141, %c0_142] : memref<128x512xbf16, #tpu.memory_space<vmem>>, vector<128x512xbf16>
    %cst_143 = arith.constant dense<0.000000e+00> : vector<128x512xf32>
    %387 = tpu.matmul %385, %386, %cst_143 {dimension_numbers = #tpu.dot_dimension_numbers<[1], [0], [0], [1], [0, 0, 1, 1], [], []>} : vector<128x128xbf16>, vector<128x512xbf16>, vector<128x512xf32> -> vector<128x512xf32>
    %c0_144 = arith.constant 0 : index
    %c0_145 = arith.constant 0 : index
    %388 = vector.load %arg11[%c0_144, %c0_145] : memref<1x512xf32, #tpu.memory_space<vmem>>, vector<1x512xf32>
    %389 = vector.broadcast %388 : vector<1x512xf32> to vector<128x512xf32>
    %390 = arith.addf %387, %389 : vector<128x512xf32>
    %391 = arith.mulf %390, %390 : vector<128x512xf32>
    %392 = arith.mulf %390, %391 : vector<128x512xf32>
    %cst_146 = arith.constant 4.471500e-02 : f32
    %393 = vector.broadcast %cst_146 : f32 to vector<128x512xf32>
    %394 = arith.mulf %393, %392 : vector<128x512xf32>
    %395 = arith.addf %390, %394 : vector<128x512xf32>
    %cst_147 = arith.constant 0.797884583 : f32
    %396 = vector.broadcast %cst_147 : f32 to vector<128x512xf32>
    %397 = arith.mulf %396, %395 : vector<128x512xf32>
    %398 = math.tanh %397 : vector<128x512xf32>
    %cst_148 = arith.constant 1.000000e+00 : f32
    %399 = vector.broadcast %cst_148 : f32 to vector<128x512xf32>
    %400 = arith.addf %399, %398 : vector<128x512xf32>
    %cst_149 = arith.constant 5.000000e-01 : f32
    %401 = vector.broadcast %cst_149 : f32 to vector<128x512xf32>
    %402 = arith.mulf %401, %400 : vector<128x512xf32>
    %403 = arith.mulf %390, %402 : vector<128x512xf32>
    %404 = arith.truncf %403 : vector<128x512xf32> to vector<128x512xbf16>
    %c0_150 = arith.constant 0 : index
    %c0_151 = arith.constant 0 : index
    %405 = vector.load %arg12[%c0_150, %c0_151] : memref<512x128xbf16, #tpu.memory_space<vmem>>, vector<512x128xbf16>
    %cst_152 = arith.constant dense<0.000000e+00> : vector<128x128xf32>
    %406 = tpu.matmul %404, %405, %cst_152 {dimension_numbers = #tpu.dot_dimension_numbers<[1], [0], [0], [1], [0, 0, 1, 1], [], []>} : vector<128x512xbf16>, vector<512x128xbf16>, vector<128x128xf32> -> vector<128x128xf32>
    %c0_153 = arith.constant 0 : index
    %c0_154 = arith.constant 0 : index
    %407 = vector.load %arg13[%c0_153, %c0_154] : memref<1x128xf32, #tpu.memory_space<vmem>>, vector<1x128xf32>
    %408 = vector.broadcast %407 : vector<1x128xf32> to vector<128x128xf32>
    %409 = arith.addf %406, %408 : vector<128x128xf32>
    %410 = arith.addf %366, %409 : vector<128x128xf32>
    %411 = tpu.transpose %410, [1, 0] : vector<128x128xf32> -> vector<128x128xf32>
    %c0_155 = arith.constant 0 : index
    %c0_156 = arith.constant 0 : index
    %c0_157 = arith.constant 0 : index
    %412 = vector.load %arg14[%c0_155, %c0_156, %c0_157] : memref<1x128x128xf32, #tpu.memory_space<vmem>>, vector<1x128x128xf32>
    %413 = vector.shape_cast %412 : vector<1x128x128xf32> to vector<128x128xf32>
    %414 = vector.shape_cast %411 : vector<128x128xf32> to vector<1x128x128xf32>
    tpu.vector_store %arg14[%c0_155, %c0_156, %c0_157], %414 {strides = array<i32>} : memref<1x128x128xf32, #tpu.memory_space<vmem>>, vector<1x128x128xf32>,
    return
  }
  func.func @transform_0(%arg0: i32, %arg1: i32) -> (i32, i32, i32) {
    %c0_i32 = arith.constant 0 : i32
    %c0_i32_0 = arith.constant 0 : i32
    return %arg0, %arg1, %c0_i32 : i32, i32, i32
  }
  func.func @transform_1(%arg0: i32, %arg1: i32) -> (i32, i32, i32, i32) {
    %c0_i32 = arith.constant 0 : i32
    %c0_i32_0 = arith.constant 0 : i32
    %c0_i32_1 = arith.constant 0 : i32
    %c0_i32_2 = arith.constant 0 : i32
    return %arg0, %c0_i32, %c0_i32_0, %c0_i32_1 : i32, i32, i32, i32
  }
  func.func @transform_2(%arg0: i32, %arg1: i32) -> (i32, i32, i32, i32) {
    %c0_i32 = arith.constant 0 : i32
    %c0_i32_0 = arith.constant 0 : i32
    %c0_i32_1 = arith.constant 0 : i32
    %c0_i32_2 = arith.constant 0 : i32
    return %arg0, %c0_i32, %c0_i32_0, %c0_i32_1 : i32, i32, i32, i32
  }
  func.func @transform_3(%arg0: i32, %arg1: i32) -> (i32, i32) {
    %c0_i32 = arith.constant 0 : i32
    %c0_i32_0 = arith.constant 0 : i32
    %c0_i32_1 = arith.constant 0 : i32
    return %c0_i32, %c0_i32_0 : i32, i32
  }
  func.func @transform_4(%arg0: i32, %arg1: i32) -> (i32, i32) {
    %c0_i32 = arith.constant 0 : i32
    %c0_i32_0 = arith.constant 0 : i32
    %c0_i32_1 = arith.constant 0 : i32
    return %c0_i32, %c0_i32_0 : i32, i32
  }
  func.func @transform_5(%arg0: i32, %arg1: i32) -> (i32, i32) {
    %c0_i32 = arith.constant 0 : i32
    %c0_i32_0 = arith.constant 0 : i32
    %c0_i32_1 = arith.constant 0 : i32
    return %c0_i32, %c0_i32_0 : i32, i32
  }
  func.func @transform_6(%arg0: i32, %arg1: i32) -> (i32, i32) {
    %c0_i32 = arith.constant 0 : i32
    %c0_i32_0 = arith.constant 0 : i32
    %c0_i32_1 = arith.constant 0 : i32
    return %c0_i32, %c0_i32_0 : i32, i32
  }
  func.func @transform_7(%arg0: i32, %arg1: i32) -> (i32, i32) {
    %c0_i32 = arith.constant 0 : i32
    %c0_i32_0 = arith.constant 0 : i32
    %c0_i32_1 = arith.constant 0 : i32
    return %c0_i32, %c0_i32_0 : i32, i32
  }
  func.func @transform_8(%arg0: i32, %arg1: i32) -> (i32, i32) {
    %c0_i32 = arith.constant 0 : i32
    %c0_i32_0 = arith.constant 0 : i32
    %c0_i32_1 = arith.constant 0 : i32
    return %c0_i32, %c0_i32_0 : i32, i32
  }
  func.func @transform_9(%arg0: i32, %arg1: i32) -> (i32, i32) {
    %c0_i32 = arith.constant 0 : i32
    %c0_i32_0 = arith.constant 0 : i32
    %c0_i32_1 = arith.constant 0 : i32
    return %c0_i32, %c0_i32_0 : i32, i32
  }
  func.func @transform_10(%arg0: i32, %arg1: i32) -> (i32, i32) {
    %c0_i32 = arith.constant 0 : i32
    %c0_i32_0 = arith.constant 0 : i32
    %c0_i32_1 = arith.constant 0 : i32
    return %c0_i32, %c0_i32_0 : i32, i32
  }
  func.func @transform_11(%arg0: i32, %arg1: i32) -> (i32, i32) {
    %c0_i32 = arith.constant 0 : i32
    %c0_i32_0 = arith.constant 0 : i32
    %c0_i32_1 = arith.constant 0 : i32
    return %c0_i32, %c0_i32_0 : i32, i32
  }
  func.func @transform_12(%arg0: i32, %arg1: i32) -> (i32, i32, i32) {
    %c0_i32 = arith.constant 0 : i32
    %c0_i32_0 = arith.constant 0 : i32
    return %arg0, %c0_i32, %arg1 : i32, i32, i32
  }
}

</mosaic_0001>

<llo_original>
// kernel: context_self_block.3
$region0: #{context_self_block.3}
  #allocation0 [shape = 'u32[]', space=smem, size = 0x4, offset = 0x4, fixed_abs, tag = 'smem constant byte address 0x4 - core index']
  #allocation1 [shape = 'u32[144,128]{1,0:T(1,128)}', space=vmem, size = 0x12000, scoped, tag = 'internal scratch']
  #allocation2 [shape = 'f32[18,18,128]{2,1,0:T(8,128)}', space=vmem, size = 0x36000, scoped, tag = 'scratch operand']
  %s0 = inlined_call_operand.vmem [shape: f32[2,16,16,128], index: 0, kind: input, shape index: {}]
  %s1 = inlined_call_operand.vmem [shape: f32[3,3,128], index: 1, kind: input, shape index: {}]
  %s2 = inlined_call_operand.vmem [shape: f32[1,128], index: 2, kind: input, shape index: {}]
  %s3 = inlined_call_operand.vmem [shape: f32[2,16,16,128], index: 3, kind: output, shape index: {}]
  %s4 = sld [smem:[#allocation0]]
  $region45: #{context_self_block.3} parent=0
    _
  %s6 = ssub.s32 1, %s4
  %s7 = scalar_select 0, %s6, %s4
  loop: start=0, step=1, limit=4
  $region2: #{context_self_block.3} parent=0 // loop_pre_header
    _
  $region3: #{context_self_block.3} parent=0 // loop_header
    %s9 = sphi 0, %s13
    %p10 = scmp.ge.s32.totalorder %s9, 4
    %s19 = sphi 0, %s21
    %s22 = sphi 0, %s19
    %s23 = sphi 0, %s22
    %s39 = sphi 0, %s23
    %s43 = sphi 0, %s43
    %s45 = sphi 0, %s43
    %s46 = sphi 0, %s45
    %s60 = sphi 0, %s46
    %s64 = sphi 0, %s64
    %s66 = sphi 0, %s64
    %s67 = sphi 0, %s66
    %s81 = sphi 0, %s67
    %s87 = sphi 0, %s89
    %s90 = sphi 0, %s87
    %s91 = sphi 0, %s90
    %s107 = sphi 0, %s91
  $region4: #{context_self_block.3} parent=0 // loop_header_branch
    %12 = sbr.rel (%p10) target = $region8
  $region5: #{context_self_block.3} parent=0 // loop_body
    %s14 = ssub.s32 %s9, 1
    %s15 = ssub.s32 %s9, 2
    %s16 = sadd.s32 %s9, 1
    %s17 = ssub.s32 %s9, %s16
    %p18 = scmp.eq.s32.totalorder %s17, 0
    %s20 = sadd.s32 %s19, 1
    %s21 = scalar_select %p18, %s19, %s20
    %p24 = pneg %p18
    %p25 = scmp.eq.s32.totalorder %s9, 1
    %p26 = por %p24, %p25
    %p27 = scmp.ne.s32.totalorder %s19, %s22
    %p28 = scmp.eq.s32.totalorder %s9, 0
    %p29 = por %p27, %p28
    %p30 = scmp.ne.s32.totalorder %s19, %s22
    %p31 = scmp.eq.s32.totalorder %s14, 1
    %p32 = por %p30, %p31
    %p33 = scmp.ne.s32.totalorder %s22, %s23
    %p34 = scmp.eq.s32.totalorder %s14, 0
    %p35 = por %p33, %p34
    %p36 = scmp.ne.s32.totalorder %s22, %s23
    %p37 = scmp.eq.s32.totalorder %s15, 1
    %p38 = por %p36, %p37
    %p40 = scmp.ne.s32.totalorder %s23, %s39
    %p41 = scmp.eq.s32.totalorder %s15, 0
    %p42 = por %p40, %p41
    %s44 = sadd.s32 %s43, 1
    %p47 = scmp.eq.s32.totalorder %s9, 1
    %p48 = scmp.ne.s32.totalorder %s43, %s45
    %p49 = scmp.eq.s32.totalorder %s9, 0
    %p50 = por %p48, %p49
    %p51 = scmp.ne.s32.totalorder %s43, %s45
    %p52 = scmp.eq.s32.totalorder %s14, 1
    %p53 = por %p51, %p52
    %p54 = scmp.ne.s32.totalorder %s45, %s46
    %p55 = scmp.eq.s32.totalorder %s14, 0
    %p56 = por %p54, %p55
    %p57 = scmp.ne.s32.totalorder %s45, %s46
    %p58 = scmp.eq.s32.totalorder %s15, 1
    %p59 = por %p57, %p58
    %p61 = scmp.ne.s32.totalorder %s46, %s60
    %p62 = scmp.eq.s32.totalorder %s15, 0
    %p63 = por %p61, %p62
    %s65 = sadd.s32 %s64, 1
    %p68 = scmp.eq.s32.totalorder %s9, 1
    %p69 = scmp.ne.s32.totalorder %s64, %s66
    %p70 = scmp.eq.s32.totalorder %s9, 0
    %p71 = por %p69, %p70
    %p72 = scmp.ne.s32.totalorder %s64, %s66
    %p73 = scmp.eq.s32.totalorder %s14, 1
    %p74 = por %p72, %p73
    %p75 = scmp.ne.s32.totalorder %s66, %s67
    %p76 = scmp.eq.s32.totalorder %s14, 0
    %p77 = por %p75, %p76
    %p78 = scmp.ne.s32.totalorder %s66, %s67
    %p79 = scmp.eq.s32.totalorder %s15, 1
    %p80 = por %p78, %p79
    %p82 = scmp.ne.s32.totalorder %s67, %s81
    %p83 = scmp.eq.s32.totalorder %s15, 0
    %p84 = por %p82, %p83
    %s85 = ssub.s32 %s9, %s16
    %p86 = scmp.eq.s32.totalorder %s85, 0
    %s88 = sadd.s32 %s87, 1
    %s89 = scalar_select %p86, %s87, %s88
    %p92 = pneg %p86
    %p93 = scmp.eq.s32.totalorder %s9, 1
    %p94 = por %p92, %p93
    %p95 = scmp.ne.s32.totalorder %s87, %s90
    %p96 = scmp.eq.s32.totalorder %s9, 0
    %p97 = por %p95, %p96
    %p98 = scmp.ne.s32.totalorder %s87, %s90
    %p99 = scmp.eq.s32.totalorder %s14, 1
    %p100 = por %p98, %p99
    %p101 = scmp.ne.s32.totalorder %s90, %s91
    %p102 = scmp.eq.s32.totalorder %s14, 0
    %p103 = por %p101, %p102
    %p104 = scmp.ne.s32.totalorder %s90, %s91
    %p105 = scmp.eq.s32.totalorder %s15, 1
    %p106 = por %p104, %p105
    %p108 = scmp.ne.s32.totalorder %s91, %s107
    %p109 = scmp.eq.s32.totalorder %s15, 0
    %p110 = por %p108, %p109
    %p111 = scmp.le.s32.totalorder 1, %s9
    %p112 = scmp.lt.s32.totalorder %s9, 3
    %p113 = pnand %p111, %p112
    %p114 = pneg %p113
    // Predicated region
    $region9: #{context_self_block.3} parent=5 // pred_check
      _
    $region10: #{context_self_block.3} parent=5 // pred_check_branch
      %116 = sbr.rel (%p113) target = $region12
    $region11: #{context_self_block.3} parent=5 // pred_region
      %s117 = ssub.s32 %s9, 1
      // Predicated region
      $region13: #{context_self_block.3} parent=11 // pred_check
        %p118 = pneg %p56
      $region14: #{context_self_block.3} parent=11 // pred_check_branch
        %120 = sbr.rel (%p118) target = $region16
      $region15: #{context_self_block.3} parent=11 // pred_region
        _
      $region16: #{context_self_block.3} parent=11 // pred_fallthru
        _
      // Predicated region
      $region17: #{context_self_block.3} parent=11 // pred_check
        %p121 = pneg %p77
      $region18: #{context_self_block.3} parent=11 // pred_check_branch
        %123 = sbr.rel (%p121) target = $region20
      $region19: #{context_self_block.3} parent=11 // pred_region
        _
      $region20: #{context_self_block.3} parent=11 // pred_fallthru
        _
    $region12: #{context_self_block.3} parent=5 // pred_fallthru
      _
    %p124 = scmp.lt.s32.totalorder %s9, 2
    // Predicated region
    $region21: #{context_self_block.3} parent=5 // pred_check
      %p125 = pneg %p124
    $region22: #{context_self_block.3} parent=5 // pred_check_branch
      %127 = sbr.rel (%p125) target = $region24
    $region23: #{context_self_block.3} parent=5 // pred_region
      // Predicated region
      $region25: #{context_self_block.3} parent=23 // pred_check
        %p128 = pneg %p29
      $region26: #{context_self_block.3} parent=23 // pred_check_branch
        %130 = sbr.rel (%p128) target = $region28
      $region27: #{context_self_block.3} parent=23 // pred_region
        %p131 = scmp.lt.s32.totalorder %s9, 1
        %s132 = scalar_select %p131, %s9, 1
        %s133 = smul.addr %s132, 32
        %s134 = smul.addr %s133, 8
        %s135 = scalar_lea.vmem %s0, %s134
      $region28: #{context_self_block.3} parent=23 // pred_fallthru
        _
    $region24: #{context_self_block.3} parent=5 // pred_fallthru
      _
    %p136 = scmp.le.s32.totalorder 1, %s9
    %p137 = scmp.lt.s32.totalorder %s9, 3
    %p138 = pnand %p136, %p137
    %p139 = pneg %p138
    // Predicated region
    $region29: #{context_self_block.3} parent=5 // pred_check
      _
    $region30: #{context_self_block.3} parent=5 // pred_check_branch
      %141 = sbr.rel (%p138) target = $region32
    $region31: #{context_self_block.3} parent=5 // pred_region
      %s142 = ssub.s32 %s9, 1
      %p143 = scmp.lt.s32.totalorder %s14, 1
      %s144 = scalar_select %p143, %s14, 1
      %s145 = smul.addr %s144, 32
      %s146 = smul.addr %s145, 8
      %s147 = scalar_lea.vmem %s0, %s146
      %p148 = pneg %p35
      %p149 = pneg %p32
      %p150 = pneg %p56
      %p151 = pneg %p53
      %p152 = pneg %p77
      %p153 = pneg %p74
      %p154 = pneg %p103
      %p155 = pneg %p100
      %p156 = scmp.lt.s32.totalorder %s14, 1
      %s157 = scalar_select %p156, %s14, 1
      %s158 = smul.addr %s157, 32
      %s159 = smul.addr %s158, 8
      %s160 = scalar_lea.vmem %s3, %s159
      %p161 = scmp.lt.s32.totalorder %s14, 1
      %s162 = scalar_select %p161, %s14, 1
      %s163 = smul.addr %s162, 32
      %s164 = smul.addr %s163, 8
      %s165 = scalar_lea.vmem %s0, %s164
      %p166 = scmp.lt.s32.totalorder %s14, 1
      %s167 = scalar_select %p166, %s14, 1
      %s168 = smul.addr %s167, 32
      %s169 = smul.addr %s168, 8
      %s170 = scalar_lea.vmem %s3, %s169
      %v171 = vld [vmem:[%s165] sm:$0xff]
      %v172 = vld [vmem:[%s165 + $0x8] sm:$0xff]
      %v173 = vld [vmem:[%s165 + $0x10] sm:$0xff]
      %v174 = vld [vmem:[%s165 + $0x18] sm:$0xff]
      %v175 = vld [vmem:[%s165 + $0x20] sm:$0xff]
      %v176 = vld [vmem:[%s165 + $0x28] sm:$0xff]
      %v177 = vld [vmem:[%s165 + $0x30] sm:$0xff]
      %v178 = vld [vmem:[%s165 + $0x38] sm:$0xff]
      %v179 = vld [vmem:[%s165 + $0x40] sm:$0xff]
      %v180 = vld [vmem:[%s165 + $0x48] sm:$0xff]
      %v181 = vld [vmem:[%s165 + $0x50] sm:$0xff]
      %v182 = vld [vmem:[%s165 + $0x58] sm:$0xff]
      %v183 = vld [vmem:[%s165 + $0x60] sm:$0xff]
      %v184 = vld [vmem:[%s165 + $0x68] sm:$0xff]
      %v185 = vld [vmem:[%s165 + $0x70] sm:$0xff]
      %v186 = vld [vmem:[%s165 + $0x78] sm:$0xff]
      %v187 = vld [vmem:[%s165 + $0x80] sm:$0xff]
      %v188 = vld [vmem:[%s165 + $0x88] sm:$0xff]
      %v189 = vld [vmem:[%s165 + $0x90] sm:$0xff]
      %v190 = vld [vmem:[%s165 + $0x98] sm:$0xff]
      %v191 = vld [vmem:[%s165 + $0xa0] sm:$0xff]
      %v192 = vld [vmem:[%s165 + $0xa8] sm:$0xff]
      %v193 = vld [vmem:[%s165 + $0xb0] sm:$0xff]
      %v194 = vld [vmem:[%s165 + $0xb8] sm:$0xff]
      %v195 = vld [vmem:[%s165 + $0xc0] sm:$0xff]
      %v196 = vld [vmem:[%s165 + $0xc8] sm:$0xff]
      %v197 = vld [vmem:[%s165 + $0xd0] sm:$0xff]
      %v198 = vld [vmem:[%s165 + $0xd8] sm:$0xff]
      %v199 = vld [vmem:[%s165 + $0xe0] sm:$0xff]
      %v200 = vld [vmem:[%s165 + $0xe8] sm:$0xff]
      %v201 = vld [vmem:[%s165 + $0xf0] sm:$0xff]
      %v202 = vld [vmem:[%s165 + $0xf8] sm:$0xff]
      %203 = vst [vmem:[#allocation2] sm:$0xff] 0.0
      %204 = vst [vmem:[#allocation2 + $0x8] sm:$0xff] 0.0
      %205 = vst [vmem:[#allocation2 + $0x10] sm:$0x3] 0.0
      %206 = vst [vmem:[#allocation2 + $0x18] sm:$0xff] 0.0
      %207 = vst [vmem:[#allocation2 + $0x20] sm:$0xff] 0.0
      %208 = vst [vmem:[#allocation2 + $0x28] sm:$0x3] 0.0
      %209 = vst [vmem:[#allocation2 + $0x30] sm:$0xff] 0.0
      %210 = vst [vmem:[#allocation2 + $0x38] sm:$0xff] 0.0
      %211 = vst [vmem:[#allocation2 + $0x40] sm:$0x3] 0.0
      %212 = vst [vmem:[#allocation2 + $0x48] sm:$0xff] 0.0
      %213 = vst [vmem:[#allocation2 + $0x50] sm:$0xff] 0.0
      %214 = vst [vmem:[#allocation2 + $0x58] sm:$0x3] 0.0
      %215 = vst [vmem:[#allocation2 + $0x60] sm:$0xff] 0.0
      %216 = vst [vmem:[#allocation2 + $0x68] sm:$0xff] 0.0
      %217 = vst [vmem:[#allocation2 + $0x70] sm:$0x3] 0.0
      %218 = vst [vmem:[#allocation2 + $0x78] sm:$0xff] 0.0
      %219 = vst [vmem:[#allocation2 + $0x80] sm:$0xff] 0.0
      %220 = vst [vmem:[#allocation2 + $0x88] sm:$0x3] 0.0
      %221 = vst [vmem:[#allocation2 + $0x90] sm:$0xff] 0.0
      %222 = vst [vmem:[#allocation2 + $0x98] sm:$0xff] 0.0
      %223 = vst [vmem:[#allocation2 + $0xa0] sm:$0x3] 0.0
      %224 = vst [vmem:[#allocation2 + $0xa8] sm:$0xff] 0.0
      %225 = vst [vmem:[#allocation2 + $0xb0] sm:$0xff] 0.0
      %226 = vst [vmem:[#allocation2 + $0xb8] sm:$0x3] 0.0
      %227 = vst [vmem:[#allocation2 + $0xc0] sm:$0xff] 0.0
      %228 = vst [vmem:[#allocation2 + $0xc8] sm:$0xff] 0.0
      %229 = vst [vmem:[#allocation2 + $0xd0] sm:$0x3] 0.0
      %230 = vst [vmem:[#allocation2 + $0xd8] sm:$0xff] 0.0
      %231 = vst [vmem:[#allocation2 + $0xe0] sm:$0xff] 0.0
      %232 = vst [vmem:[#allocation2 + $0xe8] sm:$0x3] 0.0
      %233 = vst [vmem:[#allocation2 + $0xf0] sm:$0xff] 0.0
      %234 = vst [vmem:[#allocation2 + $0xf8] sm:$0xff] 0.0
      %235 = vst [vmem:[#allocation2 + $0x100] sm:$0x3] 0.0
      %236 = vst [vmem:[#allocation2 + $0x108] sm:$0xff] 0.0
      %237 = vst [vmem:[#allocation2 + $0x110] sm:$0xff] 0.0
      %238 = vst [vmem:[#allocation2 + $0x118] sm:$0x3] 0.0
      %239 = vst [vmem:[#allocation2 + $0x120] sm:$0xff] 0.0
      %240 = vst [vmem:[#allocation2 + $0x128] sm:$0xff] 0.0
      %241 = vst [vmem:[#allocation2 + $0x130] sm:$0x3] 0.0
      %242 = vst [vmem:[#allocation2 + $0x138] sm:$0xff] 0.0
      %243 = vst [vmem:[#allocation2 + $0x140] sm:$0xff] 0.0
      %244 = vst [vmem:[#allocation2 + $0x148] sm:$0x3] 0.0
      %245 = vst [vmem:[#allocation2 + $0x150] sm:$0xff] 0.0
      %246 = vst [vmem:[#allocation2 + $0x158] sm:$0xff] 0.0
      %247 = vst [vmem:[#allocation2 + $0x160] sm:$0x3] 0.0
      %248 = vst [vmem:[#allocation2 + $0x168] sm:$0xff] 0.0
      %249 = vst [vmem:[#allocation2 + $0x170] sm:$0xff] 0.0
      %250 = vst [vmem:[#allocation2 + $0x178] sm:$0x3] 0.0
      %251 = vst [vmem:[#allocation2 + $0x180] sm:$0xff] 0.0
      %252 = vst [vmem:[#allocation2 + $0x188] sm:$0xff] 0.0
      %253 = vst [vmem:[#allocation2 + $0x190] sm:$0x3] 0.0
      %254 = vst [vmem:[#allocation2 + $0x198] sm:$0xff] 0.0
      %255 = vst [vmem:[#allocation2 + $0x1a0] sm:$0xff] 0.0
      %256 = vst [vmem:[#allocation2 + $0x1a8] sm:$0x3] 0.0
      %s257 = scalar_lea.vmem [#allocation2], 24
      %258 = vst [vmem:[%s257 + $0x1] sm:$0xff] %v171
      %259 = vst [vmem:[%s257 + $0x9] sm:$0xff] %v172
      %260 = vst [vmem:[%s257 + $0x19] sm:$0xff] %v173
      %261 = vst [vmem:[%s257 + $0x21] sm:$0xff] %v174
      %262 = vst [vmem:[%s257 + $0x31] sm:$0xff] %v175
      %263 = vst [vmem:[%s257 + $0x39] sm:$0xff] %v176
      %264 = vst [vmem:[%s257 + $0x49] sm:$0xff] %v177
      %265 = vst [vmem:[%s257 + $0x51] sm:$0xff] %v178
      %266 = vst [vmem:[%s257 + $0x61] sm:$0xff] %v179
      %267 = vst [vmem:[%s257 + $0x69] sm:$0xff] %v180
      %268 = vst [vmem:[%s257 + $0x79] sm:$0xff] %v181
      %269 = vst [vmem:[%s257 + $0x81] sm:$0xff] %v182
      %270 = vst [vmem:[%s257 + $0x91] sm:$0xff] %v183
      %271 = vst [vmem:[%s257 + $0x99] sm:$0xff] %v184
      %272 = vst [vmem:[%s257 + $0xa9] sm:$0xff] %v185
      %273 = vst [vmem:[%s257 + $0xb1] sm:$0xff] %v186
      %274 = vst [vmem:[%s257 + $0xc1] sm:$0xff] %v187
      %275 = vst [vmem:[%s257 + $0xc9] sm:$0xff] %v188
      %276 = vst [vmem:[%s257 + $0xd9] sm:$0xff] %v189
      %277 = vst [vmem:[%s257 + $0xe1] sm:$0xff] %v190
      %278 = vst [vmem:[%s257 + $0xf1] sm:$0xff] %v191
      %279 = vst [vmem:[%s257 + $0xf9] sm:$0xff] %v192
      %280 = vst [vmem:[%s257 + $0x109] sm:$0xff] %v193
      %281 = vst [vmem:[%s257 + $0x111] sm:$0xff] %v194
      %282 = vst [vmem:[%s257 + $0x121] sm:$0xff] %v195
      %283 = vst [vmem:[%s257 + $0x129] sm:$0xff] %v196
      %284 = vst [vmem:[%s257 + $0x139] sm:$0xff] %v197
      %285 = vst [vmem:[%s257 + $0x141] sm:$0xff] %v198
      %286 = vst [vmem:[%s257 + $0x151] sm:$0xff] %v199
      %287 = vst [vmem:[%s257 + $0x159] sm:$0xff] %v200
      %288 = vst [vmem:[%s257 + $0x169] sm:$0xff] %v201
      %289 = vst [vmem:[%s257 + $0x171] sm:$0xff] %v202
      %v290 = vld [vmem:[%s1] sm:$0x7]
      %v291 = vld [vmem:[%s1 + $0x4] sm:$0x7]
      %v292 = vld [vmem:[%s1 + $0x8] sm:$0x7]
      %v293 = vld [vmem:[%s2] sm:$0x1]
      %v295 = vlaneseq
      %v296 = vshrl.u32 %v295, 7
      %v297 = vsub.s32 0, %v296
      %v298 = vrot.slane %v293, %v297
      %v300 = vadd.f32 %v171, %v298
      %v301 = vadd.f32 %v172, %v298
      %v302 = vadd.f32 %v173, %v298
      %v303 = vadd.f32 %v174, %v298
      %v304 = vadd.f32 %v175, %v298
      %v305 = vadd.f32 %v176, %v298
      %v306 = vadd.f32 %v177, %v298
      %v307 = vadd.f32 %v178, %v298
      %v308 = vadd.f32 %v179, %v298
      %v309 = vadd.f32 %v180, %v298
      %v310 = vadd.f32 %v181, %v298
      %v311 = vadd.f32 %v182, %v298
      %v312 = vadd.f32 %v183, %v298
      %v313 = vadd.f32 %v184, %v298
      %v314 = vadd.f32 %v185, %v298
      %v315 = vadd.f32 %v186, %v298
      %v316 = vadd.f32 %v187, %v298
      %v317 = vadd.f32 %v188, %v298
      %v318 = vadd.f32 %v189, %v298
      %v319 = vadd.f32 %v190, %v298
      %v320 = vadd.f32 %v191, %v298
      %v321 = vadd.f32 %v192, %v298
      %v322 = vadd.f32 %v193, %v298
      %v323 = vadd.f32 %v194, %v298
      %v324 = vadd.f32 %v195, %v298
      %v325 = vadd.f32 %v196, %v298
      %v326 = vadd.f32 %v197, %v298
      %v327 = vadd.f32 %v198, %v298
      %v328 = vadd.f32 %v199, %v298
      %v329 = vadd.f32 %v200, %v298
      %v330 = vadd.f32 %v201, %v298
      %v331 = vadd.f32 %v202, %v298
      %v332 = vld [vmem:[#allocation2] sm:$0xff]
      %v333 = vld [vmem:[#allocation2 + $0x8] sm:$0xff]
      %v334 = vld [vmem:[#allocation2 + $0x18] sm:$0xff]
      %v335 = vld [vmem:[#allocation2 + $0x20] sm:$0xff]
      %v336 = vld [vmem:[#allocation2 + $0x30] sm:$0xff]
      %v337 = vld [vmem:[#allocation2 + $0x38] sm:$0xff]
      %v338 = vld [vmem:[#allocation2 + $0x48] sm:$0xff]
      %v339 = vld [vmem:[#allocation2 + $0x50] sm:$0xff]
      %v340 = vld [vmem:[#allocation2 + $0x60] sm:$0xff]
      %v341 = vld [vmem:[#allocation2 + $0x68] sm:$0xff]
      %v342 = vld [vmem:[#allocation2 + $0x78] sm:$0xff]
      %v343 = vld [vmem:[#allocation2 + $0x80] sm:$0xff]
      %v344 = vld [vmem:[#allocation2 + $0x90] sm:$0xff]
      %v345 = vld [vmem:[#allocation2 + $0x98] sm:$0xff]
      %v346 = vld [vmem:[#allocation2 + $0xa8] sm:$0xff]
      %v347 = vld [vmem:[#allocation2 + $0xb0] sm:$0xff]
      %v348 = vld [vmem:[#allocation2 + $0xc0] sm:$0xff]
      %v349 = vld [vmem:[#allocation2 + $0xc8] sm:$0xff]
      %v350 = vld [vmem:[#allocation2 + $0xd8] sm:$0xff]
      %v351 = vld [vmem:[#allocation2 + $0xe0] sm:$0xff]
      %v352 = vld [vmem:[#allocation2 + $0xf0] sm:$0xff]
      %v353 = vld [vmem:[#allocation2 + $0xf8] sm:$0xff]
      %v354 = vld [vmem:[#allocation2 + $0x108] sm:$0xff]
      %v355 = vld [vmem:[#allocation2 + $0x110] sm:$0xff]
      %v356 = vld [vmem:[#allocation2 + $0x120] sm:$0xff]
      %v357 = vld [vmem:[#allocation2 + $0x128] sm:$0xff]
      %v358 = vld [vmem:[#allocation2 + $0x138] sm:$0xff]
      %v359 = vld [vmem:[#allocation2 + $0x140] sm:$0xff]
      %v360 = vld [vmem:[#allocation2 + $0x150] sm:$0xff]
      %v361 = vld [vmem:[#allocation2 + $0x158] sm:$0xff]
      %v362 = vld [vmem:[#allocation2 + $0x168] sm:$0xff]
      %v363 = vld [vmem:[#allocation2 + $0x170] sm:$0xff]
      %v364 = vlaneseq
      %v365 = vshrl.u32 %v364, 7
      %v366 = vsub.s32 0, %v365
      %v367 = vrot.slane %v290, %v366
      %v368 = vmul.f32 %v332, %v367
      %v369 = vmul.f32 %v333, %v367
      %v370 = vmul.f32 %v334, %v367
      %v371 = vmul.f32 %v335, %v367
      %v372 = vmul.f32 %v336, %v367
      %v373 = vmul.f32 %v337, %v367
      %v374 = vmul.f32 %v338, %v367
      %v375 = vmul.f32 %v339, %v367
      %v376 = vmul.f32 %v340, %v367
      %v377 = vmul.f32 %v341, %v367
      %v378 = vmul.f32 %v342, %v367
      %v379 = vmul.f32 %v343, %v367
      %v380 = vmul.f32 %v344, %v367
      %v381 = vmul.f32 %v345, %v367
      %v382 = vmul.f32 %v346, %v367
      %v383 = vmul.f32 %v347, %v367
      %v384 = vmul.f32 %v348, %v367
      %v385 = vmul.f32 %v349, %v367
      %v386 = vmul.f32 %v350, %v367
      %v387 = vmul.f32 %v351, %v367
      %v388 = vmul.f32 %v352, %v367
      %v389 = vmul.f32 %v353, %v367
      %v390 = vmul.f32 %v354, %v367
      %v391 = vmul.f32 %v355, %v367
      %v392 = vmul.f32 %v356, %v367
      %v393 = vmul.f32 %v357, %v367
      %v394 = vmul.f32 %v358, %v367
      %v395 = vmul.f32 %v359, %v367
      %v396 = vmul.f32 %v360, %v367
      %v397 = vmul.f32 %v361, %v367
      %v398 = vmul.f32 %v362, %v367
      %v399 = vmul.f32 %v363, %v367
      %v400 = vadd.f32 %v300, %v368
      %v401 = vadd.f32 %v301, %v369
      %v402 = vadd.f32 %v302, %v370
      %v403 = vadd.f32 %v303, %v371
      %v404 = vadd.f32 %v304, %v372
      %v405 = vadd.f32 %v305, %v373
      %v406 = vadd.f32 %v306, %v374
      %v407 = vadd.f32 %v307, %v375
      %v408 = vadd.f32 %v308, %v376
      %v409 = vadd.f32 %v309, %v377
      %v410 = vadd.f32 %v310, %v378
      %v411 = vadd.f32 %v311, %v379
      %v412 = vadd.f32 %v312, %v380
      %v413 = vadd.f32 %v313, %v381
      %v414 = vadd.f32 %v314, %v382
      %v415 = vadd.f32 %v315, %v383
      %v416 = vadd.f32 %v316, %v384
      %v417 = vadd.f32 %v317, %v385
      %v418 = vadd.f32 %v318, %v386
      %v419 = vadd.f32 %v319, %v387
      %v420 = vadd.f32 %v320, %v388
      %v421 = vadd.f32 %v321, %v389
      %v422 = vadd.f32 %v322, %v390
      %v423 = vadd.f32 %v323, %v391
      %v424 = vadd.f32 %v324, %v392
      %v425 = vadd.f32 %v325, %v393
      %v426 = vadd.f32 %v326, %v394
      %v427 = vadd.f32 %v327, %v395
      %v428 = vadd.f32 %v328, %v396
      %v429 = vadd.f32 %v329, %v397
      %v430 = vadd.f32 %v330, %v398
      %v431 = vadd.f32 %v331, %v399
      %v432 = vld [vmem:[#allocation2 + $0x1] sm:$0xff]
      %v433 = vld [vmem:[#allocation2 + $0x9] sm:$0xff]
      %v434 = vld [vmem:[#allocation2 + $0x19] sm:$0xff]
      %v435 = vld [vmem:[#allocation2 + $0x21] sm:$0xff]
      %v436 = vld [vmem:[#allocation2 + $0x31] sm:$0xff]
      %v437 = vld [vmem:[#allocation2 + $0x39] sm:$0xff]
      %v438 = vld [vmem:[#allocation2 + $0x49] sm:$0xff]
      %v439 = vld [vmem:[#allocation2 + $0x51] sm:$0xff]
      %v440 = vld [vmem:[#allocation2 + $0x61] sm:$0xff]
      %v441 = vld [vmem:[#allocation2 + $0x69] sm:$0xff]
      %v442 = vld [vmem:[#allocation2 + $0x79] sm:$0xff]
      %v443 = vld [vmem:[#allocation2 + $0x81] sm:$0xff]
      %v444 = vld [vmem:[#allocation2 + $0x91] sm:$0xff]
      %v445 = vld [vmem:[#allocation2 + $0x99] sm:$0xff]
      %v446 = vld [vmem:[#allocation2 + $0xa9] sm:$0xff]
      %v447 = vld [vmem:[#allocation2 + $0xb1] sm:$0xff]
      %v448 = vld [vmem:[#allocation2 + $0xc1] sm:$0xff]
      %v449 = vld [vmem:[#allocation2 + $0xc9] sm:$0xff]
      %v450 = vld [vmem:[#allocation2 + $0xd9] sm:$0xff]
      %v451 = vld [vmem:[#allocation2 + $0xe1] sm:$0xff]
      %v452 = vld [vmem:[#allocation2 + $0xf1] sm:$0xff]
      %v453 = vld [vmem:[#allocation2 + $0xf9] sm:$0xff]
      %v454 = vld [vmem:[#allocation2 + $0x109] sm:$0xff]
      %v455 = vld [vmem:[#allocation2 + $0x111] sm:$0xff]
      %v456 = vld [vmem:[#allocation2 + $0x121] sm:$0xff]
      %v457 = vld [vmem:[#allocation2 + $0x129] sm:$0xff]
      %v458 = vld [vmem:[#allocation2 + $0x139] sm:$0xff]
      %v459 = vld [vmem:[#allocation2 + $0x141] sm:$0xff]
      %v460 = vld [vmem:[#allocation2 + $0x151] sm:$0xff]
      %v461 = vld [vmem:[#allocation2 + $0x159] sm:$0xff]
      %v462 = vld [vmem:[#allocation2 + $0x169] sm:$0xff]
      %v463 = vld [vmem:[#allocation2 + $0x171] sm:$0xff]
      %v464 = vlaneseq
      %v465 = vshrl.u32 %v464, 7
      %v466 = vsub.s32 1, %v465
      %v467 = vrot.slane %v290, %v466
      %v468 = vmul.f32 %v432, %v467
      %v469 = vmul.f32 %v433, %v467
      %v470 = vmul.f32 %v434, %v467
      %v471 = vmul.f32 %v435, %v467
      %v472 = vmul.f32 %v436, %v467
      %v473 = vmul.f32 %v437, %v467
      %v474 = vmul.f32 %v438, %v467
      %v475 = vmul.f32 %v439, %v467
      %v476 = vmul.f32 %v440, %v467
      %v477 = vmul.f32 %v441, %v467
      %v478 = vmul.f32 %v442, %v467
      %v479 = vmul.f32 %v443, %v467
      %v480 = vmul.f32 %v444, %v467
      %v481 = vmul.f32 %v445, %v467
      %v482 = vmul.f32 %v446, %v467
      %v483 = vmul.f32 %v447, %v467
      %v484 = vmul.f32 %v448, %v467
      %v485 = vmul.f32 %v449, %v467
      %v486 = vmul.f32 %v450, %v467
      %v487 = vmul.f32 %v451, %v467
      %v488 = vmul.f32 %v452, %v467
      %v489 = vmul.f32 %v453, %v467
      %v490 = vmul.f32 %v454, %v467
      %v491 = vmul.f32 %v455, %v467
      %v492 = vmul.f32 %v456, %v467
      %v493 = vmul.f32 %v457, %v467
      %v494 = vmul.f32 %v458, %v467
      %v495 = vmul.f32 %v459, %v467
      %v496 = vmul.f32 %v460, %v467
      %v497 = vmul.f32 %v461, %v467
      %v498 = vmul.f32 %v462, %v467
      %v499 = vmul.f32 %v463, %v467
      %v500 = vadd.f32 %v400, %v468
      %v501 = vadd.f32 %v401, %v469
      %v502 = vadd.f32 %v402, %v470
      %v503 = vadd.f32 %v403, %v471
      %v504 = vadd.f32 %v404, %v472
      %v505 = vadd.f32 %v405, %v473
      %v506 = vadd.f32 %v406, %v474
      %v507 = vadd.f32 %v407, %v475
      %v508 = vadd.f32 %v408, %v476
      %v509 = vadd.f32 %v409, %v477
      %v510 = vadd.f32 %v410, %v478
      %v511 = vadd.f32 %v411, %v479
      %v512 = vadd.f32 %v412, %v480
      %v513 = vadd.f32 %v413, %v481
      %v514 = vadd.f32 %v414, %v482
      %v515 = vadd.f32 %v415, %v483
      %v516 = vadd.f32 %v416, %v484
      %v517 = vadd.f32 %v417, %v485
      %v518 = vadd.f32 %v418, %v486
      %v519 = vadd.f32 %v419, %v487
      %v520 = vadd.f32 %v420, %v488
      %v521 = vadd.f32 %v421, %v489
      %v522 = vadd.f32 %v422, %v490
      %v523 = vadd.f32 %v423, %v491
      %v524 = vadd.f32 %v424, %v492
      %v525 = vadd.f32 %v425, %v493
      %v526 = vadd.f32 %v426, %v494
      %v527 = vadd.f32 %v427, %v495
      %v528 = vadd.f32 %v428, %v496
      %v529 = vadd.f32 %v429, %v497
      %v530 = vadd.f32 %v430, %v498
      %v531 = vadd.f32 %v431, %v499
      %v532 = vld [vmem:[#allocation2 + $0x2] sm:$0xff]
      %v533 = vld [vmem:[#allocation2 + $0xa] sm:$0xff]
      %v534 = vld [vmem:[#allocation2 + $0x1a] sm:$0xff]
      %v535 = vld [vmem:[#allocation2 + $0x22] sm:$0xff]
      %v536 = vld [vmem:[#allocation2 + $0x32] sm:$0xff]
      %v537 = vld [vmem:[#allocation2 + $0x3a] sm:$0xff]
      %v538 = vld [vmem:[#allocation2 + $0x4a] sm:$0xff]
      %v539 = vld [vmem:[#allocation2 + $0x52] sm:$0xff]
      %v540 = vld [vmem:[#allocation2 + $0x62] sm:$0xff]
      %v541 = vld [vmem:[#allocation2 + $0x6a] sm:$0xff]
      %v542 = vld [vmem:[#allocation2 + $0x7a] sm:$0xff]
      %v543 = vld [vmem:[#allocation2 + $0x82] sm:$0xff]
      %v544 = vld [vmem:[#allocation2 + $0x92] sm:$0xff]
      %v545 = vld [vmem:[#allocation2 + $0x9a] sm:$0xff]
      %v546 = vld [vmem:[#allocation2 + $0xaa] sm:$0xff]
      %v547 = vld [vmem:[#allocation2 + $0xb2] sm:$0xff]
      %v548 = vld [vmem:[#allocation2 + $0xc2] sm:$0xff]
      %v549 = vld [vmem:[#allocation2 + $0xca] sm:$0xff]
      %v550 = vld [vmem:[#allocation2 + $0xda] sm:$0xff]
      %v551 = vld [vmem:[#allocation2 + $0xe2] sm:$0xff]
      %v552 = vld [vmem:[#allocation2 + $0xf2] sm:$0xff]
      %v553 = vld [vmem:[#allocation2 + $0xfa] sm:$0xff]
      %v554 = vld [vmem:[#allocation2 + $0x10a] sm:$0xff]
      %v555 = vld [vmem:[#allocation2 + $0x112] sm:$0xff]
      %v556 = vld [vmem:[#allocation2 + $0x122] sm:$0xff]
      %v557 = vld [vmem:[#allocation2 + $0x12a] sm:$0xff]
      %v558 = vld [vmem:[#allocation2 + $0x13a] sm:$0xff]
      %v559 = vld [vmem:[#allocation2 + $0x142] sm:$0xff]
      %v560 = vld [vmem:[#allocation2 + $0x152] sm:$0xff]
      %v561 = vld [vmem:[#allocation2 + $0x15a] sm:$0xff]
      %v562 = vld [vmem:[#allocation2 + $0x16a] sm:$0xff]
      %v563 = vld [vmem:[#allocation2 + $0x172] sm:$0xff]
      %v564 = vlaneseq
      %v565 = vshrl.u32 %v564, 7
      %v566 = vsub.s32 2, %v565
      %v567 = vrot.slane %v290, %v566
      %v568 = vmul.f32 %v532, %v567
      %v569 = vmul.f32 %v533, %v567
      %v570 = vmul.f32 %v534, %v567
      %v571 = vmul.f32 %v535, %v567
      %v572 = vmul.f32 %v536, %v567
      %v573 = vmul.f32 %v537, %v567
      %v574 = vmul.f32 %v538, %v567
      %v575 = vmul.f32 %v539, %v567
      %v576 = vmul.f32 %v540, %v567
      %v577 = vmul.f32 %v541, %v567
      %v578 = vmul.f32 %v542, %v567
      %v579 = vmul.f32 %v543, %v567
      %v580 = vmul.f32 %v544, %v567
      %v581 = vmul.f32 %v545, %v567
      %v582 = vmul.f32 %v546, %v567
      %v583 = vmul.f32 %v547, %v567
      %v584 = vmul.f32 %v548, %v567
      %v585 = vmul.f32 %v549, %v567
      %v586 = vmul.f32 %v550, %v567
      %v587 = vmul.f32 %v551, %v567
      %v588 = vmul.f32 %v552, %v567
      %v589 = vmul.f32 %v553, %v567
      %v590 = vmul.f32 %v554, %v567
      %v591 = vmul.f32 %v555, %v567
      %v592 = vmul.f32 %v556, %v567
      %v593 = vmul.f32 %v557, %v567
      %v594 = vmul.f32 %v558, %v567
      %v595 = vmul.f32 %v559, %v567
      %v596 = vmul.f32 %v560, %v567
      %v597 = vmul.f32 %v561, %v567
      %v598 = vmul.f32 %v562, %v567
      %v599 = vmul.f32 %v563, %v567
      %v600 = vadd.f32 %v500, %v568
      %v601 = vadd.f32 %v501, %v569
      %v602 = vadd.f32 %v502, %v570
      %v603 = vadd.f32 %v503, %v571
      %v604 = vadd.f32 %v504, %v572
      %v605 = vadd.f32 %v505, %v573
      %v606 = vadd.f32 %v506, %v574
      %v607 = vadd.f32 %v507, %v575
      %v608 = vadd.f32 %v508, %v576
      %v609 = vadd.f32 %v509, %v577
      %v610 = vadd.f32 %v510, %v578
      %v611 = vadd.f32 %v511, %v579
      %v612 = vadd.f32 %v512, %v580
      %v613 = vadd.f32 %v513, %v581
      %v614 = vadd.f32 %v514, %v582
      %v615 = vadd.f32 %v515, %v583
      %v616 = vadd.f32 %v516, %v584
      %v617 = vadd.f32 %v517, %v585
      %v618 = vadd.f32 %v518, %v586
      %v619 = vadd.f32 %v519, %v587
      %v620 = vadd.f32 %v520, %v588
      %v621 = vadd.f32 %v521, %v589
      %v622 = vadd.f32 %v522, %v590
      %v623 = vadd.f32 %v523, %v591
      %v624 = vadd.f32 %v524, %v592
      %v625 = vadd.f32 %v525, %v593
      %v626 = vadd.f32 %v526, %v594
      %v627 = vadd.f32 %v527, %v595
      %v628 = vadd.f32 %v528, %v596
      %v629 = vadd.f32 %v529, %v597
      %v630 = vadd.f32 %v530, %v598
      %v631 = vadd.f32 %v531, %v599
      %v632 = vld [vmem:[%s257] sm:$0xff]
      %v633 = vld [vmem:[%s257 + $0x8] sm:$0xff]
      %v634 = vld [vmem:[%s257 + $0x18] sm:$0xff]
      %v635 = vld [vmem:[%s257 + $0x20] sm:$0xff]
      %v636 = vld [vmem:[%s257 + $0x30] sm:$0xff]
      %v637 = vld [vmem:[%s257 + $0x38] sm:$0xff]
      %v638 = vld [vmem:[%s257 + $0x48] sm:$0xff]
      %v639 = vld [vmem:[%s257 + $0x50] sm:$0xff]
      %v640 = vld [vmem:[%s257 + $0x60] sm:$0xff]
      %v641 = vld [vmem:[%s257 + $0x68] sm:$0xff]
      %v642 = vld [vmem:[%s257 + $0x78] sm:$0xff]
      %v643 = vld [vmem:[%s257 + $0x80] sm:$0xff]
      %v644 = vld [vmem:[%s257 + $0x90] sm:$0xff]
      %v645 = vld [vmem:[%s257 + $0x98] sm:$0xff]
      %v646 = vld [vmem:[%s257 + $0xa8] sm:$0xff]
      %v647 = vld [vmem:[%s257 + $0xb0] sm:$0xff]
      %v648 = vld [vmem:[%s257 + $0xc0] sm:$0xff]
      %v649 = vld [vmem:[%s257 + $0xc8] sm:$0xff]
      %v650 = vld [vmem:[%s257 + $0xd8] sm:$0xff]
      %v651 = vld [vmem:[%s257 + $0xe0] sm:$0xff]
      %v652 = vld [vmem:[%s257 + $0xf0] sm:$0xff]
      %v653 = vld [vmem:[%s257 + $0xf8] sm:$0xff]
      %v654 = vld [vmem:[%s257 + $0x108] sm:$0xff]
      %v655 = vld [vmem:[%s257 + $0x110] sm:$0xff]
      %v656 = vld [vmem:[%s257 + $0x120] sm:$0xff]
      %v657 = vld [vmem:[%s257 + $0x128] sm:$0xff]
      %v658 = vld [vmem:[%s257 + $0x138] sm:$0xff]
      %v659 = vld [vmem:[%s257 + $0x140] sm:$0xff]
      %v660 = vld [vmem:[%s257 + $0x150] sm:$0xff]
      %v661 = vld [vmem:[%s257 + $0x158] sm:$0xff]
      %v662 = vld [vmem:[%s257 + $0x168] sm:$0xff]
      %v663 = vld [vmem:[%s257 + $0x170] sm:$0xff]
      %v664 = vlaneseq
      %v665 = vshrl.u32 %v664, 7
      %v666 = vsub.s32 0, %v665
      %v667 = vrot.slane %v291, %v666
      %v668 = vmul.f32 %v632, %v667
      %v669 = vmul.f32 %v633, %v667
      %v670 = vmul.f32 %v634, %v667
      %v671 = vmul.f32 %v635, %v667
      %v672 = vmul.f32 %v636, %v667
      %v673 = vmul.f32 %v637, %v667
      %v674 = vmul.f32 %v638, %v667
      %v675 = vmul.f32 %v639, %v667
      %v676 = vmul.f32 %v640, %v667
      %v677 = vmul.f32 %v641, %v667
      %v678 = vmul.f32 %v642, %v667
      %v679 = vmul.f32 %v643, %v667
      %v680 = vmul.f32 %v644, %v667
      %v681 = vmul.f32 %v645, %v667
      %v682 = vmul.f32 %v646, %v667
      %v683 = vmul.f32 %v647, %v667
      %v684 = vmul.f32 %v648, %v667
      %v685 = vmul.f32 %v649, %v667
      %v686 = vmul.f32 %v650, %v667
      %v687 = vmul.f32 %v651, %v667
      %v688 = vmul.f32 %v652, %v667
      %v689 = vmul.f32 %v653, %v667
      %v690 = vmul.f32 %v654, %v667
      %v691 = vmul.f32 %v655, %v667
      %v692 = vmul.f32 %v656, %v667
      %v693 = vmul.f32 %v657, %v667
      %v694 = vmul.f32 %v658, %v667
      %v695 = vmul.f32 %v659, %v667
      %v696 = vmul.f32 %v660, %v667
      %v697 = vmul.f32 %v661, %v667
      %v698 = vmul.f32 %v662, %v667
      %v699 = vmul.f32 %v663, %v667
      %v700 = vadd.f32 %v600, %v668
      %v701 = vadd.f32 %v601, %v669
      %v702 = vadd.f32 %v602, %v670
      %v703 = vadd.f32 %v603, %v671
      %v704 = vadd.f32 %v604, %v672
      %v705 = vadd.f32 %v605, %v673
      %v706 = vadd.f32 %v606, %v674
      %v707 = vadd.f32 %v607, %v675
      %v708 = vadd.f32 %v608, %v676
      %v709 = vadd.f32 %v609, %v677
      %v710 = vadd.f32 %v610, %v678
      %v711 = vadd.f32 %v611, %v679
      %v712 = vadd.f32 %v612, %v680
      %v713 = vadd.f32 %v613, %v681
      %v714 = vadd.f32 %v614, %v682
      %v715 = vadd.f32 %v615, %v683
      %v716 = vadd.f32 %v616, %v684
      %v717 = vadd.f32 %v617, %v685
      %v718 = vadd.f32 %v618, %v686
      %v719 = vadd.f32 %v619, %v687
      %v720 = vadd.f32 %v620, %v688
      %v721 = vadd.f32 %v621, %v689
      %v722 = vadd.f32 %v622, %v690
      %v723 = vadd.f32 %v623, %v691
      %v724 = vadd.f32 %v624, %v692
      %v725 = vadd.f32 %v625, %v693
      %v726 = vadd.f32 %v626, %v694
      %v727 = vadd.f32 %v627, %v695
      %v728 = vadd.f32 %v628, %v696
      %v729 = vadd.f32 %v629, %v697
      %v730 = vadd.f32 %v630, %v698
      %v731 = vadd.f32 %v631, %v699
      %v732 = vld [vmem:[%s257 + $0x1] sm:$0xff]
      %v733 = vld [vmem:[%s257 + $0x9] sm:$0xff]
      %v734 = vld [vmem:[%s257 + $0x19] sm:$0xff]
      %v735 = vld [vmem:[%s257 + $0x21] sm:$0xff]
      %v736 = vld [vmem:[%s257 + $0x31] sm:$0xff]
      %v737 = vld [vmem:[%s257 + $0x39] sm:$0xff]
      %v738 = vld [vmem:[%s257 + $0x49] sm:$0xff]
      %v739 = vld [vmem:[%s257 + $0x51] sm:$0xff]
      %v740 = vld [vmem:[%s257 + $0x61] sm:$0xff]
      %v741 = vld [vmem:[%s257 + $0x69] sm:$0xff]
      %v742 = vld [vmem:[%s257 + $0x79] sm:$0xff]
      %v743 = vld [vmem:[%s257 + $0x81] sm:$0xff]
      %v744 = vld [vmem:[%s257 + $0x91] sm:$0xff]
      %v745 = vld [vmem:[%s257 + $0x99] sm:$0xff]
      %v746 = vld [vmem:[%s257 + $0xa9] sm:$0xff]
      %v747 = vld [vmem:[%s257 + $0xb1] sm:$0xff]
      %v748 = vld [vmem:[%s257 + $0xc1] sm:$0xff]
      %v749 = vld [vmem:[%s257 + $0xc9] sm:$0xff]
      %v750 = vld [vmem:[%s257 + $0xd9] sm:$0xff]
      %v751 = vld [vmem:[%s257 + $0xe1] sm:$0xff]
      %v752 = vld [vmem:[%s257 + $0xf1] sm:$0xff]
      %v753 = vld [vmem:[%s257 + $0xf9] sm:$0xff]
      %v754 = vld [vmem:[%s257 + $0x109] sm:$0xff]
      %v755 = vld [vmem:[%s257 + $0x111] sm:$0xff]
      %v756 = vld [vmem:[%s257 + $0x121] sm:$0xff]
      %v757 = vld [vmem:[%s257 + $0x129] sm:$0xff]
      %v758 = vld [vmem:[%s257 + $0x139] sm:$0xff]
      %v759 = vld [vmem:[%s257 + $0x141] sm:$0xff]
      %v760 = vld [vmem:[%s257 + $0x151] sm:$0xff]
      %v761 = vld [vmem:[%s257 + $0x159] sm:$0xff]
      %v762 = vld [vmem:[%s257 + $0x169] sm:$0xff]
      %v763 = vld [vmem:[%s257 + $0x171] sm:$0xff]
      %v764 = vlaneseq
      %v765 = vshrl.u32 %v764, 7
      %v766 = vsub.s32 1, %v765
      %v767 = vrot.slane %v291, %v766
      %v768 = vmul.f32 %v732, %v767
      %v769 = vmul.f32 %v733, %v767
      %v770 = vmul.f32 %v734, %v767
      %v771 = vmul.f32 %v735, %v767
      %v772 = vmul.f32 %v736, %v767
      %v773 = vmul.f32 %v737, %v767
      %v774 = vmul.f32 %v738, %v767
      %v775 = vmul.f32 %v739, %v767
      %v776 = vmul.f32 %v740, %v767
      %v777 = vmul.f32 %v741, %v767
      %v778 = vmul.f32 %v742, %v767
      %v779 = vmul.f32 %v743, %v767
      %v780 = vmul.f32 %v744, %v767
      %v781 = vmul.f32 %v745, %v767
      %v782 = vmul.f32 %v746, %v767
      %v783 = vmul.f32 %v747, %v767
      %v784 = vmul.f32 %v748, %v767
      %v785 = vmul.f32 %v749, %v767
      %v786 = vmul.f32 %v750, %v767
      %v787 = vmul.f32 %v751, %v767
      %v788 = vmul.f32 %v752, %v767
      %v789 = vmul.f32 %v753, %v767
      %v790 = vmul.f32 %v754, %v767
      %v791 = vmul.f32 %v755, %v767
      %v792 = vmul.f32 %v756, %v767
      %v793 = vmul.f32 %v757, %v767
      %v794 = vmul.f32 %v758, %v767
      %v795 = vmul.f32 %v759, %v767
      %v796 = vmul.f32 %v760, %v767
      %v797 = vmul.f32 %v761, %v767
      %v798 = vmul.f32 %v762, %v767
      %v799 = vmul.f32 %v763, %v767
      %v800 = vadd.f32 %v700, %v768
      %v801 = vadd.f32 %v701, %v769
      %v802 = vadd.f32 %v702, %v770
      %v803 = vadd.f32 %v703, %v771
      %v804 = vadd.f32 %v704, %v772
      %v805 = vadd.f32 %v705, %v773
      %v806 = vadd.f32 %v706, %v774
      %v807 = vadd.f32 %v707, %v775
      %v808 = vadd.f32 %v708, %v776
      %v809 = vadd.f32 %v709, %v777
      %v810 = vadd.f32 %v710, %v778
      %v811 = vadd.f32 %v711, %v779
      %v812 = vadd.f32 %v712, %v780
      %v813 = vadd.f32 %v713, %v781
      %v814 = vadd.f32 %v714, %v782
      %v815 = vadd.f32 %v715, %v783
      %v816 = vadd.f32 %v716, %v784
      %v817 = vadd.f32 %v717, %v785
      %v818 = vadd.f32 %v718, %v786
      %v819 = vadd.f32 %v719, %v787
      %v820 = vadd.f32 %v720, %v788
      %v821 = vadd.f32 %v721, %v789
      %v822 = vadd.f32 %v722, %v790
      %v823 = vadd.f32 %v723, %v791
      %v824 = vadd.f32 %v724, %v792
      %v825 = vadd.f32 %v725, %v793
      %v826 = vadd.f32 %v726, %v794
      %v827 = vadd.f32 %v727, %v795
      %v828 = vadd.f32 %v728, %v796
      %v829 = vadd.f32 %v729, %v797
      %v830 = vadd.f32 %v730, %v798
      %v831 = vadd.f32 %v731, %v799
      %v832 = vld [vmem:[%s257 + $0x2] sm:$0xff]
      %v833 = vld [vmem:[%s257 + $0xa] sm:$0xff]
      %v834 = vld [vmem:[%s257 + $0x1a] sm:$0xff]
      %v835 = vld [vmem:[%s257 + $0x22] sm:$0xff]
      %v836 = vld [vmem:[%s257 + $0x32] sm:$0xff]
      %v837 = vld [vmem:[%s257 + $0x3a] sm:$0xff]
      %v838 = vld [vmem:[%s257 + $0x4a] sm:$0xff]
      %v839 = vld [vmem:[%s257 + $0x52] sm:$0xff]
      %v840 = vld [vmem:[%s257 + $0x62] sm:$0xff]
      %v841 = vld [vmem:[%s257 + $0x6a] sm:$0xff]
      %v842 = vld [vmem:[%s257 + $0x7a] sm:$0xff]
      %v843 = vld [vmem:[%s257 + $0x82] sm:$0xff]
      %v844 = vld [vmem:[%s257 + $0x92] sm:$0xff]
      %v845 = vld [vmem:[%s257 + $0x9a] sm:$0xff]
      %v846 = vld [vmem:[%s257 + $0xaa] sm:$0xff]
      %v847 = vld [vmem:[%s257 + $0xb2] sm:$0xff]
      %v848 = vld [vmem:[%s257 + $0xc2] sm:$0xff]
      %v849 = vld [vmem:[%s257 + $0xca] sm:$0xff]
      %v850 = vld [vmem:[%s257 + $0xda] sm:$0xff]
      %v851 = vld [vmem:[%s257 + $0xe2] sm:$0xff]
      %v852 = vld [vmem:[%s257 + $0xf2] sm:$0xff]
      %v853 = vld [vmem:[%s257 + $0xfa] sm:$0xff]
      %v854 = vld [vmem:[%s257 + $0x10a] sm:$0xff]
      %v855 = vld [vmem:[%s257 + $0x112] sm:$0xff]
      %v856 = vld [vmem:[%s257 + $0x122] sm:$0xff]
      %v857 = vld [vmem:[%s257 + $0x12a] sm:$0xff]
      %v858 = vld [vmem:[%s257 + $0x13a] sm:$0xff]
      %v859 = vld [vmem:[%s257 + $0x142] sm:$0xff]
      %v860 = vld [vmem:[%s257 + $0x152] sm:$0xff]
      %v861 = vld [vmem:[%s257 + $0x15a] sm:$0xff]
      %v862 = vld [vmem:[%s257 + $0x16a] sm:$0xff]
      %v863 = vld [vmem:[%s257 + $0x172] sm:$0xff]
      %v864 = vlaneseq
      %v865 = vshrl.u32 %v864, 7
      %v866 = vsub.s32 2, %v865
      %v867 = vrot.slane %v291, %v866
      %v868 = vmul.f32 %v832, %v867
      %v869 = vmul.f32 %v833, %v867
      %v870 = vmul.f32 %v834, %v867
      %v871 = vmul.f32 %v835, %v867
      %v872 = vmul.f32 %v836, %v867
      %v873 = vmul.f32 %v837, %v867
      %v874 = vmul.f32 %v838, %v867
      %v875 = vmul.f32 %v839, %v867
      %v876 = vmul.f32 %v840, %v867
      %v877 = vmul.f32 %v841, %v867
      %v878 = vmul.f32 %v842, %v867
      %v879 = vmul.f32 %v843, %v867
      %v880 = vmul.f32 %v844, %v867
      %v881 = vmul.f32 %v845, %v867
      %v882 = vmul.f32 %v846, %v867
      %v883 = vmul.f32 %v847, %v867
      %v884 = vmul.f32 %v848, %v867
      %v885 = vmul.f32 %v849, %v867
      %v886 = vmul.f32 %v850, %v867
      %v887 = vmul.f32 %v851, %v867
      %v888 = vmul.f32 %v852, %v867
      %v889 = vmul.f32 %v853, %v867
      %v890 = vmul.f32 %v854, %v867
      %v891 = vmul.f32 %v855, %v867
      %v892 = vmul.f32 %v856, %v867
      %v893 = vmul.f32 %v857, %v867
      %v894 = vmul.f32 %v858, %v867
      %v895 = vmul.f32 %v859, %v867
      %v896 = vmul.f32 %v860, %v867
      %v897 = vmul.f32 %v861, %v867
      %v898 = vmul.f32 %v862, %v867
      %v899 = vmul.f32 %v863, %v867
      %v900 = vadd.f32 %v800, %v868
      %v901 = vadd.f32 %v801, %v869
      %v902 = vadd.f32 %v802, %v870
      %v903 = vadd.f32 %v803, %v871
      %v904 = vadd.f32 %v804, %v872
      %v905 = vadd.f32 %v805, %v873
      %v906 = vadd.f32 %v806, %v874
      %v907 = vadd.f32 %v807, %v875
      %v908 = vadd.f32 %v808, %v876
      %v909 = vadd.f32 %v809, %v877
      %v910 = vadd.f32 %v810, %v878
      %v911 = vadd.f32 %v811, %v879
      %v912 = vadd.f32 %v812, %v880
      %v913 = vadd.f32 %v813, %v881
      %v914 = vadd.f32 %v814, %v882
      %v915 = vadd.f32 %v815, %v883
      %v916 = vadd.f32 %v816, %v884
      %v917 = vadd.f32 %v817, %v885
      %v918 = vadd.f32 %v818, %v886
      %v919 = vadd.f32 %v819, %v887
      %v920 = vadd.f32 %v820, %v888
      %v921 = vadd.f32 %v821, %v889
      %v922 = vadd.f32 %v822, %v890
      %v923 = vadd.f32 %v823, %v891
      %v924 = vadd.f32 %v824, %v892
      %v925 = vadd.f32 %v825, %v893
      %v926 = vadd.f32 %v826, %v894
      %v927 = vadd.f32 %v827, %v895
      %v928 = vadd.f32 %v828, %v896
      %v929 = vadd.f32 %v829, %v897
      %v930 = vadd.f32 %v830, %v898
      %v931 = vadd.f32 %v831, %v899
      %s932 = scalar_lea.vmem [#allocation2], 48
      %v933 = vld [vmem:[%s932] sm:$0xff]
      %v934 = vld [vmem:[%s932 + $0x8] sm:$0xff]
      %v935 = vld [vmem:[%s932 + $0x18] sm:$0xff]
      %v936 = vld [vmem:[%s932 + $0x20] sm:$0xff]
      %v937 = vld [vmem:[%s932 + $0x30] sm:$0xff]
      %v938 = vld [vmem:[%s932 + $0x38] sm:$0xff]
      %v939 = vld [vmem:[%s932 + $0x48] sm:$0xff]
      %v940 = vld [vmem:[%s932 + $0x50] sm:$0xff]
      %v941 = vld [vmem:[%s932 + $0x60] sm:$0xff]
      %v942 = vld [vmem:[%s932 + $0x68] sm:$0xff]
      %v943 = vld [vmem:[%s932 + $0x78] sm:$0xff]
      %v944 = vld [vmem:[%s932 + $0x80] sm:$0xff]
      %v945 = vld [vmem:[%s932 + $0x90] sm:$0xff]
      %v946 = vld [vmem:[%s932 + $0x98] sm:$0xff]
      %v947 = vld [vmem:[%s932 + $0xa8] sm:$0xff]
      %v948 = vld [vmem:[%s932 + $0xb0] sm:$0xff]
      %v949 = vld [vmem:[%s932 + $0xc0] sm:$0xff]
      %v950 = vld [vmem:[%s932 + $0xc8] sm:$0xff]
      %v951 = vld [vmem:[%s932 + $0xd8] sm:$0xff]
      %v952 = vld [vmem:[%s932 + $0xe0] sm:$0xff]
      %v953 = vld [vmem:[%s932 + $0xf0] sm:$0xff]
      %v954 = vld [vmem:[%s932 + $0xf8] sm:$0xff]
      %v955 = vld [vmem:[%s932 + $0x108] sm:$0xff]
      %v956 = vld [vmem:[%s932 + $0x110] sm:$0xff]
      %v957 = vld [vmem:[%s932 + $0x120] sm:$0xff]
      %v958 = vld [vmem:[%s932 + $0x128] sm:$0xff]
      %v959 = vld [vmem:[%s932 + $0x138] sm:$0xff]
      %v960 = vld [vmem:[%s932 + $0x140] sm:$0xff]
      %v961 = vld [vmem:[%s932 + $0x150] sm:$0xff]
      %v962 = vld [vmem:[%s932 + $0x158] sm:$0xff]
      %v963 = vld [vmem:[%s932 + $0x168] sm:$0xff]
      %v964 = vld [vmem:[%s932 + $0x170] sm:$0xff]
      %v965 = vlaneseq
      %v966 = vshrl.u32 %v965, 7
      %v967 = vsub.s32 0, %v966
      %v968 = vrot.slane %v292, %v967
      %v969 = vmul.f32 %v933, %v968
      %v970 = vmul.f32 %v934, %v968
      %v971 = vmul.f32 %v935, %v968
      %v972 = vmul.f32 %v936, %v968
      %v973 = vmul.f32 %v937, %v968
      %v974 = vmul.f32 %v938, %v968
      %v975 = vmul.f32 %v939, %v968
      %v976 = vmul.f32 %v940, %v968
      %v977 = vmul.f32 %v941, %v968
      %v978 = vmul.f32 %v942, %v968
      %v979 = vmul.f32 %v943, %v968
      %v980 = vmul.f32 %v944, %v968
      %v981 = vmul.f32 %v945, %v968
      %v982 = vmul.f32 %v946, %v968
      %v983 = vmul.f32 %v947, %v968
      %v984 = vmul.f32 %v948, %v968
      %v985 = vmul.f32 %v949, %v968
      %v986 = vmul.f32 %v950, %v968
      %v987 = vmul.f32 %v951, %v968
      %v988 = vmul.f32 %v952, %v968
      %v989 = vmul.f32 %v953, %v968
      %v990 = vmul.f32 %v954, %v968
      %v991 = vmul.f32 %v955, %v968
      %v992 = vmul.f32 %v956, %v968
      %v993 = vmul.f32 %v957, %v968
      %v994 = vmul.f32 %v958, %v968
      %v995 = vmul.f32 %v959, %v968
      %v996 = vmul.f32 %v960, %v968
      %v997 = vmul.f32 %v961, %v968
      %v998 = vmul.f32 %v962, %v968
      %v999 = vmul.f32 %v963, %v968
      %v1000 = vmul.f32 %v964, %v968
      %v1001 = vadd.f32 %v900, %v969
      %v1002 = vadd.f32 %v901, %v970
      %v1003 = vadd.f32 %v902, %v971
      %v1004 = vadd.f32 %v903, %v972
      %v1005 = vadd.f32 %v904, %v973
      %v1006 = vadd.f32 %v905, %v974
      %v1007 = vadd.f32 %v906, %v975
      %v1008 = vadd.f32 %v907, %v976
      %v1009 = vadd.f32 %v908, %v977
      %v1010 = vadd.f32 %v909, %v978
      %v1011 = vadd.f32 %v910, %v979
      %v1012 = vadd.f32 %v911, %v980
      %v1013 = vadd.f32 %v912, %v981
      %v1014 = vadd.f32 %v913, %v982
      %v1015 = vadd.f32 %v914, %v983
      %v1016 = vadd.f32 %v915, %v984
      %v1017 = vadd.f32 %v916, %v985
      %v1018 = vadd.f32 %v917, %v986
      %v1019 = vadd.f32 %v918, %v987
      %v1020 = vadd.f32 %v919, %v988
      %v1021 = vadd.f32 %v920, %v989
      %v1022 = vadd.f32 %v921, %v990
      %v1023 = vadd.f32 %v922, %v991
      %v1024 = vadd.f32 %v923, %v992
      %v1025 = vadd.f32 %v924, %v993
      %v1026 = vadd.f32 %v925, %v994
      %v1027 = vadd.f32 %v926, %v995
      %v1028 = vadd.f32 %v927, %v996
      %v1029 = vadd.f32 %v928, %v997
      %v1030 = vadd.f32 %v929, %v998
      %v1031 = vadd.f32 %v930, %v999
      %v1032 = vadd.f32 %v931, %v1000
      %v1033 = vld [vmem:[%s932 + $0x1] sm:$0xff]
      %v1034 = vld [vmem:[%s932 + $0x9] sm:$0xff]
      %v1035 = vld [vmem:[%s932 + $0x19] sm:$0xff]
      %v1036 = vld [vmem:[%s932 + $0x21] sm:$0xff]
      %v1037 = vld [vmem:[%s932 + $0x31] sm:$0xff]
      %v1038 = vld [vmem:[%s932 + $0x39] sm:$0xff]
      %v1039 = vld [vmem:[%s932 + $0x49] sm:$0xff]
      %v1040 = vld [vmem:[%s932 + $0x51] sm:$0xff]
      %v1041 = vld [vmem:[%s932 + $0x61] sm:$0xff]
      %v1042 = vld [vmem:[%s932 + $0x69] sm:$0xff]
      %v1043 = vld [vmem:[%s932 + $0x79] sm:$0xff]
      %v1044 = vld [vmem:[%s932 + $0x81] sm:$0xff]
      %v1045 = vld [vmem:[%s932 + $0x91] sm:$0xff]
      %v1046 = vld [vmem:[%s932 + $0x99] sm:$0xff]
      %v1047 = vld [vmem:[%s932 + $0xa9] sm:$0xff]
      %v1048 = vld [vmem:[%s932 + $0xb1] sm:$0xff]
      %v1049 = vld [vmem:[%s932 + $0xc1] sm:$0xff]
      %v1050 = vld [vmem:[%s932 + $0xc9] sm:$0xff]
      %v1051 = vld [vmem:[%s932 + $0xd9] sm:$0xff]
      %v1052 = vld [vmem:[%s932 + $0xe1] sm:$0xff]
      %v1053 = vld [vmem:[%s932 + $0xf1] sm:$0xff]
      %v1054 = vld [vmem:[%s932 + $0xf9] sm:$0xff]
      %v1055 = vld [vmem:[%s932 + $0x109] sm:$0xff]
      %v1056 = vld [vmem:[%s932 + $0x111] sm:$0xff]
      %v1057 = vld [vmem:[%s932 + $0x121] sm:$0xff]
      %v1058 = vld [vmem:[%s932 + $0x129] sm:$0xff]
      %v1059 = vld [vmem:[%s932 + $0x139] sm:$0xff]
      %v1060 = vld [vmem:[%s932 + $0x141] sm:$0xff]
      %v1061 = vld [vmem:[%s932 + $0x151] sm:$0xff]
      %v1062 = vld [vmem:[%s932 + $0x159] sm:$0xff]
      %v1063 = vld [vmem:[%s932 + $0x169] sm:$0xff]
      %v1064 = vld [vmem:[%s932 + $0x171] sm:$0xff]
      %v1065 = vlaneseq
      %v1066 = vshrl.u32 %v1065, 7
      %v1067 = vsub.s32 1, %v1066
      %v1068 = vrot.slane %v292, %v1067
      %v1069 = vmul.f32 %v1033, %v1068
      %v1070 = vmul.f32 %v1034, %v1068
      %v1071 = vmul.f32 %v1035, %v1068
      %v1072 = vmul.f32 %v1036, %v1068
      %v1073 = vmul.f32 %v1037, %v1068
      %v1074 = vmul.f32 %v1038, %v1068
      %v1075 = vmul.f32 %v1039, %v1068
      %v1076 = vmul.f32 %v1040, %v1068
      %v1077 = vmul.f32 %v1041, %v1068
      %v1078 = vmul.f32 %v1042, %v1068
      %v1079 = vmul.f32 %v1043, %v1068
      %v1080 = vmul.f32 %v1044, %v1068
      %v1081 = vmul.f32 %v1045, %v1068
      %v1082 = vmul.f32 %v1046, %v1068
      %v1083 = vmul.f32 %v1047, %v1068
      %v1084 = vmul.f32 %v1048, %v1068
      %v1085 = vmul.f32 %v1049, %v1068
      %v1086 = vmul.f32 %v1050, %v1068
      %v1087 = vmul.f32 %v1051, %v1068
      %v1088 = vmul.f32 %v1052, %v1068
      %v1089 = vmul.f32 %v1053, %v1068
      %v1090 = vmul.f32 %v1054, %v1068
      %v1091 = vmul.f32 %v1055, %v1068
      %v1092 = vmul.f32 %v1056, %v1068
      %v1093 = vmul.f32 %v1057, %v1068
      %v1094 = vmul.f32 %v1058, %v1068
      %v1095 = vmul.f32 %v1059, %v1068
      %v1096 = vmul.f32 %v1060, %v1068
      %v1097 = vmul.f32 %v1061, %v1068
      %v1098 = vmul.f32 %v1062, %v1068
      %v1099 = vmul.f32 %v1063, %v1068
      %v1100 = vmul.f32 %v1064, %v1068
      %v1101 = vadd.f32 %v1001, %v1069
      %v1102 = vadd.f32 %v1002, %v1070
      %v1103 = vadd.f32 %v1003, %v1071
      %v1104 = vadd.f32 %v1004, %v1072
      %v1105 = vadd.f32 %v1005, %v1073
      %v1106 = vadd.f32 %v1006, %v1074
      %v1107 = vadd.f32 %v1007, %v1075
      %v1108 = vadd.f32 %v1008, %v1076
      %v1109 = vadd.f32 %v1009, %v1077
      %v1110 = vadd.f32 %v1010, %v1078
      %v1111 = vadd.f32 %v1011, %v1079
      %v1112 = vadd.f32 %v1012, %v1080
      %v1113 = vadd.f32 %v1013, %v1081
      %v1114 = vadd.f32 %v1014, %v1082
      %v1115 = vadd.f32 %v1015, %v1083
      %v1116 = vadd.f32 %v1016, %v1084
      %v1117 = vadd.f32 %v1017, %v1085
      %v1118 = vadd.f32 %v1018, %v1086
      %v1119 = vadd.f32 %v1019, %v1087
      %v1120 = vadd.f32 %v1020, %v1088
      %v1121 = vadd.f32 %v1021, %v1089
      %v1122 = vadd.f32 %v1022, %v1090
      %v1123 = vadd.f32 %v1023, %v1091
      %v1124 = vadd.f32 %v1024, %v1092
      %v1125 = vadd.f32 %v1025, %v1093
      %v1126 = vadd.f32 %v1026, %v1094
      %v1127 = vadd.f32 %v1027, %v1095
      %v1128 = vadd.f32 %v1028, %v1096
      %v1129 = vadd.f32 %v1029, %v1097
      %v1130 = vadd.f32 %v1030, %v1098
      %v1131 = vadd.f32 %v1031, %v1099
      %v1132 = vadd.f32 %v1032, %v1100
      %v1133 = vld [vmem:[%s932 + $0x2] sm:$0xff]
      %v1134 = vld [vmem:[%s932 + $0xa] sm:$0xff]
      %v1135 = vld [vmem:[%s932 + $0x1a] sm:$0xff]
      %v1136 = vld [vmem:[%s932 + $0x22] sm:$0xff]
      %v1137 = vld [vmem:[%s932 + $0x32] sm:$0xff]
      %v1138 = vld [vmem:[%s932 + $0x3a] sm:$0xff]
      %v1139 = vld [vmem:[%s932 + $0x4a] sm:$0xff]
      %v1140 = vld [vmem:[%s932 + $0x52] sm:$0xff]
      %v1141 = vld [vmem:[%s932 + $0x62] sm:$0xff]
      %v1142 = vld [vmem:[%s932 + $0x6a] sm:$0xff]
      %v1143 = vld [vmem:[%s932 + $0x7a] sm:$0xff]
      %v1144 = vld [vmem:[%s932 + $0x82] sm:$0xff]
      %v1145 = vld [vmem:[%s932 + $0x92] sm:$0xff]
      %v1146 = vld [vmem:[%s932 + $0x9a] sm:$0xff]
      %v1147 = vld [vmem:[%s932 + $0xaa] sm:$0xff]
      %v1148 = vld [vmem:[%s932 + $0xb2] sm:$0xff]
      %v1149 = vld [vmem:[%s932 + $0xc2] sm:$0xff]
      %v1150 = vld [vmem:[%s932 + $0xca] sm:$0xff]
      %v1151 = vld [vmem:[%s932 + $0xda] sm:$0xff]
      %v1152 = vld [vmem:[%s932 + $0xe2] sm:$0xff]
      %v1153 = vld [vmem:[%s932 + $0xf2] sm:$0xff]
      %v1154 = vld [vmem:[%s932 + $0xfa] sm:$0xff]
      %v1155 = vld [vmem:[%s932 + $0x10a] sm:$0xff]
      %v1156 = vld [vmem:[%s932 + $0x112] sm:$0xff]
      %v1157 = vld [vmem:[%s932 + $0x122] sm:$0xff]
      %v1158 = vld [vmem:[%s932 + $0x12a] sm:$0xff]
      %v1159 = vld [vmem:[%s932 + $0x13a] sm:$0xff]
      %v1160 = vld [vmem:[%s932 + $0x142] sm:$0xff]
      %v1161 = vld [vmem:[%s932 + $0x152] sm:$0xff]
      %v1162 = vld [vmem:[%s932 + $0x15a] sm:$0xff]
      %v1163 = vld [vmem:[%s932 + $0x16a] sm:$0xff]
      %v1164 = vld [vmem:[%s932 + $0x172] sm:$0xff]
      %v1165 = vlaneseq
      %v1166 = vshrl.u32 %v1165, 7
      %v1167 = vsub.s32 2, %v1166
      %v1168 = vrot.slane %v292, %v1167
      %v1169 = vmul.f32 %v1133, %v1168
      %v1170 = vmul.f32 %v1134, %v1168
      %v1171 = vmul.f32 %v1135, %v1168
      %v1172 = vmul.f32 %v1136, %v1168
      %v1173 = vmul.f32 %v1137, %v1168
      %v1174 = vmul.f32 %v1138, %v1168
      %v1175 = vmul.f32 %v1139, %v1168
      %v1176 = vmul.f32 %v1140, %v1168
      %v1177 = vmul.f32 %v1141, %v1168
      %v1178 = vmul.f32 %v1142, %v1168
      %v1179 = vmul.f32 %v1143, %v1168
      %v1180 = vmul.f32 %v1144, %v1168
      %v1181 = vmul.f32 %v1145, %v1168
      %v1182 = vmul.f32 %v1146, %v1168
      %v1183 = vmul.f32 %v1147, %v1168
      %v1184 = vmul.f32 %v1148, %v1168
      %v1185 = vmul.f32 %v1149, %v1168
      %v1186 = vmul.f32 %v1150, %v1168
      %v1187 = vmul.f32 %v1151, %v1168
      %v1188 = vmul.f32 %v1152, %v1168
      %v1189 = vmul.f32 %v1153, %v1168
      %v1190 = vmul.f32 %v1154, %v1168
      %v1191 = vmul.f32 %v1155, %v1168
      %v1192 = vmul.f32 %v1156, %v1168
      %v1193 = vmul.f32 %v1157, %v1168
      %v1194 = vmul.f32 %v1158, %v1168
      %v1195 = vmul.f32 %v1159, %v1168
      %v1196 = vmul.f32 %v1160, %v1168
      %v1197 = vmul.f32 %v1161, %v1168
      %v1198 = vmul.f32 %v1162, %v1168
      %v1199 = vmul.f32 %v1163, %v1168
      %v1200 = vmul.f32 %v1164, %v1168
      %v1201 = vadd.f32 %v1101, %v1169
      %v1202 = vadd.f32 %v1102, %v1170
      %v1203 = vadd.f32 %v1103, %v1171
      %v1204 = vadd.f32 %v1104, %v1172
      %v1205 = vadd.f32 %v1105, %v1173
      %v1206 = vadd.f32 %v1106, %v1174
      %v1207 = vadd.f32 %v1107, %v1175
      %v1208 = vadd.f32 %v1108, %v1176
      %v1209 = vadd.f32 %v1109, %v1177
      %v1210 = vadd.f32 %v1110, %v1178
      %v1211 = vadd.f32 %v1111, %v1179
      %v1212 = vadd.f32 %v1112, %v1180
      %v1213 = vadd.f32 %v1113, %v1181
      %v1214 = vadd.f32 %v1114, %v1182
      %v1215 = vadd.f32 %v1115, %v1183
      %v1216 = vadd.f32 %v1116, %v1184
      %v1217 = vadd.f32 %v1117, %v1185
      %v1218 = vadd.f32 %v1118, %v1186
      %v1219 = vadd.f32 %v1119, %v1187
      %v1220 = vadd.f32 %v1120, %v1188
      %v1221 = vadd.f32 %v1121, %v1189
      %v1222 = vadd.f32 %v1122, %v1190
      %v1223 = vadd.f32 %v1123, %v1191
      %v1224 = vadd.f32 %v1124, %v1192
      %v1225 = vadd.f32 %v1125, %v1193
      %v1226 = vadd.f32 %v1126, %v1194
      %v1227 = vadd.f32 %v1127, %v1195
      %v1228 = vadd.f32 %v1128, %v1196
      %v1229 = vadd.f32 %v1129, %v1197
      %v1230 = vadd.f32 %v1130, %v1198
      %v1231 = vadd.f32 %v1131, %v1199
      %v1232 = vadd.f32 %v1132, %v1200
      %1233 = vst [vmem:[%s170] sm:$0xff] %v1201
      %1234 = vst [vmem:[%s170 + $0x8] sm:$0xff] %v1202
      %1235 = vst [vmem:[%s170 + $0x10] sm:$0xff] %v1203
      %1236 = vst [vmem:[%s170 + $0x18] sm:$0xff] %v1204
      %1237 = vst [vmem:[%s170 + $0x20] sm:$0xff] %v1205
      %1238 = vst [vmem:[%s170 + $0x28] sm:$0xff] %v1206
      %1239 = vst [vmem:[%s170 + $0x30] sm:$0xff] %v1207
      %1240 = vst [vmem:[%s170 + $0x38] sm:$0xff] %v1208
      %1241 = vst [vmem:[%s170 + $0x40] sm:$0xff] %v1209
      %1242 = vst [vmem:[%s170 + $0x48] sm:$0xff] %v1210
      %1243 = vst [vmem:[%s170 + $0x50] sm:$0xff] %v1211
      %1244 = vst [vmem:[%s170 + $0x58] sm:$0xff] %v1212
      %1245 = vst [vmem:[%s170 + $0x60] sm:$0xff] %v1213
      %1246 = vst [vmem:[%s170 + $0x68] sm:$0xff] %v1214
      %1247 = vst [vmem:[%s170 + $0x70] sm:$0xff] %v1215
      %1248 = vst [vmem:[%s170 + $0x78] sm:$0xff] %v1216
      %1249 = vst [vmem:[%s170 + $0x80] sm:$0xff] %v1217
      %1250 = vst [vmem:[%s170 + $0x88] sm:$0xff] %v1218
      %1251 = vst [vmem:[%s170 + $0x90] sm:$0xff] %v1219
      %1252 = vst [vmem:[%s170 + $0x98] sm:$0xff] %v1220
      %1253 = vst [vmem:[%s170 + $0xa0] sm:$0xff] %v1221
      %1254 = vst [vmem:[%s170 + $0xa8] sm:$0xff] %v1222
      %1255 = vst [vmem:[%s170 + $0xb0] sm:$0xff] %v1223
      %1256 = vst [vmem:[%s170 + $0xb8] sm:$0xff] %v1224
      %1257 = vst [vmem:[%s170 + $0xc0] sm:$0xff] %v1225
      %1258 = vst [vmem:[%s170 + $0xc8] sm:$0xff] %v1226
      %1259 = vst [vmem:[%s170 + $0xd0] sm:$0xff] %v1227
      %1260 = vst [vmem:[%s170 + $0xd8] sm:$0xff] %v1228
      %1261 = vst [vmem:[%s170 + $0xe0] sm:$0xff] %v1229
      %1262 = vst [vmem:[%s170 + $0xe8] sm:$0xff] %v1230
      %1263 = vst [vmem:[%s170 + $0xf0] sm:$0xff] %v1231
      %1264 = vst [vmem:[%s170 + $0xf8] sm:$0xff] %v1232
      %p1265 = scmp.lt.s32.totalorder %s14, 1
      %s1266 = scalar_select %p1265, %s14, 1
      %s1267 = smul.addr %s1266, 32
      %s1268 = smul.addr %s1267, 8
      %s1269 = scalar_lea.vmem %s3, %s1268
      // Predicated region
      $region33: #{context_self_block.3} parent=31 // pred_check
        %p1270 = pneg %p100
      $region34: #{context_self_block.3} parent=31 // pred_check_branch
        %1272 = sbr.rel (%p1270) target = $region36
      $region35: #{context_self_block.3} parent=31 // pred_region
        _
      $region36: #{context_self_block.3} parent=31 // pred_fallthru
        _
    $region32: #{context_self_block.3} parent=5 // pred_fallthru
      _
    %p1273 = scmp.le.s32.totalorder 2, %s9
    // Predicated region
    $region37: #{context_self_block.3} parent=5 // pred_check
      %p1274 = pneg %p1273
    $region38: #{context_self_block.3} parent=5 // pred_check_branch
      %1276 = sbr.rel (%p1274) target = $region40
    $region39: #{context_self_block.3} parent=5 // pred_region
      %s1277 = ssub.s32 %s9, 2
      // Predicated region
      $region41: #{context_self_block.3} parent=39 // pred_check
        %p1278 = pneg %p106
      $region42: #{context_self_block.3} parent=39 // pred_check_branch
        %1280 = sbr.rel (%p1278) target = $region44
      $region43: #{context_self_block.3} parent=39 // pred_region
        %p1281 = scmp.lt.s32.totalorder %s15, 1
        %s1282 = scalar_select %p1281, %s15, 1
        %s1283 = smul.addr %s1282, 32
        %s1284 = smul.addr %s1283, 8
        %s1285 = scalar_lea.vmem %s3, %s1284
      $region44: #{context_self_block.3} parent=39 // pred_fallthru
        _
    $region40: #{context_self_block.3} parent=5 // pred_fallthru
      _
  $region6: #{context_self_block.3} parent=0 // loop_footer
    %s13 = sadd.s32 1, %s9
  $region7: #{context_self_block.3} parent=0 // loop_footer_branch
    %8 = sbr.rel target = $region3
  $region8: #{context_self_block.3} parent=0 // loop_exit
    _

// kernel: context_self_block.4
$region0: #{context_self_block.4}
  #allocation0 [shape = 'u32[]', space=smem, size = 0x4, offset = 0x4, fixed_abs, tag = 'smem constant byte address 0x4 - core index']
  #allocation1 [shape = 'u32[144,128]{1,0:T(1,128)}', space=vmem, size = 0x12000, scoped, tag = 'internal scratch']
  #allocation2 [shape = 'f32[18,128]{1,0:T(8,128)}', space=vmem, size = 0x3000, scoped, tag = 'scratch operand']
  %s0 = inlined_call_operand.vmem [shape: f32[2,256,128], index: 0, kind: input, shape index: {}]
  %s1 = inlined_call_operand.vmem [shape: bf16[18,256], index: 1, kind: input, shape index: {}]
  %s2 = inlined_call_operand.vmem [shape: bf16[2,128,256], index: 2, kind: input, shape index: {}]
  %s3 = inlined_call_operand.vmem [shape: f32[2,1,256], index: 3, kind: input, shape index: {}]
  %s4 = inlined_call_operand.vmem [shape: bf16[2,2,128,64], index: 4, kind: output, shape index: {0}]
  %s5 = inlined_call_operand.vmem [shape: bf16[2,2,64,128], index: 5, kind: output, shape index: {1}]
  %6 = xla_tuple %s4, %s5
  %s7 = sld [smem:[#allocation0]]
  $region65: #{context_self_block.4} parent=0
    _
  %s9 = ssub.s32 1, %s7
  %s10 = scalar_select 0, %s9, %s7
  loop: start=0, step=1, limit=4
  $region2: #{context_self_block.4} parent=0 // loop_pre_header
    _
  $region3: #{context_self_block.4} parent=0 // loop_header
    %s12 = sphi 0, %s16
    %p13 = scmp.ge.s32.totalorder %s12, 4
    %s19 = sphi 0, %s31
    %s20 = sphi 0, %s27
    %s21 = sphi 0, %s19
    %s22 = sphi 0, %s20
    %s23 = sphi 0, %s21
    %s24 = sphi 0, %s22
    %s36 = sphi 0, %s38
    %s39 = sphi 0, %s36
    %s40 = sphi 0, %s39
    %s56 = sphi 0, %s40
    %s62 = sphi 0, %s64
    %s65 = sphi 0, %s62
    %s66 = sphi 0, %s65
    %s82 = sphi 0, %s66
    %s86 = sphi 0, %s86
    %s88 = sphi 0, %s86
    %s89 = sphi 0, %s88
    %s103 = sphi 0, %s89
    %s107 = sphi 0, %s107
    %s109 = sphi 0, %s107
    %s110 = sphi 0, %s109
    %s124 = sphi 0, %s110
    %s130 = sphi 0, %s132
    %s133 = sphi 0, %s130
    %s134 = sphi 0, %s133
    %s150 = sphi 0, %s134
    %s156 = sphi 0, %s158
    %s159 = sphi 0, %s156
    %s160 = sphi 0, %s159
    %s176 = sphi 0, %s160
  $region4: #{context_self_block.4} parent=0 // loop_header_branch
    %15 = sbr.rel (%p13) target = $region8
  $region5: #{context_self_block.4} parent=0 // loop_body
    %s17 = ssub.s32 %s12, 1
    %s18 = ssub.s32 %s12, 2
    %s25 = sadd.s32 1, %s20
    %p26 = scmp.ge.s32.totalorder %s25, 1
    %s27 = scalar_select %p26, 0, %s25
    %s28 = sadd.s32 1, %s19
    %s29 = scalar_select %p26, %s28, %s19
    %p30 = scmp.ge.s32.totalorder %s29, 2
    %s31 = scalar_select %p30, 0, %s29
    %s32 = ssub.s32 %s19, %s31
    %s33 = ssub.s32 %s20, %s27
    %s34 = sor.u32 %s32, %s33
    %p35 = scmp.eq.s32.totalorder %s34, 0
    %s37 = sadd.s32 %s36, 1
    %s38 = scalar_select %p35, %s36, %s37
    %p41 = pneg %p35
    %p42 = scmp.eq.s32.totalorder %s12, 1
    %p43 = por %p41, %p42
    %p44 = scmp.ne.s32.totalorder %s36, %s39
    %p45 = scmp.eq.s32.totalorder %s12, 0
    %p46 = por %p44, %p45
    %p47 = scmp.ne.s32.totalorder %s36, %s39
    %p48 = scmp.eq.s32.totalorder %s17, 1
    %p49 = por %p47, %p48
    %p50 = scmp.ne.s32.totalorder %s39, %s40
    %p51 = scmp.eq.s32.totalorder %s17, 0
    %p52 = por %p50, %p51
    %p53 = scmp.ne.s32.totalorder %s39, %s40
    %p54 = scmp.eq.s32.totalorder %s18, 1
    %p55 = por %p53, %p54
    %p57 = scmp.ne.s32.totalorder %s40, %s56
    %p58 = scmp.eq.s32.totalorder %s18, 0
    %p59 = por %p57, %p58
    %s60 = ssub.s32 %s20, %s27
    %p61 = scmp.eq.s32.totalorder %s60, 0
    %s63 = sadd.s32 %s62, 1
    %s64 = scalar_select %p61, %s62, %s63
    %p67 = pneg %p61
    %p68 = scmp.eq.s32.totalorder %s12, 1
    %p69 = por %p67, %p68
    %p70 = scmp.ne.s32.totalorder %s62, %s65
    %p71 = scmp.eq.s32.totalorder %s12, 0
    %p72 = por %p70, %p71
    %p73 = scmp.ne.s32.totalorder %s62, %s65
    %p74 = scmp.eq.s32.totalorder %s17, 1
    %p75 = por %p73, %p74
    %p76 = scmp.ne.s32.totalorder %s65, %s66
    %p77 = scmp.eq.s32.totalorder %s17, 0
    %p78 = por %p76, %p77
    %p79 = scmp.ne.s32.totalorder %s65, %s66
    %p80 = scmp.eq.s32.totalorder %s18, 1
    %p81 = por %p79, %p80
    %p83 = scmp.ne.s32.totalorder %s66, %s82
    %p84 = scmp.eq.s32.totalorder %s18, 0
    %p85 = por %p83, %p84
    %s87 = sadd.s32 %s86, 1
    %p90 = scmp.eq.s32.totalorder %s12, 1
    %p91 = scmp.ne.s32.totalorder %s86, %s88
    %p92 = scmp.eq.s32.totalorder %s12, 0
    %p93 = por %p91, %p92
    %p94 = scmp.ne.s32.totalorder %s86, %s88
    %p95 = scmp.eq.s32.totalorder %s17, 1
    %p96 = por %p94, %p95
    %p97 = scmp.ne.s32.totalorder %s88, %s89
    %p98 = scmp.eq.s32.totalorder %s17, 0
    %p99 = por %p97, %p98
    %p100 = scmp.ne.s32.totalorder %s88, %s89
    %p101 = scmp.eq.s32.totalorder %s18, 1
    %p102 = por %p100, %p101
    %p104 = scmp.ne.s32.totalorder %s89, %s103
    %p105 = scmp.eq.s32.totalorder %s18, 0
    %p106 = por %p104, %p105
    %s108 = sadd.s32 %s107, 1
    %p111 = scmp.eq.s32.totalorder %s12, 1
    %p112 = scmp.ne.s32.totalorder %s107, %s109
    %p113 = scmp.eq.s32.totalorder %s12, 0
    %p114 = por %p112, %p113
    %p115 = scmp.ne.s32.totalorder %s107, %s109
    %p116 = scmp.eq.s32.totalorder %s17, 1
    %p117 = por %p115, %p116
    %p118 = scmp.ne.s32.totalorder %s109, %s110
    %p119 = scmp.eq.s32.totalorder %s17, 0
    %p120 = por %p118, %p119
    %p121 = scmp.ne.s32.totalorder %s109, %s110
    %p122 = scmp.eq.s32.totalorder %s18, 1
    %p123 = por %p121, %p122
    %p125 = scmp.ne.s32.totalorder %s110, %s124
    %p126 = scmp.eq.s32.totalorder %s18, 0
    %p127 = por %p125, %p126
    %s128 = ssub.s32 %s19, %s31
    %p129 = scmp.eq.s32.totalorder %s128, 0
    %s131 = sadd.s32 %s130, 1
    %s132 = scalar_select %p129, %s130, %s131
    %p135 = pneg %p129
    %p136 = scmp.eq.s32.totalorder %s12, 1
    %p137 = por %p135, %p136
    %p138 = scmp.ne.s32.totalorder %s130, %s133
    %p139 = scmp.eq.s32.totalorder %s12, 0
    %p140 = por %p138, %p139
    %p141 = scmp.ne.s32.totalorder %s130, %s133
    %p142 = scmp.eq.s32.totalorder %s17, 1
    %p143 = por %p141, %p142
    %p144 = scmp.ne.s32.totalorder %s133, %s134
    %p145 = scmp.eq.s32.totalorder %s17, 0
    %p146 = por %p144, %p145
    %p147 = scmp.ne.s32.totalorder %s133, %s134
    %p148 = scmp.eq.s32.totalorder %s18, 1
    %p149 = por %p147, %p148
    %p151 = scmp.ne.s32.totalorder %s134, %s150
    %p152 = scmp.eq.s32.totalorder %s18, 0
    %p153 = por %p151, %p152
    %s154 = ssub.s32 %s19, %s31
    %p155 = scmp.eq.s32.totalorder %s154, 0
    %s157 = sadd.s32 %s156, 1
    %s158 = scalar_select %p155, %s156, %s157
    %p161 = pneg %p155
    %p162 = scmp.eq.s32.totalorder %s12, 1
    %p163 = por %p161, %p162
    %p164 = scmp.ne.s32.totalorder %s156, %s159
    %p165 = scmp.eq.s32.totalorder %s12, 0
    %p166 = por %p164, %p165
    %p167 = scmp.ne.s32.totalorder %s156, %s159
    %p168 = scmp.eq.s32.totalorder %s17, 1
    %p169 = por %p167, %p168
    %p170 = scmp.ne.s32.totalorder %s159, %s160
    %p171 = scmp.eq.s32.totalorder %s17, 0
    %p172 = por %p170, %p171
    %p173 = scmp.ne.s32.totalorder %s159, %s160
    %p174 = scmp.eq.s32.totalorder %s18, 1
    %p175 = por %p173, %p174
    %p177 = scmp.ne.s32.totalorder %s160, %s176
    %p178 = scmp.eq.s32.totalorder %s18, 0
    %p179 = por %p177, %p178
    %p180 = scmp.le.s32.totalorder 1, %s12
    %p181 = scmp.lt.s32.totalorder %s12, 3
    %p182 = pnand %p180, %p181
    %p183 = pneg %p182
    // Predicated region
    $region9: #{context_self_block.4} parent=5 // pred_check
      _
    $region10: #{context_self_block.4} parent=5 // pred_check_branch
      %185 = sbr.rel (%p182) target = $region12
    $region11: #{context_self_block.4} parent=5 // pred_region
      %s186 = ssub.s32 %s12, 1
      // Predicated region
      $region13: #{context_self_block.4} parent=11 // pred_check
        %p187 = pneg %p78
      $region14: #{context_self_block.4} parent=11 // pred_check_branch
        %189 = sbr.rel (%p187) target = $region16
      $region15: #{context_self_block.4} parent=11 // pred_region
        %s190 = smul.u32 2, %s22
        %p191 = scmp.lt.s32.totalorder %s190, 1
        %s192 = scalar_select %p191, %s190, 1
        %s193 = smul.addr %s192, 4
        %s194 = scalar_lea.vmem %s1, %s193
        %s195 = smul.u32 2, %s22
      $region16: #{context_self_block.4} parent=11 // pred_fallthru
        _
      // Predicated region
      $region17: #{context_self_block.4} parent=11 // pred_check
        %p196 = pneg %p99
      $region18: #{context_self_block.4} parent=11 // pred_check_branch
        %198 = sbr.rel (%p196) target = $region20
      $region19: #{context_self_block.4} parent=11 // pred_region
        _
      $region20: #{context_self_block.4} parent=11 // pred_fallthru
        _
      // Predicated region
      $region21: #{context_self_block.4} parent=11 // pred_check
        %p199 = pneg %p120
      $region22: #{context_self_block.4} parent=11 // pred_check_branch
        %201 = sbr.rel (%p199) target = $region24
      $region23: #{context_self_block.4} parent=11 // pred_region
        _
      $region24: #{context_self_block.4} parent=11 // pred_fallthru
        _
    $region12: #{context_self_block.4} parent=5 // pred_fallthru
      _
    %p202 = scmp.lt.s32.totalorder %s12, 2
    // Predicated region
    $region25: #{context_self_block.4} parent=5 // pred_check
      %p203 = pneg %p202
    $region26: #{context_self_block.4} parent=5 // pred_check_branch
      %205 = sbr.rel (%p203) target = $region28
    $region27: #{context_self_block.4} parent=5 // pred_region
      // Predicated region
      $region29: #{context_self_block.4} parent=27 // pred_check
        %p206 = pneg %p46
      $region30: #{context_self_block.4} parent=27 // pred_check_branch
        %208 = sbr.rel (%p206) target = $region32
      $region31: #{context_self_block.4} parent=27 // pred_region
        %s209 = smul.u32 32, %s20
        %p210 = scmp.lt.s32.totalorder %s19, 1
        %s211 = scalar_select %p210, %s19, 1
        %p212 = scmp.lt.s32.totalorder %s209, 31
        %s213 = scalar_select %p212, %s209, 31
        %s214 = smul.addr %s211, 32
        %s215 = sadd.s32 %s213, %s214
        %s216 = smul.addr %s215, 8
        %s217 = scalar_lea.vmem %s0, %s216
        %s218 = smul.u32 32, %s20
      $region32: #{context_self_block.4} parent=27 // pred_fallthru
        _
    $region28: #{context_self_block.4} parent=5 // pred_fallthru
      _
    %p219 = scmp.le.s32.totalorder 1, %s12
    %p220 = scmp.lt.s32.totalorder %s12, 3
    %p221 = pnand %p219, %p220
    %p222 = pneg %p221
    // Predicated region
    $region33: #{context_self_block.4} parent=5 // pred_check
      _
    $region34: #{context_self_block.4} parent=5 // pred_check_branch
      %224 = sbr.rel (%p221) target = $region36
    $region35: #{context_self_block.4} parent=5 // pred_region
      %s225 = ssub.s32 %s12, 1
      %s226 = smul.u32 32, %s22
      %p227 = scmp.lt.s32.totalorder %s21, 1
      %s228 = scalar_select %p227, %s21, 1
      %p229 = scmp.lt.s32.totalorder %s226, 31
      %s230 = scalar_select %p229, %s226, 31
      %s231 = smul.addr %s228, 32
      %s232 = sadd.s32 %s230, %s231
      %s233 = smul.addr %s232, 8
      %s234 = scalar_lea.vmem %s0, %s233
      %p235 = pneg %p52
      %p236 = pneg %p49
      %s237 = smul.u32 2, %s22
      %p238 = scmp.lt.s32.totalorder %s237, 1
      %s239 = scalar_select %p238, %s237, 1
      %s240 = smul.addr %s239, 4
      %s241 = scalar_lea.vmem %s1, %s240
      %p242 = pneg %p78
      %p243 = pneg %p75
      %p244 = pneg %p99
      %p245 = pneg %p96
      %p246 = pneg %p120
      %p247 = pneg %p117
      %p248 = pneg %p146
      %p249 = pneg %p143
      %p250 = scmp.lt.s32.totalorder %s21, 1
      %s251 = scalar_select %p250, %s21, 1
      %s252 = smul.addr %s251, 32
      %s253 = smul.addr %s252, 4
      %s254 = scalar_lea.vmem %s4, %s253
      %p255 = pneg %p172
      %p256 = pneg %p169
      %p257 = scmp.lt.s32.totalorder %s21, 1
      %s258 = scalar_select %p257, %s21, 1
      %s259 = smul.addr %s258, 16
      %s260 = smul.addr %s259, 4
      %s261 = scalar_lea.vmem %s5, %s260
      %s262 = smul.u32 32, %s22
      %p263 = scmp.lt.s32.totalorder %s21, 1
      %s264 = scalar_select %p263, %s21, 1
      %p265 = scmp.lt.s32.totalorder %s262, 31
      %s266 = scalar_select %p265, %s262, 31
      %s267 = smul.addr %s264, 32
      %s268 = sadd.s32 %s266, %s267
      %s269 = smul.addr %s268, 8
      %s270 = scalar_lea.vmem %s0, %s269
      %s271 = smul.u32 32, %s22
      %s272 = smul.u32 2, %s22
      %p273 = scmp.lt.s32.totalorder %s272, 1
      %s274 = scalar_select %p273, %s272, 1
      %s275 = smul.addr %s274, 4
      %s276 = scalar_lea.vmem %s1, %s275
      %s277 = smul.u32 2, %s22
      %p278 = scmp.lt.s32.totalorder %s21, 1
      %s279 = scalar_select %p278, %s21, 1
      %s280 = smul.addr %s279, 32
      %s281 = smul.addr %s280, 4
      %s282 = scalar_lea.vmem %s4, %s281
      %p283 = scmp.lt.s32.totalorder %s21, 1
      %s284 = scalar_select %p283, %s21, 1
      %s285 = smul.addr %s284, 16
      %s286 = smul.addr %s285, 4
      %s287 = scalar_lea.vmem %s5, %s286
      %v289 = vld [vmem:[%s270] sm:$0xff]
      %v290 = vld [vmem:[%s270 + $0x8] sm:$0xff]
      %v291 = vld [vmem:[%s270 + $0x10] sm:$0xff]
      %v292 = vld [vmem:[%s270 + $0x18] sm:$0xff]
      %v293 = vld [vmem:[%s270 + $0x20] sm:$0xff]
      %v294 = vld [vmem:[%s270 + $0x28] sm:$0xff]
      %v295 = vld [vmem:[%s270 + $0x30] sm:$0xff]
      %v296 = vld [vmem:[%s270 + $0x38] sm:$0xff]
      %v297 = vld [vmem:[%s270 + $0x40] sm:$0xff]
      %v298 = vld [vmem:[%s270 + $0x48] sm:$0xff]
      %v299 = vld [vmem:[%s270 + $0x50] sm:$0xff]
      %v300 = vld [vmem:[%s270 + $0x58] sm:$0xff]
      %v301 = vld [vmem:[%s270 + $0x60] sm:$0xff]
      %v302 = vld [vmem:[%s270 + $0x68] sm:$0xff]
      %v303 = vld [vmem:[%s270 + $0x70] sm:$0xff]
      %v304 = vld [vmem:[%s270 + $0x78] sm:$0xff]
      %v305 = vld [vmem:[%s270 + $0x80] sm:$0xff]
      %v306 = vld [vmem:[%s270 + $0x88] sm:$0xff]
      %v307 = vld [vmem:[%s270 + $0x90] sm:$0xff]
      %v308 = vld [vmem:[%s270 + $0x98] sm:$0xff]
      %v309 = vld [vmem:[%s270 + $0xa0] sm:$0xff]
      %v310 = vld [vmem:[%s270 + $0xa8] sm:$0xff]
      %v311 = vld [vmem:[%s270 + $0xb0] sm:$0xff]
      %v312 = vld [vmem:[%s270 + $0xb8] sm:$0xff]
      %v313 = vld [vmem:[%s270 + $0xc0] sm:$0xff]
      %v314 = vld [vmem:[%s270 + $0xc8] sm:$0xff]
      %v315 = vld [vmem:[%s270 + $0xd0] sm:$0xff]
      %v316 = vld [vmem:[%s270 + $0xd8] sm:$0xff]
      %v317 = vld [vmem:[%s270 + $0xe0] sm:$0xff]
      %v318 = vld [vmem:[%s270 + $0xe8] sm:$0xff]
      %v319 = vld [vmem:[%s270 + $0xf0] sm:$0xff]
      %v320 = vld [vmem:[%s270 + $0xf8] sm:$0xff]
      %321 = vadd.xlane.f32.xlu0 %v289
      %v322 = vpop.xlane.xlu0 %321
      %323 = vadd.xlane.f32.xlu0 %v290
      %v324 = vpop.xlane.xlu0 %323
      %325 = vadd.xlane.f32.xlu0 %v291
      %v326 = vpop.xlane.xlu0 %325
      %327 = vadd.xlane.f32.xlu0 %v292
      %v328 = vpop.xlane.xlu0 %327
      %329 = vadd.xlane.f32.xlu0 %v293
      %v330 = vpop.xlane.xlu0 %329
      %331 = vadd.xlane.f32.xlu0 %v294
      %v332 = vpop.xlane.xlu0 %331
      %333 = vadd.xlane.f32.xlu0 %v295
      %v334 = vpop.xlane.xlu0 %333
      %335 = vadd.xlane.f32.xlu0 %v296
      %v336 = vpop.xlane.xlu0 %335
      %337 = vadd.xlane.f32.xlu0 %v297
      %v338 = vpop.xlane.xlu0 %337
      %339 = vadd.xlane.f32.xlu0 %v298
      %v340 = vpop.xlane.xlu0 %339
      %341 = vadd.xlane.f32.xlu0 %v299
      %v342 = vpop.xlane.xlu0 %341
      %343 = vadd.xlane.f32.xlu0 %v300
      %v344 = vpop.xlane.xlu0 %343
      %345 = vadd.xlane.f32.xlu0 %v301
      %v346 = vpop.xlane.xlu0 %345
      %347 = vadd.xlane.f32.xlu0 %v302
      %v348 = vpop.xlane.xlu0 %347
      %349 = vadd.xlane.f32.xlu0 %v303
      %v350 = vpop.xlane.xlu0 %349
      %351 = vadd.xlane.f32.xlu0 %v304
      %v352 = vpop.xlane.xlu0 %351
      %353 = vadd.xlane.f32.xlu0 %v305
      %v354 = vpop.xlane.xlu0 %353
      %355 = vadd.xlane.f32.xlu0 %v306
      %v356 = vpop.xlane.xlu0 %355
      %357 = vadd.xlane.f32.xlu0 %v307
      %v358 = vpop.xlane.xlu0 %357
      %359 = vadd.xlane.f32.xlu0 %v308
      %v360 = vpop.xlane.xlu0 %359
      %361 = vadd.xlane.f32.xlu0 %v309
      %v362 = vpop.xlane.xlu0 %361
      %363 = vadd.xlane.f32.xlu0 %v310
      %v364 = vpop.xlane.xlu0 %363
      %365 = vadd.xlane.f32.xlu0 %v311
      %v366 = vpop.xlane.xlu0 %365
      %367 = vadd.xlane.f32.xlu0 %v312
      %v368 = vpop.xlane.xlu0 %367
      %369 = vadd.xlane.f32.xlu0 %v313
      %v370 = vpop.xlane.xlu0 %369
      %371 = vadd.xlane.f32.xlu0 %v314
      %v372 = vpop.xlane.xlu0 %371
      %373 = vadd.xlane.f32.xlu0 %v315
      %v374 = vpop.xlane.xlu0 %373
      %375 = vadd.xlane.f32.xlu0 %v316
      %v376 = vpop.xlane.xlu0 %375
      %377 = vadd.xlane.f32.xlu0 %v317
      %v378 = vpop.xlane.xlu0 %377
      %379 = vadd.xlane.f32.xlu0 %v318
      %v380 = vpop.xlane.xlu0 %379
      %381 = vadd.xlane.f32.xlu0 %v319
      %v382 = vpop.xlane.xlu0 %381
      %383 = vadd.xlane.f32.xlu0 %v320
      %v384 = vpop.xlane.xlu0 %383
      %v385 = vrcp.pop 128.0
      %v386 = vmul.f32 %v322, %v385
      %v387 = vmul.f32 %v324, %v385
      %v388 = vmul.f32 %v326, %v385
      %v389 = vmul.f32 %v328, %v385
      %v390 = vmul.f32 %v330, %v385
      %v391 = vmul.f32 %v332, %v385
      %v392 = vmul.f32 %v334, %v385
      %v393 = vmul.f32 %v336, %v385
      %v394 = vmul.f32 %v338, %v385
      %v395 = vmul.f32 %v340, %v385
      %v396 = vmul.f32 %v342, %v385
      %v397 = vmul.f32 %v344, %v385
      %v398 = vmul.f32 %v346, %v385
      %v399 = vmul.f32 %v348, %v385
      %v400 = vmul.f32 %v350, %v385
      %v401 = vmul.f32 %v352, %v385
      %v402 = vmul.f32 %v354, %v385
      %v403 = vmul.f32 %v356, %v385
      %v404 = vmul.f32 %v358, %v385
      %v405 = vmul.f32 %v360, %v385
      %v406 = vmul.f32 %v362, %v385
      %v407 = vmul.f32 %v364, %v385
      %v408 = vmul.f32 %v366, %v385
      %v409 = vmul.f32 %v368, %v385
      %v410 = vmul.f32 %v370, %v385
      %v411 = vmul.f32 %v372, %v385
      %v412 = vmul.f32 %v374, %v385
      %v413 = vmul.f32 %v376, %v385
      %v414 = vmul.f32 %v378, %v385
      %v415 = vmul.f32 %v380, %v385
      %v416 = vmul.f32 %v382, %v385
      %v417 = vmul.f32 %v384, %v385
      %v418 = vmul.f32 %v289, %v289
      %v419 = vmul.f32 %v290, %v290
      %v420 = vmul.f32 %v291, %v291
      %v421 = vmul.f32 %v292, %v292
      %v422 = vmul.f32 %v293, %v293
      %v423 = vmul.f32 %v294, %v294
      %v424 = vmul.f32 %v295, %v295
      %v425 = vmul.f32 %v296, %v296
      %v426 = vmul.f32 %v297, %v297
      %v427 = vmul.f32 %v298, %v298
      %v428 = vmul.f32 %v299, %v299
      %v429 = vmul.f32 %v300, %v300
      %v430 = vmul.f32 %v301, %v301
      %v431 = vmul.f32 %v302, %v302
      %v432 = vmul.f32 %v303, %v303
      %v433 = vmul.f32 %v304, %v304
      %v434 = vmul.f32 %v305, %v305
      %v435 = vmul.f32 %v306, %v306
      %v436 = vmul.f32 %v307, %v307
      %v437 = vmul.f32 %v308, %v308
      %v438 = vmul.f32 %v309, %v309
      %v439 = vmul.f32 %v310, %v310
      %v440 = vmul.f32 %v311, %v311
      %v441 = vmul.f32 %v312, %v312
      %v442 = vmul.f32 %v313, %v313
      %v443 = vmul.f32 %v314, %v314
      %v444 = vmul.f32 %v315, %v315
      %v445 = vmul.f32 %v316, %v316
      %v446 = vmul.f32 %v317, %v317
      %v447 = vmul.f32 %v318, %v318
      %v448 = vmul.f32 %v319, %v319
      %v449 = vmul.f32 %v320, %v320
      %450 = vadd.xlane.f32.xlu0 %v418
      %v451 = vpop.xlane.xlu0 %450
      %452 = vadd.xlane.f32.xlu0 %v419
      %v453 = vpop.xlane.xlu0 %452
      %454 = vadd.xlane.f32.xlu0 %v420
      %v455 = vpop.xlane.xlu0 %454
      %456 = vadd.xlane.f32.xlu0 %v421
      %v457 = vpop.xlane.xlu0 %456
      %458 = vadd.xlane.f32.xlu0 %v422
      %v459 = vpop.xlane.xlu0 %458
      %460 = vadd.xlane.f32.xlu0 %v423
      %v461 = vpop.xlane.xlu0 %460
      %462 = vadd.xlane.f32.xlu0 %v424
      %v463 = vpop.xlane.xlu0 %462
      %464 = vadd.xlane.f32.xlu0 %v425
      %v465 = vpop.xlane.xlu0 %464
      %466 = vadd.xlane.f32.xlu0 %v426
      %v467 = vpop.xlane.xlu0 %466
      %468 = vadd.xlane.f32.xlu0 %v427
      %v469 = vpop.xlane.xlu0 %468
      %470 = vadd.xlane.f32.xlu0 %v428
      %v471 = vpop.xlane.xlu0 %470
      %472 = vadd.xlane.f32.xlu0 %v429
      %v473 = vpop.xlane.xlu0 %472
      %474 = vadd.xlane.f32.xlu0 %v430
      %v475 = vpop.xlane.xlu0 %474
      %476 = vadd.xlane.f32.xlu0 %v431
      %v477 = vpop.xlane.xlu0 %476
      %478 = vadd.xlane.f32.xlu0 %v432
      %v479 = vpop.xlane.xlu0 %478
      %480 = vadd.xlane.f32.xlu0 %v433
      %v481 = vpop.xlane.xlu0 %480
      %482 = vadd.xlane.f32.xlu0 %v434
      %v483 = vpop.xlane.xlu0 %482
      %484 = vadd.xlane.f32.xlu0 %v435
      %v485 = vpop.xlane.xlu0 %484
      %486 = vadd.xlane.f32.xlu0 %v436
      %v487 = vpop.xlane.xlu0 %486
      %488 = vadd.xlane.f32.xlu0 %v437
      %v489 = vpop.xlane.xlu0 %488
      %490 = vadd.xlane.f32.xlu0 %v438
      %v491 = vpop.xlane.xlu0 %490
      %492 = vadd.xlane.f32.xlu0 %v439
      %v493 = vpop.xlane.xlu0 %492
      %494 = vadd.xlane.f32.xlu0 %v440
      %v495 = vpop.xlane.xlu0 %494
      %496 = vadd.xlane.f32.xlu0 %v441
      %v497 = vpop.xlane.xlu0 %496
      %498 = vadd.xlane.f32.xlu0 %v442
      %v499 = vpop.xlane.xlu0 %498
      %500 = vadd.xlane.f32.xlu0 %v443
      %v501 = vpop.xlane.xlu0 %500
      %502 = vadd.xlane.f32.xlu0 %v444
      %v503 = vpop.xlane.xlu0 %502
      %504 = vadd.xlane.f32.xlu0 %v445
      %v505 = vpop.xlane.xlu0 %504
      %506 = vadd.xlane.f32.xlu0 %v446
      %v507 = vpop.xlane.xlu0 %506
      %508 = vadd.xlane.f32.xlu0 %v447
      %v509 = vpop.xlane.xlu0 %508
      %510 = vadd.xlane.f32.xlu0 %v448
      %v511 = vpop.xlane.xlu0 %510
      %512 = vadd.xlane.f32.xlu0 %v449
      %v513 = vpop.xlane.xlu0 %512
      %v514 = vmul.f32 %v451, %v385
      %v515 = vmul.f32 %v453, %v385
      %v516 = vmul.f32 %v455, %v385
      %v517 = vmul.f32 %v457, %v385
      %v518 = vmul.f32 %v459, %v385
      %v519 = vmul.f32 %v461, %v385
      %v520 = vmul.f32 %v463, %v385
      %v521 = vmul.f32 %v465, %v385
      %v522 = vmul.f32 %v467, %v385
      %v523 = vmul.f32 %v469, %v385
      %v524 = vmul.f32 %v471, %v385
      %v525 = vmul.f32 %v473, %v385
      %v526 = vmul.f32 %v475, %v385
      %v527 = vmul.f32 %v477, %v385
      %v528 = vmul.f32 %v479, %v385
      %v529 = vmul.f32 %v481, %v385
      %v530 = vmul.f32 %v483, %v385
      %v531 = vmul.f32 %v485, %v385
      %v532 = vmul.f32 %v487, %v385
      %v533 = vmul.f32 %v489, %v385
      %v534 = vmul.f32 %v491, %v385
      %v535 = vmul.f32 %v493, %v385
      %v536 = vmul.f32 %v495, %v385
      %v537 = vmul.f32 %v497, %v385
      %v538 = vmul.f32 %v499, %v385
      %v539 = vmul.f32 %v501, %v385
      %v540 = vmul.f32 %v503, %v385
      %v541 = vmul.f32 %v505, %v385
      %v542 = vmul.f32 %v507, %v385
      %v543 = vmul.f32 %v509, %v385
      %v544 = vmul.f32 %v511, %v385
      %v545 = vmul.f32 %v513, %v385
      %v546 = vmul.f32 %v386, %v386
      %v547 = vmul.f32 %v387, %v387
      %v548 = vmul.f32 %v388, %v388
      %v549 = vmul.f32 %v389, %v389
      %v550 = vmul.f32 %v390, %v390
      %v551 = vmul.f32 %v391, %v391
      %v552 = vmul.f32 %v392, %v392
      %v553 = vmul.f32 %v393, %v393
      %v554 = vmul.f32 %v394, %v394
      %v555 = vmul.f32 %v395, %v395
      %v556 = vmul.f32 %v396, %v396
      %v557 = vmul.f32 %v397, %v397
      %v558 = vmul.f32 %v398, %v398
      %v559 = vmul.f32 %v399, %v399
      %v560 = vmul.f32 %v400, %v400
      %v561 = vmul.f32 %v401, %v401
      %v562 = vmul.f32 %v402, %v402
      %v563 = vmul.f32 %v403, %v403
      %v564 = vmul.f32 %v404, %v404
      %v565 = vmul.f32 %v405, %v405
      %v566 = vmul.f32 %v406, %v406
      %v567 = vmul.f32 %v407, %v407
      %v568 = vmul.f32 %v408, %v408
      %v569 = vmul.f32 %v409, %v409
      %v570 = vmul.f32 %v410, %v410
      %v571 = vmul.f32 %v411, %v411
      %v572 = vmul.f32 %v412, %v412
      %v573 = vmul.f32 %v413, %v413
      %v574 = vmul.f32 %v414, %v414
      %v575 = vmul.f32 %v415, %v415
      %v576 = vmul.f32 %v416, %v416
      %v577 = vmul.f32 %v417, %v417
      %v578 = vsub.f32 %v514, %v546
      %v579 = vsub.f32 %v515, %v547
      %v580 = vsub.f32 %v516, %v548
      %v581 = vsub.f32 %v517, %v549
      %v582 = vsub.f32 %v518, %v550
      %v583 = vsub.f32 %v519, %v551
      %v584 = vsub.f32 %v520, %v552
      %v585 = vsub.f32 %v521, %v553
      %v586 = vsub.f32 %v522, %v554
      %v587 = vsub.f32 %v523, %v555
      %v588 = vsub.f32 %v524, %v556
      %v589 = vsub.f32 %v525, %v557
      %v590 = vsub.f32 %v526, %v558
      %v591 = vsub.f32 %v527, %v559
      %v592 = vsub.f32 %v528, %v560
      %v593 = vsub.f32 %v529, %v561
      %v594 = vsub.f32 %v530, %v562
      %v595 = vsub.f32 %v531, %v563
      %v596 = vsub.f32 %v532, %v564
      %v597 = vsub.f32 %v533, %v565
      %v598 = vsub.f32 %v534, %v566
      %v599 = vsub.f32 %v535, %v567
      %v600 = vsub.f32 %v536, %v568
      %v601 = vsub.f32 %v537, %v569
      %v602 = vsub.f32 %v538, %v570
      %v603 = vsub.f32 %v539, %v571
      %v604 = vsub.f32 %v540, %v572
      %v605 = vsub.f32 %v541, %v573
      %v606 = vsub.f32 %v542, %v574
      %v607 = vsub.f32 %v543, %v575
      %v608 = vsub.f32 %v544, %v576
      %v609 = vsub.f32 %v545, %v577
      %v610 = vsub.f32 %v289, %v386
      %v611 = vsub.f32 %v290, %v387
      %v612 = vsub.f32 %v291, %v388
      %v613 = vsub.f32 %v292, %v389
      %v614 = vsub.f32 %v293, %v390
      %v615 = vsub.f32 %v294, %v391
      %v616 = vsub.f32 %v295, %v392
      %v617 = vsub.f32 %v296, %v393
      %v618 = vsub.f32 %v297, %v394
      %v619 = vsub.f32 %v298, %v395
      %v620 = vsub.f32 %v299, %v396
      %v621 = vsub.f32 %v300, %v397
      %v622 = vsub.f32 %v301, %v398
      %v623 = vsub.f32 %v302, %v399
      %v624 = vsub.f32 %v303, %v400
      %v625 = vsub.f32 %v304, %v401
      %v626 = vsub.f32 %v305, %v402
      %v627 = vsub.f32 %v306, %v403
      %v628 = vsub.f32 %v307, %v404
      %v629 = vsub.f32 %v308, %v405
      %v630 = vsub.f32 %v309, %v406
      %v631 = vsub.f32 %v310, %v407
      %v632 = vsub.f32 %v311, %v408
      %v633 = vsub.f32 %v312, %v409
      %v634 = vsub.f32 %v313, %v410
      %v635 = vsub.f32 %v314, %v411
      %v636 = vsub.f32 %v315, %v412
      %v637 = vsub.f32 %v316, %v413
      %v638 = vsub.f32 %v317, %v414
      %v639 = vsub.f32 %v318, %v415
      %v640 = vsub.f32 %v319, %v416
      %v641 = vsub.f32 %v320, %v417
      %v642 = vadd.f32 %v578, 1e-05
      %v643 = vadd.f32 %v579, 1e-05
      %v644 = vadd.f32 %v580, 1e-05
      %v645 = vadd.f32 %v581, 1e-05
      %v646 = vadd.f32 %v582, 1e-05
      %v647 = vadd.f32 %v583, 1e-05
      %v648 = vadd.f32 %v584, 1e-05
      %v649 = vadd.f32 %v585, 1e-05
      %v650 = vadd.f32 %v586, 1e-05
      %v651 = vadd.f32 %v587, 1e-05
      %v652 = vadd.f32 %v588, 1e-05
      %v653 = vadd.f32 %v589, 1e-05
      %v654 = vadd.f32 %v590, 1e-05
      %v655 = vadd.f32 %v591, 1e-05
      %v656 = vadd.f32 %v592, 1e-05
      %v657 = vadd.f32 %v593, 1e-05
      %v658 = vadd.f32 %v594, 1e-05
      %v659 = vadd.f32 %v595, 1e-05
      %v660 = vadd.f32 %v596, 1e-05
      %v661 = vadd.f32 %v597, 1e-05
      %v662 = vadd.f32 %v598, 1e-05
      %v663 = vadd.f32 %v599, 1e-05
      %v664 = vadd.f32 %v600, 1e-05
      %v665 = vadd.f32 %v601, 1e-05
      %v666 = vadd.f32 %v602, 1e-05
      %v667 = vadd.f32 %v603, 1e-05
      %v668 = vadd.f32 %v604, 1e-05
      %v669 = vadd.f32 %v605, 1e-05
      %v670 = vadd.f32 %v606, 1e-05
      %v671 = vadd.f32 %v607, 1e-05
      %v672 = vadd.f32 %v608, 1e-05
      %v673 = vadd.f32 %v609, 1e-05
      %v674 = vrsqrt.pop %v642
      %v675 = vrsqrt.pop %v643
      %v676 = vrsqrt.pop %v644
      %v677 = vrsqrt.pop %v645
      %v678 = vrsqrt.pop %v646
      %v679 = vrsqrt.pop %v647
      %v680 = vrsqrt.pop %v648
      %v681 = vrsqrt.pop %v649
      %v682 = vrsqrt.pop %v650
      %v683 = vrsqrt.pop %v651
      %v684 = vrsqrt.pop %v652
      %v685 = vrsqrt.pop %v653
      %v686 = vrsqrt.pop %v654
      %v687 = vrsqrt.pop %v655
      %v688 = vrsqrt.pop %v656
      %v689 = vrsqrt.pop %v657
      %v690 = vrsqrt.pop %v658
      %v691 = vrsqrt.pop %v659
      %v692 = vrsqrt.pop %v660
      %v693 = vrsqrt.pop %v661
      %v694 = vrsqrt.pop %v662
      %v695 = vrsqrt.pop %v663
      %v696 = vrsqrt.pop %v664
      %v697 = vrsqrt.pop %v665
      %v698 = vrsqrt.pop %v666
      %v699 = vrsqrt.pop %v667
      %v700 = vrsqrt.pop %v668
      %v701 = vrsqrt.pop %v669
      %v702 = vrsqrt.pop %v670
      %v703 = vrsqrt.pop %v671
      %v704 = vrsqrt.pop %v672
      %v705 = vrsqrt.pop %v673
      %v706 = vmul.f32 %v610, %v674
      %v707 = vmul.f32 %v611, %v675
      %v708 = vmul.f32 %v612, %v676
      %v709 = vmul.f32 %v613, %v677
      %v710 = vmul.f32 %v614, %v678
      %v711 = vmul.f32 %v615, %v679
      %v712 = vmul.f32 %v616, %v680
      %v713 = vmul.f32 %v617, %v681
      %v714 = vmul.f32 %v618, %v682
      %v715 = vmul.f32 %v619, %v683
      %v716 = vmul.f32 %v620, %v684
      %v717 = vmul.f32 %v621, %v685
      %v718 = vmul.f32 %v622, %v686
      %v719 = vmul.f32 %v623, %v687
      %v720 = vmul.f32 %v624, %v688
      %v721 = vmul.f32 %v625, %v689
      %v722 = vmul.f32 %v626, %v690
      %v723 = vmul.f32 %v627, %v691
      %v724 = vmul.f32 %v628, %v692
      %v725 = vmul.f32 %v629, %v693
      %v726 = vmul.f32 %v630, %v694
      %v727 = vmul.f32 %v631, %v695
      %v728 = vmul.f32 %v632, %v696
      %v729 = vmul.f32 %v633, %v697
      %v730 = vmul.f32 %v634, %v698
      %v731 = vmul.f32 %v635, %v699
      %v732 = vmul.f32 %v636, %v700
      %v733 = vmul.f32 %v637, %v701
      %v734 = vmul.f32 %v638, %v702
      %v735 = vmul.f32 %v639, %v703
      %v736 = vmul.f32 %v640, %v704
      %v737 = vmul.f32 %v641, %v705
      %v738 = vpack.c.bf16 %v707, %v706
      %v739 = vpack.c.bf16 %v709, %v708
      %v740 = vpack.c.bf16 %v711, %v710
      %v741 = vpack.c.bf16 %v713, %v712
      %v742 = vpack.c.bf16 %v715, %v714
      %v743 = vpack.c.bf16 %v717, %v716
      %v744 = vpack.c.bf16 %v719, %v718
      %v745 = vpack.c.bf16 %v721, %v720
      %v746 = vpack.c.bf16 %v723, %v722
      %v747 = vpack.c.bf16 %v725, %v724
      %v748 = vpack.c.bf16 %v727, %v726
      %v749 = vpack.c.bf16 %v729, %v728
      %v750 = vpack.c.bf16 %v731, %v730
      %v751 = vpack.c.bf16 %v733, %v732
      %v752 = vpack.c.bf16 %v735, %v734
      %v753 = vpack.c.bf16 %v737, %v736
      %p754 = scmp.eq.s32.totalorder %s22, 0
      // Predicated region
      $region37: #{context_self_block.4} parent=35 // pred_check
        %p755 = pneg %p754
      $region38: #{context_self_block.4} parent=35 // pred_check_branch
        %757 = sbr.rel (%p755) target = $region40
      $region39: #{context_self_block.4} parent=35 // pred_region
        %758 = vst [vmem:[#allocation2] sm:$0xff] 0.0
        %759 = vst [vmem:[#allocation2 + $0x8] sm:$0xff] 0.0
        %760 = vst [vmem:[#allocation2 + $0x10] sm:$0x3] 0.0
      $region40: #{context_self_block.4} parent=35 // pred_fallthru
        _
      %v761 = vld [vmem:[#allocation2] sm:$0xff]
      %v762 = vld [vmem:[#allocation2 + $0x8] sm:$0xff]
      %v763 = vld [vmem:[#allocation2 + $0x10] sm:$0x3]
      %v764 = vld [vmem:[%s276] sm:$0xff]
      %v765 = vld [vmem:[%s276 + $0x8] sm:$0xff]
      %v766 = vld [vmem:[%s276 + $0x10] sm:$0x11]
      %v770 = vunpack.c.l.b16 %v764
      %v771 = vunpack.c.h.b16 %v764
      %v772 = vunpack.c.l.b16 %v765
      %v773 = vunpack.c.h.b16 %v765
      %v774 = vunpack.c.l.b16 %v766
      %v775 = vunpack.c.h.b16 %v766
      %v776 = vpack.c.b16 %v772, %v770
      %v777 = vpack.c.b16 %v773, %v771
      %v778 = vpack.c.b16 %v774, %v774
      %v779 = vpack.c.b16 %v775, %v775
      %784 = vmatprep.subr.bf16.mxu0 0
      %785 = vmatpush1.bf16.msra.mxu0 %v738
      %786 = vmatprep.subr.bf16.mxu0 0
      %787 = vmatpush1.bf16.msra.mxu0 %v739
      %788 = vmatprep.subr.bf16.mxu0 0
      %789 = vmatpush1.bf16.msra.mxu0 %v740
      %790 = vmatprep.subr.bf16.mxu0 0
      %791 = vmatpush1.bf16.msra.mxu0 %v741
      %792 = vmatprep.subr.bf16.mxu0 0
      %793 = vmatpush1.bf16.msra.mxu0 %v742
      %794 = vmatprep.subr.bf16.mxu0 0
      %795 = vmatpush1.bf16.msra.mxu0 %v743
      %796 = vmatprep.subr.bf16.mxu0 0
      %797 = vmatpush1.bf16.msra.mxu0 %v744
      %798 = vmatprep.subr.bf16.mxu0 0
      %799 = vmatpush1.bf16.msra.mxu0 %v745
      %800 = vmatprep.subr.bf16.mxu0 0
      %801 = vmatpush1.bf16.msra.mxu0 %v746
      %802 = vmatprep.subr.bf16.mxu0 0
      %803 = vmatpush1.bf16.msra.mxu0 %v747
      %804 = vmatprep.subr.bf16.mxu0 0
      %805 = vmatpush1.bf16.msra.mxu0 %v748
      %806 = vmatprep.subr.bf16.mxu0 0
      %807 = vmatpush1.bf16.msra.mxu0 %v749
      %808 = vmatprep.subr.bf16.mxu0 0
      %809 = vmatpush1.bf16.msra.mxu0 %v750
      %810 = vmatprep.subr.bf16.mxu0 0
      %811 = vmatpush1.bf16.msra.mxu0 %v751
      %812 = vmatprep.subr.bf16.mxu0 0
      %813 = vmatpush1.bf16.msra.mxu0 %v752
      %814 = vmatprep.subr.bf16.mxu0 0
      %815 = vmatpush1.bf16.msra.mxu0 %v753
      %816 = vmatprep.mubr.bf16.mxu0 %v777
      %817 = vmatmul.mubr.bf16.gmra.mrb[0].mxu0 %v776
      %v818 = vpop.f32.mrb[0].mxu0
      %v819 = vadd.f32 0.0, %v818
      %v820 = vpop.f32.mrb[0].mxu0
      %v821 = vpop.f32.mrb[0].mxu0
      %v822 = vadd.f32 0.0, %v821
      %v823 = vpop.f32.mrb[0].mxu0
      %824 = vmatprep.mubr.bf16.mxu0 %v779
      %825 = vmatmul.mubr.bf16.gmra.mrb[0].mxu0 %v778
      %v826 = vpop.f32.mrb[0].mxu0
      %v827 = vadd.f32 0.0, %v826
      %v828 = vpop.f32.mrb[0].mxu0
      %v829 = vpop.f32.mrb[0].mxu0
      %v830 = vpop.f32.mrb[0].mxu0
      %831 = vdwg.mxu0
      %v832 = vadd.f32 %v761, %v819
      %v833 = vadd.f32 %v762, %v822
      %v834 = vadd.f32 %v763, %v827
      %835 = vst [vmem:[#allocation2] sm:$0xff] %v832
      %836 = vst [vmem:[#allocation2 + $0x8] sm:$0xff] %v833
      %837 = vst [vmem:[#allocation2 + $0x10] sm:$0x3] %v834
      // Predicated region
      $region41: #{context_self_block.4} parent=35 // pred_check
        %p838 = pneg %p754
      $region42: #{context_self_block.4} parent=35 // pred_check_branch
        %840 = sbr.rel (%p838) target = $region44
      $region43: #{context_self_block.4} parent=35 // pred_region
        %v841 = vld [vmem:[#allocation2] sm:$0xff]
        %v842 = vld [vmem:[#allocation2 + $0x8] sm:$0xff]
        %v843 = vld [vmem:[#allocation2 + $0x10] sm:$0x3]
        %v844 = vlaneseq
        %v845 = vand.u32 %v844, 127
        %v846 = vpack.c.bf16 %v842, %v841
        %v847 = vld [vmem:[%s2] sm:$0xff]
        %v848 = vld [vmem:[%s2 + $0x8] sm:$0xff]
        %v849 = vld [vmem:[%s2 + $0x10] sm:$0xff]
        %v850 = vld [vmem:[%s2 + $0x18] sm:$0xff]
        %v851 = vld [vmem:[%s2 + $0x20] sm:$0xff]
        %v852 = vld [vmem:[%s2 + $0x28] sm:$0xff]
        %v853 = vld [vmem:[%s2 + $0x30] sm:$0xff]
        %v854 = vld [vmem:[%s2 + $0x38] sm:$0xff]
        %v855 = vld [vmem:[%s2 + $0x40] sm:$0xff]
        %v856 = vld [vmem:[%s2 + $0x48] sm:$0xff]
        %v857 = vld [vmem:[%s2 + $0x50] sm:$0xff]
        %v858 = vld [vmem:[%s2 + $0x58] sm:$0xff]
        %v859 = vld [vmem:[%s2 + $0x60] sm:$0xff]
        %v860 = vld [vmem:[%s2 + $0x68] sm:$0xff]
        %v861 = vld [vmem:[%s2 + $0x70] sm:$0xff]
        %v862 = vld [vmem:[%s2 + $0x78] sm:$0xff]
        %v863 = vld [vmem:[%s3] sm:$0x3]
        %v865 = vlaneseq
        %v866 = vshrl.u32 %v865, 7
        %v867 = vsub.s32 0, %v866
        %v868 = vrot.slane %v863, %v867
        %v869 = vlaneseq
        %v870 = vshrl.u32 %v869, 7
        %v871 = vsub.s32 1, %v870
        %v872 = vrot.slane %v863, %v871
        %v891 = vunpack.c.l.b16 %v847
        %v892 = vunpack.c.h.b16 %v847
        %v893 = vunpack.c.l.b16 %v848
        %v894 = vunpack.c.h.b16 %v848
        %v895 = vunpack.c.l.b16 %v849
        %v896 = vunpack.c.h.b16 %v849
        %v897 = vunpack.c.l.b16 %v850
        %v898 = vunpack.c.h.b16 %v850
        %v899 = vunpack.c.l.b16 %v851
        %v900 = vunpack.c.h.b16 %v851
        %v901 = vunpack.c.l.b16 %v852
        %v902 = vunpack.c.h.b16 %v852
        %v903 = vunpack.c.l.b16 %v853
        %v904 = vunpack.c.h.b16 %v853
        %v905 = vunpack.c.l.b16 %v854
        %v906 = vunpack.c.h.b16 %v854
        %v907 = vunpack.c.l.b16 %v855
        %v908 = vunpack.c.h.b16 %v855
        %v909 = vunpack.c.l.b16 %v856
        %v910 = vunpack.c.h.b16 %v856
        %v911 = vunpack.c.l.b16 %v857
        %v912 = vunpack.c.h.b16 %v857
        %v913 = vunpack.c.l.b16 %v858
        %v914 = vunpack.c.h.b16 %v858
        %v915 = vunpack.c.l.b16 %v859
        %v916 = vunpack.c.h.b16 %v859
        %v917 = vunpack.c.l.b16 %v860
        %v918 = vunpack.c.h.b16 %v860
        %v919 = vunpack.c.l.b16 %v861
        %v920 = vunpack.c.h.b16 %v861
        %v921 = vunpack.c.l.b16 %v862
        %v922 = vunpack.c.h.b16 %v862
        %v923 = vpack.c.b16 %v893, %v891
        %v924 = vpack.c.b16 %v894, %v892
        %v925 = vpack.c.b16 %v897, %v895
        %v926 = vpack.c.b16 %v898, %v896
        %v927 = vpack.c.b16 %v901, %v899
        %v928 = vpack.c.b16 %v902, %v900
        %v929 = vpack.c.b16 %v905, %v903
        %v930 = vpack.c.b16 %v906, %v904
        %v931 = vpack.c.b16 %v909, %v907
        %v932 = vpack.c.b16 %v910, %v908
        %v933 = vpack.c.b16 %v913, %v911
        %v934 = vpack.c.b16 %v914, %v912
        %v935 = vpack.c.b16 %v917, %v915
        %v936 = vpack.c.b16 %v918, %v916
        %v937 = vpack.c.b16 %v921, %v919
        %v938 = vpack.c.b16 %v922, %v920
        %955 = vmatprep.subr.bf16.mxu0 %v924
        %956 = vmatpush1.bf16.msra.mxu0 %v923
        %957 = vmatprep.subr.bf16.mxu0 %v926
        %958 = vmatpush1.bf16.msra.mxu0 %v925
        %959 = vmatprep.subr.bf16.mxu0 %v928
        %960 = vmatpush1.bf16.msra.mxu0 %v927
        %961 = vmatprep.subr.bf16.mxu0 %v930
        %962 = vmatpush1.bf16.msra.mxu0 %v929
        %963 = vmatprep.subr.bf16.mxu0 %v932
        %964 = vmatpush1.bf16.msra.mxu0 %v931
        %965 = vmatprep.subr.bf16.mxu0 %v934
        %966 = vmatpush1.bf16.msra.mxu0 %v933
        %967 = vmatprep.subr.bf16.mxu0 %v936
        %968 = vmatpush1.bf16.msra.mxu0 %v935
        %969 = vmatprep.subr.bf16.mxu0 %v938
        %970 = vmatpush1.bf16.msra.mxu0 %v937
        %971 = vmatprep.subr.bf16.mxu0 0
        %972 = vmatpush1.bf16.msra.mxu0 0
        %973 = vmatprep.subr.bf16.mxu0 0
        %974 = vmatpush1.bf16.msra.mxu0 0
        %975 = vmatprep.subr.bf16.mxu0 0
        %976 = vmatpush1.bf16.msra.mxu0 0
        %977 = vmatprep.subr.bf16.mxu0 0
        %978 = vmatpush1.bf16.msra.mxu0 0
        %979 = vmatprep.subr.bf16.mxu0 0
        %980 = vmatpush1.bf16.msra.mxu0 0
        %981 = vmatprep.subr.bf16.mxu0 0
        %982 = vmatpush1.bf16.msra.mxu0 0
        %983 = vmatprep.subr.bf16.mxu0 0
        %984 = vmatpush1.bf16.msra.mxu0 0
        %985 = vmatprep.subr.bf16.mxu0 0
        %986 = vmatpush1.bf16.msra.mxu0 0
        %987 = vmatprep.mubr.bf16.mxu0 0
        %988 = vmatmul.mubr.bf16.gmra.mrb[0].mxu0 %v846
        %v989 = vpop.f32.mrb[0].mxu0
        %v990 = vadd.f32 %v868, %v989
        %v991 = vpop.f32.mrb[0].mxu0
        %v992 = vadd.f32 %v872, %v991
        %v993 = vpop.f32.mrb[0].mxu0
        %v994 = vadd.f32 %v868, %v993
        %v995 = vpop.f32.mrb[0].mxu0
        %v996 = vadd.f32 %v872, %v995
        %997 = vdwg.mxu0
        %vm998 = vcmp.ge.s32.totalorder %v845, 0
        %vm999 = vcmp.lt.s32.totalorder %v845, 32
        %vm1000 = vmand %vm998, %vm999
        %v1001 = vsel %vm1000, %v990, 0.0
        %v1002 = vsel %vm1000, %v994, 0.0
        %v1003 = vsel %vm1000, %v992, 0.0
        %v1004 = vsel %vm1000, %v996, 0.0
        %vm1005 = vcmp.ge.s32.totalorder %v845, 32
        %vm1006 = vcmp.lt.s32.totalorder %v845, 64
        %vm1007 = vmand %vm1005, %vm1006
        %v1008 = vsel %vm1007, %v990, 0.0
        %v1009 = vsel %vm1007, %v994, 0.0
        %v1010 = vsel %vm1007, %v992, 0.0
        %v1011 = vsel %vm1007, %v996, 0.0
        %vm1012 = vcmp.ge.s32.totalorder %v845, 64
        %vm1013 = vcmp.lt.s32.totalorder %v845, 96
        %vm1014 = vmand %vm1012, %vm1013
        %v1015 = vsel %vm1014, %v990, 0.0
        %v1016 = vsel %vm1014, %v994, 0.0
        %v1017 = vsel %vm1014, %v992, 0.0
        %v1018 = vsel %vm1014, %v996, 0.0
        %vm1019 = vcmp.ge.s32.totalorder %v845, 96
        %vm1020 = vcmp.lt.s32.totalorder %v845, 128
        %vm1021 = vmand %vm1019, %vm1020
        %v1022 = vsel %vm1021, %v990, 0.0
        %v1023 = vsel %vm1021, %v994, 0.0
        %v1024 = vsel %vm1021, %v992, 0.0
        %v1025 = vsel %vm1021, %v996, 0.0
        %vm1028 = vcmask 1040384
        %v1029 = vrot.slane %v1008, 7
        %v1030 = vrot.slane %v1009, 7
        %v1031 = vsel %vm1028, %v1029, %v1030
        %vm1036 = vcmask 1041408
        %v1037 = vrot.slane %v1015, 6
        %v1038 = vrot.slane %v1016, 6
        %v1039 = vsel %vm1036, %v1037, %v1038
        %vm1044 = vcmask 1042432
        %v1045 = vrot.slane %v1022, 5
        %v1046 = vrot.slane %v1023, 5
        %v1047 = vsel %vm1044, %v1045, %v1046
        %v1050 = vsel %vm1028, %v1002, %v1029
        %v1051 = vsel %vm1036, %v1031, %v1037
        %v1052 = vsel %vm1044, %v1039, %v1045
        %vm1053 = vcmask 1043456
        %v1054 = vsel %vm1053, %v1047, 0.0
        %v1057 = vrot.slane %v1010, 7
        %v1058 = vrot.slane %v1011, 7
        %v1059 = vsel %vm1028, %v1057, %v1058
        %v1064 = vrot.slane %v1017, 6
        %v1065 = vrot.slane %v1018, 6
        %v1066 = vsel %vm1036, %v1064, %v1065
        %v1071 = vrot.slane %v1024, 5
        %v1072 = vrot.slane %v1025, 5
        %v1073 = vsel %vm1044, %v1071, %v1072
        %v1076 = vsel %vm1028, %v1004, %v1057
        %v1077 = vsel %vm1036, %v1059, %v1064
        %v1078 = vsel %vm1044, %v1066, %v1071
        %v1079 = vsel %vm1053, %v1073, 0.0
        %1080 = vxpose.xlu0.b32.start [1/16] %v1001, 128
        %1081 = vxpose.xlu0.b32.cont [2/16] %v1050, 128
        %1082 = vxpose.xlu0.b32.cont [3/16] %v1051, 128
        %1083 = vxpose.xlu0.b32.cont [4/16] %v1052, 128
        %1084 = vxpose.xlu0.b32.cont [5/16] %v1054, 128
        %1085 = vxpose.xlu0.b32.cont [6/16] 0.0, 128
        %1086 = vxpose.xlu0.b32.cont [7/16] 0.0, 128
        %1087 = vxpose.xlu0.b32.cont [8/16] 0.0, 128
        %1088 = vxpose.xlu0.b32.cont [9/16] 0.0, 128
        %1089 = vxpose.xlu0.b32.cont [10/16] 0.0, 128
        %1090 = vxpose.xlu0.b32.cont [11/16] 0.0, 128
        %1091 = vxpose.xlu0.b32.cont [12/16] 0.0, 128
        %1092 = vxpose.xlu0.b32.cont [13/16] 0.0, 128
        %1093 = vxpose.xlu0.b32.cont [14/16] 0.0, 128
        %1094 = vxpose.xlu0.b32.cont [15/16] 0.0, 128
        %1095 = vxpose.xlu0.b32.end [16/16] 0.0, 128
        %v1096 = vpop.trf.xlu0
        %v1097 = vpop.trf.xlu0
        %v1098 = vpop.trf.xlu0
        %v1099 = vpop.trf.xlu0
        %v1100 = vpop.trf.xlu0
        %v1101 = vpop.trf.xlu0
        %v1102 = vpop.trf.xlu0
        %v1103 = vpop.trf.xlu0
        %v1104 = vpop.trf.xlu0
        %v1105 = vpop.trf.xlu0
        %v1106 = vpop.trf.xlu0
        %v1107 = vpop.trf.xlu0
        %v1108 = vpop.trf.xlu0
        %v1109 = vpop.trf.xlu0
        %v1110 = vpop.trf.xlu0
        %v1111 = vpop.trf.xlu0
        %v1112 = vpack.c.bf16 %v1097, %v1096
        %v1113 = vpack.c.bf16 %v1099, %v1098
        %v1114 = vpack.c.bf16 %v1101, %v1100
        %v1115 = vpack.c.bf16 %v1103, %v1102
        %v1116 = vpack.c.bf16 %v1105, %v1104
        %v1117 = vpack.c.bf16 %v1107, %v1106
        %v1118 = vpack.c.bf16 %v1109, %v1108
        %v1119 = vpack.c.bf16 %v1111, %v1110
        %v1128 = vunpack.c.l.b16 %v1112
        %v1129 = vunpack.c.h.b16 %v1112
        %v1130 = vunpack.c.l.b16 %v1113
        %v1131 = vunpack.c.h.b16 %v1113
        %v1132 = vunpack.c.l.b16 %v1114
        %v1133 = vunpack.c.h.b16 %v1114
        %v1134 = vunpack.c.l.b16 %v1115
        %v1135 = vunpack.c.h.b16 %v1115
        %v1136 = vunpack.c.l.b16 %v1116
        %v1137 = vunpack.c.h.b16 %v1116
        %v1138 = vunpack.c.l.b16 %v1117
        %v1139 = vunpack.c.h.b16 %v1117
        %v1140 = vunpack.c.l.b16 %v1118
        %v1141 = vunpack.c.h.b16 %v1118
        %v1142 = vunpack.c.l.b16 %v1119
        %v1143 = vunpack.c.h.b16 %v1119
        %v1144 = vpack.c.b16 %v1128, %v1128
        %v1145 = vpack.c.b16 %v1129, %v1129
        %v1146 = vpack.c.b16 %v1130, %v1130
        %v1147 = vpack.c.b16 %v1131, %v1131
        %v1148 = vpack.c.b16 %v1132, %v1132
        %v1149 = vpack.c.b16 %v1133, %v1133
        %v1150 = vpack.c.b16 %v1134, %v1134
        %v1151 = vpack.c.b16 %v1135, %v1135
        %v1152 = vpack.c.b16 %v1136, %v1136
        %v1153 = vpack.c.b16 %v1137, %v1137
        %v1154 = vpack.c.b16 %v1138, %v1138
        %v1155 = vpack.c.b16 %v1139, %v1139
        %v1156 = vpack.c.b16 %v1140, %v1140
        %v1157 = vpack.c.b16 %v1141, %v1141
        %v1158 = vpack.c.b16 %v1142, %v1142
        %v1159 = vpack.c.b16 %v1143, %v1143
        %vm1176 = vcmask 519168
        %1177 = vst.msk [vmem:[%s282] sm:$0xf] %vm1176, %v1144
        %1178 = vst.msk [vmem:[%s282 + $0x4] sm:$0xf] %vm1176, %v1145
        %1179 = vst.msk [vmem:[%s282 + $0x8] sm:$0xf] %vm1176, %v1146
        %1180 = vst.msk [vmem:[%s282 + $0xc] sm:$0xf] %vm1176, %v1147
        %1181 = vst.msk [vmem:[%s282 + $0x10] sm:$0xf] %vm1176, %v1148
        %1182 = vst.msk [vmem:[%s282 + $0x14] sm:$0xf] %vm1176, %v1149
        %1183 = vst.msk [vmem:[%s282 + $0x18] sm:$0xf] %vm1176, %v1150
        %1184 = vst.msk [vmem:[%s282 + $0x1c] sm:$0xf] %vm1176, %v1151
        %1185 = vst.msk [vmem:[%s282 + $0x20] sm:$0xf] %vm1176, %v1152
        %1186 = vst.msk [vmem:[%s282 + $0x24] sm:$0xf] %vm1176, %v1153
        %1187 = vst.msk [vmem:[%s282 + $0x28] sm:$0xf] %vm1176, %v1154
        %1188 = vst.msk [vmem:[%s282 + $0x2c] sm:$0xf] %vm1176, %v1155
        %1189 = vst.msk [vmem:[%s282 + $0x30] sm:$0xf] %vm1176, %v1156
        %1190 = vst.msk [vmem:[%s282 + $0x34] sm:$0xf] %vm1176, %v1157
        %1191 = vst.msk [vmem:[%s282 + $0x38] sm:$0xf] %vm1176, %v1158
        %1192 = vst.msk [vmem:[%s282 + $0x3c] sm:$0xf] %vm1176, %v1159
        %v1193 = vpack.c.bf16 %v1076, %v1003
        %v1194 = vpack.c.bf16 %v1078, %v1077
        %v1195 = vpack.c.bf16 0.0, %v1079
        %v1196 = vpack.c.bf16 0.0, 0.0
        %v1201 = vunpack.c.l.b16 %v1193
        %v1202 = vunpack.c.h.b16 %v1193
        %v1203 = vunpack.c.l.b16 %v1194
        %v1204 = vunpack.c.h.b16 %v1194
        %v1205 = vunpack.c.l.b16 %v1195
        %v1206 = vunpack.c.h.b16 %v1195
        %v1207 = vunpack.c.l.b16 %v1196
        %v1208 = vunpack.c.h.b16 %v1196
        %v1209 = vpack.c.b16 %v1201, %v1201
        %v1210 = vpack.c.b16 %v1202, %v1202
        %v1211 = vpack.c.b16 %v1203, %v1203
        %v1212 = vpack.c.b16 %v1204, %v1204
        %v1213 = vpack.c.b16 %v1205, %v1205
        %v1214 = vpack.c.b16 %v1206, %v1206
        %v1215 = vpack.c.b16 %v1207, %v1207
        %v1216 = vpack.c.b16 %v1208, %v1208
        %1225 = vst [vmem:[%s287] sm:$0xf] %v1209
        %1226 = vst [vmem:[%s287 + $0x4] sm:$0xf] %v1210
        %1227 = vst [vmem:[%s287 + $0x8] sm:$0xf] %v1211
        %1228 = vst [vmem:[%s287 + $0xc] sm:$0xf] %v1212
        %1229 = vst [vmem:[%s287 + $0x10] sm:$0xf] %v1213
        %1230 = vst [vmem:[%s287 + $0x14] sm:$0xf] %v1214
        %1231 = vst [vmem:[%s287 + $0x18] sm:$0xf] %v1215
        %1232 = vst [vmem:[%s287 + $0x1c] sm:$0xf] %v1216
        %v1233 = vpack.c.bf16 %v843, %v842
        %s1234 = scalar_lea.vmem %s2, 128
        %v1235 = vld [vmem:[%s1234] sm:$0xff]
        %v1236 = vld [vmem:[%s1234 + $0x8] sm:$0xff]
        %v1237 = vld [vmem:[%s1234 + $0x10] sm:$0xff]
        %v1238 = vld [vmem:[%s1234 + $0x18] sm:$0xff]
        %v1239 = vld [vmem:[%s1234 + $0x20] sm:$0xff]
        %v1240 = vld [vmem:[%s1234 + $0x28] sm:$0xff]
        %v1241 = vld [vmem:[%s1234 + $0x30] sm:$0xff]
        %v1242 = vld [vmem:[%s1234 + $0x38] sm:$0xff]
        %v1243 = vld [vmem:[%s1234 + $0x40] sm:$0xff]
        %v1244 = vld [vmem:[%s1234 + $0x48] sm:$0xff]
        %v1245 = vld [vmem:[%s1234 + $0x50] sm:$0xff]
        %v1246 = vld [vmem:[%s1234 + $0x58] sm:$0xff]
        %v1247 = vld [vmem:[%s1234 + $0x60] sm:$0xff]
        %v1248 = vld [vmem:[%s1234 + $0x68] sm:$0xff]
        %v1249 = vld [vmem:[%s1234 + $0x70] sm:$0xff]
        %v1250 = vld [vmem:[%s1234 + $0x78] sm:$0xff]
        %s1251 = scalar_lea.vmem %s3, 2
        %v1252 = vld [vmem:[%s1251] sm:$0x3]
        %v1254 = vlaneseq
        %v1255 = vshrl.u32 %v1254, 7
        %v1256 = vsub.s32 0, %v1255
        %v1257 = vrot.slane %v1252, %v1256
        %v1258 = vlaneseq
        %v1259 = vshrl.u32 %v1258, 7
        %v1260 = vsub.s32 1, %v1259
        %v1261 = vrot.slane %v1252, %v1260
        %v1265 = vshrl.u32 %v1233, 16
        %v1267 = vshll.u32 %v1233, 16
        %v1269 = vrot.slane %v1267, 1
        %v1270 = vor.u32 %v1265, %v1269
        %v1288 = vunpack.c.l.b16 %v1235
        %v1289 = vunpack.c.h.b16 %v1235
        %v1290 = vunpack.c.l.b16 %v1236
        %v1291 = vunpack.c.h.b16 %v1236
        %v1292 = vunpack.c.l.b16 %v1237
        %v1293 = vunpack.c.h.b16 %v1237
        %v1294 = vunpack.c.l.b16 %v1238
        %v1295 = vunpack.c.h.b16 %v1238
        %v1296 = vunpack.c.l.b16 %v1239
        %v1297 = vunpack.c.h.b16 %v1239
        %v1298 = vunpack.c.l.b16 %v1240
        %v1299 = vunpack.c.h.b16 %v1240
        %v1300 = vunpack.c.l.b16 %v1241
        %v1301 = vunpack.c.h.b16 %v1241
        %v1302 = vunpack.c.l.b16 %v1242
        %v1303 = vunpack.c.h.b16 %v1242
        %v1304 = vunpack.c.l.b16 %v1243
        %v1305 = vunpack.c.h.b16 %v1243
        %v1306 = vunpack.c.l.b16 %v1244
        %v1307 = vunpack.c.h.b16 %v1244
        %v1308 = vunpack.c.l.b16 %v1245
        %v1309 = vunpack.c.h.b16 %v1245
        %v1310 = vunpack.c.l.b16 %v1246
        %v1311 = vunpack.c.h.b16 %v1246
        %v1312 = vunpack.c.l.b16 %v1247
        %v1313 = vunpack.c.h.b16 %v1247
        %v1314 = vunpack.c.l.b16 %v1248
        %v1315 = vunpack.c.h.b16 %v1248
        %v1316 = vunpack.c.l.b16 %v1249
        %v1317 = vunpack.c.h.b16 %v1249
        %v1318 = vunpack.c.l.b16 %v1250
        %v1319 = vunpack.c.h.b16 %v1250
        %v1320 = vpack.c.b16 %v1290, %v1288
        %v1321 = vpack.c.b16 %v1291, %v1289
        %v1322 = vpack.c.b16 %v1294, %v1292
        %v1323 = vpack.c.b16 %v1295, %v1293
        %v1324 = vpack.c.b16 %v1298, %v1296
        %v1325 = vpack.c.b16 %v1299, %v1297
        %v1326 = vpack.c.b16 %v1302, %v1300
        %v1327 = vpack.c.b16 %v1303, %v1301
        %v1328 = vpack.c.b16 %v1306, %v1304
        %v1329 = vpack.c.b16 %v1307, %v1305
        %v1330 = vpack.c.b16 %v1310, %v1308
        %v1331 = vpack.c.b16 %v1311, %v1309
        %v1332 = vpack.c.b16 %v1314, %v1312
        %v1333 = vpack.c.b16 %v1315, %v1313
        %v1334 = vpack.c.b16 %v1318, %v1316
        %v1335 = vpack.c.b16 %v1319, %v1317
        %1352 = vmatprep.subr.bf16.mxu0 %v1321
        %1353 = vmatpush1.bf16.msra.mxu0 %v1320
        %1354 = vmatprep.subr.bf16.mxu0 %v1323
        %1355 = vmatpush1.bf16.msra.mxu0 %v1322
        %1356 = vmatprep.subr.bf16.mxu0 %v1325
        %1357 = vmatpush1.bf16.msra.mxu0 %v1324
        %1358 = vmatprep.subr.bf16.mxu0 %v1327
        %1359 = vmatpush1.bf16.msra.mxu0 %v1326
        %1360 = vmatprep.subr.bf16.mxu0 %v1329
        %1361 = vmatpush1.bf16.msra.mxu0 %v1328
        %1362 = vmatprep.subr.bf16.mxu0 %v1331
        %1363 = vmatpush1.bf16.msra.mxu0 %v1330
        %1364 = vmatprep.subr.bf16.mxu0 %v1333
        %1365 = vmatpush1.bf16.msra.mxu0 %v1332
        %1366 = vmatprep.subr.bf16.mxu0 %v1335
        %1367 = vmatpush1.bf16.msra.mxu0 %v1334
        %1368 = vmatprep.subr.bf16.mxu0 0
        %1369 = vmatpush1.bf16.msra.mxu0 0
        %1370 = vmatprep.subr.bf16.mxu0 0
        %1371 = vmatpush1.bf16.msra.mxu0 0
        %1372 = vmatprep.subr.bf16.mxu0 0
        %1373 = vmatpush1.bf16.msra.mxu0 0
        %1374 = vmatprep.subr.bf16.mxu0 0
        %1375 = vmatpush1.bf16.msra.mxu0 0
        %1376 = vmatprep.subr.bf16.mxu0 0
        %1377 = vmatpush1.bf16.msra.mxu0 0
        %1378 = vmatprep.subr.bf16.mxu0 0
        %1379 = vmatpush1.bf16.msra.mxu0 0
        %1380 = vmatprep.subr.bf16.mxu0 0
        %1381 = vmatpush1.bf16.msra.mxu0 0
        %1382 = vmatprep.subr.bf16.mxu0 0
        %1383 = vmatpush1.bf16.msra.mxu0 0
        %1384 = vmatprep.mubr.bf16.mxu0 0
        %1385 = vmatmul.mubr.bf16.gmra.mrb[0].mxu0 %v1270
        %v1386 = vpop.f32.mrb[0].mxu0
        %v1387 = vadd.f32 %v1257, %v1386
        %v1388 = vpop.f32.mrb[0].mxu0
        %v1389 = vadd.f32 %v1261, %v1388
        %v1390 = vpop.f32.mrb[0].mxu0
        %v1391 = vadd.f32 %v1257, %v1390
        %v1392 = vpop.f32.mrb[0].mxu0
        %v1393 = vadd.f32 %v1261, %v1392
        %1394 = vdwg.mxu0
        %v1395 = vsel %vm1000, %v1387, 0.0
        %v1396 = vsel %vm1000, %v1391, 0.0
        %v1397 = vsel %vm1000, %v1389, 0.0
        %v1398 = vsel %vm1000, %v1393, 0.0
        %v1399 = vsel %vm1007, %v1387, 0.0
        %v1400 = vsel %vm1007, %v1391, 0.0
        %v1401 = vsel %vm1007, %v1389, 0.0
        %v1402 = vsel %vm1007, %v1393, 0.0
        %v1403 = vsel %vm1014, %v1387, 0.0
        %v1404 = vsel %vm1014, %v1391, 0.0
        %v1405 = vsel %vm1014, %v1389, 0.0
        %v1406 = vsel %vm1014, %v1393, 0.0
        %v1407 = vsel %vm1021, %v1387, 0.0
        %v1408 = vsel %vm1021, %v1391, 0.0
        %v1409 = vsel %vm1021, %v1389, 0.0
        %v1410 = vsel %vm1021, %v1393, 0.0
        %v1413 = vrot.slane %v1399, 7
        %v1414 = vrot.slane %v1400, 7
        %v1415 = vsel %vm1028, %v1413, %v1414
        %v1420 = vrot.slane %v1403, 6
        %v1421 = vrot.slane %v1404, 6
        %v1422 = vsel %vm1036, %v1420, %v1421
        %v1427 = vrot.slane %v1407, 5
        %v1428 = vrot.slane %v1408, 5
        %v1429 = vsel %vm1044, %v1427, %v1428
        %v1432 = vsel %vm1028, %v1396, %v1413
        %v1433 = vsel %vm1036, %v1415, %v1420
        %v1434 = vsel %vm1044, %v1422, %v1427
        %v1435 = vsel %vm1053, %v1429, 0.0
        %v1438 = vrot.slane %v1401, 7
        %v1439 = vrot.slane %v1402, 7
        %v1440 = vsel %vm1028, %v1438, %v1439
        %v1445 = vrot.slane %v1405, 6
        %v1446 = vrot.slane %v1406, 6
        %v1447 = vsel %vm1036, %v1445, %v1446
        %v1452 = vrot.slane %v1409, 5
        %v1453 = vrot.slane %v1410, 5
        %v1454 = vsel %vm1044, %v1452, %v1453
        %v1457 = vsel %vm1028, %v1398, %v1438
        %v1458 = vsel %vm1036, %v1440, %v1445
        %v1459 = vsel %vm1044, %v1447, %v1452
        %v1460 = vsel %vm1053, %v1454, 0.0
        %1461 = vxpose.xlu0.b32.start [1/16] %v1395, 128
        %1462 = vxpose.xlu0.b32.cont [2/16] %v1432, 128
        %1463 = vxpose.xlu0.b32.cont [3/16] %v1433, 128
        %1464 = vxpose.xlu0.b32.cont [4/16] %v1434, 128
        %1465 = vxpose.xlu0.b32.cont [5/16] %v1435, 128
        %1466 = vxpose.xlu0.b32.cont [6/16] 0.0, 128
        %1467 = vxpose.xlu0.b32.cont [7/16] 0.0, 128
        %1468 = vxpose.xlu0.b32.cont [8/16] 0.0, 128
        %1469 = vxpose.xlu0.b32.cont [9/16] 0.0, 128
        %1470 = vxpose.xlu0.b32.cont [10/16] 0.0, 128
        %1471 = vxpose.xlu0.b32.cont [11/16] 0.0, 128
        %1472 = vxpose.xlu0.b32.cont [12/16] 0.0, 128
        %1473 = vxpose.xlu0.b32.cont [13/16] 0.0, 128
        %1474 = vxpose.xlu0.b32.cont [14/16] 0.0, 128
        %1475 = vxpose.xlu0.b32.cont [15/16] 0.0, 128
        %1476 = vxpose.xlu0.b32.end [16/16] 0.0, 128
        %v1477 = vpop.trf.xlu0
        %v1478 = vpop.trf.xlu0
        %v1479 = vpop.trf.xlu0
        %v1480 = vpop.trf.xlu0
        %v1481 = vpop.trf.xlu0
        %v1482 = vpop.trf.xlu0
        %v1483 = vpop.trf.xlu0
        %v1484 = vpop.trf.xlu0
        %v1485 = vpop.trf.xlu0
        %v1486 = vpop.trf.xlu0
        %v1487 = vpop.trf.xlu0
        %v1488 = vpop.trf.xlu0
        %v1489 = vpop.trf.xlu0
        %v1490 = vpop.trf.xlu0
        %v1491 = vpop.trf.xlu0
        %v1492 = vpop.trf.xlu0
        %v1493 = vpack.c.bf16 %v1478, %v1477
        %v1494 = vpack.c.bf16 %v1480, %v1479
        %v1495 = vpack.c.bf16 %v1482, %v1481
        %v1496 = vpack.c.bf16 %v1484, %v1483
        %v1497 = vpack.c.bf16 %v1486, %v1485
        %v1498 = vpack.c.bf16 %v1488, %v1487
        %v1499 = vpack.c.bf16 %v1490, %v1489
        %v1500 = vpack.c.bf16 %v1492, %v1491
        %v1509 = vunpack.c.l.b16 %v1493
        %v1510 = vunpack.c.h.b16 %v1493
        %v1511 = vunpack.c.l.b16 %v1494
        %v1512 = vunpack.c.h.b16 %v1494
        %v1513 = vunpack.c.l.b16 %v1495
        %v1514 = vunpack.c.h.b16 %v1495
        %v1515 = vunpack.c.l.b16 %v1496
        %v1516 = vunpack.c.h.b16 %v1496
        %v1517 = vunpack.c.l.b16 %v1497
        %v1518 = vunpack.c.h.b16 %v1497
        %v1519 = vunpack.c.l.b16 %v1498
        %v1520 = vunpack.c.h.b16 %v1498
        %v1521 = vunpack.c.l.b16 %v1499
        %v1522 = vunpack.c.h.b16 %v1499
        %v1523 = vunpack.c.l.b16 %v1500
        %v1524 = vunpack.c.h.b16 %v1500
        %v1525 = vpack.c.b16 %v1509, %v1509
        %v1526 = vpack.c.b16 %v1510, %v1510
        %v1527 = vpack.c.b16 %v1511, %v1511
        %v1528 = vpack.c.b16 %v1512, %v1512
        %v1529 = vpack.c.b16 %v1513, %v1513
        %v1530 = vpack.c.b16 %v1514, %v1514
        %v1531 = vpack.c.b16 %v1515, %v1515
        %v1532 = vpack.c.b16 %v1516, %v1516
        %v1533 = vpack.c.b16 %v1517, %v1517
        %v1534 = vpack.c.b16 %v1518, %v1518
        %v1535 = vpack.c.b16 %v1519, %v1519
        %v1536 = vpack.c.b16 %v1520, %v1520
        %v1537 = vpack.c.b16 %v1521, %v1521
        %v1538 = vpack.c.b16 %v1522, %v1522
        %v1539 = vpack.c.b16 %v1523, %v1523
        %v1540 = vpack.c.b16 %v1524, %v1524
        %s1557 = scalar_lea.vmem %s282, 64
        %1558 = vst.msk [vmem:[%s1557] sm:$0xf] %vm1176, %v1525
        %1559 = vst.msk [vmem:[%s1557 + $0x4] sm:$0xf] %vm1176, %v1526
        %1560 = vst.msk [vmem:[%s1557 + $0x8] sm:$0xf] %vm1176, %v1527
        %1561 = vst.msk [vmem:[%s1557 + $0xc] sm:$0xf] %vm1176, %v1528
        %1562 = vst.msk [vmem:[%s1557 + $0x10] sm:$0xf] %vm1176, %v1529
        %1563 = vst.msk [vmem:[%s1557 + $0x14] sm:$0xf] %vm1176, %v1530
        %1564 = vst.msk [vmem:[%s1557 + $0x18] sm:$0xf] %vm1176, %v1531
        %1565 = vst.msk [vmem:[%s1557 + $0x1c] sm:$0xf] %vm1176, %v1532
        %1566 = vst.msk [vmem:[%s1557 + $0x20] sm:$0xf] %vm1176, %v1533
        %1567 = vst.msk [vmem:[%s1557 + $0x24] sm:$0xf] %vm1176, %v1534
        %1568 = vst.msk [vmem:[%s1557 + $0x28] sm:$0xf] %vm1176, %v1535
        %1569 = vst.msk [vmem:[%s1557 + $0x2c] sm:$0xf] %vm1176, %v1536
        %1570 = vst.msk [vmem:[%s1557 + $0x30] sm:$0xf] %vm1176, %v1537
        %1571 = vst.msk [vmem:[%s1557 + $0x34] sm:$0xf] %vm1176, %v1538
        %1572 = vst.msk [vmem:[%s1557 + $0x38] sm:$0xf] %vm1176, %v1539
        %1573 = vst.msk [vmem:[%s1557 + $0x3c] sm:$0xf] %vm1176, %v1540
        %v1574 = vpack.c.bf16 %v1457, %v1397
        %v1575 = vpack.c.bf16 %v1459, %v1458
        %v1576 = vpack.c.bf16 0.0, %v1460
        %v1580 = vunpack.c.l.b16 %v1574
        %v1581 = vunpack.c.h.b16 %v1574
        %v1582 = vunpack.c.l.b16 %v1575
        %v1583 = vunpack.c.h.b16 %v1575
        %v1584 = vunpack.c.l.b16 %v1576
        %v1585 = vunpack.c.h.b16 %v1576
        %v1586 = vpack.c.b16 %v1580, %v1580
        %v1587 = vpack.c.b16 %v1581, %v1581
        %v1588 = vpack.c.b16 %v1582, %v1582
        %v1589 = vpack.c.b16 %v1583, %v1583
        %v1590 = vpack.c.b16 %v1584, %v1584
        %v1591 = vpack.c.b16 %v1585, %v1585
        %s1598 = scalar_lea.vmem %s287, 32
        %1599 = vst [vmem:[%s1598] sm:$0xf] %v1586
        %1600 = vst [vmem:[%s1598 + $0x4] sm:$0xf] %v1587
        %1601 = vst [vmem:[%s1598 + $0x8] sm:$0xf] %v1588
        %1602 = vst [vmem:[%s1598 + $0xc] sm:$0xf] %v1589
        %1603 = vst [vmem:[%s1598 + $0x10] sm:$0xf] %v1590
        %1604 = vst [vmem:[%s1598 + $0x14] sm:$0xf] %v1591
        %1605 = vst [vmem:[%s1598 + $0x18] sm:$0xf] %v1215
        %1606 = vst [vmem:[%s1598 + $0x1c] sm:$0xf] %v1216
      $region44: #{context_self_block.4} parent=35 // pred_fallthru
        _
      %p1607 = scmp.lt.s32.totalorder %s21, 1
      %s1608 = scalar_select %p1607, %s21, 1
      %s1609 = smul.addr %s1608, 32
      %s1610 = smul.addr %s1609, 4
      %s1611 = scalar_lea.vmem %s4, %s1610
      %p1612 = scmp.lt.s32.totalorder %s21, 1
      %s1613 = scalar_select %p1612, %s21, 1
      %s1614 = smul.addr %s1613, 16
      %s1615 = smul.addr %s1614, 4
      %s1616 = scalar_lea.vmem %s5, %s1615
      // Predicated region
      $region45: #{context_self_block.4} parent=35 // pred_check
        %p1617 = pneg %p143
      $region46: #{context_self_block.4} parent=35 // pred_check_branch
        %1619 = sbr.rel (%p1617) target = $region48
      $region47: #{context_self_block.4} parent=35 // pred_region
        _
      $region48: #{context_self_block.4} parent=35 // pred_fallthru
        _
      // Predicated region
      $region49: #{context_self_block.4} parent=35 // pred_check
        %p1620 = pneg %p169
      $region50: #{context_self_block.4} parent=35 // pred_check_branch
        %1622 = sbr.rel (%p1620) target = $region52
      $region51: #{context_self_block.4} parent=35 // pred_region
        _
      $region52: #{context_self_block.4} parent=35 // pred_fallthru
        _
    $region36: #{context_self_block.4} parent=5 // pred_fallthru
      _
    %p1623 = scmp.le.s32.totalorder 2, %s12
    // Predicated region
    $region53: #{context_self_block.4} parent=5 // pred_check
      %p1624 = pneg %p1623
    $region54: #{context_self_block.4} parent=5 // pred_check_branch
      %1626 = sbr.rel (%p1624) target = $region56
    $region55: #{context_self_block.4} parent=5 // pred_region
      %s1627 = ssub.s32 %s12, 2
      // Predicated region
      $region57: #{context_self_block.4} parent=55 // pred_check
        %p1628 = pneg %p149
      $region58: #{context_self_block.4} parent=55 // pred_check_branch
        %1630 = sbr.rel (%p1628) target = $region60
      $region59: #{context_self_block.4} parent=55 // pred_region
        %p1631 = scmp.lt.s32.totalorder %s23, 1
        %s1632 = scalar_select %p1631, %s23, 1
        %s1633 = smul.addr %s1632, 32
        %s1634 = smul.addr %s1633, 4
        %s1635 = scalar_lea.vmem %s4, %s1634
      $region60: #{context_self_block.4} parent=55 // pred_fallthru
        _
      // Predicated region
      $region61: #{context_self_block.4} parent=55 // pred_check
        %p1636 = pneg %p175
      $region62: #{context_self_block.4} parent=55 // pred_check_branch
        %1638 = sbr.rel (%p1636) target = $region64
      $region63: #{context_self_block.4} parent=55 // pred_region
        %p1639 = scmp.lt.s32.totalorder %s23, 1
        %s1640 = scalar_select %p1639, %s23, 1
        %s1641 = smul.addr %s1640, 16
        %s1642 = smul.addr %s1641, 4
        %s1643 = scalar_lea.vmem %s5, %s1642
      $region64: #{context_self_block.4} parent=55 // pred_fallthru
        _
    $region56: #{context_self_block.4} parent=5 // pred_fallthru
      _
  $region6: #{context_self_block.4} parent=0 // loop_footer
    %s16 = sadd.s32 1, %s12
  $region7: #{context_self_block.4} parent=0 // loop_footer_branch
    %11 = sbr.rel target = $region3
  $region8: #{context_self_block.4} parent=0 // loop_exit
    _

// kernel: context_self_block.5
$region0: #{context_self_block.5}
  #allocation0 [shape = 'u32[]', space=smem, size = 0x4, offset = 0x4, fixed_abs, tag = 'smem constant byte address 0x4 - core index']
  #allocation1 [shape = 'u32[144,128]{1,0:T(1,128)}', space=vmem, size = 0x12000, scoped, tag = 'internal scratch']
  %s0 = inlined_call_operand.vmem [shape: f32[2,256,128], index: 0, kind: input, shape index: {}]
  %s1 = inlined_call_operand.vmem [shape: bf16[2,2,128,64], index: 1, kind: input, shape index: {}]
  %s2 = inlined_call_operand.vmem [shape: bf16[2,2,64,128], index: 2, kind: input, shape index: {}]
  %s3 = inlined_call_operand.vmem [shape: bf16[128,256], index: 3, kind: input, shape index: {}]
  %s4 = inlined_call_operand.vmem [shape: f32[1,256], index: 4, kind: input, shape index: {}]
  %s5 = inlined_call_operand.vmem [shape: bf16[128,128], index: 5, kind: input, shape index: {}]
  %s6 = inlined_call_operand.vmem [shape: bf16[128,128], index: 6, kind: input, shape index: {}]
  %s7 = inlined_call_operand.vmem [shape: f32[1,128], index: 7, kind: input, shape index: {}]
  %s8 = inlined_call_operand.vmem [shape: bf16[128,512], index: 8, kind: input, shape index: {}]
  %s9 = inlined_call_operand.vmem [shape: f32[1,512], index: 9, kind: input, shape index: {}]
  %s10 = inlined_call_operand.vmem [shape: bf16[512,128], index: 10, kind: input, shape index: {}]
  %s11 = inlined_call_operand.vmem [shape: f32[1,128], index: 11, kind: input, shape index: {}]
  %s12 = inlined_call_operand.vmem [shape: f32[2,128,256], index: 12, kind: output, shape index: {}]
  %s13 = sld [smem:[#allocation0]]
  $region115: #{context_self_block.5} parent=0
    _
  %s15 = ssub.s32 1, %s13
  %s16 = scalar_select 0, %s15, %s13
  $region1: #{context_self_block.5} parent=0
    #allocation2 [shape = 'u8[131072]{0}', space=vmem, size = 0x20000, scoped, tag = 'output window, operand 0']
    loop: start=0, step=1, limit=6
    $region2: #{context_self_block.5} parent=1 // loop_pre_header
      _
    $region3: #{context_self_block.5} parent=1 // loop_header
      %s18 = sphi 0, %s22
      %p19 = scmp.ge.s32.totalorder %s18, 6
      %s25 = sphi 0, %s37
      %s26 = sphi 0, %s33
      %s27 = sphi 0, %s25
      %s28 = sphi 0, %s26
      %s29 = sphi 0, %s27
      %s30 = sphi 0, %s28
      %s42 = sphi 0, %s44
      %s45 = sphi 0, %s42
      %s46 = sphi 0, %s45
      %s62 = sphi 0, %s46
      %s68 = sphi 0, %s70
      %s71 = sphi 0, %s68
      %s72 = sphi 0, %s71
      %s88 = sphi 0, %s72
      %s94 = sphi 0, %s96
      %s97 = sphi 0, %s94
      %s98 = sphi 0, %s97
      %s114 = sphi 0, %s98
      %s118 = sphi 0, %s118
      %s120 = sphi 0, %s118
      %s121 = sphi 0, %s120
      %s135 = sphi 0, %s121
      %s139 = sphi 0, %s139
      %s141 = sphi 0, %s139
      %s142 = sphi 0, %s141
      %s156 = sphi 0, %s142
      %s160 = sphi 0, %s160
      %s162 = sphi 0, %s160
      %s163 = sphi 0, %s162
      %s177 = sphi 0, %s163
      %s181 = sphi 0, %s181
      %s183 = sphi 0, %s181
      %s184 = sphi 0, %s183
      %s198 = sphi 0, %s184
      %s202 = sphi 0, %s202
      %s204 = sphi 0, %s202
      %s205 = sphi 0, %s204
      %s219 = sphi 0, %s205
      %s223 = sphi 0, %s223
      %s225 = sphi 0, %s223
      %s226 = sphi 0, %s225
      %s240 = sphi 0, %s226
      %s244 = sphi 0, %s244
      %s246 = sphi 0, %s244
      %s247 = sphi 0, %s246
      %s261 = sphi 0, %s247
      %s265 = sphi 0, %s265
      %s267 = sphi 0, %s265
      %s268 = sphi 0, %s267
      %s282 = sphi 0, %s268
      %s286 = sphi 0, %s286
      %s288 = sphi 0, %s286
      %s289 = sphi 0, %s288
      %s303 = sphi 0, %s289
      %s311 = sphi 0, %s313
      %s314 = sphi 0, %s311
      %s315 = sphi 0, %s314
      %s331 = sphi 0, %s315
    $region4: #{context_self_block.5} parent=1 // loop_header_branch
      %21 = sbr.rel (%p19) target = $region8
    $region5: #{context_self_block.5} parent=1 // loop_body
      %s23 = ssub.s32 %s18, 1
      %s24 = ssub.s32 %s18, 2
      %s31 = sadd.s32 1, %s26
      %p32 = scmp.ge.s32.totalorder %s31, 2
      %s33 = scalar_select %p32, 0, %s31
      %s34 = sadd.s32 1, %s25
      %s35 = scalar_select %p32, %s34, %s25
      %p36 = scmp.ge.s32.totalorder %s35, 2
      %s37 = scalar_select %p36, 0, %s35
      %s38 = ssub.s32 %s25, %s37
      %s39 = ssub.s32 %s26, %s33
      %s40 = sor.u32 %s38, %s39
      %p41 = scmp.eq.s32.totalorder %s40, 0
      %s43 = sadd.s32 %s42, 1
      %s44 = scalar_select %p41, %s42, %s43
      %p47 = pneg %p41
      %p48 = scmp.eq.s32.totalorder %s18, 3
      %p49 = por %p47, %p48
      %p50 = scmp.ne.s32.totalorder %s42, %s45
      %p51 = scmp.eq.s32.totalorder %s18, 0
      %p52 = por %p50, %p51
      %p53 = scmp.ne.s32.totalorder %s42, %s45
      %p54 = scmp.eq.s32.totalorder %s23, 3
      %p55 = por %p53, %p54
      %p56 = scmp.ne.s32.totalorder %s45, %s46
      %p57 = scmp.eq.s32.totalorder %s23, 0
      %p58 = por %p56, %p57
      %p59 = scmp.ne.s32.totalorder %s45, %s46
      %p60 = scmp.eq.s32.totalorder %s24, 3
      %p61 = por %p59, %p60
      %p63 = scmp.ne.s32.totalorder %s46, %s62
      %p64 = scmp.eq.s32.totalorder %s24, 0
      %p65 = por %p63, %p64
      %s66 = ssub.s32 %s25, %s37
      %p67 = scmp.eq.s32.totalorder %s66, 0
      %s69 = sadd.s32 %s68, 1
      %s70 = scalar_select %p67, %s68, %s69
      %p73 = pneg %p67
      %p74 = scmp.eq.s32.totalorder %s18, 3
      %p75 = por %p73, %p74
      %p76 = scmp.ne.s32.totalorder %s68, %s71
      %p77 = scmp.eq.s32.totalorder %s18, 0
      %p78 = por %p76, %p77
      %p79 = scmp.ne.s32.totalorder %s68, %s71
      %p80 = scmp.eq.s32.totalorder %s23, 3
      %p81 = por %p79, %p80
      %p82 = scmp.ne.s32.totalorder %s71, %s72
      %p83 = scmp.eq.s32.totalorder %s23, 0
      %p84 = por %p82, %p83
      %p85 = scmp.ne.s32.totalorder %s71, %s72
      %p86 = scmp.eq.s32.totalorder %s24, 3
      %p87 = por %p85, %p86
      %p89 = scmp.ne.s32.totalorder %s72, %s88
      %p90 = scmp.eq.s32.totalorder %s24, 0
      %p91 = por %p89, %p90
      %s92 = ssub.s32 %s25, %s37
      %p93 = scmp.eq.s32.totalorder %s92, 0
      %s95 = sadd.s32 %s94, 1
      %s96 = scalar_select %p93, %s94, %s95
      %p99 = pneg %p93
      %p100 = scmp.eq.s32.totalorder %s18, 3
      %p101 = por %p99, %p100
      %p102 = scmp.ne.s32.totalorder %s94, %s97
      %p103 = scmp.eq.s32.totalorder %s18, 0
      %p104 = por %p102, %p103
      %p105 = scmp.ne.s32.totalorder %s94, %s97
      %p106 = scmp.eq.s32.totalorder %s23, 3
      %p107 = por %p105, %p106
      %p108 = scmp.ne.s32.totalorder %s97, %s98
      %p109 = scmp.eq.s32.totalorder %s23, 0
      %p110 = por %p108, %p109
      %p111 = scmp.ne.s32.totalorder %s97, %s98
      %p112 = scmp.eq.s32.totalorder %s24, 3
      %p113 = por %p111, %p112
      %p115 = scmp.ne.s32.totalorder %s98, %s114
      %p116 = scmp.eq.s32.totalorder %s24, 0
      %p117 = por %p115, %p116
      %s119 = sadd.s32 %s118, 1
      %p122 = scmp.eq.s32.totalorder %s18, 3
      %p123 = scmp.ne.s32.totalorder %s118, %s120
      %p124 = scmp.eq.s32.totalorder %s18, 0
      %p125 = por %p123, %p124
      %p126 = scmp.ne.s32.totalorder %s118, %s120
      %p127 = scmp.eq.s32.totalorder %s23, 3
      %p128 = por %p126, %p127
      %p129 = scmp.ne.s32.totalorder %s120, %s121
      %p130 = scmp.eq.s32.totalorder %s23, 0
      %p131 = por %p129, %p130
      %p132 = scmp.ne.s32.totalorder %s120, %s121
      %p133 = scmp.eq.s32.totalorder %s24, 3
      %p134 = por %p132, %p133
      %p136 = scmp.ne.s32.totalorder %s121, %s135
      %p137 = scmp.eq.s32.totalorder %s24, 0
      %p138 = por %p136, %p137
      %s140 = sadd.s32 %s139, 1
      %p143 = scmp.eq.s32.totalorder %s18, 3
      %p144 = scmp.ne.s32.totalorder %s139, %s141
      %p145 = scmp.eq.s32.totalorder %s18, 0
      %p146 = por %p144, %p145
      %p147 = scmp.ne.s32.totalorder %s139, %s141
      %p148 = scmp.eq.s32.totalorder %s23, 3
      %p149 = por %p147, %p148
      %p150 = scmp.ne.s32.totalorder %s141, %s142
      %p151 = scmp.eq.s32.totalorder %s23, 0
      %p152 = por %p150, %p151
      %p153 = scmp.ne.s32.totalorder %s141, %s142
      %p154 = scmp.eq.s32.totalorder %s24, 3
      %p155 = por %p153, %p154
      %p157 = scmp.ne.s32.totalorder %s142, %s156
      %p158 = scmp.eq.s32.totalorder %s24, 0
      %p159 = por %p157, %p158
      %s161 = sadd.s32 %s160, 1
      %p164 = scmp.eq.s32.totalorder %s18, 3
      %p165 = scmp.ne.s32.totalorder %s160, %s162
      %p166 = scmp.eq.s32.totalorder %s18, 0
      %p167 = por %p165, %p166
      %p168 = scmp.ne.s32.totalorder %s160, %s162
      %p169 = scmp.eq.s32.totalorder %s23, 3
      %p170 = por %p168, %p169
      %p171 = scmp.ne.s32.totalorder %s162, %s163
      %p172 = scmp.eq.s32.totalorder %s23, 0
      %p173 = por %p171, %p172
      %p174 = scmp.ne.s32.totalorder %s162, %s163
      %p175 = scmp.eq.s32.totalorder %s24, 3
      %p176 = por %p174, %p175
      %p178 = scmp.ne.s32.totalorder %s163, %s177
      %p179 = scmp.eq.s32.totalorder %s24, 0
      %p180 = por %p178, %p179
      %s182 = sadd.s32 %s181, 1
      %p185 = scmp.eq.s32.totalorder %s18, 3
      %p186 = scmp.ne.s32.totalorder %s181, %s183
      %p187 = scmp.eq.s32.totalorder %s18, 0
      %p188 = por %p186, %p187
      %p189 = scmp.ne.s32.totalorder %s181, %s183
      %p190 = scmp.eq.s32.totalorder %s23, 3
      %p191 = por %p189, %p190
      %p192 = scmp.ne.s32.totalorder %s183, %s184
      %p193 = scmp.eq.s32.totalorder %s23, 0
      %p194 = por %p192, %p193
      %p195 = scmp.ne.s32.totalorder %s183, %s184
      %p196 = scmp.eq.s32.totalorder %s24, 3
      %p197 = por %p195, %p196
      %p199 = scmp.ne.s32.totalorder %s184, %s198
      %p200 = scmp.eq.s32.totalorder %s24, 0
      %p201 = por %p199, %p200
      %s203 = sadd.s32 %s202, 1
      %p206 = scmp.eq.s32.totalorder %s18, 3
      %p207 = scmp.ne.s32.totalorder %s202, %s204
      %p208 = scmp.eq.s32.totalorder %s18, 0
      %p209 = por %p207, %p208
      %p210 = scmp.ne.s32.totalorder %s202, %s204
      %p211 = scmp.eq.s32.totalorder %s23, 3
      %p212 = por %p210, %p211
      %p213 = scmp.ne.s32.totalorder %s204, %s205
      %p214 = scmp.eq.s32.totalorder %s23, 0
      %p215 = por %p213, %p214
      %p216 = scmp.ne.s32.totalorder %s204, %s205
      %p217 = scmp.eq.s32.totalorder %s24, 3
      %p218 = por %p216, %p217
      %p220 = scmp.ne.s32.totalorder %s205, %s219
      %p221 = scmp.eq.s32.totalorder %s24, 0
      %p222 = por %p220, %p221
      %s224 = sadd.s32 %s223, 1
      %p227 = scmp.eq.s32.totalorder %s18, 3
      %p228 = scmp.ne.s32.totalorder %s223, %s225
      %p229 = scmp.eq.s32.totalorder %s18, 0
      %p230 = por %p228, %p229
      %p231 = scmp.ne.s32.totalorder %s223, %s225
      %p232 = scmp.eq.s32.totalorder %s23, 3
      %p233 = por %p231, %p232
      %p234 = scmp.ne.s32.totalorder %s225, %s226
      %p235 = scmp.eq.s32.totalorder %s23, 0
      %p236 = por %p234, %p235
      %p237 = scmp.ne.s32.totalorder %s225, %s226
      %p238 = scmp.eq.s32.totalorder %s24, 3
      %p239 = por %p237, %p238
      %p241 = scmp.ne.s32.totalorder %s226, %s240
      %p242 = scmp.eq.s32.totalorder %s24, 0
      %p243 = por %p241, %p242
      %s245 = sadd.s32 %s244, 1
      %p248 = scmp.eq.s32.totalorder %s18, 3
      %p249 = scmp.ne.s32.totalorder %s244, %s246
      %p250 = scmp.eq.s32.totalorder %s18, 0
      %p251 = por %p249, %p250
      %p252 = scmp.ne.s32.totalorder %s244, %s246
      %p253 = scmp.eq.s32.totalorder %s23, 3
      %p254 = por %p252, %p253
      %p255 = scmp.ne.s32.totalorder %s246, %s247
      %p256 = scmp.eq.s32.totalorder %s23, 0
      %p257 = por %p255, %p256
      %p258 = scmp.ne.s32.totalorder %s246, %s247
      %p259 = scmp.eq.s32.totalorder %s24, 3
      %p260 = por %p258, %p259
      %p262 = scmp.ne.s32.totalorder %s247, %s261
      %p263 = scmp.eq.s32.totalorder %s24, 0
      %p264 = por %p262, %p263
      %s266 = sadd.s32 %s265, 1
      %p269 = scmp.eq.s32.totalorder %s18, 3
      %p270 = scmp.ne.s32.totalorder %s265, %s267
      %p271 = scmp.eq.s32.totalorder %s18, 0
      %p272 = por %p270, %p271
      %p273 = scmp.ne.s32.totalorder %s265, %s267
      %p274 = scmp.eq.s32.totalorder %s23, 3
      %p275 = por %p273, %p274
      %p276 = scmp.ne.s32.totalorder %s267, %s268
      %p277 = scmp.eq.s32.totalorder %s23, 0
      %p278 = por %p276, %p277
      %p279 = scmp.ne.s32.totalorder %s267, %s268
      %p280 = scmp.eq.s32.totalorder %s24, 3
      %p281 = por %p279, %p280
      %p283 = scmp.ne.s32.totalorder %s268, %s282
      %p284 = scmp.eq.s32.totalorder %s24, 0
      %p285 = por %p283, %p284
      %s287 = sadd.s32 %s286, 1
      %p290 = scmp.eq.s32.totalorder %s18, 3
      %p291 = scmp.ne.s32.totalorder %s286, %s288
      %p292 = scmp.eq.s32.totalorder %s18, 0
      %p293 = por %p291, %p292
      %p294 = scmp.ne.s32.totalorder %s286, %s288
      %p295 = scmp.eq.s32.totalorder %s23, 3
      %p296 = por %p294, %p295
      %p297 = scmp.ne.s32.totalorder %s288, %s289
      %p298 = scmp.eq.s32.totalorder %s23, 0
      %p299 = por %p297, %p298
      %p300 = scmp.ne.s32.totalorder %s288, %s289
      %p301 = scmp.eq.s32.totalorder %s24, 3
      %p302 = por %p300, %p301
      %p304 = scmp.ne.s32.totalorder %s289, %s303
      %p305 = scmp.eq.s32.totalorder %s24, 0
      %p306 = por %p304, %p305
      %s307 = ssub.s32 %s25, %s37
      %s308 = ssub.s32 %s26, %s33
      %s309 = sor.u32 %s307, %s308
      %p310 = scmp.eq.s32.totalorder %s309, 0
      %s312 = sadd.s32 %s311, 1
      %s313 = scalar_select %p310, %s311, %s312
      %p316 = pneg %p310
      %p317 = scmp.eq.s32.totalorder %s18, 3
      %p318 = por %p316, %p317
      %p319 = scmp.ne.s32.totalorder %s311, %s314
      %p320 = scmp.eq.s32.totalorder %s18, 0
      %p321 = por %p319, %p320
      %p322 = scmp.ne.s32.totalorder %s311, %s314
      %p323 = scmp.eq.s32.totalorder %s23, 3
      %p324 = por %p322, %p323
      %p325 = scmp.ne.s32.totalorder %s314, %s315
      %p326 = scmp.eq.s32.totalorder %s23, 0
      %p327 = por %p325, %p326
      %p328 = scmp.ne.s32.totalorder %s314, %s315
      %p329 = scmp.eq.s32.totalorder %s24, 3
      %p330 = por %p328, %p329
      %p332 = scmp.ne.s32.totalorder %s315, %s331
      %p333 = scmp.eq.s32.totalorder %s24, 0
      %p334 = por %p332, %p333
      %p335 = scmp.le.s32.totalorder 1, %s18
      %p336 = scmp.lt.s32.totalorder %s18, 5
      %p337 = pnand %p335, %p336
      %p338 = pneg %p337
      // Predicated region
      $region9: #{context_self_block.5} parent=5 // pred_check
        _
      $region10: #{context_self_block.5} parent=5 // pred_check_branch
        %340 = sbr.rel (%p337) target = $region12
      $region11: #{context_self_block.5} parent=5 // pred_region
        %s341 = ssub.s32 %s18, 1
        // Predicated region
        $region13: #{context_self_block.5} parent=11 // pred_check
          %p342 = pneg %p131
        $region14: #{context_self_block.5} parent=11 // pred_check_branch
          %344 = sbr.rel (%p342) target = $region16
        $region15: #{context_self_block.5} parent=11 // pred_region
          _
        $region16: #{context_self_block.5} parent=11 // pred_fallthru
          _
        // Predicated region
        $region17: #{context_self_block.5} parent=11 // pred_check
          %p345 = pneg %p152
        $region18: #{context_self_block.5} parent=11 // pred_check_branch
          %347 = sbr.rel (%p345) target = $region20
        $region19: #{context_self_block.5} parent=11 // pred_region
          _
        $region20: #{context_self_block.5} parent=11 // pred_fallthru
          _
        // Predicated region
        $region21: #{context_self_block.5} parent=11 // pred_check
          %p348 = pneg %p173
        $region22: #{context_self_block.5} parent=11 // pred_check_branch
          %350 = sbr.rel (%p348) target = $region24
        $region23: #{context_self_block.5} parent=11 // pred_region
          _
        $region24: #{context_self_block.5} parent=11 // pred_fallthru
          _
        // Predicated region
        $region25: #{context_self_block.5} parent=11 // pred_check
          %p351 = pneg %p194
        $region26: #{context_self_block.5} parent=11 // pred_check_branch
          %353 = sbr.rel (%p351) target = $region28
        $region27: #{context_self_block.5} parent=11 // pred_region
          _
        $region28: #{context_self_block.5} parent=11 // pred_fallthru
          _
        // Predicated region
        $region29: #{context_self_block.5} parent=11 // pred_check
          %p354 = pneg %p215
        $region30: #{context_self_block.5} parent=11 // pred_check_branch
          %356 = sbr.rel (%p354) target = $region32
        $region31: #{context_self_block.5} parent=11 // pred_region
          _
        $region32: #{context_self_block.5} parent=11 // pred_fallthru
          _
        // Predicated region
        $region33: #{context_self_block.5} parent=11 // pred_check
          %p357 = pneg %p236
        $region34: #{context_self_block.5} parent=11 // pred_check_branch
          %359 = sbr.rel (%p357) target = $region36
        $region35: #{context_self_block.5} parent=11 // pred_region
          _
        $region36: #{context_self_block.5} parent=11 // pred_fallthru
          _
        // Predicated region
        $region37: #{context_self_block.5} parent=11 // pred_check
          %p360 = pneg %p257
        $region38: #{context_self_block.5} parent=11 // pred_check_branch
          %362 = sbr.rel (%p360) target = $region40
        $region39: #{context_self_block.5} parent=11 // pred_region
          _
        $region40: #{context_self_block.5} parent=11 // pred_fallthru
          _
        // Predicated region
        $region41: #{context_self_block.5} parent=11 // pred_check
          %p363 = pneg %p278
        $region42: #{context_self_block.5} parent=11 // pred_check_branch
          %365 = sbr.rel (%p363) target = $region44
        $region43: #{context_self_block.5} parent=11 // pred_region
          _
        $region44: #{context_self_block.5} parent=11 // pred_fallthru
          _
        // Predicated region
        $region45: #{context_self_block.5} parent=11 // pred_check
          %p366 = pneg %p299
        $region46: #{context_self_block.5} parent=11 // pred_check_branch
          %368 = sbr.rel (%p366) target = $region48
        $region47: #{context_self_block.5} parent=11 // pred_region
          _
        $region48: #{context_self_block.5} parent=11 // pred_fallthru
          _
      $region12: #{context_self_block.5} parent=5 // pred_fallthru
        _
      %p369 = scmp.lt.s32.totalorder %s18, 4
      // Predicated region
      $region49: #{context_self_block.5} parent=5 // pred_check
        %p370 = pneg %p369
      $region50: #{context_self_block.5} parent=5 // pred_check_branch
        %372 = sbr.rel (%p370) target = $region52
      $region51: #{context_self_block.5} parent=5 // pred_region
        // Predicated region
        $region53: #{context_self_block.5} parent=51 // pred_check
          %p373 = pneg %p52
        $region54: #{context_self_block.5} parent=51 // pred_check_branch
          %375 = sbr.rel (%p373) target = $region56
        $region55: #{context_self_block.5} parent=51 // pred_region
          %s376 = smul.u32 16, %s26
          %p377 = scmp.lt.s32.totalorder %s25, 1
          %s378 = scalar_select %p377, %s25, 1
          %p379 = scmp.lt.s32.totalorder %s376, 31
          %s380 = scalar_select %p379, %s376, 31
          %s381 = smul.addr %s378, 32
          %s382 = sadd.s32 %s380, %s381
          %s383 = smul.addr %s382, 8
          %s384 = scalar_lea.vmem %s0, %s383
          %s385 = smul.u32 16, %s26
        $region56: #{context_self_block.5} parent=51 // pred_fallthru
          _
        // Predicated region
        $region57: #{context_self_block.5} parent=51 // pred_check
          %p386 = pneg %p78
        $region58: #{context_self_block.5} parent=51 // pred_check_branch
          %388 = sbr.rel (%p386) target = $region60
        $region59: #{context_self_block.5} parent=51 // pred_region
          %p389 = scmp.lt.s32.totalorder %s25, 1
          %s390 = scalar_select %p389, %s25, 1
          %s391 = smul.addr %s390, 32
          %s392 = smul.addr %s391, 4
          %s393 = scalar_lea.vmem %s1, %s392
        $region60: #{context_self_block.5} parent=51 // pred_fallthru
          _
        // Predicated region
        $region61: #{context_self_block.5} parent=51 // pred_check
          %p394 = pneg %p104
        $region62: #{context_self_block.5} parent=51 // pred_check_branch
          %396 = sbr.rel (%p394) target = $region64
        $region63: #{context_self_block.5} parent=51 // pred_region
          %p397 = scmp.lt.s32.totalorder %s25, 1
          %s398 = scalar_select %p397, %s25, 1
          %s399 = smul.addr %s398, 16
          %s400 = smul.addr %s399, 4
          %s401 = scalar_lea.vmem %s2, %s400
        $region64: #{context_self_block.5} parent=51 // pred_fallthru
          _
      $region52: #{context_self_block.5} parent=5 // pred_fallthru
        _
      %p402 = scmp.le.s32.totalorder 1, %s18
      %p403 = scmp.lt.s32.totalorder %s18, 5
      %p404 = pnand %p402, %p403
      %p405 = pneg %p404
      // Predicated region
      $region65: #{context_self_block.5} parent=5 // pred_check
        _
      $region66: #{context_self_block.5} parent=5 // pred_check_branch
        %407 = sbr.rel (%p404) target = $region68
      $region67: #{context_self_block.5} parent=5 // pred_region
        %s408 = ssub.s32 %s18, 1
        %s409 = smul.u32 16, %s28
        %p410 = scmp.lt.s32.totalorder %s27, 1
        %s411 = scalar_select %p410, %s27, 1
        %p412 = scmp.lt.s32.totalorder %s409, 31
        %s413 = scalar_select %p412, %s409, 31
        %s414 = smul.addr %s411, 32
        %s415 = sadd.s32 %s413, %s414
        %s416 = smul.addr %s415, 8
        %s417 = scalar_lea.vmem %s0, %s416
        %p418 = pneg %p58
        %p419 = pneg %p55
        %p420 = scmp.lt.s32.totalorder %s27, 1
        %s421 = scalar_select %p420, %s27, 1
        %s422 = smul.addr %s421, 32
        %s423 = smul.addr %s422, 4
        %s424 = scalar_lea.vmem %s1, %s423
        %p425 = pneg %p84
        %p426 = pneg %p81
        %p427 = scmp.lt.s32.totalorder %s27, 1
        %s428 = scalar_select %p427, %s27, 1
        %s429 = smul.addr %s428, 16
        %s430 = smul.addr %s429, 4
        %s431 = scalar_lea.vmem %s2, %s430
        %p432 = pneg %p110
        %p433 = pneg %p107
        %p434 = pneg %p131
        %p435 = pneg %p128
        %p436 = pneg %p152
        %p437 = pneg %p149
        %p438 = pneg %p173
        %p439 = pneg %p170
        %p440 = pneg %p194
        %p441 = pneg %p191
        %p442 = pneg %p215
        %p443 = pneg %p212
        %p444 = pneg %p236
        %p445 = pneg %p233
        %p446 = pneg %p257
        %p447 = pneg %p254
        %p448 = pneg %p278
        %p449 = pneg %p275
        %p450 = pneg %p299
        %p451 = pneg %p296
        %p452 = pneg %p327
        %p453 = pneg %p324
        %s454 = sand.u32 %s314, 1
        %s455 = sand.u32 %s314, 1
        %s456 = smul.addr %s455, 128
        %s457 = scalar_lea.vmem [#allocation2], %s456
        %s458 = smul.u32 16, %s28
        %p459 = scmp.lt.s32.totalorder %s27, 1
        %s460 = scalar_select %p459, %s27, 1
        %p461 = scmp.lt.s32.totalorder %s458, 31
        %s462 = scalar_select %p461, %s458, 31
        %s463 = smul.addr %s460, 32
        %s464 = sadd.s32 %s462, %s463
        %s465 = smul.addr %s464, 8
        %s466 = scalar_lea.vmem %s0, %s465
        %s467 = smul.u32 16, %s28
        %p468 = scmp.lt.s32.totalorder %s27, 1
        %s469 = scalar_select %p468, %s27, 1
        %s470 = smul.addr %s469, 32
        %s471 = smul.addr %s470, 4
        %s472 = scalar_lea.vmem %s1, %s471
        %p473 = scmp.lt.s32.totalorder %s27, 1
        %s474 = scalar_select %p473, %s27, 1
        %s475 = smul.addr %s474, 16
        %s476 = smul.addr %s475, 4
        %s477 = scalar_lea.vmem %s2, %s476
        %v479 = vld [vmem:[%s466] sm:$0xff]
        %v480 = vld [vmem:[%s466 + $0x8] sm:$0xff]
        %v481 = vld [vmem:[%s466 + $0x10] sm:$0xff]
        %v482 = vld [vmem:[%s466 + $0x18] sm:$0xff]
        %v483 = vld [vmem:[%s466 + $0x20] sm:$0xff]
        %v484 = vld [vmem:[%s466 + $0x28] sm:$0xff]
        %v485 = vld [vmem:[%s466 + $0x30] sm:$0xff]
        %v486 = vld [vmem:[%s466 + $0x38] sm:$0xff]
        %v487 = vld [vmem:[%s466 + $0x40] sm:$0xff]
        %v488 = vld [vmem:[%s466 + $0x48] sm:$0xff]
        %v489 = vld [vmem:[%s466 + $0x50] sm:$0xff]
        %v490 = vld [vmem:[%s466 + $0x58] sm:$0xff]
        %v491 = vld [vmem:[%s466 + $0x60] sm:$0xff]
        %v492 = vld [vmem:[%s466 + $0x68] sm:$0xff]
        %v493 = vld [vmem:[%s466 + $0x70] sm:$0xff]
        %v494 = vld [vmem:[%s466 + $0x78] sm:$0xff]
        %v495 = vlaneseq
        %v496 = vand.u32 %v495, 127
        %497 = vadd.xlane.f32.xlu0 %v479
        %v498 = vpop.xlane.xlu0 %497
        %499 = vadd.xlane.f32.xlu0 %v480
        %v500 = vpop.xlane.xlu0 %499
        %501 = vadd.xlane.f32.xlu0 %v481
        %v502 = vpop.xlane.xlu0 %501
        %503 = vadd.xlane.f32.xlu0 %v482
        %v504 = vpop.xlane.xlu0 %503
        %505 = vadd.xlane.f32.xlu0 %v483
        %v506 = vpop.xlane.xlu0 %505
        %507 = vadd.xlane.f32.xlu0 %v484
        %v508 = vpop.xlane.xlu0 %507
        %509 = vadd.xlane.f32.xlu0 %v485
        %v510 = vpop.xlane.xlu0 %509
        %511 = vadd.xlane.f32.xlu0 %v486
        %v512 = vpop.xlane.xlu0 %511
        %513 = vadd.xlane.f32.xlu0 %v487
        %v514 = vpop.xlane.xlu0 %513
        %515 = vadd.xlane.f32.xlu0 %v488
        %v516 = vpop.xlane.xlu0 %515
        %517 = vadd.xlane.f32.xlu0 %v489
        %v518 = vpop.xlane.xlu0 %517
        %519 = vadd.xlane.f32.xlu0 %v490
        %v520 = vpop.xlane.xlu0 %519
        %521 = vadd.xlane.f32.xlu0 %v491
        %v522 = vpop.xlane.xlu0 %521
        %523 = vadd.xlane.f32.xlu0 %v492
        %v524 = vpop.xlane.xlu0 %523
        %525 = vadd.xlane.f32.xlu0 %v493
        %v526 = vpop.xlane.xlu0 %525
        %527 = vadd.xlane.f32.xlu0 %v494
        %v528 = vpop.xlane.xlu0 %527
        %v529 = vrcp.pop 128.0
        %v530 = vmul.f32 %v498, %v529
        %v531 = vmul.f32 %v500, %v529
        %v532 = vmul.f32 %v502, %v529
        %v533 = vmul.f32 %v504, %v529
        %v534 = vmul.f32 %v506, %v529
        %v535 = vmul.f32 %v508, %v529
        %v536 = vmul.f32 %v510, %v529
        %v537 = vmul.f32 %v512, %v529
        %v538 = vmul.f32 %v514, %v529
        %v539 = vmul.f32 %v516, %v529
        %v540 = vmul.f32 %v518, %v529
        %v541 = vmul.f32 %v520, %v529
        %v542 = vmul.f32 %v522, %v529
        %v543 = vmul.f32 %v524, %v529
        %v544 = vmul.f32 %v526, %v529
        %v545 = vmul.f32 %v528, %v529
        %v546 = vmul.f32 %v479, %v479
        %v547 = vmul.f32 %v480, %v480
        %v548 = vmul.f32 %v481, %v481
        %v549 = vmul.f32 %v482, %v482
        %v550 = vmul.f32 %v483, %v483
        %v551 = vmul.f32 %v484, %v484
        %v552 = vmul.f32 %v485, %v485
        %v553 = vmul.f32 %v486, %v486
        %v554 = vmul.f32 %v487, %v487
        %v555 = vmul.f32 %v488, %v488
        %v556 = vmul.f32 %v489, %v489
        %v557 = vmul.f32 %v490, %v490
        %v558 = vmul.f32 %v491, %v491
        %v559 = vmul.f32 %v492, %v492
        %v560 = vmul.f32 %v493, %v493
        %v561 = vmul.f32 %v494, %v494
        %562 = vadd.xlane.f32.xlu0 %v546
        %v563 = vpop.xlane.xlu0 %562
        %564 = vadd.xlane.f32.xlu0 %v547
        %v565 = vpop.xlane.xlu0 %564
        %566 = vadd.xlane.f32.xlu0 %v548
        %v567 = vpop.xlane.xlu0 %566
        %568 = vadd.xlane.f32.xlu0 %v549
        %v569 = vpop.xlane.xlu0 %568
        %570 = vadd.xlane.f32.xlu0 %v550
        %v571 = vpop.xlane.xlu0 %570
        %572 = vadd.xlane.f32.xlu0 %v551
        %v573 = vpop.xlane.xlu0 %572
        %574 = vadd.xlane.f32.xlu0 %v552
        %v575 = vpop.xlane.xlu0 %574
        %576 = vadd.xlane.f32.xlu0 %v553
        %v577 = vpop.xlane.xlu0 %576
        %578 = vadd.xlane.f32.xlu0 %v554
        %v579 = vpop.xlane.xlu0 %578
        %580 = vadd.xlane.f32.xlu0 %v555
        %v581 = vpop.xlane.xlu0 %580
        %582 = vadd.xlane.f32.xlu0 %v556
        %v583 = vpop.xlane.xlu0 %582
        %584 = vadd.xlane.f32.xlu0 %v557
        %v585 = vpop.xlane.xlu0 %584
        %586 = vadd.xlane.f32.xlu0 %v558
        %v587 = vpop.xlane.xlu0 %586
        %588 = vadd.xlane.f32.xlu0 %v559
        %v589 = vpop.xlane.xlu0 %588
        %590 = vadd.xlane.f32.xlu0 %v560
        %v591 = vpop.xlane.xlu0 %590
        %592 = vadd.xlane.f32.xlu0 %v561
        %v593 = vpop.xlane.xlu0 %592
        %v594 = vmul.f32 %v563, %v529
        %v595 = vmul.f32 %v565, %v529
        %v596 = vmul.f32 %v567, %v529
        %v597 = vmul.f32 %v569, %v529
        %v598 = vmul.f32 %v571, %v529
        %v599 = vmul.f32 %v573, %v529
        %v600 = vmul.f32 %v575, %v529
        %v601 = vmul.f32 %v577, %v529
        %v602 = vmul.f32 %v579, %v529
        %v603 = vmul.f32 %v581, %v529
        %v604 = vmul.f32 %v583, %v529
        %v605 = vmul.f32 %v585, %v529
        %v606 = vmul.f32 %v587, %v529
        %v607 = vmul.f32 %v589, %v529
        %v608 = vmul.f32 %v591, %v529
        %v609 = vmul.f32 %v593, %v529
        %v610 = vmul.f32 %v530, %v530
        %v611 = vmul.f32 %v531, %v531
        %v612 = vmul.f32 %v532, %v532
        %v613 = vmul.f32 %v533, %v533
        %v614 = vmul.f32 %v534, %v534
        %v615 = vmul.f32 %v535, %v535
        %v616 = vmul.f32 %v536, %v536
        %v617 = vmul.f32 %v537, %v537
        %v618 = vmul.f32 %v538, %v538
        %v619 = vmul.f32 %v539, %v539
        %v620 = vmul.f32 %v540, %v540
        %v621 = vmul.f32 %v541, %v541
        %v622 = vmul.f32 %v542, %v542
        %v623 = vmul.f32 %v543, %v543
        %v624 = vmul.f32 %v544, %v544
        %v625 = vmul.f32 %v545, %v545
        %v626 = vsub.f32 %v594, %v610
        %v627 = vsub.f32 %v595, %v611
        %v628 = vsub.f32 %v596, %v612
        %v629 = vsub.f32 %v597, %v613
        %v630 = vsub.f32 %v598, %v614
        %v631 = vsub.f32 %v599, %v615
        %v632 = vsub.f32 %v600, %v616
        %v633 = vsub.f32 %v601, %v617
        %v634 = vsub.f32 %v602, %v618
        %v635 = vsub.f32 %v603, %v619
        %v636 = vsub.f32 %v604, %v620
        %v637 = vsub.f32 %v605, %v621
        %v638 = vsub.f32 %v606, %v622
        %v639 = vsub.f32 %v607, %v623
        %v640 = vsub.f32 %v608, %v624
        %v641 = vsub.f32 %v609, %v625
        %v642 = vsub.f32 %v479, %v530
        %v643 = vsub.f32 %v480, %v531
        %v644 = vsub.f32 %v481, %v532
        %v645 = vsub.f32 %v482, %v533
        %v646 = vsub.f32 %v483, %v534
        %v647 = vsub.f32 %v484, %v535
        %v648 = vsub.f32 %v485, %v536
        %v649 = vsub.f32 %v486, %v537
        %v650 = vsub.f32 %v487, %v538
        %v651 = vsub.f32 %v488, %v539
        %v652 = vsub.f32 %v489, %v540
        %v653 = vsub.f32 %v490, %v541
        %v654 = vsub.f32 %v491, %v542
        %v655 = vsub.f32 %v492, %v543
        %v656 = vsub.f32 %v493, %v544
        %v657 = vsub.f32 %v494, %v545
        %v658 = vadd.f32 %v626, 1e-05
        %v659 = vadd.f32 %v627, 1e-05
        %v660 = vadd.f32 %v628, 1e-05
        %v661 = vadd.f32 %v629, 1e-05
        %v662 = vadd.f32 %v630, 1e-05
        %v663 = vadd.f32 %v631, 1e-05
        %v664 = vadd.f32 %v632, 1e-05
        %v665 = vadd.f32 %v633, 1e-05
        %v666 = vadd.f32 %v634, 1e-05
        %v667 = vadd.f32 %v635, 1e-05
        %v668 = vadd.f32 %v636, 1e-05
        %v669 = vadd.f32 %v637, 1e-05
        %v670 = vadd.f32 %v638, 1e-05
        %v671 = vadd.f32 %v639, 1e-05
        %v672 = vadd.f32 %v640, 1e-05
        %v673 = vadd.f32 %v641, 1e-05
        %v674 = vrsqrt.pop %v658
        %v675 = vrsqrt.pop %v659
        %v676 = vrsqrt.pop %v660
        %v677 = vrsqrt.pop %v661
        %v678 = vrsqrt.pop %v662
        %v679 = vrsqrt.pop %v663
        %v680 = vrsqrt.pop %v664
        %v681 = vrsqrt.pop %v665
        %v682 = vrsqrt.pop %v666
        %v683 = vrsqrt.pop %v667
        %v684 = vrsqrt.pop %v668
        %v685 = vrsqrt.pop %v669
        %v686 = vrsqrt.pop %v670
        %v687 = vrsqrt.pop %v671
        %v688 = vrsqrt.pop %v672
        %v689 = vrsqrt.pop %v673
        %v690 = vmul.f32 %v642, %v674
        %v691 = vmul.f32 %v643, %v675
        %v692 = vmul.f32 %v644, %v676
        %v693 = vmul.f32 %v645, %v677
        %v694 = vmul.f32 %v646, %v678
        %v695 = vmul.f32 %v647, %v679
        %v696 = vmul.f32 %v648, %v680
        %v697 = vmul.f32 %v649, %v681
        %v698 = vmul.f32 %v650, %v682
        %v699 = vmul.f32 %v651, %v683
        %v700 = vmul.f32 %v652, %v684
        %v701 = vmul.f32 %v653, %v685
        %v702 = vmul.f32 %v654, %v686
        %v703 = vmul.f32 %v655, %v687
        %v704 = vmul.f32 %v656, %v688
        %v705 = vmul.f32 %v657, %v689
        %v706 = vpack.c.bf16 %v691, %v690
        %v707 = vpack.c.bf16 %v693, %v692
        %v708 = vpack.c.bf16 %v695, %v694
        %v709 = vpack.c.bf16 %v697, %v696
        %v710 = vpack.c.bf16 %v699, %v698
        %v711 = vpack.c.bf16 %v701, %v700
        %v712 = vpack.c.bf16 %v703, %v702
        %v713 = vpack.c.bf16 %v705, %v704
        %v714 = vld [vmem:[%s3] sm:$0xff]
        %v715 = vld [vmem:[%s3 + $0x8] sm:$0xff]
        %v716 = vld [vmem:[%s3 + $0x10] sm:$0xff]
        %v717 = vld [vmem:[%s3 + $0x18] sm:$0xff]
        %v718 = vld [vmem:[%s3 + $0x20] sm:$0xff]
        %v719 = vld [vmem:[%s3 + $0x28] sm:$0xff]
        %v720 = vld [vmem:[%s3 + $0x30] sm:$0xff]
        %v721 = vld [vmem:[%s3 + $0x38] sm:$0xff]
        %v722 = vld [vmem:[%s3 + $0x40] sm:$0xff]
        %v723 = vld [vmem:[%s3 + $0x48] sm:$0xff]
        %v724 = vld [vmem:[%s3 + $0x50] sm:$0xff]
        %v725 = vld [vmem:[%s3 + $0x58] sm:$0xff]
        %v726 = vld [vmem:[%s3 + $0x60] sm:$0xff]
        %v727 = vld [vmem:[%s3 + $0x68] sm:$0xff]
        %v728 = vld [vmem:[%s3 + $0x70] sm:$0xff]
        %v729 = vld [vmem:[%s3 + $0x78] sm:$0xff]
        %v730 = vld [vmem:[%s4] sm:$0x3]
        %v732 = vlaneseq
        %v733 = vshrl.u32 %v732, 7
        %v734 = vsub.s32 0, %v733
        %v735 = vrot.slane %v730, %v734
        %v736 = vlaneseq
        %v737 = vshrl.u32 %v736, 7
        %v738 = vsub.s32 1, %v737
        %v739 = vrot.slane %v730, %v738
        %v758 = vunpack.c.l.b16 %v714
        %v759 = vunpack.c.h.b16 %v714
        %v760 = vunpack.c.l.b16 %v715
        %v761 = vunpack.c.h.b16 %v715
        %v762 = vunpack.c.l.b16 %v716
        %v763 = vunpack.c.h.b16 %v716
        %v764 = vunpack.c.l.b16 %v717
        %v765 = vunpack.c.h.b16 %v717
        %v766 = vunpack.c.l.b16 %v718
        %v767 = vunpack.c.h.b16 %v718
        %v768 = vunpack.c.l.b16 %v719
        %v769 = vunpack.c.h.b16 %v719
        %v770 = vunpack.c.l.b16 %v720
        %v771 = vunpack.c.h.b16 %v720
        %v772 = vunpack.c.l.b16 %v721
        %v773 = vunpack.c.h.b16 %v721
        %v774 = vunpack.c.l.b16 %v722
        %v775 = vunpack.c.h.b16 %v722
        %v776 = vunpack.c.l.b16 %v723
        %v777 = vunpack.c.h.b16 %v723
        %v778 = vunpack.c.l.b16 %v724
        %v779 = vunpack.c.h.b16 %v724
        %v780 = vunpack.c.l.b16 %v725
        %v781 = vunpack.c.h.b16 %v725
        %v782 = vunpack.c.l.b16 %v726
        %v783 = vunpack.c.h.b16 %v726
        %v784 = vunpack.c.l.b16 %v727
        %v785 = vunpack.c.h.b16 %v727
        %v786 = vunpack.c.l.b16 %v728
        %v787 = vunpack.c.h.b16 %v728
        %v788 = vunpack.c.l.b16 %v729
        %v789 = vunpack.c.h.b16 %v729
        %v790 = vpack.c.b16 %v760, %v758
        %v791 = vpack.c.b16 %v761, %v759
        %v792 = vpack.c.b16 %v764, %v762
        %v793 = vpack.c.b16 %v765, %v763
        %v794 = vpack.c.b16 %v768, %v766
        %v795 = vpack.c.b16 %v769, %v767
        %v796 = vpack.c.b16 %v772, %v770
        %v797 = vpack.c.b16 %v773, %v771
        %v798 = vpack.c.b16 %v776, %v774
        %v799 = vpack.c.b16 %v777, %v775
        %v800 = vpack.c.b16 %v780, %v778
        %v801 = vpack.c.b16 %v781, %v779
        %v802 = vpack.c.b16 %v784, %v782
        %v803 = vpack.c.b16 %v785, %v783
        %v804 = vpack.c.b16 %v788, %v786
        %v805 = vpack.c.b16 %v789, %v787
        %822 = vmatprep.subr.bf16.mxu0 %v791
        %823 = vmatpush1.bf16.msra.mxu0 %v790
        %824 = vmatprep.subr.bf16.mxu0 %v793
        %825 = vmatpush1.bf16.msra.mxu0 %v792
        %826 = vmatprep.subr.bf16.mxu0 %v795
        %827 = vmatpush1.bf16.msra.mxu0 %v794
        %828 = vmatprep.subr.bf16.mxu0 %v797
        %829 = vmatpush1.bf16.msra.mxu0 %v796
        %830 = vmatprep.subr.bf16.mxu0 %v799
        %831 = vmatpush1.bf16.msra.mxu0 %v798
        %832 = vmatprep.subr.bf16.mxu0 %v801
        %833 = vmatpush1.bf16.msra.mxu0 %v800
        %834 = vmatprep.subr.bf16.mxu0 %v803
        %835 = vmatpush1.bf16.msra.mxu0 %v802
        %836 = vmatprep.subr.bf16.mxu0 %v805
        %837 = vmatpush1.bf16.msra.mxu0 %v804
        %838 = vmatprep.subr.bf16.mxu0 0
        %839 = vmatpush1.bf16.msra.mxu0 0
        %840 = vmatprep.subr.bf16.mxu0 0
        %841 = vmatpush1.bf16.msra.mxu0 0
        %842 = vmatprep.subr.bf16.mxu0 0
        %843 = vmatpush1.bf16.msra.mxu0 0
        %844 = vmatprep.subr.bf16.mxu0 0
        %845 = vmatpush1.bf16.msra.mxu0 0
        %846 = vmatprep.subr.bf16.mxu0 0
        %847 = vmatpush1.bf16.msra.mxu0 0
        %848 = vmatprep.subr.bf16.mxu0 0
        %849 = vmatpush1.bf16.msra.mxu0 0
        %850 = vmatprep.subr.bf16.mxu0 0
        %851 = vmatpush1.bf16.msra.mxu0 0
        %852 = vmatprep.subr.bf16.mxu0 0
        %853 = vmatpush1.bf16.msra.mxu0 0
        %854 = vmatprep.mubr.bf16.mxu0 0
        %855 = vmatmul.mubr.bf16.gmra.mrb[0].mxu0 %v706
        %v856 = vpop.f32.mrb[0].mxu0
        %v857 = vadd.f32 %v735, %v856
        %v858 = vpop.f32.mrb[0].mxu0
        %v859 = vadd.f32 %v739, %v858
        %v860 = vpop.f32.mrb[0].mxu0
        %v861 = vadd.f32 %v735, %v860
        %v862 = vpop.f32.mrb[0].mxu0
        %v863 = vadd.f32 %v739, %v862
        %864 = vmatprep.mubr.bf16.mxu0 0
        %865 = vmatmul.mubr.bf16.gmra.mrb[0].mxu0 %v707
        %v866 = vpop.f32.mrb[0].mxu0
        %v867 = vadd.f32 %v735, %v866
        %v868 = vpop.f32.mrb[0].mxu0
        %v869 = vadd.f32 %v739, %v868
        %v870 = vpop.f32.mrb[0].mxu0
        %v871 = vadd.f32 %v735, %v870
        %v872 = vpop.f32.mrb[0].mxu0
        %v873 = vadd.f32 %v739, %v872
        %874 = vmatprep.mubr.bf16.mxu0 0
        %875 = vmatmul.mubr.bf16.gmra.mrb[0].mxu0 %v708
        %v876 = vpop.f32.mrb[0].mxu0
        %v877 = vadd.f32 %v735, %v876
        %v878 = vpop.f32.mrb[0].mxu0
        %v879 = vadd.f32 %v739, %v878
        %v880 = vpop.f32.mrb[0].mxu0
        %v881 = vadd.f32 %v735, %v880
        %v882 = vpop.f32.mrb[0].mxu0
        %v883 = vadd.f32 %v739, %v882
        %884 = vmatprep.mubr.bf16.mxu0 0
        %885 = vmatmul.mubr.bf16.gmra.mrb[0].mxu0 %v709
        %v886 = vpop.f32.mrb[0].mxu0
        %v887 = vadd.f32 %v735, %v886
        %v888 = vpop.f32.mrb[0].mxu0
        %v889 = vadd.f32 %v739, %v888
        %v890 = vpop.f32.mrb[0].mxu0
        %v891 = vadd.f32 %v735, %v890
        %v892 = vpop.f32.mrb[0].mxu0
        %v893 = vadd.f32 %v739, %v892
        %894 = vmatprep.mubr.bf16.mxu0 0
        %895 = vmatmul.mubr.bf16.gmra.mrb[0].mxu0 %v710
        %v896 = vpop.f32.mrb[0].mxu0
        %v897 = vadd.f32 %v735, %v896
        %v898 = vpop.f32.mrb[0].mxu0
        %v899 = vadd.f32 %v739, %v898
        %v900 = vpop.f32.mrb[0].mxu0
        %v901 = vadd.f32 %v735, %v900
        %v902 = vpop.f32.mrb[0].mxu0
        %v903 = vadd.f32 %v739, %v902
        %904 = vmatprep.mubr.bf16.mxu0 0
        %905 = vmatmul.mubr.bf16.gmra.mrb[0].mxu0 %v711
        %v906 = vpop.f32.mrb[0].mxu0
        %v907 = vadd.f32 %v735, %v906
        %v908 = vpop.f32.mrb[0].mxu0
        %v909 = vadd.f32 %v739, %v908
        %v910 = vpop.f32.mrb[0].mxu0
        %v911 = vadd.f32 %v735, %v910
        %v912 = vpop.f32.mrb[0].mxu0
        %v913 = vadd.f32 %v739, %v912
        %914 = vmatprep.mubr.bf16.mxu0 0
        %915 = vmatmul.mubr.bf16.gmra.mrb[0].mxu0 %v712
        %v916 = vpop.f32.mrb[0].mxu0
        %v917 = vadd.f32 %v735, %v916
        %v918 = vpop.f32.mrb[0].mxu0
        %v919 = vadd.f32 %v739, %v918
        %v920 = vpop.f32.mrb[0].mxu0
        %v921 = vadd.f32 %v735, %v920
        %v922 = vpop.f32.mrb[0].mxu0
        %v923 = vadd.f32 %v739, %v922
        %924 = vmatprep.mubr.bf16.mxu0 0
        %925 = vmatmul.mubr.bf16.gmra.mrb[0].mxu0 %v713
        %v926 = vpop.f32.mrb[0].mxu0
        %v927 = vadd.f32 %v735, %v926
        %v928 = vpop.f32.mrb[0].mxu0
        %v929 = vadd.f32 %v739, %v928
        %v930 = vpop.f32.mrb[0].mxu0
        %v931 = vadd.f32 %v735, %v930
        %v932 = vpop.f32.mrb[0].mxu0
        %v933 = vadd.f32 %v739, %v932
        %934 = vdwg.mxu0
        %v935 = vld [vmem:[%s472] sm:$0xf]
        %v936 = vld [vmem:[%s472 + $0x4] sm:$0xf]
        %v937 = vld [vmem:[%s472 + $0x8] sm:$0xf]
        %v938 = vld [vmem:[%s472 + $0xc] sm:$0xf]
        %v939 = vld [vmem:[%s472 + $0x10] sm:$0xf]
        %v940 = vld [vmem:[%s472 + $0x14] sm:$0xf]
        %v941 = vld [vmem:[%s472 + $0x18] sm:$0xf]
        %v942 = vld [vmem:[%s472 + $0x1c] sm:$0xf]
        %v943 = vld [vmem:[%s472 + $0x20] sm:$0xf]
        %v944 = vld [vmem:[%s472 + $0x24] sm:$0xf]
        %v945 = vld [vmem:[%s472 + $0x28] sm:$0xf]
        %v946 = vld [vmem:[%s472 + $0x2c] sm:$0xf]
        %v947 = vld [vmem:[%s472 + $0x30] sm:$0xf]
        %v948 = vld [vmem:[%s472 + $0x34] sm:$0xf]
        %v949 = vld [vmem:[%s472 + $0x38] sm:$0xf]
        %v950 = vld [vmem:[%s472 + $0x3c] sm:$0xf]
        %v951 = vld [vmem:[%s477] sm:$0xf]
        %v952 = vld [vmem:[%s477 + $0x4] sm:$0xf]
        %v953 = vld [vmem:[%s477 + $0x8] sm:$0xf]
        %v954 = vld [vmem:[%s477 + $0xc] sm:$0xf]
        %v955 = vld [vmem:[%s477 + $0x10] sm:$0xf]
        %v956 = vld [vmem:[%s477 + $0x14] sm:$0xf]
        %v957 = vld [vmem:[%s477 + $0x18] sm:$0xf]
        %v958 = vld [vmem:[%s477 + $0x1c] sm:$0xf]
        %v959 = vpack.c.bf16 %v861, %v857
        %v960 = vpack.c.bf16 %v871, %v867
        %v961 = vpack.c.bf16 %v881, %v877
        %v962 = vpack.c.bf16 %v891, %v887
        %v963 = vpack.c.bf16 %v901, %v897
        %v964 = vpack.c.bf16 %v911, %v907
        %v965 = vpack.c.bf16 %v921, %v917
        %v966 = vpack.c.bf16 %v931, %v927
        %v983 = vunpack.c.l.b16 %v935
        %v984 = vunpack.c.l.b16 %v936
        %v985 = vunpack.c.l.b16 %v937
        %v986 = vunpack.c.l.b16 %v938
        %v987 = vunpack.c.l.b16 %v939
        %v988 = vunpack.c.l.b16 %v940
        %v989 = vunpack.c.l.b16 %v941
        %v990 = vunpack.c.l.b16 %v942
        %v991 = vunpack.c.l.b16 %v943
        %v992 = vunpack.c.l.b16 %v944
        %v993 = vunpack.c.l.b16 %v945
        %v994 = vunpack.c.l.b16 %v946
        %v995 = vunpack.c.l.b16 %v947
        %v996 = vunpack.c.l.b16 %v948
        %v997 = vunpack.c.l.b16 %v949
        %v998 = vunpack.c.l.b16 %v950
        %v999 = vpack.c.b16 %v984, %v983
        %v1000 = vpack.c.b16 %v986, %v985
        %v1001 = vpack.c.b16 %v988, %v987
        %v1002 = vpack.c.b16 %v990, %v989
        %v1003 = vpack.c.b16 %v992, %v991
        %v1004 = vpack.c.b16 %v994, %v993
        %v1005 = vpack.c.b16 %v996, %v995
        %v1006 = vpack.c.b16 %v998, %v997
        %1015 = vmatprep.subr.bf16.mxu0 0
        %1016 = vmatpush1.bf16.msra.mxu0 %v999
        %1017 = vmatprep.subr.bf16.mxu0 0
        %1018 = vmatpush1.bf16.msra.mxu0 %v1000
        %1019 = vmatprep.subr.bf16.mxu0 0
        %1020 = vmatpush1.bf16.msra.mxu0 %v1001
        %1021 = vmatprep.subr.bf16.mxu0 0
        %1022 = vmatpush1.bf16.msra.mxu0 %v1002
        %1023 = vmatprep.subr.bf16.mxu0 0
        %1024 = vmatpush1.bf16.msra.mxu0 %v1003
        %1025 = vmatprep.subr.bf16.mxu0 0
        %1026 = vmatpush1.bf16.msra.mxu0 %v1004
        %1027 = vmatprep.subr.bf16.mxu0 0
        %1028 = vmatpush1.bf16.msra.mxu0 %v1005
        %1029 = vmatprep.subr.bf16.mxu0 0
        %1030 = vmatpush1.bf16.msra.mxu0 %v1006
        %1031 = vmatprep.subr.bf16.mxu0 0
        %1032 = vmatpush1.bf16.msra.mxu0 0
        %1033 = vmatprep.subr.bf16.mxu0 0
        %1034 = vmatpush1.bf16.msra.mxu0 0
        %1035 = vmatprep.subr.bf16.mxu0 0
        %1036 = vmatpush1.bf16.msra.mxu0 0
        %1037 = vmatprep.subr.bf16.mxu0 0
        %1038 = vmatpush1.bf16.msra.mxu0 0
        %1039 = vmatprep.subr.bf16.mxu0 0
        %1040 = vmatpush1.bf16.msra.mxu0 0
        %1041 = vmatprep.subr.bf16.mxu0 0
        %1042 = vmatpush1.bf16.msra.mxu0 0
        %1043 = vmatprep.subr.bf16.mxu0 0
        %1044 = vmatpush1.bf16.msra.mxu0 0
        %1045 = vmatprep.subr.bf16.mxu0 0
        %1046 = vmatpush1.bf16.msra.mxu0 0
        %1047 = vmatprep.mubr.bf16.mxu0 0
        %1048 = vmatmul.mubr.bf16.gmra.mrb[0].mxu0 %v959
        %v1049 = vpop.f32.mrb[0].mxu0
        %v1050 = vadd.f32 0.0, %v1049
        %v1051 = vpop.f32.mrb[0].mxu0
        %v1052 = vpop.f32.mrb[0].mxu0
        %v1053 = vadd.f32 0.0, %v1052
        %v1054 = vpop.f32.mrb[0].mxu0
        %1055 = vmatprep.mubr.bf16.mxu0 0
        %1056 = vmatmul.mubr.bf16.gmra.mrb[0].mxu0 %v960
        %v1057 = vpop.f32.mrb[0].mxu0
        %v1058 = vadd.f32 0.0, %v1057
        %v1059 = vpop.f32.mrb[0].mxu0
        %v1060 = vpop.f32.mrb[0].mxu0
        %v1061 = vadd.f32 0.0, %v1060
        %v1062 = vpop.f32.mrb[0].mxu0
        %1063 = vmatprep.mubr.bf16.mxu0 0
        %1064 = vmatmul.mubr.bf16.gmra.mrb[0].mxu0 %v961
        %v1065 = vpop.f32.mrb[0].mxu0
        %v1066 = vadd.f32 0.0, %v1065
        %v1067 = vpop.f32.mrb[0].mxu0
        %v1068 = vpop.f32.mrb[0].mxu0
        %v1069 = vadd.f32 0.0, %v1068
        %v1070 = vpop.f32.mrb[0].mxu0
        %1071 = vmatprep.mubr.bf16.mxu0 0
        %1072 = vmatmul.mubr.bf16.gmra.mrb[0].mxu0 %v962
        %v1073 = vpop.f32.mrb[0].mxu0
        %v1074 = vadd.f32 0.0, %v1073
        %v1075 = vpop.f32.mrb[0].mxu0
        %v1076 = vpop.f32.mrb[0].mxu0
        %v1077 = vadd.f32 0.0, %v1076
        %v1078 = vpop.f32.mrb[0].mxu0
        %1079 = vmatprep.mubr.bf16.mxu0 0
        %1080 = vmatmul.mubr.bf16.gmra.mrb[0].mxu0 %v963
        %v1081 = vpop.f32.mrb[0].mxu0
        %v1082 = vadd.f32 0.0, %v1081
        %v1083 = vpop.f32.mrb[0].mxu0
        %v1084 = vpop.f32.mrb[0].mxu0
        %v1085 = vadd.f32 0.0, %v1084
        %v1086 = vpop.f32.mrb[0].mxu0
        %1087 = vmatprep.mubr.bf16.mxu0 0
        %1088 = vmatmul.mubr.bf16.gmra.mrb[0].mxu0 %v964
        %v1089 = vpop.f32.mrb[0].mxu0
        %v1090 = vadd.f32 0.0, %v1089
        %v1091 = vpop.f32.mrb[0].mxu0
        %v1092 = vpop.f32.mrb[0].mxu0
        %v1093 = vadd.f32 0.0, %v1092
        %v1094 = vpop.f32.mrb[0].mxu0
        %1095 = vmatprep.mubr.bf16.mxu0 0
        %1096 = vmatmul.mubr.bf16.gmra.mrb[0].mxu0 %v965
        %v1097 = vpop.f32.mrb[0].mxu0
        %v1098 = vadd.f32 0.0, %v1097
        %v1099 = vpop.f32.mrb[0].mxu0
        %v1100 = vpop.f32.mrb[0].mxu0
        %v1101 = vadd.f32 0.0, %v1100
        %v1102 = vpop.f32.mrb[0].mxu0
        %1103 = vmatprep.mubr.bf16.mxu0 0
        %1104 = vmatmul.mubr.bf16.gmra.mrb[0].mxu0 %v966
        %v1105 = vpop.f32.mrb[0].mxu0
        %v1106 = vadd.f32 0.0, %v1105
        %v1107 = vpop.f32.mrb[0].mxu0
        %v1108 = vpop.f32.mrb[0].mxu0
        %v1109 = vadd.f32 0.0, %v1108
        %v1110 = vpop.f32.mrb[0].mxu0
        %1111 = vdwg.mxu0
        %vm1112 = vcmp.ge.s32.totalorder %v496, 0
        %vm1113 = vcmp.lt.s32.totalorder %v496, 9
        %vm1114 = vmand %vm1112, %vm1113
        %v1115 = vsel %vm1114, %v1050, -inf
        %v1116 = vsel %vm1114, %v1053, -inf
        %v1117 = vsel %vm1114, %v1058, -inf
        %v1118 = vsel %vm1114, %v1061, -inf
        %v1119 = vsel %vm1114, %v1066, -inf
        %v1120 = vsel %vm1114, %v1069, -inf
        %v1121 = vsel %vm1114, %v1074, -inf
        %v1122 = vsel %vm1114, %v1077, -inf
        %v1123 = vsel %vm1114, %v1082, -inf
        %v1124 = vsel %vm1114, %v1085, -inf
        %v1125 = vsel %vm1114, %v1090, -inf
        %v1126 = vsel %vm1114, %v1093, -inf
        %v1127 = vsel %vm1114, %v1098, -inf
        %v1128 = vsel %vm1114, %v1101, -inf
        %v1129 = vsel %vm1114, %v1106, -inf
        %v1130 = vsel %vm1114, %v1109, -inf
        %vm1131 = vcmask 523264
        %v1132 = vsel %vm1131, %v1115, -inf
        %1133 = vmax.xlane.f32.xlu0 %v1132
        %v1134 = vpop.xlane.xlu0 %1133
        %v1135 = vsel %vm1131, %v1116, -inf
        %1136 = vmax.xlane.f32.xlu0 %v1135
        %v1137 = vpop.xlane.xlu0 %1136
        %v1138 = vsel %vm1131, %v1117, -inf
        %1139 = vmax.xlane.f32.xlu0 %v1138
        %v1140 = vpop.xlane.xlu0 %1139
        %v1141 = vsel %vm1131, %v1118, -inf
        %1142 = vmax.xlane.f32.xlu0 %v1141
        %v1143 = vpop.xlane.xlu0 %1142
        %v1144 = vsel %vm1131, %v1119, -inf
        %1145 = vmax.xlane.f32.xlu0 %v1144
        %v1146 = vpop.xlane.xlu0 %1145
        %v1147 = vsel %vm1131, %v1120, -inf
        %1148 = vmax.xlane.f32.xlu0 %v1147
        %v1149 = vpop.xlane.xlu0 %1148
        %v1150 = vsel %vm1131, %v1121, -inf
        %1151 = vmax.xlane.f32.xlu0 %v1150
        %v1152 = vpop.xlane.xlu0 %1151
        %v1153 = vsel %vm1131, %v1122, -inf
        %1154 = vmax.xlane.f32.xlu0 %v1153
        %v1155 = vpop.xlane.xlu0 %1154
        %v1156 = vsel %vm1131, %v1123, -inf
        %1157 = vmax.xlane.f32.xlu0 %v1156
        %v1158 = vpop.xlane.xlu0 %1157
        %v1159 = vsel %vm1131, %v1124, -inf
        %1160 = vmax.xlane.f32.xlu0 %v1159
        %v1161 = vpop.xlane.xlu0 %1160
        %v1162 = vsel %vm1131, %v1125, -inf
        %1163 = vmax.xlane.f32.xlu0 %v1162
        %v1164 = vpop.xlane.xlu0 %1163
        %v1165 = vsel %vm1131, %v1126, -inf
        %1166 = vmax.xlane.f32.xlu0 %v1165
        %v1167 = vpop.xlane.xlu0 %1166
        %v1168 = vsel %vm1131, %v1127, -inf
        %1169 = vmax.xlane.f32.xlu0 %v1168
        %v1170 = vpop.xlane.xlu0 %1169
        %v1171 = vsel %vm1131, %v1128, -inf
        %1172 = vmax.xlane.f32.xlu0 %v1171
        %v1173 = vpop.xlane.xlu0 %1172
        %v1174 = vsel %vm1131, %v1129, -inf
        %1175 = vmax.xlane.f32.xlu0 %v1174
        %v1176 = vpop.xlane.xlu0 %1175
        %v1177 = vsel %vm1131, %v1130, -inf
        %1178 = vmax.xlane.f32.xlu0 %v1177
        %v1179 = vpop.xlane.xlu0 %1178
        %v1180 = vsel %vm1114, %v1134, 0.0
        %v1181 = vsel %vm1114, %v1137, 0.0
        %v1182 = vsel %vm1114, %v1140, 0.0
        %v1183 = vsel %vm1114, %v1143, 0.0
        %v1184 = vsel %vm1114, %v1146, 0.0
        %v1185 = vsel %vm1114, %v1149, 0.0
        %v1186 = vsel %vm1114, %v1152, 0.0
        %v1187 = vsel %vm1114, %v1155, 0.0
        %v1188 = vsel %vm1114, %v1158, 0.0
        %v1189 = vsel %vm1114, %v1161, 0.0
        %v1190 = vsel %vm1114, %v1164, 0.0
        %v1191 = vsel %vm1114, %v1167, 0.0
        %v1192 = vsel %vm1114, %v1170, 0.0
        %v1193 = vsel %vm1114, %v1173, 0.0
        %v1194 = vsel %vm1114, %v1176, 0.0
        %v1195 = vsel %vm1114, %v1179, 0.0
        %v1196 = vadd.f32 %v1180, 0.0
        %v1197 = vadd.f32 %v1181, 0.0
        %v1198 = vadd.f32 %v1182, 0.0
        %v1199 = vadd.f32 %v1183, 0.0
        %v1200 = vadd.f32 %v1184, 0.0
        %v1201 = vadd.f32 %v1185, 0.0
        %v1202 = vadd.f32 %v1186, 0.0
        %v1203 = vadd.f32 %v1187, 0.0
        %v1204 = vadd.f32 %v1188, 0.0
        %v1205 = vadd.f32 %v1189, 0.0
        %v1206 = vadd.f32 %v1190, 0.0
        %v1207 = vadd.f32 %v1191, 0.0
        %v1208 = vadd.f32 %v1192, 0.0
        %v1209 = vadd.f32 %v1193, 0.0
        %v1210 = vadd.f32 %v1194, 0.0
        %v1211 = vadd.f32 %v1195, 0.0
        %vm1212 = vcmp.ge.s32.totalorder %v496, 9
        %vm1213 = vcmp.lt.s32.totalorder %v496, 18
        %vm1214 = vmand %vm1212, %vm1213
        %v1215 = vsel %vm1214, %v1050, -inf
        %v1216 = vsel %vm1214, %v1053, -inf
        %v1217 = vsel %vm1214, %v1058, -inf
        %v1218 = vsel %vm1214, %v1061, -inf
        %v1219 = vsel %vm1214, %v1066, -inf
        %v1220 = vsel %vm1214, %v1069, -inf
        %v1221 = vsel %vm1214, %v1074, -inf
        %v1222 = vsel %vm1214, %v1077, -inf
        %v1223 = vsel %vm1214, %v1082, -inf
        %v1224 = vsel %vm1214, %v1085, -inf
        %v1225 = vsel %vm1214, %v1090, -inf
        %v1226 = vsel %vm1214, %v1093, -inf
        %v1227 = vsel %vm1214, %v1098, -inf
        %v1228 = vsel %vm1214, %v1101, -inf
        %v1229 = vsel %vm1214, %v1106, -inf
        %v1230 = vsel %vm1214, %v1109, -inf
        %v1231 = vsel %vm1131, %v1215, -inf
        %1232 = vmax.xlane.f32.xlu0 %v1231
        %v1233 = vpop.xlane.xlu0 %1232
        %v1234 = vsel %vm1131, %v1216, -inf
        %1235 = vmax.xlane.f32.xlu0 %v1234
        %v1236 = vpop.xlane.xlu0 %1235
        %v1237 = vsel %vm1131, %v1217, -inf
        %1238 = vmax.xlane.f32.xlu0 %v1237
        %v1239 = vpop.xlane.xlu0 %1238
        %v1240 = vsel %vm1131, %v1218, -inf
        %1241 = vmax.xlane.f32.xlu0 %v1240
        %v1242 = vpop.xlane.xlu0 %1241
        %v1243 = vsel %vm1131, %v1219, -inf
        %1244 = vmax.xlane.f32.xlu0 %v1243
        %v1245 = vpop.xlane.xlu0 %1244
        %v1246 = vsel %vm1131, %v1220, -inf
        %1247 = vmax.xlane.f32.xlu0 %v1246
        %v1248 = vpop.xlane.xlu0 %1247
        %v1249 = vsel %vm1131, %v1221, -inf
        %1250 = vmax.xlane.f32.xlu0 %v1249
        %v1251 = vpop.xlane.xlu0 %1250
        %v1252 = vsel %vm1131, %v1222, -inf
        %1253 = vmax.xlane.f32.xlu0 %v1252
        %v1254 = vpop.xlane.xlu0 %1253
        %v1255 = vsel %vm1131, %v1223, -inf
        %1256 = vmax.xlane.f32.xlu0 %v1255
        %v1257 = vpop.xlane.xlu0 %1256
        %v1258 = vsel %vm1131, %v1224, -inf
        %1259 = vmax.xlane.f32.xlu0 %v1258
        %v1260 = vpop.xlane.xlu0 %1259
        %v1261 = vsel %vm1131, %v1225, -inf
        %1262 = vmax.xlane.f32.xlu0 %v1261
        %v1263 = vpop.xlane.xlu0 %1262
        %v1264 = vsel %vm1131, %v1226, -inf
        %1265 = vmax.xlane.f32.xlu0 %v1264
        %v1266 = vpop.xlane.xlu0 %1265
        %v1267 = vsel %vm1131, %v1227, -inf
        %1268 = vmax.xlane.f32.xlu0 %v1267
        %v1269 = vpop.xlane.xlu0 %1268
        %v1270 = vsel %vm1131, %v1228, -inf
        %1271 = vmax.xlane.f32.xlu0 %v1270
        %v1272 = vpop.xlane.xlu0 %1271
        %v1273 = vsel %vm1131, %v1229, -inf
        %1274 = vmax.xlane.f32.xlu0 %v1273
        %v1275 = vpop.xlane.xlu0 %1274
        %v1276 = vsel %vm1131, %v1230, -inf
        %1277 = vmax.xlane.f32.xlu0 %v1276
        %v1278 = vpop.xlane.xlu0 %1277
        %v1279 = vsel %vm1214, %v1233, 0.0
        %v1280 = vsel %vm1214, %v1236, 0.0
        %v1281 = vsel %vm1214, %v1239, 0.0
        %v1282 = vsel %vm1214, %v1242, 0.0
        %v1283 = vsel %vm1214, %v1245, 0.0
        %v1284 = vsel %vm1214, %v1248, 0.0
        %v1285 = vsel %vm1214, %v1251, 0.0
        %v1286 = vsel %vm1214, %v1254, 0.0
        %v1287 = vsel %vm1214, %v1257, 0.0
        %v1288 = vsel %vm1214, %v1260, 0.0
        %v1289 = vsel %vm1214, %v1263, 0.0
        %v1290 = vsel %vm1214, %v1266, 0.0
        %v1291 = vsel %vm1214, %v1269, 0.0
        %v1292 = vsel %vm1214, %v1272, 0.0
        %v1293 = vsel %vm1214, %v1275, 0.0
        %v1294 = vsel %vm1214, %v1278, 0.0
        %v1295 = vadd.f32 %v1196, %v1279
        %v1296 = vadd.f32 %v1197, %v1280
        %v1297 = vadd.f32 %v1198, %v1281
        %v1298 = vadd.f32 %v1199, %v1282
        %v1299 = vadd.f32 %v1200, %v1283
        %v1300 = vadd.f32 %v1201, %v1284
        %v1301 = vadd.f32 %v1202, %v1285
        %v1302 = vadd.f32 %v1203, %v1286
        %v1303 = vadd.f32 %v1204, %v1287
        %v1304 = vadd.f32 %v1205, %v1288
        %v1305 = vadd.f32 %v1206, %v1289
        %v1306 = vadd.f32 %v1207, %v1290
        %v1307 = vadd.f32 %v1208, %v1291
        %v1308 = vadd.f32 %v1209, %v1292
        %v1309 = vadd.f32 %v1210, %v1293
        %v1310 = vadd.f32 %v1211, %v1294
        %vm1311 = vcmp.ge.s32.totalorder %v496, 18
        %vm1312 = vcmp.lt.s32.totalorder %v496, 27
        %vm1313 = vmand %vm1311, %vm1312
        %v1314 = vsel %vm1313, %v1050, -inf
        %v1315 = vsel %vm1313, %v1053, -inf
        %v1316 = vsel %vm1313, %v1058, -inf
        %v1317 = vsel %vm1313, %v1061, -inf
        %v1318 = vsel %vm1313, %v1066, -inf
        %v1319 = vsel %vm1313, %v1069, -inf
        %v1320 = vsel %vm1313, %v1074, -inf
        %v1321 = vsel %vm1313, %v1077, -inf
        %v1322 = vsel %vm1313, %v1082, -inf
        %v1323 = vsel %vm1313, %v1085, -inf
        %v1324 = vsel %vm1313, %v1090, -inf
        %v1325 = vsel %vm1313, %v1093, -inf
        %v1326 = vsel %vm1313, %v1098, -inf
        %v1327 = vsel %vm1313, %v1101, -inf
        %v1328 = vsel %vm1313, %v1106, -inf
        %v1329 = vsel %vm1313, %v1109, -inf
        %v1330 = vsel %vm1131, %v1314, -inf
        %1331 = vmax.xlane.f32.xlu0 %v1330
        %v1332 = vpop.xlane.xlu0 %1331
        %v1333 = vsel %vm1131, %v1315, -inf
        %1334 = vmax.xlane.f32.xlu0 %v1333
        %v1335 = vpop.xlane.xlu0 %1334
        %v1336 = vsel %vm1131, %v1316, -inf
        %1337 = vmax.xlane.f32.xlu0 %v1336
        %v1338 = vpop.xlane.xlu0 %1337
        %v1339 = vsel %vm1131, %v1317, -inf
        %1340 = vmax.xlane.f32.xlu0 %v1339
        %v1341 = vpop.xlane.xlu0 %1340
        %v1342 = vsel %vm1131, %v1318, -inf
        %1343 = vmax.xlane.f32.xlu0 %v1342
        %v1344 = vpop.xlane.xlu0 %1343
        %v1345 = vsel %vm1131, %v1319, -inf
        %1346 = vmax.xlane.f32.xlu0 %v1345
        %v1347 = vpop.xlane.xlu0 %1346
        %v1348 = vsel %vm1131, %v1320, -inf
        %1349 = vmax.xlane.f32.xlu0 %v1348
        %v1350 = vpop.xlane.xlu0 %1349
        %v1351 = vsel %vm1131, %v1321, -inf
        %1352 = vmax.xlane.f32.xlu0 %v1351
        %v1353 = vpop.xlane.xlu0 %1352
        %v1354 = vsel %vm1131, %v1322, -inf
        %1355 = vmax.xlane.f32.xlu0 %v1354
        %v1356 = vpop.xlane.xlu0 %1355
        %v1357 = vsel %vm1131, %v1323, -inf
        %1358 = vmax.xlane.f32.xlu0 %v1357
        %v1359 = vpop.xlane.xlu0 %1358
        %v1360 = vsel %vm1131, %v1324, -inf
        %1361 = vmax.xlane.f32.xlu0 %v1360
        %v1362 = vpop.xlane.xlu0 %1361
        %v1363 = vsel %vm1131, %v1325, -inf
        %1364 = vmax.xlane.f32.xlu0 %v1363
        %v1365 = vpop.xlane.xlu0 %1364
        %v1366 = vsel %vm1131, %v1326, -inf
        %1367 = vmax.xlane.f32.xlu0 %v1366
        %v1368 = vpop.xlane.xlu0 %1367
        %v1369 = vsel %vm1131, %v1327, -inf
        %1370 = vmax.xlane.f32.xlu0 %v1369
        %v1371 = vpop.xlane.xlu0 %1370
        %v1372 = vsel %vm1131, %v1328, -inf
        %1373 = vmax.xlane.f32.xlu0 %v1372
        %v1374 = vpop.xlane.xlu0 %1373
        %v1375 = vsel %vm1131, %v1329, -inf
        %1376 = vmax.xlane.f32.xlu0 %v1375
        %v1377 = vpop.xlane.xlu0 %1376
        %v1378 = vsel %vm1313, %v1332, 0.0
        %v1379 = vsel %vm1313, %v1335, 0.0
        %v1380 = vsel %vm1313, %v1338, 0.0
        %v1381 = vsel %vm1313, %v1341, 0.0
        %v1382 = vsel %vm1313, %v1344, 0.0
        %v1383 = vsel %vm1313, %v1347, 0.0
        %v1384 = vsel %vm1313, %v1350, 0.0
        %v1385 = vsel %vm1313, %v1353, 0.0
        %v1386 = vsel %vm1313, %v1356, 0.0
        %v1387 = vsel %vm1313, %v1359, 0.0
        %v1388 = vsel %vm1313, %v1362, 0.0
        %v1389 = vsel %vm1313, %v1365, 0.0
        %v1390 = vsel %vm1313, %v1368, 0.0
        %v1391 = vsel %vm1313, %v1371, 0.0
        %v1392 = vsel %vm1313, %v1374, 0.0
        %v1393 = vsel %vm1313, %v1377, 0.0
        %v1394 = vadd.f32 %v1295, %v1378
        %v1395 = vadd.f32 %v1296, %v1379
        %v1396 = vadd.f32 %v1297, %v1380
        %v1397 = vadd.f32 %v1298, %v1381
        %v1398 = vadd.f32 %v1299, %v1382
        %v1399 = vadd.f32 %v1300, %v1383
        %v1400 = vadd.f32 %v1301, %v1384
        %v1401 = vadd.f32 %v1302, %v1385
        %v1402 = vadd.f32 %v1303, %v1386
        %v1403 = vadd.f32 %v1304, %v1387
        %v1404 = vadd.f32 %v1305, %v1388
        %v1405 = vadd.f32 %v1306, %v1389
        %v1406 = vadd.f32 %v1307, %v1390
        %v1407 = vadd.f32 %v1308, %v1391
        %v1408 = vadd.f32 %v1309, %v1392
        %v1409 = vadd.f32 %v1310, %v1393
        %vm1410 = vcmp.ge.s32.totalorder %v496, 27
        %vm1411 = vcmp.lt.s32.totalorder %v496, 36
        %vm1412 = vmand %vm1410, %vm1411
        %v1413 = vsel %vm1412, %v1050, -inf
        %v1414 = vsel %vm1412, %v1053, -inf
        %v1415 = vsel %vm1412, %v1058, -inf
        %v1416 = vsel %vm1412, %v1061, -inf
        %v1417 = vsel %vm1412, %v1066, -inf
        %v1418 = vsel %vm1412, %v1069, -inf
        %v1419 = vsel %vm1412, %v1074, -inf
        %v1420 = vsel %vm1412, %v1077, -inf
        %v1421 = vsel %vm1412, %v1082, -inf
        %v1422 = vsel %vm1412, %v1085, -inf
        %v1423 = vsel %vm1412, %v1090, -inf
        %v1424 = vsel %vm1412, %v1093, -inf
        %v1425 = vsel %vm1412, %v1098, -inf
        %v1426 = vsel %vm1412, %v1101, -inf
        %v1427 = vsel %vm1412, %v1106, -inf
        %v1428 = vsel %vm1412, %v1109, -inf
        %v1429 = vsel %vm1131, %v1413, -inf
        %1430 = vmax.xlane.f32.xlu0 %v1429
        %v1431 = vpop.xlane.xlu0 %1430
        %v1432 = vsel %vm1131, %v1414, -inf
        %1433 = vmax.xlane.f32.xlu0 %v1432
        %v1434 = vpop.xlane.xlu0 %1433
        %v1435 = vsel %vm1131, %v1415, -inf
        %1436 = vmax.xlane.f32.xlu0 %v1435
        %v1437 = vpop.xlane.xlu0 %1436
        %v1438 = vsel %vm1131, %v1416, -inf
        %1439 = vmax.xlane.f32.xlu0 %v1438
        %v1440 = vpop.xlane.xlu0 %1439
        %v1441 = vsel %vm1131, %v1417, -inf
        %1442 = vmax.xlane.f32.xlu0 %v1441
        %v1443 = vpop.xlane.xlu0 %1442
        %v1444 = vsel %vm1131, %v1418, -inf
        %1445 = vmax.xlane.f32.xlu0 %v1444
        %v1446 = vpop.xlane.xlu0 %1445
        %v1447 = vsel %vm1131, %v1419, -inf
        %1448 = vmax.xlane.f32.xlu0 %v1447
        %v1449 = vpop.xlane.xlu0 %1448
        %v1450 = vsel %vm1131, %v1420, -inf
        %1451 = vmax.xlane.f32.xlu0 %v1450
        %v1452 = vpop.xlane.xlu0 %1451
        %v1453 = vsel %vm1131, %v1421, -inf
        %1454 = vmax.xlane.f32.xlu0 %v1453
        %v1455 = vpop.xlane.xlu0 %1454
        %v1456 = vsel %vm1131, %v1422, -inf
        %1457 = vmax.xlane.f32.xlu0 %v1456
        %v1458 = vpop.xlane.xlu0 %1457
        %v1459 = vsel %vm1131, %v1423, -inf
        %1460 = vmax.xlane.f32.xlu0 %v1459
        %v1461 = vpop.xlane.xlu0 %1460
        %v1462 = vsel %vm1131, %v1424, -inf
        %1463 = vmax.xlane.f32.xlu0 %v1462
        %v1464 = vpop.xlane.xlu0 %1463
        %v1465 = vsel %vm1131, %v1425, -inf
        %1466 = vmax.xlane.f32.xlu0 %v1465
        %v1467 = vpop.xlane.xlu0 %1466
        %v1468 = vsel %vm1131, %v1426, -inf
        %1469 = vmax.xlane.f32.xlu0 %v1468
        %v1470 = vpop.xlane.xlu0 %1469
        %v1471 = vsel %vm1131, %v1427, -inf
        %1472 = vmax.xlane.f32.xlu0 %v1471
        %v1473 = vpop.xlane.xlu0 %1472
        %v1474 = vsel %vm1131, %v1428, -inf
        %1475 = vmax.xlane.f32.xlu0 %v1474
        %v1476 = vpop.xlane.xlu0 %1475
        %v1477 = vsel %vm1412, %v1431, 0.0
        %v1478 = vsel %vm1412, %v1434, 0.0
        %v1479 = vsel %vm1412, %v1437, 0.0
        %v1480 = vsel %vm1412, %v1440, 0.0
        %v1481 = vsel %vm1412, %v1443, 0.0
        %v1482 = vsel %vm1412, %v1446, 0.0
        %v1483 = vsel %vm1412, %v1449, 0.0
        %v1484 = vsel %vm1412, %v1452, 0.0
        %v1485 = vsel %vm1412, %v1455, 0.0
        %v1486 = vsel %vm1412, %v1458, 0.0
        %v1487 = vsel %vm1412, %v1461, 0.0
        %v1488 = vsel %vm1412, %v1464, 0.0
        %v1489 = vsel %vm1412, %v1467, 0.0
        %v1490 = vsel %vm1412, %v1470, 0.0
        %v1491 = vsel %vm1412, %v1473, 0.0
        %v1492 = vsel %vm1412, %v1476, 0.0
        %v1493 = vadd.f32 %v1394, %v1477
        %v1494 = vadd.f32 %v1395, %v1478
        %v1495 = vadd.f32 %v1396, %v1479
        %v1496 = vadd.f32 %v1397, %v1480
        %v1497 = vadd.f32 %v1398, %v1481
        %v1498 = vadd.f32 %v1399, %v1482
        %v1499 = vadd.f32 %v1400, %v1483
        %v1500 = vadd.f32 %v1401, %v1484
        %v1501 = vadd.f32 %v1402, %v1485
        %v1502 = vadd.f32 %v1403, %v1486
        %v1503 = vadd.f32 %v1404, %v1487
        %v1504 = vadd.f32 %v1405, %v1488
        %v1505 = vadd.f32 %v1406, %v1489
        %v1506 = vadd.f32 %v1407, %v1490
        %v1507 = vadd.f32 %v1408, %v1491
        %v1508 = vadd.f32 %v1409, %v1492
        %v1509 = vsub.f32 %v1050, %v1493
        %v1510 = vsub.f32 %v1053, %v1494
        %v1511 = vsub.f32 %v1058, %v1495
        %v1512 = vsub.f32 %v1061, %v1496
        %v1513 = vsub.f32 %v1066, %v1497
        %v1514 = vsub.f32 %v1069, %v1498
        %v1515 = vsub.f32 %v1074, %v1499
        %v1516 = vsub.f32 %v1077, %v1500
        %v1517 = vsub.f32 %v1082, %v1501
        %v1518 = vsub.f32 %v1085, %v1502
        %v1519 = vsub.f32 %v1090, %v1503
        %v1520 = vsub.f32 %v1093, %v1504
        %v1521 = vsub.f32 %v1098, %v1505
        %v1522 = vsub.f32 %v1101, %v1506
        %v1523 = vsub.f32 %v1106, %v1507
        %v1524 = vsub.f32 %v1109, %v1508
        %v1525 = vmul.f32 %v1509, 1.442695
        %v1526 = vpow.pop %v1525
        %v1527 = vmul.f32 %v1510, 1.442695
        %v1528 = vpow.pop %v1527
        %v1529 = vmul.f32 %v1511, 1.442695
        %v1530 = vpow.pop %v1529
        %v1531 = vmul.f32 %v1512, 1.442695
        %v1532 = vpow.pop %v1531
        %v1533 = vmul.f32 %v1513, 1.442695
        %v1534 = vpow.pop %v1533
        %v1535 = vmul.f32 %v1514, 1.442695
        %v1536 = vpow.pop %v1535
        %v1537 = vmul.f32 %v1515, 1.442695
        %v1538 = vpow.pop %v1537
        %v1539 = vmul.f32 %v1516, 1.442695
        %v1540 = vpow.pop %v1539
        %v1541 = vmul.f32 %v1517, 1.442695
        %v1542 = vpow.pop %v1541
        %v1543 = vmul.f32 %v1518, 1.442695
        %v1544 = vpow.pop %v1543
        %v1545 = vmul.f32 %v1519, 1.442695
        %v1546 = vpow.pop %v1545
        %v1547 = vmul.f32 %v1520, 1.442695
        %v1548 = vpow.pop %v1547
        %v1549 = vmul.f32 %v1521, 1.442695
        %v1550 = vpow.pop %v1549
        %v1551 = vmul.f32 %v1522, 1.442695
        %v1552 = vpow.pop %v1551
        %v1553 = vmul.f32 %v1523, 1.442695
        %v1554 = vpow.pop %v1553
        %v1555 = vmul.f32 %v1524, 1.442695
        %v1556 = vpow.pop %v1555
        %v1557 = vpack.c.bf16 %v1528, %v1526
        %v1558 = vpack.c.bf16 %v1532, %v1530
        %v1559 = vpack.c.bf16 %v1536, %v1534
        %v1560 = vpack.c.bf16 %v1540, %v1538
        %v1561 = vpack.c.bf16 %v1544, %v1542
        %v1562 = vpack.c.bf16 %v1548, %v1546
        %v1563 = vpack.c.bf16 %v1552, %v1550
        %v1564 = vpack.c.bf16 %v1556, %v1554
        %v1573 = vunpack.c.l.b16 %v951
        %v1574 = vunpack.c.l.b16 %v952
        %v1575 = vunpack.c.l.b16 %v953
        %v1576 = vunpack.c.l.b16 %v954
        %v1577 = vunpack.c.l.b16 %v955
        %v1578 = vunpack.c.l.b16 %v956
        %v1579 = vunpack.c.l.b16 %v957
        %v1580 = vunpack.c.l.b16 %v958
        %v1581 = vpack.c.b16 %v1574, %v1573
        %v1582 = vpack.c.b16 %v1576, %v1575
        %v1583 = vpack.c.b16 %v1578, %v1577
        %v1584 = vpack.c.b16 %v1580, %v1579
        %v1590 = vsel %vm1131, %v1557, 0
        %v1593 = vsel %vm1131, %v1558, 0
        %v1596 = vsel %vm1131, %v1559, 0
        %v1599 = vsel %vm1131, %v1560, 0
        %v1602 = vsel %vm1131, %v1561, 0
        %v1605 = vsel %vm1131, %v1562, 0
        %v1608 = vsel %vm1131, %v1563, 0
        %v1611 = vsel %vm1131, %v1564, 0
        %1613 = vmatprep.subr.bf16.mxu0 0
        %1614 = vmatpush1.bf16.msra.mxu0 %v1581
        %1615 = vmatprep.subr.bf16.mxu0 0
        %1616 = vmatpush1.bf16.msra.mxu0 %v1582
        %1617 = vmatprep.subr.bf16.mxu0 0
        %1618 = vmatpush1.bf16.msra.mxu0 %v1583
        %1619 = vmatprep.subr.bf16.mxu0 0
        %1620 = vmatpush1.bf16.msra.mxu0 %v1584
        %1621 = vmatprep.subr.bf16.mxu0 0
        %1622 = vmatpush1.bf16.msra.mxu0 0
        %1623 = vmatprep.subr.bf16.mxu0 0
        %1624 = vmatpush1.bf16.msra.mxu0 0
        %1625 = vmatprep.subr.bf16.mxu0 0
        %1626 = vmatpush1.bf16.msra.mxu0 0
        %1627 = vmatprep.subr.bf16.mxu0 0
        %1628 = vmatpush1.bf16.msra.mxu0 0
        %1629 = vmatprep.subr.bf16.mxu0 0
        %1630 = vmatpush1.bf16.msra.mxu0 0
        %1631 = vmatprep.subr.bf16.mxu0 0
        %1632 = vmatpush1.bf16.msra.mxu0 0
        %1633 = vmatprep.subr.bf16.mxu0 0
        %1634 = vmatpush1.bf16.msra.mxu0 0
        %1635 = vmatprep.subr.bf16.mxu0 0
        %1636 = vmatpush1.bf16.msra.mxu0 0
        %1637 = vmatprep.subr.bf16.mxu0 0
        %1638 = vmatpush1.bf16.msra.mxu0 0
        %1639 = vmatprep.subr.bf16.mxu0 0
        %1640 = vmatpush1.bf16.msra.mxu0 0
        %1641 = vmatprep.subr.bf16.mxu0 0
        %1642 = vmatpush1.bf16.msra.mxu0 0
        %1643 = vmatprep.subr.bf16.mxu0 0
        %1644 = vmatpush1.bf16.msra.mxu0 0
        %1645 = vmatprep.mubr.bf16.mxu0 0
        %1646 = vmatmul.mubr.bf16.gmra.mrb[0].mxu0 %v1590
        %v1647 = vpop.f32.mrb[0].mxu0
        %v1648 = vadd.f32 0.0, %v1647
        %v1649 = vpop.f32.mrb[0].mxu0
        %v1650 = vpop.f32.mrb[0].mxu0
        %v1651 = vadd.f32 0.0, %v1650
        %v1652 = vpop.f32.mrb[0].mxu0
        %1653 = vmatprep.mubr.bf16.mxu0 0
        %1654 = vmatmul.mubr.bf16.gmra.mrb[0].mxu0 %v1593
        %v1655 = vpop.f32.mrb[0].mxu0
        %v1656 = vadd.f32 0.0, %v1655
        %v1657 = vpop.f32.mrb[0].mxu0
        %v1658 = vpop.f32.mrb[0].mxu0
        %v1659 = vadd.f32 0.0, %v1658
        %v1660 = vpop.f32.mrb[0].mxu0
        %1661 = vmatprep.mubr.bf16.mxu0 0
        %1662 = vmatmul.mubr.bf16.gmra.mrb[0].mxu0 %v1596
        %v1663 = vpop.f32.mrb[0].mxu0
        %v1664 = vadd.f32 0.0, %v1663
        %v1665 = vpop.f32.mrb[0].mxu0
        %v1666 = vpop.f32.mrb[0].mxu0
        %v1667 = vadd.f32 0.0, %v1666
        %v1668 = vpop.f32.mrb[0].mxu0
        %1669 = vmatprep.mubr.bf16.mxu0 0
        %1670 = vmatmul.mubr.bf16.gmra.mrb[0].mxu0 %v1599
        %v1671 = vpop.f32.mrb[0].mxu0
        %v1672 = vadd.f32 0.0, %v1671
        %v1673 = vpop.f32.mrb[0].mxu0
        %v1674 = vpop.f32.mrb[0].mxu0
        %v1675 = vadd.f32 0.0, %v1674
        %v1676 = vpop.f32.mrb[0].mxu0
        %1677 = vmatprep.mubr.bf16.mxu0 0
        %1678 = vmatmul.mubr.bf16.gmra.mrb[0].mxu0 %v1602
        %v1679 = vpop.f32.mrb[0].mxu0
        %v1680 = vadd.f32 0.0, %v1679
        %v1681 = vpop.f32.mrb[0].mxu0
        %v1682 = vpop.f32.mrb[0].mxu0
        %v1683 = vadd.f32 0.0, %v1682
        %v1684 = vpop.f32.mrb[0].mxu0
        %1685 = vmatprep.mubr.bf16.mxu0 0
        %1686 = vmatmul.mubr.bf16.gmra.mrb[0].mxu0 %v1605
        %v1687 = vpop.f32.mrb[0].mxu0
        %v1688 = vadd.f32 0.0, %v1687
        %v1689 = vpop.f32.mrb[0].mxu0
        %v1690 = vpop.f32.mrb[0].mxu0
        %v1691 = vadd.f32 0.0, %v1690
        %v1692 = vpop.f32.mrb[0].mxu0
        %1693 = vmatprep.mubr.bf16.mxu0 0
        %1694 = vmatmul.mubr.bf16.gmra.mrb[0].mxu0 %v1608
        %v1695 = vpop.f32.mrb[0].mxu0
        %v1696 = vadd.f32 0.0, %v1695
        %v1697 = vpop.f32.mrb[0].mxu0
        %v1698 = vpop.f32.mrb[0].mxu0
        %v1699 = vadd.f32 0.0, %v1698
        %v1700 = vpop.f32.mrb[0].mxu0
        %1701 = vmatprep.mubr.bf16.mxu0 0
        %1702 = vmatmul.mubr.bf16.gmra.mrb[0].mxu0 %v1611
        %v1703 = vpop.f32.mrb[0].mxu0
        %v1704 = vadd.f32 0.0, %v1703
        %v1705 = vpop.f32.mrb[0].mxu0
        %v1706 = vpop.f32.mrb[0].mxu0
        %v1707 = vadd.f32 0.0, %v1706
        %v1708 = vpop.f32.mrb[0].mxu0
        %1709 = vdwg.mxu0
        %v1710 = vsel %vm1114, %v1526, 0.0
        %v1711 = vsel %vm1114, %v1528, 0.0
        %v1712 = vsel %vm1114, %v1530, 0.0
        %v1713 = vsel %vm1114, %v1532, 0.0
        %v1714 = vsel %vm1114, %v1534, 0.0
        %v1715 = vsel %vm1114, %v1536, 0.0
        %v1716 = vsel %vm1114, %v1538, 0.0
        %v1717 = vsel %vm1114, %v1540, 0.0
        %v1718 = vsel %vm1114, %v1542, 0.0
        %v1719 = vsel %vm1114, %v1544, 0.0
        %v1720 = vsel %vm1114, %v1546, 0.0
        %v1721 = vsel %vm1114, %v1548, 0.0
        %v1722 = vsel %vm1114, %v1550, 0.0
        %v1723 = vsel %vm1114, %v1552, 0.0
        %v1724 = vsel %vm1114, %v1554, 0.0
        %v1725 = vsel %vm1114, %v1556, 0.0
        %v1726 = vsel %vm1131, %v1710, 0.0
        %1727 = vadd.xlane.f32.xlu0 %v1726
        %v1728 = vpop.xlane.xlu0 %1727
        %v1729 = vsel %vm1131, %v1711, 0.0
        %1730 = vadd.xlane.f32.xlu0 %v1729
        %v1731 = vpop.xlane.xlu0 %1730
        %v1732 = vsel %vm1131, %v1712, 0.0
        %1733 = vadd.xlane.f32.xlu0 %v1732
        %v1734 = vpop.xlane.xlu0 %1733
        %v1735 = vsel %vm1131, %v1713, 0.0
        %1736 = vadd.xlane.f32.xlu0 %v1735
        %v1737 = vpop.xlane.xlu0 %1736
        %v1738 = vsel %vm1131, %v1714, 0.0
        %1739 = vadd.xlane.f32.xlu0 %v1738
        %v1740 = vpop.xlane.xlu0 %1739
        %v1741 = vsel %vm1131, %v1715, 0.0
        %1742 = vadd.xlane.f32.xlu0 %v1741
        %v1743 = vpop.xlane.xlu0 %1742
        %v1744 = vsel %vm1131, %v1716, 0.0
        %1745 = vadd.xlane.f32.xlu0 %v1744
        %v1746 = vpop.xlane.xlu0 %1745
        %v1747 = vsel %vm1131, %v1717, 0.0
        %1748 = vadd.xlane.f32.xlu0 %v1747
        %v1749 = vpop.xlane.xlu0 %1748
        %v1750 = vsel %vm1131, %v1718, 0.0
        %1751 = vadd.xlane.f32.xlu0 %v1750
        %v1752 = vpop.xlane.xlu0 %1751
        %v1753 = vsel %vm1131, %v1719, 0.0
        %1754 = vadd.xlane.f32.xlu0 %v1753
        %v1755 = vpop.xlane.xlu0 %1754
        %v1756 = vsel %vm1131, %v1720, 0.0
        %1757 = vadd.xlane.f32.xlu0 %v1756
        %v1758 = vpop.xlane.xlu0 %1757
        %v1759 = vsel %vm1131, %v1721, 0.0
        %1760 = vadd.xlane.f32.xlu0 %v1759
        %v1761 = vpop.xlane.xlu0 %1760
        %v1762 = vsel %vm1131, %v1722, 0.0
        %1763 = vadd.xlane.f32.xlu0 %v1762
        %v1764 = vpop.xlane.xlu0 %1763
        %v1765 = vsel %vm1131, %v1723, 0.0
        %1766 = vadd.xlane.f32.xlu0 %v1765
        %v1767 = vpop.xlane.xlu0 %1766
        %v1768 = vsel %vm1131, %v1724, 0.0
        %1769 = vadd.xlane.f32.xlu0 %v1768
        %v1770 = vpop.xlane.xlu0 %1769
        %v1771 = vsel %vm1131, %v1725, 0.0
        %1772 = vadd.xlane.f32.xlu0 %v1771
        %v1773 = vpop.xlane.xlu0 %1772
        %vm1774 = vcmp.lt.s32.totalorder %v496, 32
        %vm1775 = vmand %vm1112, %vm1774
        %v1776 = vsel %vm1775, %v1648, 0.0
        %v1777 = vsel %vm1775, %v1651, 0.0
        %v1778 = vsel %vm1775, %v1656, 0.0
        %v1779 = vsel %vm1775, %v1659, 0.0
        %v1780 = vsel %vm1775, %v1664, 0.0
        %v1781 = vsel %vm1775, %v1667, 0.0
        %v1782 = vsel %vm1775, %v1672, 0.0
        %v1783 = vsel %vm1775, %v1675, 0.0
        %v1784 = vsel %vm1775, %v1680, 0.0
        %v1785 = vsel %vm1775, %v1683, 0.0
        %v1786 = vsel %vm1775, %v1688, 0.0
        %v1787 = vsel %vm1775, %v1691, 0.0
        %v1788 = vsel %vm1775, %v1696, 0.0
        %v1789 = vsel %vm1775, %v1699, 0.0
        %v1790 = vsel %vm1775, %v1704, 0.0
        %v1791 = vsel %vm1775, %v1707, 0.0
        %v1792 = vrcp.pop %v1728
        %v1793 = vrcp.pop %v1731
        %v1794 = vrcp.pop %v1734
        %v1795 = vrcp.pop %v1737
        %v1796 = vrcp.pop %v1740
        %v1797 = vrcp.pop %v1743
        %v1798 = vrcp.pop %v1746
        %v1799 = vrcp.pop %v1749
        %v1800 = vrcp.pop %v1752
        %v1801 = vrcp.pop %v1755
        %v1802 = vrcp.pop %v1758
        %v1803 = vrcp.pop %v1761
        %v1804 = vrcp.pop %v1764
        %v1805 = vrcp.pop %v1767
        %v1806 = vrcp.pop %v1770
        %v1807 = vrcp.pop %v1773
        %v1808 = vmul.f32 %v1776, %v1792
        %v1809 = vmul.f32 %v1777, %v1793
        %v1810 = vmul.f32 %v1778, %v1794
        %v1811 = vmul.f32 %v1779, %v1795
        %v1812 = vmul.f32 %v1780, %v1796
        %v1813 = vmul.f32 %v1781, %v1797
        %v1814 = vmul.f32 %v1782, %v1798
        %v1815 = vmul.f32 %v1783, %v1799
        %v1816 = vmul.f32 %v1784, %v1800
        %v1817 = vmul.f32 %v1785, %v1801
        %v1818 = vmul.f32 %v1786, %v1802
        %v1819 = vmul.f32 %v1787, %v1803
        %v1820 = vmul.f32 %v1788, %v1804
        %v1821 = vmul.f32 %v1789, %v1805
        %v1822 = vmul.f32 %v1790, %v1806
        %v1823 = vmul.f32 %v1791, %v1807
        %v1824 = vadd.f32 %v1808, 0.0
        %v1825 = vadd.f32 %v1809, 0.0
        %v1826 = vadd.f32 %v1810, 0.0
        %v1827 = vadd.f32 %v1811, 0.0
        %v1828 = vadd.f32 %v1812, 0.0
        %v1829 = vadd.f32 %v1813, 0.0
        %v1830 = vadd.f32 %v1814, 0.0
        %v1831 = vadd.f32 %v1815, 0.0
        %v1832 = vadd.f32 %v1816, 0.0
        %v1833 = vadd.f32 %v1817, 0.0
        %v1834 = vadd.f32 %v1818, 0.0
        %v1835 = vadd.f32 %v1819, 0.0
        %v1836 = vadd.f32 %v1820, 0.0
        %v1837 = vadd.f32 %v1821, 0.0
        %v1838 = vadd.f32 %v1822, 0.0
        %v1839 = vadd.f32 %v1823, 0.0
        %v1840 = vsel %vm1214, %v1526, 0.0
        %v1841 = vsel %vm1214, %v1528, 0.0
        %v1842 = vsel %vm1214, %v1530, 0.0
        %v1843 = vsel %vm1214, %v1532, 0.0
        %v1844 = vsel %vm1214, %v1534, 0.0
        %v1845 = vsel %vm1214, %v1536, 0.0
        %v1846 = vsel %vm1214, %v1538, 0.0
        %v1847 = vsel %vm1214, %v1540, 0.0
        %v1848 = vsel %vm1214, %v1542, 0.0
        %v1849 = vsel %vm1214, %v1544, 0.0
        %v1850 = vsel %vm1214, %v1546, 0.0
        %v1851 = vsel %vm1214, %v1548, 0.0
        %v1852 = vsel %vm1214, %v1550, 0.0
        %v1853 = vsel %vm1214, %v1552, 0.0
        %v1854 = vsel %vm1214, %v1554, 0.0
        %v1855 = vsel %vm1214, %v1556, 0.0
        %v1856 = vsel %vm1131, %v1840, 0.0
        %1857 = vadd.xlane.f32.xlu0 %v1856
        %v1858 = vpop.xlane.xlu0 %1857
        %v1859 = vsel %vm1131, %v1841, 0.0
        %1860 = vadd.xlane.f32.xlu0 %v1859
        %v1861 = vpop.xlane.xlu0 %1860
        %v1862 = vsel %vm1131, %v1842, 0.0
        %1863 = vadd.xlane.f32.xlu0 %v1862
        %v1864 = vpop.xlane.xlu0 %1863
        %v1865 = vsel %vm1131, %v1843, 0.0
        %1866 = vadd.xlane.f32.xlu0 %v1865
        %v1867 = vpop.xlane.xlu0 %1866
        %v1868 = vsel %vm1131, %v1844, 0.0
        %1869 = vadd.xlane.f32.xlu0 %v1868
        %v1870 = vpop.xlane.xlu0 %1869
        %v1871 = vsel %vm1131, %v1845, 0.0
        %1872 = vadd.xlane.f32.xlu0 %v1871
        %v1873 = vpop.xlane.xlu0 %1872
        %v1874 = vsel %vm1131, %v1846, 0.0
        %1875 = vadd.xlane.f32.xlu0 %v1874
        %v1876 = vpop.xlane.xlu0 %1875
        %v1877 = vsel %vm1131, %v1847, 0.0
        %1878 = vadd.xlane.f32.xlu0 %v1877
        %v1879 = vpop.xlane.xlu0 %1878
        %v1880 = vsel %vm1131, %v1848, 0.0
        %1881 = vadd.xlane.f32.xlu0 %v1880
        %v1882 = vpop.xlane.xlu0 %1881
        %v1883 = vsel %vm1131, %v1849, 0.0
        %1884 = vadd.xlane.f32.xlu0 %v1883
        %v1885 = vpop.xlane.xlu0 %1884
        %v1886 = vsel %vm1131, %v1850, 0.0
        %1887 = vadd.xlane.f32.xlu0 %v1886
        %v1888 = vpop.xlane.xlu0 %1887
        %v1889 = vsel %vm1131, %v1851, 0.0
        %1890 = vadd.xlane.f32.xlu0 %v1889
        %v1891 = vpop.xlane.xlu0 %1890
        %v1892 = vsel %vm1131, %v1852, 0.0
        %1893 = vadd.xlane.f32.xlu0 %v1892
        %v1894 = vpop.xlane.xlu0 %1893
        %v1895 = vsel %vm1131, %v1853, 0.0
        %1896 = vadd.xlane.f32.xlu0 %v1895
        %v1897 = vpop.xlane.xlu0 %1896
        %v1898 = vsel %vm1131, %v1854, 0.0
        %1899 = vadd.xlane.f32.xlu0 %v1898
        %v1900 = vpop.xlane.xlu0 %1899
        %v1901 = vsel %vm1131, %v1855, 0.0
        %1902 = vadd.xlane.f32.xlu0 %v1901
        %v1903 = vpop.xlane.xlu0 %1902
        %vm1904 = vcmp.ge.s32.totalorder %v496, 32
        %vm1905 = vcmp.lt.s32.totalorder %v496, 64
        %vm1906 = vmand %vm1904, %vm1905
        %v1907 = vsel %vm1906, %v1648, 0.0
        %v1908 = vsel %vm1906, %v1651, 0.0
        %v1909 = vsel %vm1906, %v1656, 0.0
        %v1910 = vsel %vm1906, %v1659, 0.0
        %v1911 = vsel %vm1906, %v1664, 0.0
        %v1912 = vsel %vm1906, %v1667, 0.0
        %v1913 = vsel %vm1906, %v1672, 0.0
        %v1914 = vsel %vm1906, %v1675, 0.0
        %v1915 = vsel %vm1906, %v1680, 0.0
        %v1916 = vsel %vm1906, %v1683, 0.0
        %v1917 = vsel %vm1906, %v1688, 0.0
        %v1918 = vsel %vm1906, %v1691, 0.0
        %v1919 = vsel %vm1906, %v1696, 0.0
        %v1920 = vsel %vm1906, %v1699, 0.0
        %v1921 = vsel %vm1906, %v1704, 0.0
        %v1922 = vsel %vm1906, %v1707, 0.0
        %v1923 = vrcp.pop %v1858
        %v1924 = vrcp.pop %v1861
        %v1925 = vrcp.pop %v1864
        %v1926 = vrcp.pop %v1867
        %v1927 = vrcp.pop %v1870
        %v1928 = vrcp.pop %v1873
        %v1929 = vrcp.pop %v1876
        %v1930 = vrcp.pop %v1879
        %v1931 = vrcp.pop %v1882
        %v1932 = vrcp.pop %v1885
        %v1933 = vrcp.pop %v1888
        %v1934 = vrcp.pop %v1891
        %v1935 = vrcp.pop %v1894
        %v1936 = vrcp.pop %v1897
        %v1937 = vrcp.pop %v1900
        %v1938 = vrcp.pop %v1903
        %v1939 = vmul.f32 %v1907, %v1923
        %v1940 = vmul.f32 %v1908, %v1924
        %v1941 = vmul.f32 %v1909, %v1925
        %v1942 = vmul.f32 %v1910, %v1926
        %v1943 = vmul.f32 %v1911, %v1927
        %v1944 = vmul.f32 %v1912, %v1928
        %v1945 = vmul.f32 %v1913, %v1929
        %v1946 = vmul.f32 %v1914, %v1930
        %v1947 = vmul.f32 %v1915, %v1931
        %v1948 = vmul.f32 %v1916, %v1932
        %v1949 = vmul.f32 %v1917, %v1933
        %v1950 = vmul.f32 %v1918, %v1934
        %v1951 = vmul.f32 %v1919, %v1935
        %v1952 = vmul.f32 %v1920, %v1936
        %v1953 = vmul.f32 %v1921, %v1937
        %v1954 = vmul.f32 %v1922, %v1938
        %v1955 = vadd.f32 %v1824, %v1939
        %v1956 = vadd.f32 %v1825, %v1940
        %v1957 = vadd.f32 %v1826, %v1941
        %v1958 = vadd.f32 %v1827, %v1942
        %v1959 = vadd.f32 %v1828, %v1943
        %v1960 = vadd.f32 %v1829, %v1944
        %v1961 = vadd.f32 %v1830, %v1945
        %v1962 = vadd.f32 %v1831, %v1946
        %v1963 = vadd.f32 %v1832, %v1947
        %v1964 = vadd.f32 %v1833, %v1948
        %v1965 = vadd.f32 %v1834, %v1949
        %v1966 = vadd.f32 %v1835, %v1950
        %v1967 = vadd.f32 %v1836, %v1951
        %v1968 = vadd.f32 %v1837, %v1952
        %v1969 = vadd.f32 %v1838, %v1953
        %v1970 = vadd.f32 %v1839, %v1954
        %v1971 = vsel %vm1313, %v1526, 0.0
        %v1972 = vsel %vm1313, %v1528, 0.0
        %v1973 = vsel %vm1313, %v1530, 0.0
        %v1974 = vsel %vm1313, %v1532, 0.0
        %v1975 = vsel %vm1313, %v1534, 0.0
        %v1976 = vsel %vm1313, %v1536, 0.0
        %v1977 = vsel %vm1313, %v1538, 0.0
        %v1978 = vsel %vm1313, %v1540, 0.0
        %v1979 = vsel %vm1313, %v1542, 0.0
        %v1980 = vsel %vm1313, %v1544, 0.0
        %v1981 = vsel %vm1313, %v1546, 0.0
        %v1982 = vsel %vm1313, %v1548, 0.0
        %v1983 = vsel %vm1313, %v1550, 0.0
        %v1984 = vsel %vm1313, %v1552, 0.0
        %v1985 = vsel %vm1313, %v1554, 0.0
        %v1986 = vsel %vm1313, %v1556, 0.0
        %v1987 = vsel %vm1131, %v1971, 0.0
        %1988 = vadd.xlane.f32.xlu0 %v1987
        %v1989 = vpop.xlane.xlu0 %1988
        %v1990 = vsel %vm1131, %v1972, 0.0
        %1991 = vadd.xlane.f32.xlu0 %v1990
        %v1992 = vpop.xlane.xlu0 %1991
        %v1993 = vsel %vm1131, %v1973, 0.0
        %1994 = vadd.xlane.f32.xlu0 %v1993
        %v1995 = vpop.xlane.xlu0 %1994
        %v1996 = vsel %vm1131, %v1974, 0.0
        %1997 = vadd.xlane.f32.xlu0 %v1996
        %v1998 = vpop.xlane.xlu0 %1997
        %v1999 = vsel %vm1131, %v1975, 0.0
        %2000 = vadd.xlane.f32.xlu0 %v1999
        %v2001 = vpop.xlane.xlu0 %2000
        %v2002 = vsel %vm1131, %v1976, 0.0
        %2003 = vadd.xlane.f32.xlu0 %v2002
        %v2004 = vpop.xlane.xlu0 %2003
        %v2005 = vsel %vm1131, %v1977, 0.0
        %2006 = vadd.xlane.f32.xlu0 %v2005
        %v2007 = vpop.xlane.xlu0 %2006
        %v2008 = vsel %vm1131, %v1978, 0.0
        %2009 = vadd.xlane.f32.xlu0 %v2008
        %v2010 = vpop.xlane.xlu0 %2009
        %v2011 = vsel %vm1131, %v1979, 0.0
        %2012 = vadd.xlane.f32.xlu0 %v2011
        %v2013 = vpop.xlane.xlu0 %2012
        %v2014 = vsel %vm1131, %v1980, 0.0
        %2015 = vadd.xlane.f32.xlu0 %v2014
        %v2016 = vpop.xlane.xlu0 %2015
        %v2017 = vsel %vm1131, %v1981, 0.0
        %2018 = vadd.xlane.f32.xlu0 %v2017
        %v2019 = vpop.xlane.xlu0 %2018
        %v2020 = vsel %vm1131, %v1982, 0.0
        %2021 = vadd.xlane.f32.xlu0 %v2020
        %v2022 = vpop.xlane.xlu0 %2021
        %v2023 = vsel %vm1131, %v1983, 0.0
        %2024 = vadd.xlane.f32.xlu0 %v2023
        %v2025 = vpop.xlane.xlu0 %2024
        %v2026 = vsel %vm1131, %v1984, 0.0
        %2027 = vadd.xlane.f32.xlu0 %v2026
        %v2028 = vpop.xlane.xlu0 %2027
        %v2029 = vsel %vm1131, %v1985, 0.0
        %2030 = vadd.xlane.f32.xlu0 %v2029
        %v2031 = vpop.xlane.xlu0 %2030
        %v2032 = vsel %vm1131, %v1986, 0.0
        %2033 = vadd.xlane.f32.xlu0 %v2032
        %v2034 = vpop.xlane.xlu0 %2033
        %vm2035 = vcmp.ge.s32.totalorder %v496, 64
        %vm2036 = vcmp.lt.s32.totalorder %v496, 96
        %vm2037 = vmand %vm2035, %vm2036
        %v2038 = vsel %vm2037, %v1648, 0.0
        %v2039 = vsel %vm2037, %v1651, 0.0
        %v2040 = vsel %vm2037, %v1656, 0.0
        %v2041 = vsel %vm2037, %v1659, 0.0
        %v2042 = vsel %vm2037, %v1664, 0.0
        %v2043 = vsel %vm2037, %v1667, 0.0
        %v2044 = vsel %vm2037, %v1672, 0.0
        %v2045 = vsel %vm2037, %v1675, 0.0
        %v2046 = vsel %vm2037, %v1680, 0.0
        %v2047 = vsel %vm2037, %v1683, 0.0
        %v2048 = vsel %vm2037, %v1688, 0.0
        %v2049 = vsel %vm2037, %v1691, 0.0
        %v2050 = vsel %vm2037, %v1696, 0.0
        %v2051 = vsel %vm2037, %v1699, 0.0
        %v2052 = vsel %vm2037, %v1704, 0.0
        %v2053 = vsel %vm2037, %v1707, 0.0
        %v2054 = vrcp.pop %v1989
        %v2055 = vrcp.pop %v1992
        %v2056 = vrcp.pop %v1995
        %v2057 = vrcp.pop %v1998
        %v2058 = vrcp.pop %v2001
        %v2059 = vrcp.pop %v2004
        %v2060 = vrcp.pop %v2007
        %v2061 = vrcp.pop %v2010
        %v2062 = vrcp.pop %v2013
        %v2063 = vrcp.pop %v2016
        %v2064 = vrcp.pop %v2019
        %v2065 = vrcp.pop %v2022
        %v2066 = vrcp.pop %v2025
        %v2067 = vrcp.pop %v2028
        %v2068 = vrcp.pop %v2031
        %v2069 = vrcp.pop %v2034
        %v2070 = vmul.f32 %v2038, %v2054
        %v2071 = vmul.f32 %v2039, %v2055
        %v2072 = vmul.f32 %v2040, %v2056
        %v2073 = vmul.f32 %v2041, %v2057
        %v2074 = vmul.f32 %v2042, %v2058
        %v2075 = vmul.f32 %v2043, %v2059
        %v2076 = vmul.f32 %v2044, %v2060
        %v2077 = vmul.f32 %v2045, %v2061
        %v2078 = vmul.f32 %v2046, %v2062
        %v2079 = vmul.f32 %v2047, %v2063
        %v2080 = vmul.f32 %v2048, %v2064
        %v2081 = vmul.f32 %v2049, %v2065
        %v2082 = vmul.f32 %v2050, %v2066
        %v2083 = vmul.f32 %v2051, %v2067
        %v2084 = vmul.f32 %v2052, %v2068
        %v2085 = vmul.f32 %v2053, %v2069
        %v2086 = vadd.f32 %v1955, %v2070
        %v2087 = vadd.f32 %v1956, %v2071
        %v2088 = vadd.f32 %v1957, %v2072
        %v2089 = vadd.f32 %v1958, %v2073
        %v2090 = vadd.f32 %v1959, %v2074
        %v2091 = vadd.f32 %v1960, %v2075
        %v2092 = vadd.f32 %v1961, %v2076
        %v2093 = vadd.f32 %v1962, %v2077
        %v2094 = vadd.f32 %v1963, %v2078
        %v2095 = vadd.f32 %v1964, %v2079
        %v2096 = vadd.f32 %v1965, %v2080
        %v2097 = vadd.f32 %v1966, %v2081
        %v2098 = vadd.f32 %v1967, %v2082
        %v2099 = vadd.f32 %v1968, %v2083
        %v2100 = vadd.f32 %v1969, %v2084
        %v2101 = vadd.f32 %v1970, %v2085
        %v2102 = vsel %vm1412, %v1526, 0.0
        %v2103 = vsel %vm1412, %v1528, 0.0
        %v2104 = vsel %vm1412, %v1530, 0.0
        %v2105 = vsel %vm1412, %v1532, 0.0
        %v2106 = vsel %vm1412, %v1534, 0.0
        %v2107 = vsel %vm1412, %v1536, 0.0
        %v2108 = vsel %vm1412, %v1538, 0.0
        %v2109 = vsel %vm1412, %v1540, 0.0
        %v2110 = vsel %vm1412, %v1542, 0.0
        %v2111 = vsel %vm1412, %v1544, 0.0
        %v2112 = vsel %vm1412, %v1546, 0.0
        %v2113 = vsel %vm1412, %v1548, 0.0
        %v2114 = vsel %vm1412, %v1550, 0.0
        %v2115 = vsel %vm1412, %v1552, 0.0
        %v2116 = vsel %vm1412, %v1554, 0.0
        %v2117 = vsel %vm1412, %v1556, 0.0
        %v2118 = vsel %vm1131, %v2102, 0.0
        %2119 = vadd.xlane.f32.xlu0 %v2118
        %v2120 = vpop.xlane.xlu0 %2119
        %v2121 = vsel %vm1131, %v2103, 0.0
        %2122 = vadd.xlane.f32.xlu0 %v2121
        %v2123 = vpop.xlane.xlu0 %2122
        %v2124 = vsel %vm1131, %v2104, 0.0
        %2125 = vadd.xlane.f32.xlu0 %v2124
        %v2126 = vpop.xlane.xlu0 %2125
        %v2127 = vsel %vm1131, %v2105, 0.0
        %2128 = vadd.xlane.f32.xlu0 %v2127
        %v2129 = vpop.xlane.xlu0 %2128
        %v2130 = vsel %vm1131, %v2106, 0.0
        %2131 = vadd.xlane.f32.xlu0 %v2130
        %v2132 = vpop.xlane.xlu0 %2131
        %v2133 = vsel %vm1131, %v2107, 0.0
        %2134 = vadd.xlane.f32.xlu0 %v2133
        %v2135 = vpop.xlane.xlu0 %2134
        %v2136 = vsel %vm1131, %v2108, 0.0
        %2137 = vadd.xlane.f32.xlu0 %v2136
        %v2138 = vpop.xlane.xlu0 %2137
        %v2139 = vsel %vm1131, %v2109, 0.0
        %2140 = vadd.xlane.f32.xlu0 %v2139
        %v2141 = vpop.xlane.xlu0 %2140
        %v2142 = vsel %vm1131, %v2110, 0.0
        %2143 = vadd.xlane.f32.xlu0 %v2142
        %v2144 = vpop.xlane.xlu0 %2143
        %v2145 = vsel %vm1131, %v2111, 0.0
        %2146 = vadd.xlane.f32.xlu0 %v2145
        %v2147 = vpop.xlane.xlu0 %2146
        %v2148 = vsel %vm1131, %v2112, 0.0
        %2149 = vadd.xlane.f32.xlu0 %v2148
        %v2150 = vpop.xlane.xlu0 %2149
        %v2151 = vsel %vm1131, %v2113, 0.0
        %2152 = vadd.xlane.f32.xlu0 %v2151
        %v2153 = vpop.xlane.xlu0 %2152
        %v2154 = vsel %vm1131, %v2114, 0.0
        %2155 = vadd.xlane.f32.xlu0 %v2154
        %v2156 = vpop.xlane.xlu0 %2155
        %v2157 = vsel %vm1131, %v2115, 0.0
        %2158 = vadd.xlane.f32.xlu0 %v2157
        %v2159 = vpop.xlane.xlu0 %2158
        %v2160 = vsel %vm1131, %v2116, 0.0
        %2161 = vadd.xlane.f32.xlu0 %v2160
        %v2162 = vpop.xlane.xlu0 %2161
        %v2163 = vsel %vm1131, %v2117, 0.0
        %2164 = vadd.xlane.f32.xlu0 %v2163
        %v2165 = vpop.xlane.xlu0 %2164
        %vm2166 = vcmp.ge.s32.totalorder %v496, 96
        %vm2167 = vcmp.lt.s32.totalorder %v496, 128
        %vm2168 = vmand %vm2166, %vm2167
        %v2169 = vsel %vm2168, %v1648, 0.0
        %v2170 = vsel %vm2168, %v1651, 0.0
        %v2171 = vsel %vm2168, %v1656, 0.0
        %v2172 = vsel %vm2168, %v1659, 0.0
        %v2173 = vsel %vm2168, %v1664, 0.0
        %v2174 = vsel %vm2168, %v1667, 0.0
        %v2175 = vsel %vm2168, %v1672, 0.0
        %v2176 = vsel %vm2168, %v1675, 0.0
        %v2177 = vsel %vm2168, %v1680, 0.0
        %v2178 = vsel %vm2168, %v1683, 0.0
        %v2179 = vsel %vm2168, %v1688, 0.0
        %v2180 = vsel %vm2168, %v1691, 0.0
        %v2181 = vsel %vm2168, %v1696, 0.0
        %v2182 = vsel %vm2168, %v1699, 0.0
        %v2183 = vsel %vm2168, %v1704, 0.0
        %v2184 = vsel %vm2168, %v1707, 0.0
        %v2185 = vrcp.pop %v2120
        %v2186 = vrcp.pop %v2123
        %v2187 = vrcp.pop %v2126
        %v2188 = vrcp.pop %v2129
        %v2189 = vrcp.pop %v2132
        %v2190 = vrcp.pop %v2135
        %v2191 = vrcp.pop %v2138
        %v2192 = vrcp.pop %v2141
        %v2193 = vrcp.pop %v2144
        %v2194 = vrcp.pop %v2147
        %v2195 = vrcp.pop %v2150
        %v2196 = vrcp.pop %v2153
        %v2197 = vrcp.pop %v2156
        %v2198 = vrcp.pop %v2159
        %v2199 = vrcp.pop %v2162
        %v2200 = vrcp.pop %v2165
        %v2201 = vmul.f32 %v2169, %v2185
        %v2202 = vmul.f32 %v2170, %v2186
        %v2203 = vmul.f32 %v2171, %v2187
        %v2204 = vmul.f32 %v2172, %v2188
        %v2205 = vmul.f32 %v2173, %v2189
        %v2206 = vmul.f32 %v2174, %v2190
        %v2207 = vmul.f32 %v2175, %v2191
        %v2208 = vmul.f32 %v2176, %v2192
        %v2209 = vmul.f32 %v2177, %v2193
        %v2210 = vmul.f32 %v2178, %v2194
        %v2211 = vmul.f32 %v2179, %v2195
        %v2212 = vmul.f32 %v2180, %v2196
        %v2213 = vmul.f32 %v2181, %v2197
        %v2214 = vmul.f32 %v2182, %v2198
        %v2215 = vmul.f32 %v2183, %v2199
        %v2216 = vmul.f32 %v2184, %v2200
        %v2217 = vadd.f32 %v2086, %v2201
        %v2218 = vadd.f32 %v2087, %v2202
        %v2219 = vadd.f32 %v2088, %v2203
        %v2220 = vadd.f32 %v2089, %v2204
        %v2221 = vadd.f32 %v2090, %v2205
        %v2222 = vadd.f32 %v2091, %v2206
        %v2223 = vadd.f32 %v2092, %v2207
        %v2224 = vadd.f32 %v2093, %v2208
        %v2225 = vadd.f32 %v2094, %v2209
        %v2226 = vadd.f32 %v2095, %v2210
        %v2227 = vadd.f32 %v2096, %v2211
        %v2228 = vadd.f32 %v2097, %v2212
        %v2229 = vadd.f32 %v2098, %v2213
        %v2230 = vadd.f32 %v2099, %v2214
        %v2231 = vadd.f32 %v2100, %v2215
        %v2232 = vadd.f32 %v2101, %v2216
        %v2233 = vadd.f32 %v479, %v2217
        %v2234 = vadd.f32 %v480, %v2218
        %v2235 = vadd.f32 %v481, %v2219
        %v2236 = vadd.f32 %v482, %v2220
        %v2237 = vadd.f32 %v483, %v2221
        %v2238 = vadd.f32 %v484, %v2222
        %v2239 = vadd.f32 %v485, %v2223
        %v2240 = vadd.f32 %v486, %v2224
        %v2241 = vadd.f32 %v487, %v2225
        %v2242 = vadd.f32 %v488, %v2226
        %v2243 = vadd.f32 %v489, %v2227
        %v2244 = vadd.f32 %v490, %v2228
        %v2245 = vadd.f32 %v491, %v2229
        %v2246 = vadd.f32 %v492, %v2230
        %v2247 = vadd.f32 %v493, %v2231
        %v2248 = vadd.f32 %v494, %v2232
        %s2249 = scalar_lea.vmem %s472, 64
        %v2250 = vld [vmem:[%s2249] sm:$0xf]
        %v2251 = vld [vmem:[%s2249 + $0x4] sm:$0xf]
        %v2252 = vld [vmem:[%s2249 + $0x8] sm:$0xf]
        %v2253 = vld [vmem:[%s2249 + $0xc] sm:$0xf]
        %v2254 = vld [vmem:[%s2249 + $0x10] sm:$0xf]
        %v2255 = vld [vmem:[%s2249 + $0x14] sm:$0xf]
        %v2256 = vld [vmem:[%s2249 + $0x18] sm:$0xf]
        %v2257 = vld [vmem:[%s2249 + $0x1c] sm:$0xf]
        %v2258 = vld [vmem:[%s2249 + $0x20] sm:$0xf]
        %v2259 = vld [vmem:[%s2249 + $0x24] sm:$0xf]
        %v2260 = vld [vmem:[%s2249 + $0x28] sm:$0xf]
        %v2261 = vld [vmem:[%s2249 + $0x2c] sm:$0xf]
        %v2262 = vld [vmem:[%s2249 + $0x30] sm:$0xf]
        %v2263 = vld [vmem:[%s2249 + $0x34] sm:$0xf]
        %v2264 = vld [vmem:[%s2249 + $0x38] sm:$0xf]
        %v2265 = vld [vmem:[%s2249 + $0x3c] sm:$0xf]
        %s2266 = scalar_lea.vmem %s477, 32
        %v2267 = vld [vmem:[%s2266] sm:$0xf]
        %v2268 = vld [vmem:[%s2266 + $0x4] sm:$0xf]
        %v2269 = vld [vmem:[%s2266 + $0x8] sm:$0xf]
        %v2270 = vld [vmem:[%s2266 + $0xc] sm:$0xf]
        %v2271 = vld [vmem:[%s2266 + $0x10] sm:$0xf]
        %v2272 = vld [vmem:[%s2266 + $0x14] sm:$0xf]
        %v2273 = vld [vmem:[%s2266 + $0x18] sm:$0xf]
        %v2274 = vld [vmem:[%s2266 + $0x1c] sm:$0xf]
        %v2275 = vpack.c.bf16 %v863, %v859
        %v2276 = vpack.c.bf16 %v873, %v869
        %v2277 = vpack.c.bf16 %v883, %v879
        %v2278 = vpack.c.bf16 %v893, %v889
        %v2279 = vpack.c.bf16 %v903, %v899
        %v2280 = vpack.c.bf16 %v913, %v909
        %v2281 = vpack.c.bf16 %v923, %v919
        %v2282 = vpack.c.bf16 %v933, %v929
        %v2299 = vunpack.c.l.b16 %v2250
        %v2300 = vunpack.c.l.b16 %v2251
        %v2301 = vunpack.c.l.b16 %v2252
        %v2302 = vunpack.c.l.b16 %v2253
        %v2303 = vunpack.c.l.b16 %v2254
        %v2304 = vunpack.c.l.b16 %v2255
        %v2305 = vunpack.c.l.b16 %v2256
        %v2306 = vunpack.c.l.b16 %v2257
        %v2307 = vunpack.c.l.b16 %v2258
        %v2308 = vunpack.c.l.b16 %v2259
        %v2309 = vunpack.c.l.b16 %v2260
        %v2310 = vunpack.c.l.b16 %v2261
        %v2311 = vunpack.c.l.b16 %v2262
        %v2312 = vunpack.c.l.b16 %v2263
        %v2313 = vunpack.c.l.b16 %v2264
        %v2314 = vunpack.c.l.b16 %v2265
        %v2315 = vpack.c.b16 %v2300, %v2299
        %v2316 = vpack.c.b16 %v2302, %v2301
        %v2317 = vpack.c.b16 %v2304, %v2303
        %v2318 = vpack.c.b16 %v2306, %v2305
        %v2319 = vpack.c.b16 %v2308, %v2307
        %v2320 = vpack.c.b16 %v2310, %v2309
        %v2321 = vpack.c.b16 %v2312, %v2311
        %v2322 = vpack.c.b16 %v2314, %v2313
        %2331 = vmatprep.subr.bf16.mxu0 0
        %2332 = vmatpush1.bf16.msra.mxu0 %v2315
        %2333 = vmatprep.subr.bf16.mxu0 0
        %2334 = vmatpush1.bf16.msra.mxu0 %v2316
        %2335 = vmatprep.subr.bf16.mxu0 0
        %2336 = vmatpush1.bf16.msra.mxu0 %v2317
        %2337 = vmatprep.subr.bf16.mxu0 0
        %2338 = vmatpush1.bf16.msra.mxu0 %v2318
        %2339 = vmatprep.subr.bf16.mxu0 0
        %2340 = vmatpush1.bf16.msra.mxu0 %v2319
        %2341 = vmatprep.subr.bf16.mxu0 0
        %2342 = vmatpush1.bf16.msra.mxu0 %v2320
        %2343 = vmatprep.subr.bf16.mxu0 0
        %2344 = vmatpush1.bf16.msra.mxu0 %v2321
        %2345 = vmatprep.subr.bf16.mxu0 0
        %2346 = vmatpush1.bf16.msra.mxu0 %v2322
        %2347 = vmatprep.subr.bf16.mxu0 0
        %2348 = vmatpush1.bf16.msra.mxu0 0
        %2349 = vmatprep.subr.bf16.mxu0 0
        %2350 = vmatpush1.bf16.msra.mxu0 0
        %2351 = vmatprep.subr.bf16.mxu0 0
        %2352 = vmatpush1.bf16.msra.mxu0 0
        %2353 = vmatprep.subr.bf16.mxu0 0
        %2354 = vmatpush1.bf16.msra.mxu0 0
        %2355 = vmatprep.subr.bf16.mxu0 0
        %2356 = vmatpush1.bf16.msra.mxu0 0
        %2357 = vmatprep.subr.bf16.mxu0 0
        %2358 = vmatpush1.bf16.msra.mxu0 0
        %2359 = vmatprep.subr.bf16.mxu0 0
        %2360 = vmatpush1.bf16.msra.mxu0 0
        %2361 = vmatprep.subr.bf16.mxu0 0
        %2362 = vmatpush1.bf16.msra.mxu0 0
        %2363 = vmatprep.mubr.bf16.mxu0 0
        %2364 = vmatmul.mubr.bf16.gmra.mrb[0].mxu0 %v2275
        %v2365 = vpop.f32.mrb[0].mxu0
        %v2366 = vadd.f32 0.0, %v2365
        %v2367 = vpop.f32.mrb[0].mxu0
        %v2368 = vpop.f32.mrb[0].mxu0
        %v2369 = vadd.f32 0.0, %v2368
        %v2370 = vpop.f32.mrb[0].mxu0
        %2371 = vmatprep.mubr.bf16.mxu0 0
        %2372 = vmatmul.mubr.bf16.gmra.mrb[0].mxu0 %v2276
        %v2373 = vpop.f32.mrb[0].mxu0
        %v2374 = vadd.f32 0.0, %v2373
        %v2375 = vpop.f32.mrb[0].mxu0
        %v2376 = vpop.f32.mrb[0].mxu0
        %v2377 = vadd.f32 0.0, %v2376
        %v2378 = vpop.f32.mrb[0].mxu0
        %2379 = vmatprep.mubr.bf16.mxu0 0
        %2380 = vmatmul.mubr.bf16.gmra.mrb[0].mxu0 %v2277
        %v2381 = vpop.f32.mrb[0].mxu0
        %v2382 = vadd.f32 0.0, %v2381
        %v2383 = vpop.f32.mrb[0].mxu0
        %v2384 = vpop.f32.mrb[0].mxu0
        %v2385 = vadd.f32 0.0, %v2384
        %v2386 = vpop.f32.mrb[0].mxu0
        %2387 = vmatprep.mubr.bf16.mxu0 0
        %2388 = vmatmul.mubr.bf16.gmra.mrb[0].mxu0 %v2278
        %v2389 = vpop.f32.mrb[0].mxu0
        %v2390 = vadd.f32 0.0, %v2389
        %v2391 = vpop.f32.mrb[0].mxu0
        %v2392 = vpop.f32.mrb[0].mxu0
        %v2393 = vadd.f32 0.0, %v2392
        %v2394 = vpop.f32.mrb[0].mxu0
        %2395 = vmatprep.mubr.bf16.mxu0 0
        %2396 = vmatmul.mubr.bf16.gmra.mrb[0].mxu0 %v2279
        %v2397 = vpop.f32.mrb[0].mxu0
        %v2398 = vadd.f32 0.0, %v2397
        %v2399 = vpop.f32.mrb[0].mxu0
        %v2400 = vpop.f32.mrb[0].mxu0
        %v2401 = vadd.f32 0.0, %v2400
        %v2402 = vpop.f32.mrb[0].mxu0
        %2403 = vmatprep.mubr.bf16.mxu0 0
        %2404 = vmatmul.mubr.bf16.gmra.mrb[0].mxu0 %v2280
        %v2405 = vpop.f32.mrb[0].mxu0
        %v2406 = vadd.f32 0.0, %v2405
        %v2407 = vpop.f32.mrb[0].mxu0
        %v2408 = vpop.f32.mrb[0].mxu0
        %v2409 = vadd.f32 0.0, %v2408
        %v2410 = vpop.f32.mrb[0].mxu0
        %2411 = vmatprep.mubr.bf16.mxu0 0
        %2412 = vmatmul.mubr.bf16.gmra.mrb[0].mxu0 %v2281
        %v2413 = vpop.f32.mrb[0].mxu0
        %v2414 = vadd.f32 0.0, %v2413
        %v2415 = vpop.f32.mrb[0].mxu0
        %v2416 = vpop.f32.mrb[0].mxu0
        %v2417 = vadd.f32 0.0, %v2416
        %v2418 = vpop.f32.mrb[0].mxu0
        %2419 = vmatprep.mubr.bf16.mxu0 0
        %2420 = vmatmul.mubr.bf16.gmra.mrb[0].mxu0 %v2282
        %v2421 = vpop.f32.mrb[0].mxu0
        %v2422 = vadd.f32 0.0, %v2421
        %v2423 = vpop.f32.mrb[0].mxu0
        %v2424 = vpop.f32.mrb[0].mxu0
        %v2425 = vadd.f32 0.0, %v2424
        %v2426 = vpop.f32.mrb[0].mxu0
        %2427 = vdwg.mxu0
        %v2428 = vsel %vm1114, %v2366, -inf
        %v2429 = vsel %vm1114, %v2369, -inf
        %v2430 = vsel %vm1114, %v2374, -inf
        %v2431 = vsel %vm1114, %v2377, -inf
        %v2432 = vsel %vm1114, %v2382, -inf
        %v2433 = vsel %vm1114, %v2385, -inf
        %v2434 = vsel %vm1114, %v2390, -inf
        %v2435 = vsel %vm1114, %v2393, -inf
        %v2436 = vsel %vm1114, %v2398, -inf
        %v2437 = vsel %vm1114, %v2401, -inf
        %v2438 = vsel %vm1114, %v2406, -inf
        %v2439 = vsel %vm1114, %v2409, -inf
        %v2440 = vsel %vm1114, %v2414, -inf
        %v2441 = vsel %vm1114, %v2417, -inf
        %v2442 = vsel %vm1114, %v2422, -inf
        %v2443 = vsel %vm1114, %v2425, -inf
        %v2444 = vsel %vm1131, %v2428, -inf
        %2445 = vmax.xlane.f32.xlu0 %v2444
        %v2446 = vpop.xlane.xlu0 %2445
        %v2447 = vsel %vm1131, %v2429, -inf
        %2448 = vmax.xlane.f32.xlu0 %v2447
        %v2449 = vpop.xlane.xlu0 %2448
        %v2450 = vsel %vm1131, %v2430, -inf
        %2451 = vmax.xlane.f32.xlu0 %v2450
        %v2452 = vpop.xlane.xlu0 %2451
        %v2453 = vsel %vm1131, %v2431, -inf
        %2454 = vmax.xlane.f32.xlu0 %v2453
        %v2455 = vpop.xlane.xlu0 %2454
        %v2456 = vsel %vm1131, %v2432, -inf
        %2457 = vmax.xlane.f32.xlu0 %v2456
        %v2458 = vpop.xlane.xlu0 %2457
        %v2459 = vsel %vm1131, %v2433, -inf
        %2460 = vmax.xlane.f32.xlu0 %v2459
        %v2461 = vpop.xlane.xlu0 %2460
        %v2462 = vsel %vm1131, %v2434, -inf
        %2463 = vmax.xlane.f32.xlu0 %v2462
        %v2464 = vpop.xlane.xlu0 %2463
        %v2465 = vsel %vm1131, %v2435, -inf
        %2466 = vmax.xlane.f32.xlu0 %v2465
        %v2467 = vpop.xlane.xlu0 %2466
        %v2468 = vsel %vm1131, %v2436, -inf
        %2469 = vmax.xlane.f32.xlu0 %v2468
        %v2470 = vpop.xlane.xlu0 %2469
        %v2471 = vsel %vm1131, %v2437, -inf
        %2472 = vmax.xlane.f32.xlu0 %v2471
        %v2473 = vpop.xlane.xlu0 %2472
        %v2474 = vsel %vm1131, %v2438, -inf
        %2475 = vmax.xlane.f32.xlu0 %v2474
        %v2476 = vpop.xlane.xlu0 %2475
        %v2477 = vsel %vm1131, %v2439, -inf
        %2478 = vmax.xlane.f32.xlu0 %v2477
        %v2479 = vpop.xlane.xlu0 %2478
        %v2480 = vsel %vm1131, %v2440, -inf
        %2481 = vmax.xlane.f32.xlu0 %v2480
        %v2482 = vpop.xlane.xlu0 %2481
        %v2483 = vsel %vm1131, %v2441, -inf
        %2484 = vmax.xlane.f32.xlu0 %v2483
        %v2485 = vpop.xlane.xlu0 %2484
        %v2486 = vsel %vm1131, %v2442, -inf
        %2487 = vmax.xlane.f32.xlu0 %v2486
        %v2488 = vpop.xlane.xlu0 %2487
        %v2489 = vsel %vm1131, %v2443, -inf
        %2490 = vmax.xlane.f32.xlu0 %v2489
        %v2491 = vpop.xlane.xlu0 %2490
        %v2492 = vsel %vm1114, %v2446, 0.0
        %v2493 = vsel %vm1114, %v2449, 0.0
        %v2494 = vsel %vm1114, %v2452, 0.0
        %v2495 = vsel %vm1114, %v2455, 0.0
        %v2496 = vsel %vm1114, %v2458, 0.0
        %v2497 = vsel %vm1114, %v2461, 0.0
        %v2498 = vsel %vm1114, %v2464, 0.0
        %v2499 = vsel %vm1114, %v2467, 0.0
        %v2500 = vsel %vm1114, %v2470, 0.0
        %v2501 = vsel %vm1114, %v2473, 0.0
        %v2502 = vsel %vm1114, %v2476, 0.0
        %v2503 = vsel %vm1114, %v2479, 0.0
        %v2504 = vsel %vm1114, %v2482, 0.0
        %v2505 = vsel %vm1114, %v2485, 0.0
        %v2506 = vsel %vm1114, %v2488, 0.0
        %v2507 = vsel %vm1114, %v2491, 0.0
        %v2508 = vadd.f32 %v2492, 0.0
        %v2509 = vadd.f32 %v2493, 0.0
        %v2510 = vadd.f32 %v2494, 0.0
        %v2511 = vadd.f32 %v2495, 0.0
        %v2512 = vadd.f32 %v2496, 0.0
        %v2513 = vadd.f32 %v2497, 0.0
        %v2514 = vadd.f32 %v2498, 0.0
        %v2515 = vadd.f32 %v2499, 0.0
        %v2516 = vadd.f32 %v2500, 0.0
        %v2517 = vadd.f32 %v2501, 0.0
        %v2518 = vadd.f32 %v2502, 0.0
        %v2519 = vadd.f32 %v2503, 0.0
        %v2520 = vadd.f32 %v2504, 0.0
        %v2521 = vadd.f32 %v2505, 0.0
        %v2522 = vadd.f32 %v2506, 0.0
        %v2523 = vadd.f32 %v2507, 0.0
        %v2524 = vsel %vm1214, %v2366, -inf
        %v2525 = vsel %vm1214, %v2369, -inf
        %v2526 = vsel %vm1214, %v2374, -inf
        %v2527 = vsel %vm1214, %v2377, -inf
        %v2528 = vsel %vm1214, %v2382, -inf
        %v2529 = vsel %vm1214, %v2385, -inf
        %v2530 = vsel %vm1214, %v2390, -inf
        %v2531 = vsel %vm1214, %v2393, -inf
        %v2532 = vsel %vm1214, %v2398, -inf
        %v2533 = vsel %vm1214, %v2401, -inf
        %v2534 = vsel %vm1214, %v2406, -inf
        %v2535 = vsel %vm1214, %v2409, -inf
        %v2536 = vsel %vm1214, %v2414, -inf
        %v2537 = vsel %vm1214, %v2417, -inf
        %v2538 = vsel %vm1214, %v2422, -inf
        %v2539 = vsel %vm1214, %v2425, -inf
        %v2540 = vsel %vm1131, %v2524, -inf
        %2541 = vmax.xlane.f32.xlu0 %v2540
        %v2542 = vpop.xlane.xlu0 %2541
        %v2543 = vsel %vm1131, %v2525, -inf
        %2544 = vmax.xlane.f32.xlu0 %v2543
        %v2545 = vpop.xlane.xlu0 %2544
        %v2546 = vsel %vm1131, %v2526, -inf
        %2547 = vmax.xlane.f32.xlu0 %v2546
        %v2548 = vpop.xlane.xlu0 %2547
        %v2549 = vsel %vm1131, %v2527, -inf
        %2550 = vmax.xlane.f32.xlu0 %v2549
        %v2551 = vpop.xlane.xlu0 %2550
        %v2552 = vsel %vm1131, %v2528, -inf
        %2553 = vmax.xlane.f32.xlu0 %v2552
        %v2554 = vpop.xlane.xlu0 %2553
        %v2555 = vsel %vm1131, %v2529, -inf
        %2556 = vmax.xlane.f32.xlu0 %v2555
        %v2557 = vpop.xlane.xlu0 %2556
        %v2558 = vsel %vm1131, %v2530, -inf
        %2559 = vmax.xlane.f32.xlu0 %v2558
        %v2560 = vpop.xlane.xlu0 %2559
        %v2561 = vsel %vm1131, %v2531, -inf
        %2562 = vmax.xlane.f32.xlu0 %v2561
        %v2563 = vpop.xlane.xlu0 %2562
        %v2564 = vsel %vm1131, %v2532, -inf
        %2565 = vmax.xlane.f32.xlu0 %v2564
        %v2566 = vpop.xlane.xlu0 %2565
        %v2567 = vsel %vm1131, %v2533, -inf
        %2568 = vmax.xlane.f32.xlu0 %v2567
        %v2569 = vpop.xlane.xlu0 %2568
        %v2570 = vsel %vm1131, %v2534, -inf
        %2571 = vmax.xlane.f32.xlu0 %v2570
        %v2572 = vpop.xlane.xlu0 %2571
        %v2573 = vsel %vm1131, %v2535, -inf
        %2574 = vmax.xlane.f32.xlu0 %v2573
        %v2575 = vpop.xlane.xlu0 %2574
        %v2576 = vsel %vm1131, %v2536, -inf
        %2577 = vmax.xlane.f32.xlu0 %v2576
        %v2578 = vpop.xlane.xlu0 %2577
        %v2579 = vsel %vm1131, %v2537, -inf
        %2580 = vmax.xlane.f32.xlu0 %v2579
        %v2581 = vpop.xlane.xlu0 %2580
        %v2582 = vsel %vm1131, %v2538, -inf
        %2583 = vmax.xlane.f32.xlu0 %v2582
        %v2584 = vpop.xlane.xlu0 %2583
        %v2585 = vsel %vm1131, %v2539, -inf
        %2586 = vmax.xlane.f32.xlu0 %v2585
        %v2587 = vpop.xlane.xlu0 %2586
        %v2588 = vsel %vm1214, %v2542, 0.0
        %v2589 = vsel %vm1214, %v2545, 0.0
        %v2590 = vsel %vm1214, %v2548, 0.0
        %v2591 = vsel %vm1214, %v2551, 0.0
        %v2592 = vsel %vm1214, %v2554, 0.0
        %v2593 = vsel %vm1214, %v2557, 0.0
        %v2594 = vsel %vm1214, %v2560, 0.0
        %v2595 = vsel %vm1214, %v2563, 0.0
        %v2596 = vsel %vm1214, %v2566, 0.0
        %v2597 = vsel %vm1214, %v2569, 0.0
        %v2598 = vsel %vm1214, %v2572, 0.0
        %v2599 = vsel %vm1214, %v2575, 0.0
        %v2600 = vsel %vm1214, %v2578, 0.0
        %v2601 = vsel %vm1214, %v2581, 0.0
        %v2602 = vsel %vm1214, %v2584, 0.0
        %v2603 = vsel %vm1214, %v2587, 0.0
        %v2604 = vadd.f32 %v2508, %v2588
        %v2605 = vadd.f32 %v2509, %v2589
        %v2606 = vadd.f32 %v2510, %v2590
        %v2607 = vadd.f32 %v2511, %v2591
        %v2608 = vadd.f32 %v2512, %v2592
        %v2609 = vadd.f32 %v2513, %v2593
        %v2610 = vadd.f32 %v2514, %v2594
        %v2611 = vadd.f32 %v2515, %v2595
        %v2612 = vadd.f32 %v2516, %v2596
        %v2613 = vadd.f32 %v2517, %v2597
        %v2614 = vadd.f32 %v2518, %v2598
        %v2615 = vadd.f32 %v2519, %v2599
        %v2616 = vadd.f32 %v2520, %v2600
        %v2617 = vadd.f32 %v2521, %v2601
        %v2618 = vadd.f32 %v2522, %v2602
        %v2619 = vadd.f32 %v2523, %v2603
        %v2620 = vsel %vm1313, %v2366, -inf
        %v2621 = vsel %vm1313, %v2369, -inf
        %v2622 = vsel %vm1313, %v2374, -inf
        %v2623 = vsel %vm1313, %v2377, -inf
        %v2624 = vsel %vm1313, %v2382, -inf
        %v2625 = vsel %vm1313, %v2385, -inf
        %v2626 = vsel %vm1313, %v2390, -inf
        %v2627 = vsel %vm1313, %v2393, -inf
        %v2628 = vsel %vm1313, %v2398, -inf
        %v2629 = vsel %vm1313, %v2401, -inf
        %v2630 = vsel %vm1313, %v2406, -inf
        %v2631 = vsel %vm1313, %v2409, -inf
        %v2632 = vsel %vm1313, %v2414, -inf
        %v2633 = vsel %vm1313, %v2417, -inf
        %v2634 = vsel %vm1313, %v2422, -inf
        %v2635 = vsel %vm1313, %v2425, -inf
        %v2636 = vsel %vm1131, %v2620, -inf
        %2637 = vmax.xlane.f32.xlu0 %v2636
        %v2638 = vpop.xlane.xlu0 %2637
        %v2639 = vsel %vm1131, %v2621, -inf
        %2640 = vmax.xlane.f32.xlu0 %v2639
        %v2641 = vpop.xlane.xlu0 %2640
        %v2642 = vsel %vm1131, %v2622, -inf
        %2643 = vmax.xlane.f32.xlu0 %v2642
        %v2644 = vpop.xlane.xlu0 %2643
        %v2645 = vsel %vm1131, %v2623, -inf
        %2646 = vmax.xlane.f32.xlu0 %v2645
        %v2647 = vpop.xlane.xlu0 %2646
        %v2648 = vsel %vm1131, %v2624, -inf
        %2649 = vmax.xlane.f32.xlu0 %v2648
        %v2650 = vpop.xlane.xlu0 %2649
        %v2651 = vsel %vm1131, %v2625, -inf
        %2652 = vmax.xlane.f32.xlu0 %v2651
        %v2653 = vpop.xlane.xlu0 %2652
        %v2654 = vsel %vm1131, %v2626, -inf
        %2655 = vmax.xlane.f32.xlu0 %v2654
        %v2656 = vpop.xlane.xlu0 %2655
        %v2657 = vsel %vm1131, %v2627, -inf
        %2658 = vmax.xlane.f32.xlu0 %v2657
        %v2659 = vpop.xlane.xlu0 %2658
        %v2660 = vsel %vm1131, %v2628, -inf
        %2661 = vmax.xlane.f32.xlu0 %v2660
        %v2662 = vpop.xlane.xlu0 %2661
        %v2663 = vsel %vm1131, %v2629, -inf
        %2664 = vmax.xlane.f32.xlu0 %v2663
        %v2665 = vpop.xlane.xlu0 %2664
        %v2666 = vsel %vm1131, %v2630, -inf
        %2667 = vmax.xlane.f32.xlu0 %v2666
        %v2668 = vpop.xlane.xlu0 %2667
        %v2669 = vsel %vm1131, %v2631, -inf
        %2670 = vmax.xlane.f32.xlu0 %v2669
        %v2671 = vpop.xlane.xlu0 %2670
        %v2672 = vsel %vm1131, %v2632, -inf
        %2673 = vmax.xlane.f32.xlu0 %v2672
        %v2674 = vpop.xlane.xlu0 %2673
        %v2675 = vsel %vm1131, %v2633, -inf
        %2676 = vmax.xlane.f32.xlu0 %v2675
        %v2677 = vpop.xlane.xlu0 %2676
        %v2678 = vsel %vm1131, %v2634, -inf
        %2679 = vmax.xlane.f32.xlu0 %v2678
        %v2680 = vpop.xlane.xlu0 %2679
        %v2681 = vsel %vm1131, %v2635, -inf
        %2682 = vmax.xlane.f32.xlu0 %v2681
        %v2683 = vpop.xlane.xlu0 %2682
        %v2684 = vsel %vm1313, %v2638, 0.0
        %v2685 = vsel %vm1313, %v2641, 0.0
        %v2686 = vsel %vm1313, %v2644, 0.0
        %v2687 = vsel %vm1313, %v2647, 0.0
        %v2688 = vsel %vm1313, %v2650, 0.0
        %v2689 = vsel %vm1313, %v2653, 0.0
        %v2690 = vsel %vm1313, %v2656, 0.0
        %v2691 = vsel %vm1313, %v2659, 0.0
        %v2692 = vsel %vm1313, %v2662, 0.0
        %v2693 = vsel %vm1313, %v2665, 0.0
        %v2694 = vsel %vm1313, %v2668, 0.0
        %v2695 = vsel %vm1313, %v2671, 0.0
        %v2696 = vsel %vm1313, %v2674, 0.0
        %v2697 = vsel %vm1313, %v2677, 0.0
        %v2698 = vsel %vm1313, %v2680, 0.0
        %v2699 = vsel %vm1313, %v2683, 0.0
        %v2700 = vadd.f32 %v2604, %v2684
        %v2701 = vadd.f32 %v2605, %v2685
        %v2702 = vadd.f32 %v2606, %v2686
        %v2703 = vadd.f32 %v2607, %v2687
        %v2704 = vadd.f32 %v2608, %v2688
        %v2705 = vadd.f32 %v2609, %v2689
        %v2706 = vadd.f32 %v2610, %v2690
        %v2707 = vadd.f32 %v2611, %v2691
        %v2708 = vadd.f32 %v2612, %v2692
        %v2709 = vadd.f32 %v2613, %v2693
        %v2710 = vadd.f32 %v2614, %v2694
        %v2711 = vadd.f32 %v2615, %v2695
        %v2712 = vadd.f32 %v2616, %v2696
        %v2713 = vadd.f32 %v2617, %v2697
        %v2714 = vadd.f32 %v2618, %v2698
        %v2715 = vadd.f32 %v2619, %v2699
        %v2716 = vsel %vm1412, %v2366, -inf
        %v2717 = vsel %vm1412, %v2369, -inf
        %v2718 = vsel %vm1412, %v2374, -inf
        %v2719 = vsel %vm1412, %v2377, -inf
        %v2720 = vsel %vm1412, %v2382, -inf
        %v2721 = vsel %vm1412, %v2385, -inf
        %v2722 = vsel %vm1412, %v2390, -inf
        %v2723 = vsel %vm1412, %v2393, -inf
        %v2724 = vsel %vm1412, %v2398, -inf
        %v2725 = vsel %vm1412, %v2401, -inf
        %v2726 = vsel %vm1412, %v2406, -inf
        %v2727 = vsel %vm1412, %v2409, -inf
        %v2728 = vsel %vm1412, %v2414, -inf
        %v2729 = vsel %vm1412, %v2417, -inf
        %v2730 = vsel %vm1412, %v2422, -inf
        %v2731 = vsel %vm1412, %v2425, -inf
        %v2732 = vsel %vm1131, %v2716, -inf
        %2733 = vmax.xlane.f32.xlu0 %v2732
        %v2734 = vpop.xlane.xlu0 %2733
        %v2735 = vsel %vm1131, %v2717, -inf
        %2736 = vmax.xlane.f32.xlu0 %v2735
        %v2737 = vpop.xlane.xlu0 %2736
        %v2738 = vsel %vm1131, %v2718, -inf
        %2739 = vmax.xlane.f32.xlu0 %v2738
        %v2740 = vpop.xlane.xlu0 %2739
        %v2741 = vsel %vm1131, %v2719, -inf
        %2742 = vmax.xlane.f32.xlu0 %v2741
        %v2743 = vpop.xlane.xlu0 %2742
        %v2744 = vsel %vm1131, %v2720, -inf
        %2745 = vmax.xlane.f32.xlu0 %v2744
        %v2746 = vpop.xlane.xlu0 %2745
        %v2747 = vsel %vm1131, %v2721, -inf
        %2748 = vmax.xlane.f32.xlu0 %v2747
        %v2749 = vpop.xlane.xlu0 %2748
        %v2750 = vsel %vm1131, %v2722, -inf
        %2751 = vmax.xlane.f32.xlu0 %v2750
        %v2752 = vpop.xlane.xlu0 %2751
        %v2753 = vsel %vm1131, %v2723, -inf
        %2754 = vmax.xlane.f32.xlu0 %v2753
        %v2755 = vpop.xlane.xlu0 %2754
        %v2756 = vsel %vm1131, %v2724, -inf
        %2757 = vmax.xlane.f32.xlu0 %v2756
        %v2758 = vpop.xlane.xlu0 %2757
        %v2759 = vsel %vm1131, %v2725, -inf
        %2760 = vmax.xlane.f32.xlu0 %v2759
        %v2761 = vpop.xlane.xlu0 %2760
        %v2762 = vsel %vm1131, %v2726, -inf
        %2763 = vmax.xlane.f32.xlu0 %v2762
        %v2764 = vpop.xlane.xlu0 %2763
        %v2765 = vsel %vm1131, %v2727, -inf
        %2766 = vmax.xlane.f32.xlu0 %v2765
        %v2767 = vpop.xlane.xlu0 %2766
        %v2768 = vsel %vm1131, %v2728, -inf
        %2769 = vmax.xlane.f32.xlu0 %v2768
        %v2770 = vpop.xlane.xlu0 %2769
        %v2771 = vsel %vm1131, %v2729, -inf
        %2772 = vmax.xlane.f32.xlu0 %v2771
        %v2773 = vpop.xlane.xlu0 %2772
        %v2774 = vsel %vm1131, %v2730, -inf
        %2775 = vmax.xlane.f32.xlu0 %v2774
        %v2776 = vpop.xlane.xlu0 %2775
        %v2777 = vsel %vm1131, %v2731, -inf
        %2778 = vmax.xlane.f32.xlu0 %v2777
        %v2779 = vpop.xlane.xlu0 %2778
        %v2780 = vsel %vm1412, %v2734, 0.0
        %v2781 = vsel %vm1412, %v2737, 0.0
        %v2782 = vsel %vm1412, %v2740, 0.0
        %v2783 = vsel %vm1412, %v2743, 0.0
        %v2784 = vsel %vm1412, %v2746, 0.0
        %v2785 = vsel %vm1412, %v2749, 0.0
        %v2786 = vsel %vm1412, %v2752, 0.0
        %v2787 = vsel %vm1412, %v2755, 0.0
        %v2788 = vsel %vm1412, %v2758, 0.0
        %v2789 = vsel %vm1412, %v2761, 0.0
        %v2790 = vsel %vm1412, %v2764, 0.0
        %v2791 = vsel %vm1412, %v2767, 0.0
        %v2792 = vsel %vm1412, %v2770, 0.0
        %v2793 = vsel %vm1412, %v2773, 0.0
        %v2794 = vsel %vm1412, %v2776, 0.0
        %v2795 = vsel %vm1412, %v2779, 0.0
        %v2796 = vadd.f32 %v2700, %v2780
        %v2797 = vadd.f32 %v2701, %v2781
        %v2798 = vadd.f32 %v2702, %v2782
        %v2799 = vadd.f32 %v2703, %v2783
        %v2800 = vadd.f32 %v2704, %v2784
        %v2801 = vadd.f32 %v2705, %v2785
        %v2802 = vadd.f32 %v2706, %v2786
        %v2803 = vadd.f32 %v2707, %v2787
        %v2804 = vadd.f32 %v2708, %v2788
        %v2805 = vadd.f32 %v2709, %v2789
        %v2806 = vadd.f32 %v2710, %v2790
        %v2807 = vadd.f32 %v2711, %v2791
        %v2808 = vadd.f32 %v2712, %v2792
        %v2809 = vadd.f32 %v2713, %v2793
        %v2810 = vadd.f32 %v2714, %v2794
        %v2811 = vadd.f32 %v2715, %v2795
        %v2812 = vsub.f32 %v2366, %v2796
        %v2813 = vsub.f32 %v2369, %v2797
        %v2814 = vsub.f32 %v2374, %v2798
        %v2815 = vsub.f32 %v2377, %v2799
        %v2816 = vsub.f32 %v2382, %v2800
        %v2817 = vsub.f32 %v2385, %v2801
        %v2818 = vsub.f32 %v2390, %v2802
        %v2819 = vsub.f32 %v2393, %v2803
        %v2820 = vsub.f32 %v2398, %v2804
        %v2821 = vsub.f32 %v2401, %v2805
        %v2822 = vsub.f32 %v2406, %v2806
        %v2823 = vsub.f32 %v2409, %v2807
        %v2824 = vsub.f32 %v2414, %v2808
        %v2825 = vsub.f32 %v2417, %v2809
        %v2826 = vsub.f32 %v2422, %v2810
        %v2827 = vsub.f32 %v2425, %v2811
        %v2828 = vmul.f32 %v2812, 1.442695
        %v2829 = vpow.pop %v2828
        %v2830 = vmul.f32 %v2813, 1.442695
        %v2831 = vpow.pop %v2830
        %v2832 = vmul.f32 %v2814, 1.442695
        %v2833 = vpow.pop %v2832
        %v2834 = vmul.f32 %v2815, 1.442695
        %v2835 = vpow.pop %v2834
        %v2836 = vmul.f32 %v2816, 1.442695
        %v2837 = vpow.pop %v2836
        %v2838 = vmul.f32 %v2817, 1.442695
        %v2839 = vpow.pop %v2838
        %v2840 = vmul.f32 %v2818, 1.442695
        %v2841 = vpow.pop %v2840
        %v2842 = vmul.f32 %v2819, 1.442695
        %v2843 = vpow.pop %v2842
        %v2844 = vmul.f32 %v2820, 1.442695
        %v2845 = vpow.pop %v2844
        %v2846 = vmul.f32 %v2821, 1.442695
        %v2847 = vpow.pop %v2846
        %v2848 = vmul.f32 %v2822, 1.442695
        %v2849 = vpow.pop %v2848
        %v2850 = vmul.f32 %v2823, 1.442695
        %v2851 = vpow.pop %v2850
        %v2852 = vmul.f32 %v2824, 1.442695
        %v2853 = vpow.pop %v2852
        %v2854 = vmul.f32 %v2825, 1.442695
        %v2855 = vpow.pop %v2854
        %v2856 = vmul.f32 %v2826, 1.442695
        %v2857 = vpow.pop %v2856
        %v2858 = vmul.f32 %v2827, 1.442695
        %v2859 = vpow.pop %v2858
        %v2860 = vpack.c.bf16 %v2831, %v2829
        %v2861 = vpack.c.bf16 %v2835, %v2833
        %v2862 = vpack.c.bf16 %v2839, %v2837
        %v2863 = vpack.c.bf16 %v2843, %v2841
        %v2864 = vpack.c.bf16 %v2847, %v2845
        %v2865 = vpack.c.bf16 %v2851, %v2849
        %v2866 = vpack.c.bf16 %v2855, %v2853
        %v2867 = vpack.c.bf16 %v2859, %v2857
        %v2876 = vunpack.c.l.b16 %v2267
        %v2877 = vunpack.c.l.b16 %v2268
        %v2878 = vunpack.c.l.b16 %v2269
        %v2879 = vunpack.c.l.b16 %v2270
        %v2880 = vunpack.c.l.b16 %v2271
        %v2881 = vunpack.c.l.b16 %v2272
        %v2882 = vunpack.c.l.b16 %v2273
        %v2883 = vunpack.c.l.b16 %v2274
        %v2884 = vpack.c.b16 %v2877, %v2876
        %v2885 = vpack.c.b16 %v2879, %v2878
        %v2886 = vpack.c.b16 %v2881, %v2880
        %v2887 = vpack.c.b16 %v2883, %v2882
        %v2893 = vsel %vm1131, %v2860, 0
        %v2896 = vsel %vm1131, %v2861, 0
        %v2899 = vsel %vm1131, %v2862, 0
        %v2902 = vsel %vm1131, %v2863, 0
        %v2905 = vsel %vm1131, %v2864, 0
        %v2908 = vsel %vm1131, %v2865, 0
        %v2911 = vsel %vm1131, %v2866, 0
        %v2914 = vsel %vm1131, %v2867, 0
        %2916 = vmatprep.subr.bf16.mxu0 0
        %2917 = vmatpush1.bf16.msra.mxu0 %v2884
        %2918 = vmatprep.subr.bf16.mxu0 0
        %2919 = vmatpush1.bf16.msra.mxu0 %v2885
        %2920 = vmatprep.subr.bf16.mxu0 0
        %2921 = vmatpush1.bf16.msra.mxu0 %v2886
        %2922 = vmatprep.subr.bf16.mxu0 0
        %2923 = vmatpush1.bf16.msra.mxu0 %v2887
        %2924 = vmatprep.subr.bf16.mxu0 0
        %2925 = vmatpush1.bf16.msra.mxu0 0
        %2926 = vmatprep.subr.bf16.mxu0 0
        %2927 = vmatpush1.bf16.msra.mxu0 0
        %2928 = vmatprep.subr.bf16.mxu0 0
        %2929 = vmatpush1.bf16.msra.mxu0 0
        %2930 = vmatprep.subr.bf16.mxu0 0
        %2931 = vmatpush1.bf16.msra.mxu0 0
        %2932 = vmatprep.subr.bf16.mxu0 0
        %2933 = vmatpush1.bf16.msra.mxu0 0
        %2934 = vmatprep.subr.bf16.mxu0 0
        %2935 = vmatpush1.bf16.msra.mxu0 0
        %2936 = vmatprep.subr.bf16.mxu0 0
        %2937 = vmatpush1.bf16.msra.mxu0 0
        %2938 = vmatprep.subr.bf16.mxu0 0
        %2939 = vmatpush1.bf16.msra.mxu0 0
        %2940 = vmatprep.subr.bf16.mxu0 0
        %2941 = vmatpush1.bf16.msra.mxu0 0
        %2942 = vmatprep.subr.bf16.mxu0 0
        %2943 = vmatpush1.bf16.msra.mxu0 0
        %2944 = vmatprep.subr.bf16.mxu0 0
        %2945 = vmatpush1.bf16.msra.mxu0 0
        %2946 = vmatprep.subr.bf16.mxu0 0
        %2947 = vmatpush1.bf16.msra.mxu0 0
        %2948 = vmatprep.mubr.bf16.mxu0 0
        %2949 = vmatmul.mubr.bf16.gmra.mrb[0].mxu0 %v2893
        %v2950 = vpop.f32.mrb[0].mxu0
        %v2951 = vadd.f32 0.0, %v2950
        %v2952 = vpop.f32.mrb[0].mxu0
        %v2953 = vpop.f32.mrb[0].mxu0
        %v2954 = vadd.f32 0.0, %v2953
        %v2955 = vpop.f32.mrb[0].mxu0
        %2956 = vmatprep.mubr.bf16.mxu0 0
        %2957 = vmatmul.mubr.bf16.gmra.mrb[0].mxu0 %v2896
        %v2958 = vpop.f32.mrb[0].mxu0
        %v2959 = vadd.f32 0.0, %v2958
        %v2960 = vpop.f32.mrb[0].mxu0
        %v2961 = vpop.f32.mrb[0].mxu0
        %v2962 = vadd.f32 0.0, %v2961
        %v2963 = vpop.f32.mrb[0].mxu0
        %2964 = vmatprep.mubr.bf16.mxu0 0
        %2965 = vmatmul.mubr.bf16.gmra.mrb[0].mxu0 %v2899
        %v2966 = vpop.f32.mrb[0].mxu0
        %v2967 = vadd.f32 0.0, %v2966
        %v2968 = vpop.f32.mrb[0].mxu0
        %v2969 = vpop.f32.mrb[0].mxu0
        %v2970 = vadd.f32 0.0, %v2969
        %v2971 = vpop.f32.mrb[0].mxu0
        %2972 = vmatprep.mubr.bf16.mxu0 0
        %2973 = vmatmul.mubr.bf16.gmra.mrb[0].mxu0 %v2902
        %v2974 = vpop.f32.mrb[0].mxu0
        %v2975 = vadd.f32 0.0, %v2974
        %v2976 = vpop.f32.mrb[0].mxu0
        %v2977 = vpop.f32.mrb[0].mxu0
        %v2978 = vadd.f32 0.0, %v2977
        %v2979 = vpop.f32.mrb[0].mxu0
        %2980 = vmatprep.mubr.bf16.mxu0 0
        %2981 = vmatmul.mubr.bf16.gmra.mrb[0].mxu0 %v2905
        %v2982 = vpop.f32.mrb[0].mxu0
        %v2983 = vadd.f32 0.0, %v2982
        %v2984 = vpop.f32.mrb[0].mxu0
        %v2985 = vpop.f32.mrb[0].mxu0
        %v2986 = vadd.f32 0.0, %v2985
        %v2987 = vpop.f32.mrb[0].mxu0
        %2988 = vmatprep.mubr.bf16.mxu0 0
        %2989 = vmatmul.mubr.bf16.gmra.mrb[0].mxu0 %v2908
        %v2990 = vpop.f32.mrb[0].mxu0
        %v2991 = vadd.f32 0.0, %v2990
        %v2992 = vpop.f32.mrb[0].mxu0
        %v2993 = vpop.f32.mrb[0].mxu0
        %v2994 = vadd.f32 0.0, %v2993
        %v2995 = vpop.f32.mrb[0].mxu0
        %2996 = vmatprep.mubr.bf16.mxu0 0
        %2997 = vmatmul.mubr.bf16.gmra.mrb[0].mxu0 %v2911
        %v2998 = vpop.f32.mrb[0].mxu0
        %v2999 = vadd.f32 0.0, %v2998
        %v3000 = vpop.f32.mrb[0].mxu0
        %v3001 = vpop.f32.mrb[0].mxu0
        %v3002 = vadd.f32 0.0, %v3001
        %v3003 = vpop.f32.mrb[0].mxu0
        %3004 = vmatprep.mubr.bf16.mxu0 0
        %3005 = vmatmul.mubr.bf16.gmra.mrb[0].mxu0 %v2914
        %v3006 = vpop.f32.mrb[0].mxu0
        %v3007 = vadd.f32 0.0, %v3006
        %v3008 = vpop.f32.mrb[0].mxu0
        %v3009 = vpop.f32.mrb[0].mxu0
        %v3010 = vadd.f32 0.0, %v3009
        %v3011 = vpop.f32.mrb[0].mxu0
        %3012 = vdwg.mxu0
        %v3013 = vsel %vm1114, %v2829, 0.0
        %v3014 = vsel %vm1114, %v2831, 0.0
        %v3015 = vsel %vm1114, %v2833, 0.0
        %v3016 = vsel %vm1114, %v2835, 0.0
        %v3017 = vsel %vm1114, %v2837, 0.0
        %v3018 = vsel %vm1114, %v2839, 0.0
        %v3019 = vsel %vm1114, %v2841, 0.0
        %v3020 = vsel %vm1114, %v2843, 0.0
        %v3021 = vsel %vm1114, %v2845, 0.0
        %v3022 = vsel %vm1114, %v2847, 0.0
        %v3023 = vsel %vm1114, %v2849, 0.0
        %v3024 = vsel %vm1114, %v2851, 0.0
        %v3025 = vsel %vm1114, %v2853, 0.0
        %v3026 = vsel %vm1114, %v2855, 0.0
        %v3027 = vsel %vm1114, %v2857, 0.0
        %v3028 = vsel %vm1114, %v2859, 0.0
        %v3029 = vsel %vm1131, %v3013, 0.0
        %3030 = vadd.xlane.f32.xlu0 %v3029
        %v3031 = vpop.xlane.xlu0 %3030
        %v3032 = vsel %vm1131, %v3014, 0.0
        %3033 = vadd.xlane.f32.xlu0 %v3032
        %v3034 = vpop.xlane.xlu0 %3033
        %v3035 = vsel %vm1131, %v3015, 0.0
        %3036 = vadd.xlane.f32.xlu0 %v3035
        %v3037 = vpop.xlane.xlu0 %3036
        %v3038 = vsel %vm1131, %v3016, 0.0
        %3039 = vadd.xlane.f32.xlu0 %v3038
        %v3040 = vpop.xlane.xlu0 %3039
        %v3041 = vsel %vm1131, %v3017, 0.0
        %3042 = vadd.xlane.f32.xlu0 %v3041
        %v3043 = vpop.xlane.xlu0 %3042
        %v3044 = vsel %vm1131, %v3018, 0.0
        %3045 = vadd.xlane.f32.xlu0 %v3044
        %v3046 = vpop.xlane.xlu0 %3045
        %v3047 = vsel %vm1131, %v3019, 0.0
        %3048 = vadd.xlane.f32.xlu0 %v3047
        %v3049 = vpop.xlane.xlu0 %3048
        %v3050 = vsel %vm1131, %v3020, 0.0
        %3051 = vadd.xlane.f32.xlu0 %v3050
        %v3052 = vpop.xlane.xlu0 %3051
        %v3053 = vsel %vm1131, %v3021, 0.0
        %3054 = vadd.xlane.f32.xlu0 %v3053
        %v3055 = vpop.xlane.xlu0 %3054
        %v3056 = vsel %vm1131, %v3022, 0.0
        %3057 = vadd.xlane.f32.xlu0 %v3056
        %v3058 = vpop.xlane.xlu0 %3057
        %v3059 = vsel %vm1131, %v3023, 0.0
        %3060 = vadd.xlane.f32.xlu0 %v3059
        %v3061 = vpop.xlane.xlu0 %3060
        %v3062 = vsel %vm1131, %v3024, 0.0
        %3063 = vadd.xlane.f32.xlu0 %v3062
        %v3064 = vpop.xlane.xlu0 %3063
        %v3065 = vsel %vm1131, %v3025, 0.0
        %3066 = vadd.xlane.f32.xlu0 %v3065
        %v3067 = vpop.xlane.xlu0 %3066
        %v3068 = vsel %vm1131, %v3026, 0.0
        %3069 = vadd.xlane.f32.xlu0 %v3068
        %v3070 = vpop.xlane.xlu0 %3069
        %v3071 = vsel %vm1131, %v3027, 0.0
        %3072 = vadd.xlane.f32.xlu0 %v3071
        %v3073 = vpop.xlane.xlu0 %3072
        %v3074 = vsel %vm1131, %v3028, 0.0
        %3075 = vadd.xlane.f32.xlu0 %v3074
        %v3076 = vpop.xlane.xlu0 %3075
        %v3077 = vsel %vm1775, %v2951, 0.0
        %v3078 = vsel %vm1775, %v2954, 0.0
        %v3079 = vsel %vm1775, %v2959, 0.0
        %v3080 = vsel %vm1775, %v2962, 0.0
        %v3081 = vsel %vm1775, %v2967, 0.0
        %v3082 = vsel %vm1775, %v2970, 0.0
        %v3083 = vsel %vm1775, %v2975, 0.0
        %v3084 = vsel %vm1775, %v2978, 0.0
        %v3085 = vsel %vm1775, %v2983, 0.0
        %v3086 = vsel %vm1775, %v2986, 0.0
        %v3087 = vsel %vm1775, %v2991, 0.0
        %v3088 = vsel %vm1775, %v2994, 0.0
        %v3089 = vsel %vm1775, %v2999, 0.0
        %v3090 = vsel %vm1775, %v3002, 0.0
        %v3091 = vsel %vm1775, %v3007, 0.0
        %v3092 = vsel %vm1775, %v3010, 0.0
        %v3093 = vrcp.pop %v3031
        %v3094 = vrcp.pop %v3034
        %v3095 = vrcp.pop %v3037
        %v3096 = vrcp.pop %v3040
        %v3097 = vrcp.pop %v3043
        %v3098 = vrcp.pop %v3046
        %v3099 = vrcp.pop %v3049
        %v3100 = vrcp.pop %v3052
        %v3101 = vrcp.pop %v3055
        %v3102 = vrcp.pop %v3058
        %v3103 = vrcp.pop %v3061
        %v3104 = vrcp.pop %v3064
        %v3105 = vrcp.pop %v3067
        %v3106 = vrcp.pop %v3070
        %v3107 = vrcp.pop %v3073
        %v3108 = vrcp.pop %v3076
        %v3109 = vmul.f32 %v3077, %v3093
        %v3110 = vmul.f32 %v3078, %v3094
        %v3111 = vmul.f32 %v3079, %v3095
        %v3112 = vmul.f32 %v3080, %v3096
        %v3113 = vmul.f32 %v3081, %v3097
        %v3114 = vmul.f32 %v3082, %v3098
        %v3115 = vmul.f32 %v3083, %v3099
        %v3116 = vmul.f32 %v3084, %v3100
        %v3117 = vmul.f32 %v3085, %v3101
        %v3118 = vmul.f32 %v3086, %v3102
        %v3119 = vmul.f32 %v3087, %v3103
        %v3120 = vmul.f32 %v3088, %v3104
        %v3121 = vmul.f32 %v3089, %v3105
        %v3122 = vmul.f32 %v3090, %v3106
        %v3123 = vmul.f32 %v3091, %v3107
        %v3124 = vmul.f32 %v3092, %v3108
        %v3125 = vadd.f32 %v3109, 0.0
        %v3126 = vadd.f32 %v3110, 0.0
        %v3127 = vadd.f32 %v3111, 0.0
        %v3128 = vadd.f32 %v3112, 0.0
        %v3129 = vadd.f32 %v3113, 0.0
        %v3130 = vadd.f32 %v3114, 0.0
        %v3131 = vadd.f32 %v3115, 0.0
        %v3132 = vadd.f32 %v3116, 0.0
        %v3133 = vadd.f32 %v3117, 0.0
        %v3134 = vadd.f32 %v3118, 0.0
        %v3135 = vadd.f32 %v3119, 0.0
        %v3136 = vadd.f32 %v3120, 0.0
        %v3137 = vadd.f32 %v3121, 0.0
        %v3138 = vadd.f32 %v3122, 0.0
        %v3139 = vadd.f32 %v3123, 0.0
        %v3140 = vadd.f32 %v3124, 0.0
        %v3141 = vsel %vm1214, %v2829, 0.0
        %v3142 = vsel %vm1214, %v2831, 0.0
        %v3143 = vsel %vm1214, %v2833, 0.0
        %v3144 = vsel %vm1214, %v2835, 0.0
        %v3145 = vsel %vm1214, %v2837, 0.0
        %v3146 = vsel %vm1214, %v2839, 0.0
        %v3147 = vsel %vm1214, %v2841, 0.0
        %v3148 = vsel %vm1214, %v2843, 0.0
        %v3149 = vsel %vm1214, %v2845, 0.0
        %v3150 = vsel %vm1214, %v2847, 0.0
        %v3151 = vsel %vm1214, %v2849, 0.0
        %v3152 = vsel %vm1214, %v2851, 0.0
        %v3153 = vsel %vm1214, %v2853, 0.0
        %v3154 = vsel %vm1214, %v2855, 0.0
        %v3155 = vsel %vm1214, %v2857, 0.0
        %v3156 = vsel %vm1214, %v2859, 0.0
        %v3157 = vsel %vm1131, %v3141, 0.0
        %3158 = vadd.xlane.f32.xlu0 %v3157
        %v3159 = vpop.xlane.xlu0 %3158
        %v3160 = vsel %vm1131, %v3142, 0.0
        %3161 = vadd.xlane.f32.xlu0 %v3160
        %v3162 = vpop.xlane.xlu0 %3161
        %v3163 = vsel %vm1131, %v3143, 0.0
        %3164 = vadd.xlane.f32.xlu0 %v3163
        %v3165 = vpop.xlane.xlu0 %3164
        %v3166 = vsel %vm1131, %v3144, 0.0
        %3167 = vadd.xlane.f32.xlu0 %v3166
        %v3168 = vpop.xlane.xlu0 %3167
        %v3169 = vsel %vm1131, %v3145, 0.0
        %3170 = vadd.xlane.f32.xlu0 %v3169
        %v3171 = vpop.xlane.xlu0 %3170
        %v3172 = vsel %vm1131, %v3146, 0.0
        %3173 = vadd.xlane.f32.xlu0 %v3172
        %v3174 = vpop.xlane.xlu0 %3173
        %v3175 = vsel %vm1131, %v3147, 0.0
        %3176 = vadd.xlane.f32.xlu0 %v3175
        %v3177 = vpop.xlane.xlu0 %3176
        %v3178 = vsel %vm1131, %v3148, 0.0
        %3179 = vadd.xlane.f32.xlu0 %v3178
        %v3180 = vpop.xlane.xlu0 %3179
        %v3181 = vsel %vm1131, %v3149, 0.0
        %3182 = vadd.xlane.f32.xlu0 %v3181
        %v3183 = vpop.xlane.xlu0 %3182
        %v3184 = vsel %vm1131, %v3150, 0.0
        %3185 = vadd.xlane.f32.xlu0 %v3184
        %v3186 = vpop.xlane.xlu0 %3185
        %v3187 = vsel %vm1131, %v3151, 0.0
        %3188 = vadd.xlane.f32.xlu0 %v3187
        %v3189 = vpop.xlane.xlu0 %3188
        %v3190 = vsel %vm1131, %v3152, 0.0
        %3191 = vadd.xlane.f32.xlu0 %v3190
        %v3192 = vpop.xlane.xlu0 %3191
        %v3193 = vsel %vm1131, %v3153, 0.0
        %3194 = vadd.xlane.f32.xlu0 %v3193
        %v3195 = vpop.xlane.xlu0 %3194
        %v3196 = vsel %vm1131, %v3154, 0.0
        %3197 = vadd.xlane.f32.xlu0 %v3196
        %v3198 = vpop.xlane.xlu0 %3197
        %v3199 = vsel %vm1131, %v3155, 0.0
        %3200 = vadd.xlane.f32.xlu0 %v3199
        %v3201 = vpop.xlane.xlu0 %3200
        %v3202 = vsel %vm1131, %v3156, 0.0
        %3203 = vadd.xlane.f32.xlu0 %v3202
        %v3204 = vpop.xlane.xlu0 %3203
        %v3205 = vsel %vm1906, %v2951, 0.0
        %v3206 = vsel %vm1906, %v2954, 0.0
        %v3207 = vsel %vm1906, %v2959, 0.0
        %v3208 = vsel %vm1906, %v2962, 0.0
        %v3209 = vsel %vm1906, %v2967, 0.0
        %v3210 = vsel %vm1906, %v2970, 0.0
        %v3211 = vsel %vm1906, %v2975, 0.0
        %v3212 = vsel %vm1906, %v2978, 0.0
        %v3213 = vsel %vm1906, %v2983, 0.0
        %v3214 = vsel %vm1906, %v2986, 0.0
        %v3215 = vsel %vm1906, %v2991, 0.0
        %v3216 = vsel %vm1906, %v2994, 0.0
        %v3217 = vsel %vm1906, %v2999, 0.0
        %v3218 = vsel %vm1906, %v3002, 0.0
        %v3219 = vsel %vm1906, %v3007, 0.0
        %v3220 = vsel %vm1906, %v3010, 0.0
        %v3221 = vrcp.pop %v3159
        %v3222 = vrcp.pop %v3162
        %v3223 = vrcp.pop %v3165
        %v3224 = vrcp.pop %v3168
        %v3225 = vrcp.pop %v3171
        %v3226 = vrcp.pop %v3174
        %v3227 = vrcp.pop %v3177
        %v3228 = vrcp.pop %v3180
        %v3229 = vrcp.pop %v3183
        %v3230 = vrcp.pop %v3186
        %v3231 = vrcp.pop %v3189
        %v3232 = vrcp.pop %v3192
        %v3233 = vrcp.pop %v3195
        %v3234 = vrcp.pop %v3198
        %v3235 = vrcp.pop %v3201
        %v3236 = vrcp.pop %v3204
        %v3237 = vmul.f32 %v3205, %v3221
        %v3238 = vmul.f32 %v3206, %v3222
        %v3239 = vmul.f32 %v3207, %v3223
        %v3240 = vmul.f32 %v3208, %v3224
        %v3241 = vmul.f32 %v3209, %v3225
        %v3242 = vmul.f32 %v3210, %v3226
        %v3243 = vmul.f32 %v3211, %v3227
        %v3244 = vmul.f32 %v3212, %v3228
        %v3245 = vmul.f32 %v3213, %v3229
        %v3246 = vmul.f32 %v3214, %v3230
        %v3247 = vmul.f32 %v3215, %v3231
        %v3248 = vmul.f32 %v3216, %v3232
        %v3249 = vmul.f32 %v3217, %v3233
        %v3250 = vmul.f32 %v3218, %v3234
        %v3251 = vmul.f32 %v3219, %v3235
        %v3252 = vmul.f32 %v3220, %v3236
        %v3253 = vadd.f32 %v3125, %v3237
        %v3254 = vadd.f32 %v3126, %v3238
        %v3255 = vadd.f32 %v3127, %v3239
        %v3256 = vadd.f32 %v3128, %v3240
        %v3257 = vadd.f32 %v3129, %v3241
        %v3258 = vadd.f32 %v3130, %v3242
        %v3259 = vadd.f32 %v3131, %v3243
        %v3260 = vadd.f32 %v3132, %v3244
        %v3261 = vadd.f32 %v3133, %v3245
        %v3262 = vadd.f32 %v3134, %v3246
        %v3263 = vadd.f32 %v3135, %v3247
        %v3264 = vadd.f32 %v3136, %v3248
        %v3265 = vadd.f32 %v3137, %v3249
        %v3266 = vadd.f32 %v3138, %v3250
        %v3267 = vadd.f32 %v3139, %v3251
        %v3268 = vadd.f32 %v3140, %v3252
        %v3269 = vsel %vm1313, %v2829, 0.0
        %v3270 = vsel %vm1313, %v2831, 0.0
        %v3271 = vsel %vm1313, %v2833, 0.0
        %v3272 = vsel %vm1313, %v2835, 0.0
        %v3273 = vsel %vm1313, %v2837, 0.0
        %v3274 = vsel %vm1313, %v2839, 0.0
        %v3275 = vsel %vm1313, %v2841, 0.0
        %v3276 = vsel %vm1313, %v2843, 0.0
        %v3277 = vsel %vm1313, %v2845, 0.0
        %v3278 = vsel %vm1313, %v2847, 0.0
        %v3279 = vsel %vm1313, %v2849, 0.0
        %v3280 = vsel %vm1313, %v2851, 0.0
        %v3281 = vsel %vm1313, %v2853, 0.0
        %v3282 = vsel %vm1313, %v2855, 0.0
        %v3283 = vsel %vm1313, %v2857, 0.0
        %v3284 = vsel %vm1313, %v2859, 0.0
        %v3285 = vsel %vm1131, %v3269, 0.0
        %3286 = vadd.xlane.f32.xlu0 %v3285
        %v3287 = vpop.xlane.xlu0 %3286
        %v3288 = vsel %vm1131, %v3270, 0.0
        %3289 = vadd.xlane.f32.xlu0 %v3288
        %v3290 = vpop.xlane.xlu0 %3289
        %v3291 = vsel %vm1131, %v3271, 0.0
        %3292 = vadd.xlane.f32.xlu0 %v3291
        %v3293 = vpop.xlane.xlu0 %3292
        %v3294 = vsel %vm1131, %v3272, 0.0
        %3295 = vadd.xlane.f32.xlu0 %v3294
        %v3296 = vpop.xlane.xlu0 %3295
        %v3297 = vsel %vm1131, %v3273, 0.0
        %3298 = vadd.xlane.f32.xlu0 %v3297
        %v3299 = vpop.xlane.xlu0 %3298
        %v3300 = vsel %vm1131, %v3274, 0.0
        %3301 = vadd.xlane.f32.xlu0 %v3300
        %v3302 = vpop.xlane.xlu0 %3301
        %v3303 = vsel %vm1131, %v3275, 0.0
        %3304 = vadd.xlane.f32.xlu0 %v3303
        %v3305 = vpop.xlane.xlu0 %3304
        %v3306 = vsel %vm1131, %v3276, 0.0
        %3307 = vadd.xlane.f32.xlu0 %v3306
        %v3308 = vpop.xlane.xlu0 %3307
        %v3309 = vsel %vm1131, %v3277, 0.0
        %3310 = vadd.xlane.f32.xlu0 %v3309
        %v3311 = vpop.xlane.xlu0 %3310
        %v3312 = vsel %vm1131, %v3278, 0.0
        %3313 = vadd.xlane.f32.xlu0 %v3312
        %v3314 = vpop.xlane.xlu0 %3313
        %v3315 = vsel %vm1131, %v3279, 0.0
        %3316 = vadd.xlane.f32.xlu0 %v3315
        %v3317 = vpop.xlane.xlu0 %3316
        %v3318 = vsel %vm1131, %v3280, 0.0
        %3319 = vadd.xlane.f32.xlu0 %v3318
        %v3320 = vpop.xlane.xlu0 %3319
        %v3321 = vsel %vm1131, %v3281, 0.0
        %3322 = vadd.xlane.f32.xlu0 %v3321
        %v3323 = vpop.xlane.xlu0 %3322
        %v3324 = vsel %vm1131, %v3282, 0.0
        %3325 = vadd.xlane.f32.xlu0 %v3324
        %v3326 = vpop.xlane.xlu0 %3325
        %v3327 = vsel %vm1131, %v3283, 0.0
        %3328 = vadd.xlane.f32.xlu0 %v3327
        %v3329 = vpop.xlane.xlu0 %3328
        %v3330 = vsel %vm1131, %v3284, 0.0
        %3331 = vadd.xlane.f32.xlu0 %v3330
        %v3332 = vpop.xlane.xlu0 %3331
        %v3333 = vsel %vm2037, %v2951, 0.0
        %v3334 = vsel %vm2037, %v2954, 0.0
        %v3335 = vsel %vm2037, %v2959, 0.0
        %v3336 = vsel %vm2037, %v2962, 0.0
        %v3337 = vsel %vm2037, %v2967, 0.0
        %v3338 = vsel %vm2037, %v2970, 0.0
        %v3339 = vsel %vm2037, %v2975, 0.0
        %v3340 = vsel %vm2037, %v2978, 0.0
        %v3341 = vsel %vm2037, %v2983, 0.0
        %v3342 = vsel %vm2037, %v2986, 0.0
        %v3343 = vsel %vm2037, %v2991, 0.0
        %v3344 = vsel %vm2037, %v2994, 0.0
        %v3345 = vsel %vm2037, %v2999, 0.0
        %v3346 = vsel %vm2037, %v3002, 0.0
        %v3347 = vsel %vm2037, %v3007, 0.0
        %v3348 = vsel %vm2037, %v3010, 0.0
        %v3349 = vrcp.pop %v3287
        %v3350 = vrcp.pop %v3290
        %v3351 = vrcp.pop %v3293
        %v3352 = vrcp.pop %v3296
        %v3353 = vrcp.pop %v3299
        %v3354 = vrcp.pop %v3302
        %v3355 = vrcp.pop %v3305
        %v3356 = vrcp.pop %v3308
        %v3357 = vrcp.pop %v3311
        %v3358 = vrcp.pop %v3314
        %v3359 = vrcp.pop %v3317
        %v3360 = vrcp.pop %v3320
        %v3361 = vrcp.pop %v3323
        %v3362 = vrcp.pop %v3326
        %v3363 = vrcp.pop %v3329
        %v3364 = vrcp.pop %v3332
        %v3365 = vmul.f32 %v3333, %v3349
        %v3366 = vmul.f32 %v3334, %v3350
        %v3367 = vmul.f32 %v3335, %v3351
        %v3368 = vmul.f32 %v3336, %v3352
        %v3369 = vmul.f32 %v3337, %v3353
        %v3370 = vmul.f32 %v3338, %v3354
        %v3371 = vmul.f32 %v3339, %v3355
        %v3372 = vmul.f32 %v3340, %v3356
        %v3373 = vmul.f32 %v3341, %v3357
        %v3374 = vmul.f32 %v3342, %v3358
        %v3375 = vmul.f32 %v3343, %v3359
        %v3376 = vmul.f32 %v3344, %v3360
        %v3377 = vmul.f32 %v3345, %v3361
        %v3378 = vmul.f32 %v3346, %v3362
        %v3379 = vmul.f32 %v3347, %v3363
        %v3380 = vmul.f32 %v3348, %v3364
        %v3381 = vadd.f32 %v3253, %v3365
        %v3382 = vadd.f32 %v3254, %v3366
        %v3383 = vadd.f32 %v3255, %v3367
        %v3384 = vadd.f32 %v3256, %v3368
        %v3385 = vadd.f32 %v3257, %v3369
        %v3386 = vadd.f32 %v3258, %v3370
        %v3387 = vadd.f32 %v3259, %v3371
        %v3388 = vadd.f32 %v3260, %v3372
        %v3389 = vadd.f32 %v3261, %v3373
        %v3390 = vadd.f32 %v3262, %v3374
        %v3391 = vadd.f32 %v3263, %v3375
        %v3392 = vadd.f32 %v3264, %v3376
        %v3393 = vadd.f32 %v3265, %v3377
        %v3394 = vadd.f32 %v3266, %v3378
        %v3395 = vadd.f32 %v3267, %v3379
        %v3396 = vadd.f32 %v3268, %v3380
        %v3397 = vsel %vm1412, %v2829, 0.0
        %v3398 = vsel %vm1412, %v2831, 0.0
        %v3399 = vsel %vm1412, %v2833, 0.0
        %v3400 = vsel %vm1412, %v2835, 0.0
        %v3401 = vsel %vm1412, %v2837, 0.0
        %v3402 = vsel %vm1412, %v2839, 0.0
        %v3403 = vsel %vm1412, %v2841, 0.0
        %v3404 = vsel %vm1412, %v2843, 0.0
        %v3405 = vsel %vm1412, %v2845, 0.0
        %v3406 = vsel %vm1412, %v2847, 0.0
        %v3407 = vsel %vm1412, %v2849, 0.0
        %v3408 = vsel %vm1412, %v2851, 0.0
        %v3409 = vsel %vm1412, %v2853, 0.0
        %v3410 = vsel %vm1412, %v2855, 0.0
        %v3411 = vsel %vm1412, %v2857, 0.0
        %v3412 = vsel %vm1412, %v2859, 0.0
        %v3413 = vsel %vm1131, %v3397, 0.0
        %3414 = vadd.xlane.f32.xlu0 %v3413
        %v3415 = vpop.xlane.xlu0 %3414
        %v3416 = vsel %vm1131, %v3398, 0.0
        %3417 = vadd.xlane.f32.xlu0 %v3416
        %v3418 = vpop.xlane.xlu0 %3417
        %v3419 = vsel %vm1131, %v3399, 0.0
        %3420 = vadd.xlane.f32.xlu0 %v3419
        %v3421 = vpop.xlane.xlu0 %3420
        %v3422 = vsel %vm1131, %v3400, 0.0
        %3423 = vadd.xlane.f32.xlu0 %v3422
        %v3424 = vpop.xlane.xlu0 %3423
        %v3425 = vsel %vm1131, %v3401, 0.0
        %3426 = vadd.xlane.f32.xlu0 %v3425
        %v3427 = vpop.xlane.xlu0 %3426
        %v3428 = vsel %vm1131, %v3402, 0.0
        %3429 = vadd.xlane.f32.xlu0 %v3428
        %v3430 = vpop.xlane.xlu0 %3429
        %v3431 = vsel %vm1131, %v3403, 0.0
        %3432 = vadd.xlane.f32.xlu0 %v3431
        %v3433 = vpop.xlane.xlu0 %3432
        %v3434 = vsel %vm1131, %v3404, 0.0
        %3435 = vadd.xlane.f32.xlu0 %v3434
        %v3436 = vpop.xlane.xlu0 %3435
        %v3437 = vsel %vm1131, %v3405, 0.0
        %3438 = vadd.xlane.f32.xlu0 %v3437
        %v3439 = vpop.xlane.xlu0 %3438
        %v3440 = vsel %vm1131, %v3406, 0.0
        %3441 = vadd.xlane.f32.xlu0 %v3440
        %v3442 = vpop.xlane.xlu0 %3441
        %v3443 = vsel %vm1131, %v3407, 0.0
        %3444 = vadd.xlane.f32.xlu0 %v3443
        %v3445 = vpop.xlane.xlu0 %3444
        %v3446 = vsel %vm1131, %v3408, 0.0
        %3447 = vadd.xlane.f32.xlu0 %v3446
        %v3448 = vpop.xlane.xlu0 %3447
        %v3449 = vsel %vm1131, %v3409, 0.0
        %3450 = vadd.xlane.f32.xlu0 %v3449
        %v3451 = vpop.xlane.xlu0 %3450
        %v3452 = vsel %vm1131, %v3410, 0.0
        %3453 = vadd.xlane.f32.xlu0 %v3452
        %v3454 = vpop.xlane.xlu0 %3453
        %v3455 = vsel %vm1131, %v3411, 0.0
        %3456 = vadd.xlane.f32.xlu0 %v3455
        %v3457 = vpop.xlane.xlu0 %3456
        %v3458 = vsel %vm1131, %v3412, 0.0
        %3459 = vadd.xlane.f32.xlu0 %v3458
        %v3460 = vpop.xlane.xlu0 %3459
        %v3461 = vsel %vm2168, %v2951, 0.0
        %v3462 = vsel %vm2168, %v2954, 0.0
        %v3463 = vsel %vm2168, %v2959, 0.0
        %v3464 = vsel %vm2168, %v2962, 0.0
        %v3465 = vsel %vm2168, %v2967, 0.0
        %v3466 = vsel %vm2168, %v2970, 0.0
        %v3467 = vsel %vm2168, %v2975, 0.0
        %v3468 = vsel %vm2168, %v2978, 0.0
        %v3469 = vsel %vm2168, %v2983, 0.0
        %v3470 = vsel %vm2168, %v2986, 0.0
        %v3471 = vsel %vm2168, %v2991, 0.0
        %v3472 = vsel %vm2168, %v2994, 0.0
        %v3473 = vsel %vm2168, %v2999, 0.0
        %v3474 = vsel %vm2168, %v3002, 0.0
        %v3475 = vsel %vm2168, %v3007, 0.0
        %v3476 = vsel %vm2168, %v3010, 0.0
        %v3477 = vrcp.pop %v3415
        %v3478 = vrcp.pop %v3418
        %v3479 = vrcp.pop %v3421
        %v3480 = vrcp.pop %v3424
        %v3481 = vrcp.pop %v3427
        %v3482 = vrcp.pop %v3430
        %v3483 = vrcp.pop %v3433
        %v3484 = vrcp.pop %v3436
        %v3485 = vrcp.pop %v3439
        %v3486 = vrcp.pop %v3442
        %v3487 = vrcp.pop %v3445
        %v3488 = vrcp.pop %v3448
        %v3489 = vrcp.pop %v3451
        %v3490 = vrcp.pop %v3454
        %v3491 = vrcp.pop %v3457
        %v3492 = vrcp.pop %v3460
        %v3493 = vmul.f32 %v3461, %v3477
        %v3494 = vmul.f32 %v3462, %v3478
        %v3495 = vmul.f32 %v3463, %v3479
        %v3496 = vmul.f32 %v3464, %v3480
        %v3497 = vmul.f32 %v3465, %v3481
        %v3498 = vmul.f32 %v3466, %v3482
        %v3499 = vmul.f32 %v3467, %v3483
        %v3500 = vmul.f32 %v3468, %v3484
        %v3501 = vmul.f32 %v3469, %v3485
        %v3502 = vmul.f32 %v3470, %v3486
        %v3503 = vmul.f32 %v3471, %v3487
        %v3504 = vmul.f32 %v3472, %v3488
        %v3505 = vmul.f32 %v3473, %v3489
        %v3506 = vmul.f32 %v3474, %v3490
        %v3507 = vmul.f32 %v3475, %v3491
        %v3508 = vmul.f32 %v3476, %v3492
        %v3509 = vadd.f32 %v3381, %v3493
        %v3510 = vadd.f32 %v3382, %v3494
        %v3511 = vadd.f32 %v3383, %v3495
        %v3512 = vadd.f32 %v3384, %v3496
        %v3513 = vadd.f32 %v3385, %v3497
        %v3514 = vadd.f32 %v3386, %v3498
        %v3515 = vadd.f32 %v3387, %v3499
        %v3516 = vadd.f32 %v3388, %v3500
        %v3517 = vadd.f32 %v3389, %v3501
        %v3518 = vadd.f32 %v3390, %v3502
        %v3519 = vadd.f32 %v3391, %v3503
        %v3520 = vadd.f32 %v3392, %v3504
        %v3521 = vadd.f32 %v3393, %v3505
        %v3522 = vadd.f32 %v3394, %v3506
        %v3523 = vadd.f32 %v3395, %v3507
        %v3524 = vadd.f32 %v3396, %v3508
        %v3525 = vadd.f32 %v479, %v3509
        %v3526 = vadd.f32 %v480, %v3510
        %v3527 = vadd.f32 %v481, %v3511
        %v3528 = vadd.f32 %v482, %v3512
        %v3529 = vadd.f32 %v483, %v3513
        %v3530 = vadd.f32 %v484, %v3514
        %v3531 = vadd.f32 %v485, %v3515
        %v3532 = vadd.f32 %v486, %v3516
        %v3533 = vadd.f32 %v487, %v3517
        %v3534 = vadd.f32 %v488, %v3518
        %v3535 = vadd.f32 %v489, %v3519
        %v3536 = vadd.f32 %v490, %v3520
        %v3537 = vadd.f32 %v491, %v3521
        %v3538 = vadd.f32 %v492, %v3522
        %v3539 = vadd.f32 %v493, %v3523
        %v3540 = vadd.f32 %v494, %v3524
        %3541 = vadd.xlane.f32.xlu0 %v2233
        %v3542 = vpop.xlane.xlu0 %3541
        %3543 = vadd.xlane.f32.xlu0 %v2234
        %v3544 = vpop.xlane.xlu0 %3543
        %3545 = vadd.xlane.f32.xlu0 %v2235
        %v3546 = vpop.xlane.xlu0 %3545
        %3547 = vadd.xlane.f32.xlu0 %v2236
        %v3548 = vpop.xlane.xlu0 %3547
        %3549 = vadd.xlane.f32.xlu0 %v2237
        %v3550 = vpop.xlane.xlu0 %3549
        %3551 = vadd.xlane.f32.xlu0 %v2238
        %v3552 = vpop.xlane.xlu0 %3551
        %3553 = vadd.xlane.f32.xlu0 %v2239
        %v3554 = vpop.xlane.xlu0 %3553
        %3555 = vadd.xlane.f32.xlu0 %v2240
        %v3556 = vpop.xlane.xlu0 %3555
        %3557 = vadd.xlane.f32.xlu0 %v2241
        %v3558 = vpop.xlane.xlu0 %3557
        %3559 = vadd.xlane.f32.xlu0 %v2242
        %v3560 = vpop.xlane.xlu0 %3559
        %3561 = vadd.xlane.f32.xlu0 %v2243
        %v3562 = vpop.xlane.xlu0 %3561
        %3563 = vadd.xlane.f32.xlu0 %v2244
        %v3564 = vpop.xlane.xlu0 %3563
        %3565 = vadd.xlane.f32.xlu0 %v2245
        %v3566 = vpop.xlane.xlu0 %3565
        %3567 = vadd.xlane.f32.xlu0 %v2246
        %v3568 = vpop.xlane.xlu0 %3567
        %3569 = vadd.xlane.f32.xlu0 %v2247
        %v3570 = vpop.xlane.xlu0 %3569
        %3571 = vadd.xlane.f32.xlu0 %v2248
        %v3572 = vpop.xlane.xlu0 %3571
        %3573 = vadd.xlane.f32.xlu0 %v3525
        %v3574 = vpop.xlane.xlu0 %3573
        %3575 = vadd.xlane.f32.xlu0 %v3526
        %v3576 = vpop.xlane.xlu0 %3575
        %3577 = vadd.xlane.f32.xlu0 %v3527
        %v3578 = vpop.xlane.xlu0 %3577
        %3579 = vadd.xlane.f32.xlu0 %v3528
        %v3580 = vpop.xlane.xlu0 %3579
        %3581 = vadd.xlane.f32.xlu0 %v3529
        %v3582 = vpop.xlane.xlu0 %3581
        %3583 = vadd.xlane.f32.xlu0 %v3530
        %v3584 = vpop.xlane.xlu0 %3583
        %3585 = vadd.xlane.f32.xlu0 %v3531
        %v3586 = vpop.xlane.xlu0 %3585
        %3587 = vadd.xlane.f32.xlu0 %v3532
        %v3588 = vpop.xlane.xlu0 %3587
        %3589 = vadd.xlane.f32.xlu0 %v3533
        %v3590 = vpop.xlane.xlu0 %3589
        %3591 = vadd.xlane.f32.xlu0 %v3534
        %v3592 = vpop.xlane.xlu0 %3591
        %3593 = vadd.xlane.f32.xlu0 %v3535
        %v3594 = vpop.xlane.xlu0 %3593
        %3595 = vadd.xlane.f32.xlu0 %v3536
        %v3596 = vpop.xlane.xlu0 %3595
        %3597 = vadd.xlane.f32.xlu0 %v3537
        %v3598 = vpop.xlane.xlu0 %3597
        %3599 = vadd.xlane.f32.xlu0 %v3538
        %v3600 = vpop.xlane.xlu0 %3599
        %3601 = vadd.xlane.f32.xlu0 %v3539
        %v3602 = vpop.xlane.xlu0 %3601
        %3603 = vadd.xlane.f32.xlu0 %v3540
        %v3604 = vpop.xlane.xlu0 %3603
        %v3605 = vadd.f32 %v3542, %v3574
        %v3606 = vadd.f32 %v3544, %v3576
        %v3607 = vadd.f32 %v3546, %v3578
        %v3608 = vadd.f32 %v3548, %v3580
        %v3609 = vadd.f32 %v3550, %v3582
        %v3610 = vadd.f32 %v3552, %v3584
        %v3611 = vadd.f32 %v3554, %v3586
        %v3612 = vadd.f32 %v3556, %v3588
        %v3613 = vadd.f32 %v3558, %v3590
        %v3614 = vadd.f32 %v3560, %v3592
        %v3615 = vadd.f32 %v3562, %v3594
        %v3616 = vadd.f32 %v3564, %v3596
        %v3617 = vadd.f32 %v3566, %v3598
        %v3618 = vadd.f32 %v3568, %v3600
        %v3619 = vadd.f32 %v3570, %v3602
        %v3620 = vadd.f32 %v3572, %v3604
        %v3621 = vmul.f32 %v3605, 0.00390625
        %v3622 = vmul.f32 %v3606, 0.00390625
        %v3623 = vmul.f32 %v3607, 0.00390625
        %v3624 = vmul.f32 %v3608, 0.00390625
        %v3625 = vmul.f32 %v3609, 0.00390625
        %v3626 = vmul.f32 %v3610, 0.00390625
        %v3627 = vmul.f32 %v3611, 0.00390625
        %v3628 = vmul.f32 %v3612, 0.00390625
        %v3629 = vmul.f32 %v3613, 0.00390625
        %v3630 = vmul.f32 %v3614, 0.00390625
        %v3631 = vmul.f32 %v3615, 0.00390625
        %v3632 = vmul.f32 %v3616, 0.00390625
        %v3633 = vmul.f32 %v3617, 0.00390625
        %v3634 = vmul.f32 %v3618, 0.00390625
        %v3635 = vmul.f32 %v3619, 0.00390625
        %v3636 = vmul.f32 %v3620, 0.00390625
        %v3637 = vmul.f32 %v2233, %v2233
        %v3638 = vmul.f32 %v2234, %v2234
        %v3639 = vmul.f32 %v2235, %v2235
        %v3640 = vmul.f32 %v2236, %v2236
        %v3641 = vmul.f32 %v2237, %v2237
        %v3642 = vmul.f32 %v2238, %v2238
        %v3643 = vmul.f32 %v2239, %v2239
        %v3644 = vmul.f32 %v2240, %v2240
        %v3645 = vmul.f32 %v2241, %v2241
        %v3646 = vmul.f32 %v2242, %v2242
        %v3647 = vmul.f32 %v2243, %v2243
        %v3648 = vmul.f32 %v2244, %v2244
        %v3649 = vmul.f32 %v2245, %v2245
        %v3650 = vmul.f32 %v2246, %v2246
        %v3651 = vmul.f32 %v2247, %v2247
        %v3652 = vmul.f32 %v2248, %v2248
        %3653 = vadd.xlane.f32.xlu0 %v3637
        %v3654 = vpop.xlane.xlu0 %3653
        %3655 = vadd.xlane.f32.xlu0 %v3638
        %v3656 = vpop.xlane.xlu0 %3655
        %3657 = vadd.xlane.f32.xlu0 %v3639
        %v3658 = vpop.xlane.xlu0 %3657
        %3659 = vadd.xlane.f32.xlu0 %v3640
        %v3660 = vpop.xlane.xlu0 %3659
        %3661 = vadd.xlane.f32.xlu0 %v3641
        %v3662 = vpop.xlane.xlu0 %3661
        %3663 = vadd.xlane.f32.xlu0 %v3642
        %v3664 = vpop.xlane.xlu0 %3663
        %3665 = vadd.xlane.f32.xlu0 %v3643
        %v3666 = vpop.xlane.xlu0 %3665
        %3667 = vadd.xlane.f32.xlu0 %v3644
        %v3668 = vpop.xlane.xlu0 %3667
        %3669 = vadd.xlane.f32.xlu0 %v3645
        %v3670 = vpop.xlane.xlu0 %3669
        %3671 = vadd.xlane.f32.xlu0 %v3646
        %v3672 = vpop.xlane.xlu0 %3671
        %3673 = vadd.xlane.f32.xlu0 %v3647
        %v3674 = vpop.xlane.xlu0 %3673
        %3675 = vadd.xlane.f32.xlu0 %v3648
        %v3676 = vpop.xlane.xlu0 %3675
        %3677 = vadd.xlane.f32.xlu0 %v3649
        %v3678 = vpop.xlane.xlu0 %3677
        %3679 = vadd.xlane.f32.xlu0 %v3650
        %v3680 = vpop.xlane.xlu0 %3679
        %3681 = vadd.xlane.f32.xlu0 %v3651
        %v3682 = vpop.xlane.xlu0 %3681
        %3683 = vadd.xlane.f32.xlu0 %v3652
        %v3684 = vpop.xlane.xlu0 %3683
        %v3685 = vmul.f32 %v3525, %v3525
        %v3686 = vmul.f32 %v3526, %v3526
        %v3687 = vmul.f32 %v3527, %v3527
        %v3688 = vmul.f32 %v3528, %v3528
        %v3689 = vmul.f32 %v3529, %v3529
        %v3690 = vmul.f32 %v3530, %v3530
        %v3691 = vmul.f32 %v3531, %v3531
        %v3692 = vmul.f32 %v3532, %v3532
        %v3693 = vmul.f32 %v3533, %v3533
        %v3694 = vmul.f32 %v3534, %v3534
        %v3695 = vmul.f32 %v3535, %v3535
        %v3696 = vmul.f32 %v3536, %v3536
        %v3697 = vmul.f32 %v3537, %v3537
        %v3698 = vmul.f32 %v3538, %v3538
        %v3699 = vmul.f32 %v3539, %v3539
        %v3700 = vmul.f32 %v3540, %v3540
        %3701 = vadd.xlane.f32.xlu0 %v3685
        %v3702 = vpop.xlane.xlu0 %3701
        %3703 = vadd.xlane.f32.xlu0 %v3686
        %v3704 = vpop.xlane.xlu0 %3703
        %3705 = vadd.xlane.f32.xlu0 %v3687
        %v3706 = vpop.xlane.xlu0 %3705
        %3707 = vadd.xlane.f32.xlu0 %v3688
        %v3708 = vpop.xlane.xlu0 %3707
        %3709 = vadd.xlane.f32.xlu0 %v3689
        %v3710 = vpop.xlane.xlu0 %3709
        %3711 = vadd.xlane.f32.xlu0 %v3690
        %v3712 = vpop.xlane.xlu0 %3711
        %3713 = vadd.xlane.f32.xlu0 %v3691
        %v3714 = vpop.xlane.xlu0 %3713
        %3715 = vadd.xlane.f32.xlu0 %v3692
        %v3716 = vpop.xlane.xlu0 %3715
        %3717 = vadd.xlane.f32.xlu0 %v3693
        %v3718 = vpop.xlane.xlu0 %3717
        %3719 = vadd.xlane.f32.xlu0 %v3694
        %v3720 = vpop.xlane.xlu0 %3719
        %3721 = vadd.xlane.f32.xlu0 %v3695
        %v3722 = vpop.xlane.xlu0 %3721
        %3723 = vadd.xlane.f32.xlu0 %v3696
        %v3724 = vpop.xlane.xlu0 %3723
        %3725 = vadd.xlane.f32.xlu0 %v3697
        %v3726 = vpop.xlane.xlu0 %3725
        %3727 = vadd.xlane.f32.xlu0 %v3698
        %v3728 = vpop.xlane.xlu0 %3727
        %3729 = vadd.xlane.f32.xlu0 %v3699
        %v3730 = vpop.xlane.xlu0 %3729
        %3731 = vadd.xlane.f32.xlu0 %v3700
        %v3732 = vpop.xlane.xlu0 %3731
        %v3733 = vadd.f32 %v3654, %v3702
        %v3734 = vadd.f32 %v3656, %v3704
        %v3735 = vadd.f32 %v3658, %v3706
        %v3736 = vadd.f32 %v3660, %v3708
        %v3737 = vadd.f32 %v3662, %v3710
        %v3738 = vadd.f32 %v3664, %v3712
        %v3739 = vadd.f32 %v3666, %v3714
        %v3740 = vadd.f32 %v3668, %v3716
        %v3741 = vadd.f32 %v3670, %v3718
        %v3742 = vadd.f32 %v3672, %v3720
        %v3743 = vadd.f32 %v3674, %v3722
        %v3744 = vadd.f32 %v3676, %v3724
        %v3745 = vadd.f32 %v3678, %v3726
        %v3746 = vadd.f32 %v3680, %v3728
        %v3747 = vadd.f32 %v3682, %v3730
        %v3748 = vadd.f32 %v3684, %v3732
        %v3749 = vmul.f32 %v3733, 0.00390625
        %v3750 = vmul.f32 %v3734, 0.00390625
        %v3751 = vmul.f32 %v3735, 0.00390625
        %v3752 = vmul.f32 %v3736, 0.00390625
        %v3753 = vmul.f32 %v3737, 0.00390625
        %v3754 = vmul.f32 %v3738, 0.00390625
        %v3755 = vmul.f32 %v3739, 0.00390625
        %v3756 = vmul.f32 %v3740, 0.00390625
        %v3757 = vmul.f32 %v3741, 0.00390625
        %v3758 = vmul.f32 %v3742, 0.00390625
        %v3759 = vmul.f32 %v3743, 0.00390625
        %v3760 = vmul.f32 %v3744, 0.00390625
        %v3761 = vmul.f32 %v3745, 0.00390625
        %v3762 = vmul.f32 %v3746, 0.00390625
        %v3763 = vmul.f32 %v3747, 0.00390625
        %v3764 = vmul.f32 %v3748, 0.00390625
        %v3765 = vmul.f32 %v3621, %v3621
        %v3766 = vmul.f32 %v3622, %v3622
        %v3767 = vmul.f32 %v3623, %v3623
        %v3768 = vmul.f32 %v3624, %v3624
        %v3769 = vmul.f32 %v3625, %v3625
        %v3770 = vmul.f32 %v3626, %v3626
        %v3771 = vmul.f32 %v3627, %v3627
        %v3772 = vmul.f32 %v3628, %v3628
        %v3773 = vmul.f32 %v3629, %v3629
        %v3774 = vmul.f32 %v3630, %v3630
        %v3775 = vmul.f32 %v3631, %v3631
        %v3776 = vmul.f32 %v3632, %v3632
        %v3777 = vmul.f32 %v3633, %v3633
        %v3778 = vmul.f32 %v3634, %v3634
        %v3779 = vmul.f32 %v3635, %v3635
        %v3780 = vmul.f32 %v3636, %v3636
        %v3781 = vsub.f32 %v3749, %v3765
        %v3782 = vsub.f32 %v3750, %v3766
        %v3783 = vsub.f32 %v3751, %v3767
        %v3784 = vsub.f32 %v3752, %v3768
        %v3785 = vsub.f32 %v3753, %v3769
        %v3786 = vsub.f32 %v3754, %v3770
        %v3787 = vsub.f32 %v3755, %v3771
        %v3788 = vsub.f32 %v3756, %v3772
        %v3789 = vsub.f32 %v3757, %v3773
        %v3790 = vsub.f32 %v3758, %v3774
        %v3791 = vsub.f32 %v3759, %v3775
        %v3792 = vsub.f32 %v3760, %v3776
        %v3793 = vsub.f32 %v3761, %v3777
        %v3794 = vsub.f32 %v3762, %v3778
        %v3795 = vsub.f32 %v3763, %v3779
        %v3796 = vsub.f32 %v3764, %v3780
        %v3797 = vadd.f32 %v3781, 1e-05
        %v3798 = vadd.f32 %v3782, 1e-05
        %v3799 = vadd.f32 %v3783, 1e-05
        %v3800 = vadd.f32 %v3784, 1e-05
        %v3801 = vadd.f32 %v3785, 1e-05
        %v3802 = vadd.f32 %v3786, 1e-05
        %v3803 = vadd.f32 %v3787, 1e-05
        %v3804 = vadd.f32 %v3788, 1e-05
        %v3805 = vadd.f32 %v3789, 1e-05
        %v3806 = vadd.f32 %v3790, 1e-05
        %v3807 = vadd.f32 %v3791, 1e-05
        %v3808 = vadd.f32 %v3792, 1e-05
        %v3809 = vadd.f32 %v3793, 1e-05
        %v3810 = vadd.f32 %v3794, 1e-05
        %v3811 = vadd.f32 %v3795, 1e-05
        %v3812 = vadd.f32 %v3796, 1e-05
        %v3813 = vrsqrt.pop %v3797
        %v3814 = vrsqrt.pop %v3798
        %v3815 = vrsqrt.pop %v3799
        %v3816 = vrsqrt.pop %v3800
        %v3817 = vrsqrt.pop %v3801
        %v3818 = vrsqrt.pop %v3802
        %v3819 = vrsqrt.pop %v3803
        %v3820 = vrsqrt.pop %v3804
        %v3821 = vrsqrt.pop %v3805
        %v3822 = vrsqrt.pop %v3806
        %v3823 = vrsqrt.pop %v3807
        %v3824 = vrsqrt.pop %v3808
        %v3825 = vrsqrt.pop %v3809
        %v3826 = vrsqrt.pop %v3810
        %v3827 = vrsqrt.pop %v3811
        %v3828 = vrsqrt.pop %v3812
        %v3829 = vsub.f32 %v2233, %v3621
        %v3830 = vsub.f32 %v2234, %v3622
        %v3831 = vsub.f32 %v2235, %v3623
        %v3832 = vsub.f32 %v2236, %v3624
        %v3833 = vsub.f32 %v2237, %v3625
        %v3834 = vsub.f32 %v2238, %v3626
        %v3835 = vsub.f32 %v2239, %v3627
        %v3836 = vsub.f32 %v2240, %v3628
        %v3837 = vsub.f32 %v2241, %v3629
        %v3838 = vsub.f32 %v2242, %v3630
        %v3839 = vsub.f32 %v2243, %v3631
        %v3840 = vsub.f32 %v2244, %v3632
        %v3841 = vsub.f32 %v2245, %v3633
        %v3842 = vsub.f32 %v2246, %v3634
        %v3843 = vsub.f32 %v2247, %v3635
        %v3844 = vsub.f32 %v2248, %v3636
        %v3845 = vmul.f32 %v3829, %v3813
        %v3846 = vmul.f32 %v3830, %v3814
        %v3847 = vmul.f32 %v3831, %v3815
        %v3848 = vmul.f32 %v3832, %v3816
        %v3849 = vmul.f32 %v3833, %v3817
        %v3850 = vmul.f32 %v3834, %v3818
        %v3851 = vmul.f32 %v3835, %v3819
        %v3852 = vmul.f32 %v3836, %v3820
        %v3853 = vmul.f32 %v3837, %v3821
        %v3854 = vmul.f32 %v3838, %v3822
        %v3855 = vmul.f32 %v3839, %v3823
        %v3856 = vmul.f32 %v3840, %v3824
        %v3857 = vmul.f32 %v3841, %v3825
        %v3858 = vmul.f32 %v3842, %v3826
        %v3859 = vmul.f32 %v3843, %v3827
        %v3860 = vmul.f32 %v3844, %v3828
        %v3861 = vpack.c.bf16 %v3846, %v3845
        %v3862 = vpack.c.bf16 %v3848, %v3847
        %v3863 = vpack.c.bf16 %v3850, %v3849
        %v3864 = vpack.c.bf16 %v3852, %v3851
        %v3865 = vpack.c.bf16 %v3854, %v3853
        %v3866 = vpack.c.bf16 %v3856, %v3855
        %v3867 = vpack.c.bf16 %v3858, %v3857
        %v3868 = vpack.c.bf16 %v3860, %v3859
        %v3869 = vsub.f32 %v3525, %v3621
        %v3870 = vsub.f32 %v3526, %v3622
        %v3871 = vsub.f32 %v3527, %v3623
        %v3872 = vsub.f32 %v3528, %v3624
        %v3873 = vsub.f32 %v3529, %v3625
        %v3874 = vsub.f32 %v3530, %v3626
        %v3875 = vsub.f32 %v3531, %v3627
        %v3876 = vsub.f32 %v3532, %v3628
        %v3877 = vsub.f32 %v3533, %v3629
        %v3878 = vsub.f32 %v3534, %v3630
        %v3879 = vsub.f32 %v3535, %v3631
        %v3880 = vsub.f32 %v3536, %v3632
        %v3881 = vsub.f32 %v3537, %v3633
        %v3882 = vsub.f32 %v3538, %v3634
        %v3883 = vsub.f32 %v3539, %v3635
        %v3884 = vsub.f32 %v3540, %v3636
        %v3885 = vmul.f32 %v3869, %v3813
        %v3886 = vmul.f32 %v3870, %v3814
        %v3887 = vmul.f32 %v3871, %v3815
        %v3888 = vmul.f32 %v3872, %v3816
        %v3889 = vmul.f32 %v3873, %v3817
        %v3890 = vmul.f32 %v3874, %v3818
        %v3891 = vmul.f32 %v3875, %v3819
        %v3892 = vmul.f32 %v3876, %v3820
        %v3893 = vmul.f32 %v3877, %v3821
        %v3894 = vmul.f32 %v3878, %v3822
        %v3895 = vmul.f32 %v3879, %v3823
        %v3896 = vmul.f32 %v3880, %v3824
        %v3897 = vmul.f32 %v3881, %v3825
        %v3898 = vmul.f32 %v3882, %v3826
        %v3899 = vmul.f32 %v3883, %v3827
        %v3900 = vmul.f32 %v3884, %v3828
        %v3901 = vpack.c.bf16 %v3886, %v3885
        %v3902 = vpack.c.bf16 %v3888, %v3887
        %v3903 = vpack.c.bf16 %v3890, %v3889
        %v3904 = vpack.c.bf16 %v3892, %v3891
        %v3905 = vpack.c.bf16 %v3894, %v3893
        %v3906 = vpack.c.bf16 %v3896, %v3895
        %v3907 = vpack.c.bf16 %v3898, %v3897
        %v3908 = vpack.c.bf16 %v3900, %v3899
        %v3909 = vld [vmem:[%s5] sm:$0xf]
        %v3910 = vld [vmem:[%s5 + $0x4] sm:$0xf]
        %v3911 = vld [vmem:[%s5 + $0x8] sm:$0xf]
        %v3912 = vld [vmem:[%s5 + $0xc] sm:$0xf]
        %v3913 = vld [vmem:[%s5 + $0x10] sm:$0xf]
        %v3914 = vld [vmem:[%s5 + $0x14] sm:$0xf]
        %v3915 = vld [vmem:[%s5 + $0x18] sm:$0xf]
        %v3916 = vld [vmem:[%s5 + $0x1c] sm:$0xf]
        %v3917 = vld [vmem:[%s5 + $0x20] sm:$0xf]
        %v3918 = vld [vmem:[%s5 + $0x24] sm:$0xf]
        %v3919 = vld [vmem:[%s5 + $0x28] sm:$0xf]
        %v3920 = vld [vmem:[%s5 + $0x2c] sm:$0xf]
        %v3921 = vld [vmem:[%s5 + $0x30] sm:$0xf]
        %v3922 = vld [vmem:[%s5 + $0x34] sm:$0xf]
        %v3923 = vld [vmem:[%s5 + $0x38] sm:$0xf]
        %v3924 = vld [vmem:[%s5 + $0x3c] sm:$0xf]
        %v3925 = vld [vmem:[%s6] sm:$0xf]
        %v3926 = vld [vmem:[%s6 + $0x4] sm:$0xf]
        %v3927 = vld [vmem:[%s6 + $0x8] sm:$0xf]
        %v3928 = vld [vmem:[%s6 + $0xc] sm:$0xf]
        %v3929 = vld [vmem:[%s6 + $0x10] sm:$0xf]
        %v3930 = vld [vmem:[%s6 + $0x14] sm:$0xf]
        %v3931 = vld [vmem:[%s6 + $0x18] sm:$0xf]
        %v3932 = vld [vmem:[%s6 + $0x1c] sm:$0xf]
        %v3933 = vld [vmem:[%s6 + $0x20] sm:$0xf]
        %v3934 = vld [vmem:[%s6 + $0x24] sm:$0xf]
        %v3935 = vld [vmem:[%s6 + $0x28] sm:$0xf]
        %v3936 = vld [vmem:[%s6 + $0x2c] sm:$0xf]
        %v3937 = vld [vmem:[%s6 + $0x30] sm:$0xf]
        %v3938 = vld [vmem:[%s6 + $0x34] sm:$0xf]
        %v3939 = vld [vmem:[%s6 + $0x38] sm:$0xf]
        %v3940 = vld [vmem:[%s6 + $0x3c] sm:$0xf]
        %v3957 = vunpack.c.l.b16 %v3925
        %v3958 = vunpack.c.l.b16 %v3926
        %v3959 = vunpack.c.l.b16 %v3927
        %v3960 = vunpack.c.l.b16 %v3928
        %v3961 = vunpack.c.l.b16 %v3929
        %v3962 = vunpack.c.l.b16 %v3930
        %v3963 = vunpack.c.l.b16 %v3931
        %v3964 = vunpack.c.l.b16 %v3932
        %v3965 = vunpack.c.l.b16 %v3933
        %v3966 = vunpack.c.l.b16 %v3934
        %v3967 = vunpack.c.l.b16 %v3935
        %v3968 = vunpack.c.l.b16 %v3936
        %v3969 = vunpack.c.l.b16 %v3937
        %v3970 = vunpack.c.l.b16 %v3938
        %v3971 = vunpack.c.l.b16 %v3939
        %v3972 = vunpack.c.l.b16 %v3940
        %v3973 = vpack.c.b16 %v3958, %v3957
        %v3974 = vpack.c.b16 %v3960, %v3959
        %v3975 = vpack.c.b16 %v3962, %v3961
        %v3976 = vpack.c.b16 %v3964, %v3963
        %v3977 = vpack.c.b16 %v3966, %v3965
        %v3978 = vpack.c.b16 %v3968, %v3967
        %v3979 = vpack.c.b16 %v3970, %v3969
        %v3980 = vpack.c.b16 %v3972, %v3971
        %3989 = vmatprep.subr.bf16.mxu0 0
        %3990 = vmatpush1.bf16.msra.mxu0 %v3973
        %3991 = vmatprep.subr.bf16.mxu0 0
        %3992 = vmatpush1.bf16.msra.mxu0 %v3974
        %3993 = vmatprep.subr.bf16.mxu0 0
        %3994 = vmatpush1.bf16.msra.mxu0 %v3975
        %3995 = vmatprep.subr.bf16.mxu0 0
        %3996 = vmatpush1.bf16.msra.mxu0 %v3976
        %3997 = vmatprep.subr.bf16.mxu0 0
        %3998 = vmatpush1.bf16.msra.mxu0 %v3977
        %3999 = vmatprep.subr.bf16.mxu0 0
        %4000 = vmatpush1.bf16.msra.mxu0 %v3978
        %4001 = vmatprep.subr.bf16.mxu0 0
        %4002 = vmatpush1.bf16.msra.mxu0 %v3979
        %4003 = vmatprep.subr.bf16.mxu0 0
        %4004 = vmatpush1.bf16.msra.mxu0 %v3980
        %4005 = vmatprep.subr.bf16.mxu0 0
        %4006 = vmatpush1.bf16.msra.mxu0 0
        %4007 = vmatprep.subr.bf16.mxu0 0
        %4008 = vmatpush1.bf16.msra.mxu0 0
        %4009 = vmatprep.subr.bf16.mxu0 0
        %4010 = vmatpush1.bf16.msra.mxu0 0
        %4011 = vmatprep.subr.bf16.mxu0 0
        %4012 = vmatpush1.bf16.msra.mxu0 0
        %4013 = vmatprep.subr.bf16.mxu0 0
        %4014 = vmatpush1.bf16.msra.mxu0 0
        %4015 = vmatprep.subr.bf16.mxu0 0
        %4016 = vmatpush1.bf16.msra.mxu0 0
        %4017 = vmatprep.subr.bf16.mxu0 0
        %4018 = vmatpush1.bf16.msra.mxu0 0
        %4019 = vmatprep.subr.bf16.mxu0 0
        %4020 = vmatpush1.bf16.msra.mxu0 0
        %4021 = vmatprep.mubr.bf16.mxu0 0
        %4022 = vmatmul.mubr.bf16.gmra.mrb[0].mxu0 %v3901
        %v4023 = vpop.f32.mrb[0].mxu0
        %v4024 = vadd.f32 0.0, %v4023
        %v4025 = vpop.f32.mrb[0].mxu0
        %v4026 = vpop.f32.mrb[0].mxu0
        %v4027 = vadd.f32 0.0, %v4026
        %v4028 = vpop.f32.mrb[0].mxu0
        %4029 = vmatprep.mubr.bf16.mxu0 0
        %4030 = vmatmul.mubr.bf16.gmra.mrb[0].mxu0 %v3902
        %v4031 = vpop.f32.mrb[0].mxu0
        %v4032 = vadd.f32 0.0, %v4031
        %v4033 = vpop.f32.mrb[0].mxu0
        %v4034 = vpop.f32.mrb[0].mxu0
        %v4035 = vadd.f32 0.0, %v4034
        %v4036 = vpop.f32.mrb[0].mxu0
        %4037 = vmatprep.mubr.bf16.mxu0 0
        %4038 = vmatmul.mubr.bf16.gmra.mrb[0].mxu0 %v3903
        %v4039 = vpop.f32.mrb[0].mxu0
        %v4040 = vadd.f32 0.0, %v4039
        %v4041 = vpop.f32.mrb[0].mxu0
        %v4042 = vpop.f32.mrb[0].mxu0
        %v4043 = vadd.f32 0.0, %v4042
        %v4044 = vpop.f32.mrb[0].mxu0
        %4045 = vmatprep.mubr.bf16.mxu0 0
        %4046 = vmatmul.mubr.bf16.gmra.mrb[0].mxu0 %v3904
        %v4047 = vpop.f32.mrb[0].mxu0
        %v4048 = vadd.f32 0.0, %v4047
        %v4049 = vpop.f32.mrb[0].mxu0
        %v4050 = vpop.f32.mrb[0].mxu0
        %v4051 = vadd.f32 0.0, %v4050
        %v4052 = vpop.f32.mrb[0].mxu0
        %4053 = vmatprep.mubr.bf16.mxu0 0
        %4054 = vmatmul.mubr.bf16.gmra.mrb[0].mxu0 %v3905
        %v4055 = vpop.f32.mrb[0].mxu0
        %v4056 = vadd.f32 0.0, %v4055
        %v4057 = vpop.f32.mrb[0].mxu0
        %v4058 = vpop.f32.mrb[0].mxu0
        %v4059 = vadd.f32 0.0, %v4058
        %v4060 = vpop.f32.mrb[0].mxu0
        %4061 = vmatprep.mubr.bf16.mxu0 0
        %4062 = vmatmul.mubr.bf16.gmra.mrb[0].mxu0 %v3906
        %v4063 = vpop.f32.mrb[0].mxu0
        %v4064 = vadd.f32 0.0, %v4063
        %v4065 = vpop.f32.mrb[0].mxu0
        %v4066 = vpop.f32.mrb[0].mxu0
        %v4067 = vadd.f32 0.0, %v4066
        %v4068 = vpop.f32.mrb[0].mxu0
        %4069 = vmatprep.mubr.bf16.mxu0 0
        %4070 = vmatmul.mubr.bf16.gmra.mrb[0].mxu0 %v3907
        %v4071 = vpop.f32.mrb[0].mxu0
        %v4072 = vadd.f32 0.0, %v4071
        %v4073 = vpop.f32.mrb[0].mxu0
        %v4074 = vpop.f32.mrb[0].mxu0
        %v4075 = vadd.f32 0.0, %v4074
        %v4076 = vpop.f32.mrb[0].mxu0
        %4077 = vmatprep.mubr.bf16.mxu0 0
        %4078 = vmatmul.mubr.bf16.gmra.mrb[0].mxu0 %v3908
        %v4079 = vpop.f32.mrb[0].mxu0
        %v4080 = vadd.f32 0.0, %v4079
        %v4081 = vpop.f32.mrb[0].mxu0
        %v4082 = vpop.f32.mrb[0].mxu0
        %v4083 = vadd.f32 0.0, %v4082
        %v4084 = vpop.f32.mrb[0].mxu0
        %4085 = vdwg.mxu0
        %v4102 = vunpack.c.l.b16 %v3909
        %v4103 = vunpack.c.l.b16 %v3910
        %v4104 = vunpack.c.l.b16 %v3911
        %v4105 = vunpack.c.l.b16 %v3912
        %v4106 = vunpack.c.l.b16 %v3913
        %v4107 = vunpack.c.l.b16 %v3914
        %v4108 = vunpack.c.l.b16 %v3915
        %v4109 = vunpack.c.l.b16 %v3916
        %v4110 = vunpack.c.l.b16 %v3917
        %v4111 = vunpack.c.l.b16 %v3918
        %v4112 = vunpack.c.l.b16 %v3919
        %v4113 = vunpack.c.l.b16 %v3920
        %v4114 = vunpack.c.l.b16 %v3921
        %v4115 = vunpack.c.l.b16 %v3922
        %v4116 = vunpack.c.l.b16 %v3923
        %v4117 = vunpack.c.l.b16 %v3924
        %v4118 = vpack.c.b16 %v4103, %v4102
        %v4119 = vpack.c.b16 %v4105, %v4104
        %v4120 = vpack.c.b16 %v4107, %v4106
        %v4121 = vpack.c.b16 %v4109, %v4108
        %v4122 = vpack.c.b16 %v4111, %v4110
        %v4123 = vpack.c.b16 %v4113, %v4112
        %v4124 = vpack.c.b16 %v4115, %v4114
        %v4125 = vpack.c.b16 %v4117, %v4116
        %4134 = vmatprep.subr.bf16.mxu0 0
        %4135 = vmatpush1.bf16.msra.mxu0 %v4118
        %4136 = vmatprep.subr.bf16.mxu0 0
        %4137 = vmatpush1.bf16.msra.mxu0 %v4119
        %4138 = vmatprep.subr.bf16.mxu0 0
        %4139 = vmatpush1.bf16.msra.mxu0 %v4120
        %4140 = vmatprep.subr.bf16.mxu0 0
        %4141 = vmatpush1.bf16.msra.mxu0 %v4121
        %4142 = vmatprep.subr.bf16.mxu0 0
        %4143 = vmatpush1.bf16.msra.mxu0 %v4122
        %4144 = vmatprep.subr.bf16.mxu0 0
        %4145 = vmatpush1.bf16.msra.mxu0 %v4123
        %4146 = vmatprep.subr.bf16.mxu0 0
        %4147 = vmatpush1.bf16.msra.mxu0 %v4124
        %4148 = vmatprep.subr.bf16.mxu0 0
        %4149 = vmatpush1.bf16.msra.mxu0 %v4125
        %4150 = vmatprep.subr.bf16.mxu0 0
        %4151 = vmatpush1.bf16.msra.mxu0 0
        %4152 = vmatprep.subr.bf16.mxu0 0
        %4153 = vmatpush1.bf16.msra.mxu0 0
        %4154 = vmatprep.subr.bf16.mxu0 0
        %4155 = vmatpush1.bf16.msra.mxu0 0
        %4156 = vmatprep.subr.bf16.mxu0 0
        %4157 = vmatpush1.bf16.msra.mxu0 0
        %4158 = vmatprep.subr.bf16.mxu0 0
        %4159 = vmatpush1.bf16.msra.mxu0 0
        %4160 = vmatprep.subr.bf16.mxu0 0
        %4161 = vmatpush1.bf16.msra.mxu0 0
        %4162 = vmatprep.subr.bf16.mxu0 0
        %4163 = vmatpush1.bf16.msra.mxu0 0
        %4164 = vmatprep.subr.bf16.mxu0 0
        %4165 = vmatpush1.bf16.msra.mxu0 0
        %4166 = vmatprep.mubr.bf16.mxu0 0
        %4167 = vmatmul.mubr.bf16.gmra.mrb[0].mxu0 %v3861
        %v4168 = vpop.f32.mrb[0].mxu0
        %v4169 = vadd.f32 %v4024, %v4168
        %v4170 = vpop.f32.mrb[0].mxu0
        %v4171 = vpop.f32.mrb[0].mxu0
        %v4172 = vadd.f32 %v4027, %v4171
        %v4173 = vpop.f32.mrb[0].mxu0
        %4174 = vmatprep.mubr.bf16.mxu0 0
        %4175 = vmatmul.mubr.bf16.gmra.mrb[0].mxu0 %v3862
        %v4176 = vpop.f32.mrb[0].mxu0
        %v4177 = vadd.f32 %v4032, %v4176
        %v4178 = vpop.f32.mrb[0].mxu0
        %v4179 = vpop.f32.mrb[0].mxu0
        %v4180 = vadd.f32 %v4035, %v4179
        %v4181 = vpop.f32.mrb[0].mxu0
        %4182 = vmatprep.mubr.bf16.mxu0 0
        %4183 = vmatmul.mubr.bf16.gmra.mrb[0].mxu0 %v3863
        %v4184 = vpop.f32.mrb[0].mxu0
        %v4185 = vadd.f32 %v4040, %v4184
        %v4186 = vpop.f32.mrb[0].mxu0
        %v4187 = vpop.f32.mrb[0].mxu0
        %v4188 = vadd.f32 %v4043, %v4187
        %v4189 = vpop.f32.mrb[0].mxu0
        %4190 = vmatprep.mubr.bf16.mxu0 0
        %4191 = vmatmul.mubr.bf16.gmra.mrb[0].mxu0 %v3864
        %v4192 = vpop.f32.mrb[0].mxu0
        %v4193 = vadd.f32 %v4048, %v4192
        %v4194 = vpop.f32.mrb[0].mxu0
        %v4195 = vpop.f32.mrb[0].mxu0
        %v4196 = vadd.f32 %v4051, %v4195
        %v4197 = vpop.f32.mrb[0].mxu0
        %4198 = vmatprep.mubr.bf16.mxu0 0
        %4199 = vmatmul.mubr.bf16.gmra.mrb[0].mxu0 %v3865
        %v4200 = vpop.f32.mrb[0].mxu0
        %v4201 = vadd.f32 %v4056, %v4200
        %v4202 = vpop.f32.mrb[0].mxu0
        %v4203 = vpop.f32.mrb[0].mxu0
        %v4204 = vadd.f32 %v4059, %v4203
        %v4205 = vpop.f32.mrb[0].mxu0
        %4206 = vmatprep.mubr.bf16.mxu0 0
        %4207 = vmatmul.mubr.bf16.gmra.mrb[0].mxu0 %v3866
        %v4208 = vpop.f32.mrb[0].mxu0
        %v4209 = vadd.f32 %v4064, %v4208
        %v4210 = vpop.f32.mrb[0].mxu0
        %v4211 = vpop.f32.mrb[0].mxu0
        %v4212 = vadd.f32 %v4067, %v4211
        %v4213 = vpop.f32.mrb[0].mxu0
        %4214 = vmatprep.mubr.bf16.mxu0 0
        %4215 = vmatmul.mubr.bf16.gmra.mrb[0].mxu0 %v3867
        %v4216 = vpop.f32.mrb[0].mxu0
        %v4217 = vadd.f32 %v4072, %v4216
        %v4218 = vpop.f32.mrb[0].mxu0
        %v4219 = vpop.f32.mrb[0].mxu0
        %v4220 = vadd.f32 %v4075, %v4219
        %v4221 = vpop.f32.mrb[0].mxu0
        %4222 = vmatprep.mubr.bf16.mxu0 0
        %4223 = vmatmul.mubr.bf16.gmra.mrb[0].mxu0 %v3868
        %v4224 = vpop.f32.mrb[0].mxu0
        %v4225 = vadd.f32 %v4080, %v4224
        %v4226 = vpop.f32.mrb[0].mxu0
        %v4227 = vpop.f32.mrb[0].mxu0
        %v4228 = vadd.f32 %v4083, %v4227
        %v4229 = vpop.f32.mrb[0].mxu0
        %4230 = vdwg.mxu0
        %v4231 = vld [vmem:[%s7] sm:$0x1]
        %v4233 = vlaneseq
        %v4234 = vshrl.u32 %v4233, 7
        %v4235 = vsub.s32 0, %v4234
        %v4236 = vrot.slane %v4231, %v4235
        %v4238 = vadd.f32 %v4169, %v4236
        %v4239 = vadd.f32 %v4172, %v4236
        %v4240 = vadd.f32 %v4177, %v4236
        %v4241 = vadd.f32 %v4180, %v4236
        %v4242 = vadd.f32 %v4185, %v4236
        %v4243 = vadd.f32 %v4188, %v4236
        %v4244 = vadd.f32 %v4193, %v4236
        %v4245 = vadd.f32 %v4196, %v4236
        %v4246 = vadd.f32 %v4201, %v4236
        %v4247 = vadd.f32 %v4204, %v4236
        %v4248 = vadd.f32 %v4209, %v4236
        %v4249 = vadd.f32 %v4212, %v4236
        %v4250 = vadd.f32 %v4217, %v4236
        %v4251 = vadd.f32 %v4220, %v4236
        %v4252 = vadd.f32 %v4225, %v4236
        %v4253 = vadd.f32 %v4228, %v4236
        %4254 = vadd.xlane.f32.xlu0 %v4238
        %v4255 = vpop.xlane.xlu0 %4254
        %4256 = vadd.xlane.f32.xlu0 %v4239
        %v4257 = vpop.xlane.xlu0 %4256
        %4258 = vadd.xlane.f32.xlu0 %v4240
        %v4259 = vpop.xlane.xlu0 %4258
        %4260 = vadd.xlane.f32.xlu0 %v4241
        %v4261 = vpop.xlane.xlu0 %4260
        %4262 = vadd.xlane.f32.xlu0 %v4242
        %v4263 = vpop.xlane.xlu0 %4262
        %4264 = vadd.xlane.f32.xlu0 %v4243
        %v4265 = vpop.xlane.xlu0 %4264
        %4266 = vadd.xlane.f32.xlu0 %v4244
        %v4267 = vpop.xlane.xlu0 %4266
        %4268 = vadd.xlane.f32.xlu0 %v4245
        %v4269 = vpop.xlane.xlu0 %4268
        %4270 = vadd.xlane.f32.xlu0 %v4246
        %v4271 = vpop.xlane.xlu0 %4270
        %4272 = vadd.xlane.f32.xlu0 %v4247
        %v4273 = vpop.xlane.xlu0 %4272
        %4274 = vadd.xlane.f32.xlu0 %v4248
        %v4275 = vpop.xlane.xlu0 %4274
        %4276 = vadd.xlane.f32.xlu0 %v4249
        %v4277 = vpop.xlane.xlu0 %4276
        %4278 = vadd.xlane.f32.xlu0 %v4250
        %v4279 = vpop.xlane.xlu0 %4278
        %4280 = vadd.xlane.f32.xlu0 %v4251
        %v4281 = vpop.xlane.xlu0 %4280
        %4282 = vadd.xlane.f32.xlu0 %v4252
        %v4283 = vpop.xlane.xlu0 %4282
        %4284 = vadd.xlane.f32.xlu0 %v4253
        %v4285 = vpop.xlane.xlu0 %4284
        %v4286 = vmul.f32 %v4255, %v529
        %v4287 = vmul.f32 %v4257, %v529
        %v4288 = vmul.f32 %v4259, %v529
        %v4289 = vmul.f32 %v4261, %v529
        %v4290 = vmul.f32 %v4263, %v529
        %v4291 = vmul.f32 %v4265, %v529
        %v4292 = vmul.f32 %v4267, %v529
        %v4293 = vmul.f32 %v4269, %v529
        %v4294 = vmul.f32 %v4271, %v529
        %v4295 = vmul.f32 %v4273, %v529
        %v4296 = vmul.f32 %v4275, %v529
        %v4297 = vmul.f32 %v4277, %v529
        %v4298 = vmul.f32 %v4279, %v529
        %v4299 = vmul.f32 %v4281, %v529
        %v4300 = vmul.f32 %v4283, %v529
        %v4301 = vmul.f32 %v4285, %v529
        %v4302 = vmul.f32 %v4238, %v4238
        %v4303 = vmul.f32 %v4239, %v4239
        %v4304 = vmul.f32 %v4240, %v4240
        %v4305 = vmul.f32 %v4241, %v4241
        %v4306 = vmul.f32 %v4242, %v4242
        %v4307 = vmul.f32 %v4243, %v4243
        %v4308 = vmul.f32 %v4244, %v4244
        %v4309 = vmul.f32 %v4245, %v4245
        %v4310 = vmul.f32 %v4246, %v4246
        %v4311 = vmul.f32 %v4247, %v4247
        %v4312 = vmul.f32 %v4248, %v4248
        %v4313 = vmul.f32 %v4249, %v4249
        %v4314 = vmul.f32 %v4250, %v4250
        %v4315 = vmul.f32 %v4251, %v4251
        %v4316 = vmul.f32 %v4252, %v4252
        %v4317 = vmul.f32 %v4253, %v4253
        %4318 = vadd.xlane.f32.xlu0 %v4302
        %v4319 = vpop.xlane.xlu0 %4318
        %4320 = vadd.xlane.f32.xlu0 %v4303
        %v4321 = vpop.xlane.xlu0 %4320
        %4322 = vadd.xlane.f32.xlu0 %v4304
        %v4323 = vpop.xlane.xlu0 %4322
        %4324 = vadd.xlane.f32.xlu0 %v4305
        %v4325 = vpop.xlane.xlu0 %4324
        %4326 = vadd.xlane.f32.xlu0 %v4306
        %v4327 = vpop.xlane.xlu0 %4326
        %4328 = vadd.xlane.f32.xlu0 %v4307
        %v4329 = vpop.xlane.xlu0 %4328
        %4330 = vadd.xlane.f32.xlu0 %v4308
        %v4331 = vpop.xlane.xlu0 %4330
        %4332 = vadd.xlane.f32.xlu0 %v4309
        %v4333 = vpop.xlane.xlu0 %4332
        %4334 = vadd.xlane.f32.xlu0 %v4310
        %v4335 = vpop.xlane.xlu0 %4334
        %4336 = vadd.xlane.f32.xlu0 %v4311
        %v4337 = vpop.xlane.xlu0 %4336
        %4338 = vadd.xlane.f32.xlu0 %v4312
        %v4339 = vpop.xlane.xlu0 %4338
        %4340 = vadd.xlane.f32.xlu0 %v4313
        %v4341 = vpop.xlane.xlu0 %4340
        %4342 = vadd.xlane.f32.xlu0 %v4314
        %v4343 = vpop.xlane.xlu0 %4342
        %4344 = vadd.xlane.f32.xlu0 %v4315
        %v4345 = vpop.xlane.xlu0 %4344
        %4346 = vadd.xlane.f32.xlu0 %v4316
        %v4347 = vpop.xlane.xlu0 %4346
        %4348 = vadd.xlane.f32.xlu0 %v4317
        %v4349 = vpop.xlane.xlu0 %4348
        %v4350 = vmul.f32 %v4319, %v529
        %v4351 = vmul.f32 %v4321, %v529
        %v4352 = vmul.f32 %v4323, %v529
        %v4353 = vmul.f32 %v4325, %v529
        %v4354 = vmul.f32 %v4327, %v529
        %v4355 = vmul.f32 %v4329, %v529
        %v4356 = vmul.f32 %v4331, %v529
        %v4357 = vmul.f32 %v4333, %v529
        %v4358 = vmul.f32 %v4335, %v529
        %v4359 = vmul.f32 %v4337, %v529
        %v4360 = vmul.f32 %v4339, %v529
        %v4361 = vmul.f32 %v4341, %v529
        %v4362 = vmul.f32 %v4343, %v529
        %v4363 = vmul.f32 %v4345, %v529
        %v4364 = vmul.f32 %v4347, %v529
        %v4365 = vmul.f32 %v4349, %v529
        %v4366 = vmul.f32 %v4286, %v4286
        %v4367 = vmul.f32 %v4287, %v4287
        %v4368 = vmul.f32 %v4288, %v4288
        %v4369 = vmul.f32 %v4289, %v4289
        %v4370 = vmul.f32 %v4290, %v4290
        %v4371 = vmul.f32 %v4291, %v4291
        %v4372 = vmul.f32 %v4292, %v4292
        %v4373 = vmul.f32 %v4293, %v4293
        %v4374 = vmul.f32 %v4294, %v4294
        %v4375 = vmul.f32 %v4295, %v4295
        %v4376 = vmul.f32 %v4296, %v4296
        %v4377 = vmul.f32 %v4297, %v4297
        %v4378 = vmul.f32 %v4298, %v4298
        %v4379 = vmul.f32 %v4299, %v4299
        %v4380 = vmul.f32 %v4300, %v4300
        %v4381 = vmul.f32 %v4301, %v4301
        %v4382 = vsub.f32 %v4350, %v4366
        %v4383 = vsub.f32 %v4351, %v4367
        %v4384 = vsub.f32 %v4352, %v4368
        %v4385 = vsub.f32 %v4353, %v4369
        %v4386 = vsub.f32 %v4354, %v4370
        %v4387 = vsub.f32 %v4355, %v4371
        %v4388 = vsub.f32 %v4356, %v4372
        %v4389 = vsub.f32 %v4357, %v4373
        %v4390 = vsub.f32 %v4358, %v4374
        %v4391 = vsub.f32 %v4359, %v4375
        %v4392 = vsub.f32 %v4360, %v4376
        %v4393 = vsub.f32 %v4361, %v4377
        %v4394 = vsub.f32 %v4362, %v4378
        %v4395 = vsub.f32 %v4363, %v4379
        %v4396 = vsub.f32 %v4364, %v4380
        %v4397 = vsub.f32 %v4365, %v4381
        %v4398 = vsub.f32 %v4238, %v4286
        %v4399 = vsub.f32 %v4239, %v4287
        %v4400 = vsub.f32 %v4240, %v4288
        %v4401 = vsub.f32 %v4241, %v4289
        %v4402 = vsub.f32 %v4242, %v4290
        %v4403 = vsub.f32 %v4243, %v4291
        %v4404 = vsub.f32 %v4244, %v4292
        %v4405 = vsub.f32 %v4245, %v4293
        %v4406 = vsub.f32 %v4246, %v4294
        %v4407 = vsub.f32 %v4247, %v4295
        %v4408 = vsub.f32 %v4248, %v4296
        %v4409 = vsub.f32 %v4249, %v4297
        %v4410 = vsub.f32 %v4250, %v4298
        %v4411 = vsub.f32 %v4251, %v4299
        %v4412 = vsub.f32 %v4252, %v4300
        %v4413 = vsub.f32 %v4253, %v4301
        %v4414 = vadd.f32 %v4382, 1e-05
        %v4415 = vadd.f32 %v4383, 1e-05
        %v4416 = vadd.f32 %v4384, 1e-05
        %v4417 = vadd.f32 %v4385, 1e-05
        %v4418 = vadd.f32 %v4386, 1e-05
        %v4419 = vadd.f32 %v4387, 1e-05
        %v4420 = vadd.f32 %v4388, 1e-05
        %v4421 = vadd.f32 %v4389, 1e-05
        %v4422 = vadd.f32 %v4390, 1e-05
        %v4423 = vadd.f32 %v4391, 1e-05
        %v4424 = vadd.f32 %v4392, 1e-05
        %v4425 = vadd.f32 %v4393, 1e-05
        %v4426 = vadd.f32 %v4394, 1e-05
        %v4427 = vadd.f32 %v4395, 1e-05
        %v4428 = vadd.f32 %v4396, 1e-05
        %v4429 = vadd.f32 %v4397, 1e-05
        %v4430 = vrsqrt.pop %v4414
        %v4431 = vrsqrt.pop %v4415
        %v4432 = vrsqrt.pop %v4416
        %v4433 = vrsqrt.pop %v4417
        %v4434 = vrsqrt.pop %v4418
        %v4435 = vrsqrt.pop %v4419
        %v4436 = vrsqrt.pop %v4420
        %v4437 = vrsqrt.pop %v4421
        %v4438 = vrsqrt.pop %v4422
        %v4439 = vrsqrt.pop %v4423
        %v4440 = vrsqrt.pop %v4424
        %v4441 = vrsqrt.pop %v4425
        %v4442 = vrsqrt.pop %v4426
        %v4443 = vrsqrt.pop %v4427
        %v4444 = vrsqrt.pop %v4428
        %v4445 = vrsqrt.pop %v4429
        %v4446 = vmul.f32 %v4398, %v4430
        %v4447 = vmul.f32 %v4399, %v4431
        %v4448 = vmul.f32 %v4400, %v4432
        %v4449 = vmul.f32 %v4401, %v4433
        %v4450 = vmul.f32 %v4402, %v4434
        %v4451 = vmul.f32 %v4403, %v4435
        %v4452 = vmul.f32 %v4404, %v4436
        %v4453 = vmul.f32 %v4405, %v4437
        %v4454 = vmul.f32 %v4406, %v4438
        %v4455 = vmul.f32 %v4407, %v4439
        %v4456 = vmul.f32 %v4408, %v4440
        %v4457 = vmul.f32 %v4409, %v4441
        %v4458 = vmul.f32 %v4410, %v4442
        %v4459 = vmul.f32 %v4411, %v4443
        %v4460 = vmul.f32 %v4412, %v4444
        %v4461 = vmul.f32 %v4413, %v4445
        %v4462 = vpack.c.bf16 %v4447, %v4446
        %v4463 = vpack.c.bf16 %v4449, %v4448
        %v4464 = vpack.c.bf16 %v4451, %v4450
        %v4465 = vpack.c.bf16 %v4453, %v4452
        %v4466 = vpack.c.bf16 %v4455, %v4454
        %v4467 = vpack.c.bf16 %v4457, %v4456
        %v4468 = vpack.c.bf16 %v4459, %v4458
        %v4469 = vpack.c.bf16 %v4461, %v4460
        %v4470 = vld [vmem:[%s8] sm:$0xff]
        %v4471 = vld [vmem:[%s8 + $0x8] sm:$0xff]
        %v4472 = vld [vmem:[%s8 + $0x10] sm:$0xff]
        %v4473 = vld [vmem:[%s8 + $0x18] sm:$0xff]
        %v4474 = vld [vmem:[%s8 + $0x20] sm:$0xff]
        %v4475 = vld [vmem:[%s8 + $0x28] sm:$0xff]
        %v4476 = vld [vmem:[%s8 + $0x30] sm:$0xff]
        %v4477 = vld [vmem:[%s8 + $0x38] sm:$0xff]
        %v4478 = vld [vmem:[%s8 + $0x40] sm:$0xff]
        %v4479 = vld [vmem:[%s8 + $0x48] sm:$0xff]
        %v4480 = vld [vmem:[%s8 + $0x50] sm:$0xff]
        %v4481 = vld [vmem:[%s8 + $0x58] sm:$0xff]
        %v4482 = vld [vmem:[%s8 + $0x60] sm:$0xff]
        %v4483 = vld [vmem:[%s8 + $0x68] sm:$0xff]
        %v4484 = vld [vmem:[%s8 + $0x70] sm:$0xff]
        %v4485 = vld [vmem:[%s8 + $0x78] sm:$0xff]
        %v4486 = vld [vmem:[%s8 + $0x80] sm:$0xff]
        %v4487 = vld [vmem:[%s8 + $0x88] sm:$0xff]
        %v4488 = vld [vmem:[%s8 + $0x90] sm:$0xff]
        %v4489 = vld [vmem:[%s8 + $0x98] sm:$0xff]
        %v4490 = vld [vmem:[%s8 + $0xa0] sm:$0xff]
        %v4491 = vld [vmem:[%s8 + $0xa8] sm:$0xff]
        %v4492 = vld [vmem:[%s8 + $0xb0] sm:$0xff]
        %v4493 = vld [vmem:[%s8 + $0xb8] sm:$0xff]
        %v4494 = vld [vmem:[%s8 + $0xc0] sm:$0xff]
        %v4495 = vld [vmem:[%s8 + $0xc8] sm:$0xff]
        %v4496 = vld [vmem:[%s8 + $0xd0] sm:$0xff]
        %v4497 = vld [vmem:[%s8 + $0xd8] sm:$0xff]
        %v4498 = vld [vmem:[%s8 + $0xe0] sm:$0xff]
        %v4499 = vld [vmem:[%s8 + $0xe8] sm:$0xff]
        %v4500 = vld [vmem:[%s8 + $0xf0] sm:$0xff]
        %v4501 = vld [vmem:[%s8 + $0xf8] sm:$0xff]
        %v4502 = vld [vmem:[%s9] sm:$0xf]
        %v4504 = vlaneseq
        %v4505 = vshrl.u32 %v4504, 7
        %v4506 = vsub.s32 0, %v4505
        %v4507 = vrot.slane %v4502, %v4506
        %v4508 = vlaneseq
        %v4509 = vshrl.u32 %v4508, 7
        %v4510 = vsub.s32 1, %v4509
        %v4511 = vrot.slane %v4502, %v4510
        %v4512 = vlaneseq
        %v4513 = vshrl.u32 %v4512, 7
        %v4514 = vsub.s32 2, %v4513
        %v4515 = vrot.slane %v4502, %v4514
        %v4516 = vlaneseq
        %v4517 = vshrl.u32 %v4516, 7
        %v4518 = vsub.s32 3, %v4517
        %v4519 = vrot.slane %v4502, %v4518
        %v4556 = vunpack.c.l.b16 %v4470
        %v4557 = vunpack.c.h.b16 %v4470
        %v4558 = vunpack.c.l.b16 %v4471
        %v4559 = vunpack.c.h.b16 %v4471
        %v4560 = vunpack.c.l.b16 %v4472
        %v4561 = vunpack.c.h.b16 %v4472
        %v4562 = vunpack.c.l.b16 %v4473
        %v4563 = vunpack.c.h.b16 %v4473
        %v4564 = vunpack.c.l.b16 %v4474
        %v4565 = vunpack.c.h.b16 %v4474
        %v4566 = vunpack.c.l.b16 %v4475
        %v4567 = vunpack.c.h.b16 %v4475
        %v4568 = vunpack.c.l.b16 %v4476
        %v4569 = vunpack.c.h.b16 %v4476
        %v4570 = vunpack.c.l.b16 %v4477
        %v4571 = vunpack.c.h.b16 %v4477
        %v4572 = vunpack.c.l.b16 %v4478
        %v4573 = vunpack.c.h.b16 %v4478
        %v4574 = vunpack.c.l.b16 %v4479
        %v4575 = vunpack.c.h.b16 %v4479
        %v4576 = vunpack.c.l.b16 %v4480
        %v4577 = vunpack.c.h.b16 %v4480
        %v4578 = vunpack.c.l.b16 %v4481
        %v4579 = vunpack.c.h.b16 %v4481
        %v4580 = vunpack.c.l.b16 %v4482
        %v4581 = vunpack.c.h.b16 %v4482
        %v4582 = vunpack.c.l.b16 %v4483
        %v4583 = vunpack.c.h.b16 %v4483
        %v4584 = vunpack.c.l.b16 %v4484
        %v4585 = vunpack.c.h.b16 %v4484
        %v4586 = vunpack.c.l.b16 %v4485
        %v4587 = vunpack.c.h.b16 %v4485
        %v4588 = vunpack.c.l.b16 %v4486
        %v4589 = vunpack.c.h.b16 %v4486
        %v4590 = vunpack.c.l.b16 %v4487
        %v4591 = vunpack.c.h.b16 %v4487
        %v4592 = vunpack.c.l.b16 %v4488
        %v4593 = vunpack.c.h.b16 %v4488
        %v4594 = vunpack.c.l.b16 %v4489
        %v4595 = vunpack.c.h.b16 %v4489
        %v4596 = vunpack.c.l.b16 %v4490
        %v4597 = vunpack.c.h.b16 %v4490
        %v4598 = vunpack.c.l.b16 %v4491
        %v4599 = vunpack.c.h.b16 %v4491
        %v4600 = vunpack.c.l.b16 %v4492
        %v4601 = vunpack.c.h.b16 %v4492
        %v4602 = vunpack.c.l.b16 %v4493
        %v4603 = vunpack.c.h.b16 %v4493
        %v4604 = vunpack.c.l.b16 %v4494
        %v4605 = vunpack.c.h.b16 %v4494
        %v4606 = vunpack.c.l.b16 %v4495
        %v4607 = vunpack.c.h.b16 %v4495
        %v4608 = vunpack.c.l.b16 %v4496
        %v4609 = vunpack.c.h.b16 %v4496
        %v4610 = vunpack.c.l.b16 %v4497
        %v4611 = vunpack.c.h.b16 %v4497
        %v4612 = vunpack.c.l.b16 %v4498
        %v4613 = vunpack.c.h.b16 %v4498
        %v4614 = vunpack.c.l.b16 %v4499
        %v4615 = vunpack.c.h.b16 %v4499
        %v4616 = vunpack.c.l.b16 %v4500
        %v4617 = vunpack.c.h.b16 %v4500
        %v4618 = vunpack.c.l.b16 %v4501
        %v4619 = vunpack.c.h.b16 %v4501
        %v4620 = vpack.c.b16 %v4560, %v4556
        %v4621 = vpack.c.b16 %v4561, %v4557
        %v4622 = vpack.c.b16 %v4562, %v4558
        %v4623 = vpack.c.b16 %v4563, %v4559
        %v4624 = vpack.c.b16 %v4568, %v4564
        %v4625 = vpack.c.b16 %v4569, %v4565
        %v4626 = vpack.c.b16 %v4570, %v4566
        %v4627 = vpack.c.b16 %v4571, %v4567
        %v4628 = vpack.c.b16 %v4576, %v4572
        %v4629 = vpack.c.b16 %v4577, %v4573
        %v4630 = vpack.c.b16 %v4578, %v4574
        %v4631 = vpack.c.b16 %v4579, %v4575
        %v4632 = vpack.c.b16 %v4584, %v4580
        %v4633 = vpack.c.b16 %v4585, %v4581
        %v4634 = vpack.c.b16 %v4586, %v4582
        %v4635 = vpack.c.b16 %v4587, %v4583
        %v4636 = vpack.c.b16 %v4592, %v4588
        %v4637 = vpack.c.b16 %v4593, %v4589
        %v4638 = vpack.c.b16 %v4594, %v4590
        %v4639 = vpack.c.b16 %v4595, %v4591
        %v4640 = vpack.c.b16 %v4600, %v4596
        %v4641 = vpack.c.b16 %v4601, %v4597
        %v4642 = vpack.c.b16 %v4602, %v4598
        %v4643 = vpack.c.b16 %v4603, %v4599
        %v4644 = vpack.c.b16 %v4608, %v4604
        %v4645 = vpack.c.b16 %v4609, %v4605
        %v4646 = vpack.c.b16 %v4610, %v4606
        %v4647 = vpack.c.b16 %v4611, %v4607
        %v4648 = vpack.c.b16 %v4616, %v4612
        %v4649 = vpack.c.b16 %v4617, %v4613
        %v4650 = vpack.c.b16 %v4618, %v4614
        %v4651 = vpack.c.b16 %v4619, %v4615
        %4684 = vmatprep.subr.bf16.mxu0 %v4621
        %4685 = vmatpush1.bf16.msra.mxu0 %v4620
        %4686 = vmatprep.subr.bf16.mxu0 %v4625
        %4687 = vmatpush1.bf16.msra.mxu0 %v4624
        %4688 = vmatprep.subr.bf16.mxu0 %v4629
        %4689 = vmatpush1.bf16.msra.mxu0 %v4628
        %4690 = vmatprep.subr.bf16.mxu0 %v4633
        %4691 = vmatpush1.bf16.msra.mxu0 %v4632
        %4692 = vmatprep.subr.bf16.mxu0 %v4637
        %4693 = vmatpush1.bf16.msra.mxu0 %v4636
        %4694 = vmatprep.subr.bf16.mxu0 %v4641
        %4695 = vmatpush1.bf16.msra.mxu0 %v4640
        %4696 = vmatprep.subr.bf16.mxu0 %v4645
        %4697 = vmatpush1.bf16.msra.mxu0 %v4644
        %4698 = vmatprep.subr.bf16.mxu0 %v4649
        %4699 = vmatpush1.bf16.msra.mxu0 %v4648
        %4700 = vmatprep.subr.bf16.mxu0 0
        %4701 = vmatpush1.bf16.msra.mxu0 0
        %4702 = vmatprep.subr.bf16.mxu0 0
        %4703 = vmatpush1.bf16.msra.mxu0 0
        %4704 = vmatprep.subr.bf16.mxu0 0
        %4705 = vmatpush1.bf16.msra.mxu0 0
        %4706 = vmatprep.subr.bf16.mxu0 0
        %4707 = vmatpush1.bf16.msra.mxu0 0
        %4708 = vmatprep.subr.bf16.mxu0 0
        %4709 = vmatpush1.bf16.msra.mxu0 0
        %4710 = vmatprep.subr.bf16.mxu0 0
        %4711 = vmatpush1.bf16.msra.mxu0 0
        %4712 = vmatprep.subr.bf16.mxu0 0
        %4713 = vmatpush1.bf16.msra.mxu0 0
        %4714 = vmatprep.subr.bf16.mxu0 0
        %4715 = vmatpush1.bf16.msra.mxu0 0
        %4716 = vmatprep.mubr.bf16.mxu0 0
        %4717 = vmatmul.mubr.bf16.gmra.mrb[0].mxu0 %v4462
        %v4718 = vpop.f32.mrb[0].mxu0
        %v4719 = vadd.f32 %v4507, %v4718
        %v4720 = vpop.f32.mrb[0].mxu0
        %v4721 = vadd.f32 %v4511, %v4720
        %v4722 = vpop.f32.mrb[0].mxu0
        %v4723 = vadd.f32 %v4507, %v4722
        %v4724 = vpop.f32.mrb[0].mxu0
        %v4725 = vadd.f32 %v4511, %v4724
        %4726 = vmatprep.mubr.bf16.mxu0 0
        %4727 = vmatmul.mubr.bf16.gmra.mrb[0].mxu0 %v4463
        %v4728 = vpop.f32.mrb[0].mxu0
        %v4729 = vadd.f32 %v4507, %v4728
        %v4730 = vpop.f32.mrb[0].mxu0
        %v4731 = vadd.f32 %v4511, %v4730
        %v4732 = vpop.f32.mrb[0].mxu0
        %v4733 = vadd.f32 %v4507, %v4732
        %v4734 = vpop.f32.mrb[0].mxu0
        %v4735 = vadd.f32 %v4511, %v4734
        %4736 = vmatprep.mubr.bf16.mxu0 0
        %4737 = vmatmul.mubr.bf16.gmra.mrb[0].mxu0 %v4464
        %v4738 = vpop.f32.mrb[0].mxu0
        %v4739 = vadd.f32 %v4507, %v4738
        %v4740 = vpop.f32.mrb[0].mxu0
        %v4741 = vadd.f32 %v4511, %v4740
        %v4742 = vpop.f32.mrb[0].mxu0
        %v4743 = vadd.f32 %v4507, %v4742
        %v4744 = vpop.f32.mrb[0].mxu0
        %v4745 = vadd.f32 %v4511, %v4744
        %4746 = vmatprep.mubr.bf16.mxu0 0
        %4747 = vmatmul.mubr.bf16.gmra.mrb[0].mxu0 %v4465
        %v4748 = vpop.f32.mrb[0].mxu0
        %v4749 = vadd.f32 %v4507, %v4748
        %v4750 = vpop.f32.mrb[0].mxu0
        %v4751 = vadd.f32 %v4511, %v4750
        %v4752 = vpop.f32.mrb[0].mxu0
        %v4753 = vadd.f32 %v4507, %v4752
        %v4754 = vpop.f32.mrb[0].mxu0
        %v4755 = vadd.f32 %v4511, %v4754
        %4756 = vmatprep.mubr.bf16.mxu0 0
        %4757 = vmatmul.mubr.bf16.gmra.mrb[0].mxu0 %v4466
        %v4758 = vpop.f32.mrb[0].mxu0
        %v4759 = vadd.f32 %v4507, %v4758
        %v4760 = vpop.f32.mrb[0].mxu0
        %v4761 = vadd.f32 %v4511, %v4760
        %v4762 = vpop.f32.mrb[0].mxu0
        %v4763 = vadd.f32 %v4507, %v4762
        %v4764 = vpop.f32.mrb[0].mxu0
        %v4765 = vadd.f32 %v4511, %v4764
        %4766 = vmatprep.mubr.bf16.mxu0 0
        %4767 = vmatmul.mubr.bf16.gmra.mrb[0].mxu0 %v4467
        %v4768 = vpop.f32.mrb[0].mxu0
        %v4769 = vadd.f32 %v4507, %v4768
        %v4770 = vpop.f32.mrb[0].mxu0
        %v4771 = vadd.f32 %v4511, %v4770
        %v4772 = vpop.f32.mrb[0].mxu0
        %v4773 = vadd.f32 %v4507, %v4772
        %v4774 = vpop.f32.mrb[0].mxu0
        %v4775 = vadd.f32 %v4511, %v4774
        %4776 = vmatprep.mubr.bf16.mxu0 0
        %4777 = vmatmul.mubr.bf16.gmra.mrb[0].mxu0 %v4468
        %v4778 = vpop.f32.mrb[0].mxu0
        %v4779 = vadd.f32 %v4507, %v4778
        %v4780 = vpop.f32.mrb[0].mxu0
        %v4781 = vadd.f32 %v4511, %v4780
        %v4782 = vpop.f32.mrb[0].mxu0
        %v4783 = vadd.f32 %v4507, %v4782
        %v4784 = vpop.f32.mrb[0].mxu0
        %v4785 = vadd.f32 %v4511, %v4784
        %4786 = vmatprep.mubr.bf16.mxu0 0
        %4787 = vmatmul.mubr.bf16.gmra.mrb[0].mxu0 %v4469
        %v4788 = vpop.f32.mrb[0].mxu0
        %v4789 = vadd.f32 %v4507, %v4788
        %v4790 = vpop.f32.mrb[0].mxu0
        %v4791 = vadd.f32 %v4511, %v4790
        %v4792 = vpop.f32.mrb[0].mxu0
        %v4793 = vadd.f32 %v4507, %v4792
        %v4794 = vpop.f32.mrb[0].mxu0
        %v4795 = vadd.f32 %v4511, %v4794
        %4796 = vdwg.mxu0
        %4797 = vmatprep.subr.bf16.mxu0 %v4623
        %4798 = vmatpush1.bf16.msra.mxu0 %v4622
        %4799 = vmatprep.subr.bf16.mxu0 %v4627
        %4800 = vmatpush1.bf16.msra.mxu0 %v4626
        %4801 = vmatprep.subr.bf16.mxu0 %v4631
        %4802 = vmatpush1.bf16.msra.mxu0 %v4630
        %4803 = vmatprep.subr.bf16.mxu0 %v4635
        %4804 = vmatpush1.bf16.msra.mxu0 %v4634
        %4805 = vmatprep.subr.bf16.mxu0 %v4639
        %4806 = vmatpush1.bf16.msra.mxu0 %v4638
        %4807 = vmatprep.subr.bf16.mxu0 %v4643
        %4808 = vmatpush1.bf16.msra.mxu0 %v4642
        %4809 = vmatprep.subr.bf16.mxu0 %v4647
        %4810 = vmatpush1.bf16.msra.mxu0 %v4646
        %4811 = vmatprep.subr.bf16.mxu0 %v4651
        %4812 = vmatpush1.bf16.msra.mxu0 %v4650
        %4813 = vmatprep.subr.bf16.mxu0 0
        %4814 = vmatpush1.bf16.msra.mxu0 0
        %4815 = vmatprep.subr.bf16.mxu0 0
        %4816 = vmatpush1.bf16.msra.mxu0 0
        %4817 = vmatprep.subr.bf16.mxu0 0
        %4818 = vmatpush1.bf16.msra.mxu0 0
        %4819 = vmatprep.subr.bf16.mxu0 0
        %4820 = vmatpush1.bf16.msra.mxu0 0
        %4821 = vmatprep.subr.bf16.mxu0 0
        %4822 = vmatpush1.bf16.msra.mxu0 0
        %4823 = vmatprep.subr.bf16.mxu0 0
        %4824 = vmatpush1.bf16.msra.mxu0 0
        %4825 = vmatprep.subr.bf16.mxu0 0
        %4826 = vmatpush1.bf16.msra.mxu0 0
        %4827 = vmatprep.subr.bf16.mxu0 0
        %4828 = vmatpush1.bf16.msra.mxu0 0
        %4829 = vmatprep.mubr.bf16.mxu0 0
        %4830 = vmatmul.mubr.bf16.gmra.mrb[0].mxu0 %v4462
        %v4831 = vpop.f32.mrb[0].mxu0
        %v4832 = vadd.f32 %v4515, %v4831
        %v4833 = vpop.f32.mrb[0].mxu0
        %v4834 = vadd.f32 %v4519, %v4833
        %v4835 = vpop.f32.mrb[0].mxu0
        %v4836 = vadd.f32 %v4515, %v4835
        %v4837 = vpop.f32.mrb[0].mxu0
        %v4838 = vadd.f32 %v4519, %v4837
        %4839 = vmatprep.mubr.bf16.mxu0 0
        %4840 = vmatmul.mubr.bf16.gmra.mrb[0].mxu0 %v4463
        %v4841 = vpop.f32.mrb[0].mxu0
        %v4842 = vadd.f32 %v4515, %v4841
        %v4843 = vpop.f32.mrb[0].mxu0
        %v4844 = vadd.f32 %v4519, %v4843
        %v4845 = vpop.f32.mrb[0].mxu0
        %v4846 = vadd.f32 %v4515, %v4845
        %v4847 = vpop.f32.mrb[0].mxu0
        %v4848 = vadd.f32 %v4519, %v4847
        %4849 = vmatprep.mubr.bf16.mxu0 0
        %4850 = vmatmul.mubr.bf16.gmra.mrb[0].mxu0 %v4464
        %v4851 = vpop.f32.mrb[0].mxu0
        %v4852 = vadd.f32 %v4515, %v4851
        %v4853 = vpop.f32.mrb[0].mxu0
        %v4854 = vadd.f32 %v4519, %v4853
        %v4855 = vpop.f32.mrb[0].mxu0
        %v4856 = vadd.f32 %v4515, %v4855
        %v4857 = vpop.f32.mrb[0].mxu0
        %v4858 = vadd.f32 %v4519, %v4857
        %4859 = vmatprep.mubr.bf16.mxu0 0
        %4860 = vmatmul.mubr.bf16.gmra.mrb[0].mxu0 %v4465
        %v4861 = vpop.f32.mrb[0].mxu0
        %v4862 = vadd.f32 %v4515, %v4861
        %v4863 = vpop.f32.mrb[0].mxu0
        %v4864 = vadd.f32 %v4519, %v4863
        %v4865 = vpop.f32.mrb[0].mxu0
        %v4866 = vadd.f32 %v4515, %v4865
        %v4867 = vpop.f32.mrb[0].mxu0
        %v4868 = vadd.f32 %v4519, %v4867
        %4869 = vmatprep.mubr.bf16.mxu0 0
        %4870 = vmatmul.mubr.bf16.gmra.mrb[0].mxu0 %v4466
        %v4871 = vpop.f32.mrb[0].mxu0
        %v4872 = vadd.f32 %v4515, %v4871
        %v4873 = vpop.f32.mrb[0].mxu0
        %v4874 = vadd.f32 %v4519, %v4873
        %v4875 = vpop.f32.mrb[0].mxu0
        %v4876 = vadd.f32 %v4515, %v4875
        %v4877 = vpop.f32.mrb[0].mxu0
        %v4878 = vadd.f32 %v4519, %v4877
        %4879 = vmatprep.mubr.bf16.mxu0 0
        %4880 = vmatmul.mubr.bf16.gmra.mrb[0].mxu0 %v4467
        %v4881 = vpop.f32.mrb[0].mxu0
        %v4882 = vadd.f32 %v4515, %v4881
        %v4883 = vpop.f32.mrb[0].mxu0
        %v4884 = vadd.f32 %v4519, %v4883
        %v4885 = vpop.f32.mrb[0].mxu0
        %v4886 = vadd.f32 %v4515, %v4885
        %v4887 = vpop.f32.mrb[0].mxu0
        %v4888 = vadd.f32 %v4519, %v4887
        %4889 = vmatprep.mubr.bf16.mxu0 0
        %4890 = vmatmul.mubr.bf16.gmra.mrb[0].mxu0 %v4468
        %v4891 = vpop.f32.mrb[0].mxu0
        %v4892 = vadd.f32 %v4515, %v4891
        %v4893 = vpop.f32.mrb[0].mxu0
        %v4894 = vadd.f32 %v4519, %v4893
        %v4895 = vpop.f32.mrb[0].mxu0
        %v4896 = vadd.f32 %v4515, %v4895
        %v4897 = vpop.f32.mrb[0].mxu0
        %v4898 = vadd.f32 %v4519, %v4897
        %4899 = vmatprep.mubr.bf16.mxu0 0
        %4900 = vmatmul.mubr.bf16.gmra.mrb[0].mxu0 %v4469
        %v4901 = vpop.f32.mrb[0].mxu0
        %v4902 = vadd.f32 %v4515, %v4901
        %v4903 = vpop.f32.mrb[0].mxu0
        %v4904 = vadd.f32 %v4519, %v4903
        %v4905 = vpop.f32.mrb[0].mxu0
        %v4906 = vadd.f32 %v4515, %v4905
        %v4907 = vpop.f32.mrb[0].mxu0
        %v4908 = vadd.f32 %v4519, %v4907
        %4909 = vdwg.mxu0
        %v4910 = vmul.f32 %v4719, %v4719
        %v4911 = vmul.f32 %v4721, %v4721
        %v4912 = vmul.f32 %v4832, %v4832
        %v4913 = vmul.f32 %v4834, %v4834
        %v4914 = vmul.f32 %v4723, %v4723
        %v4915 = vmul.f32 %v4725, %v4725
        %v4916 = vmul.f32 %v4836, %v4836
        %v4917 = vmul.f32 %v4838, %v4838
        %v4918 = vmul.f32 %v4729, %v4729
        %v4919 = vmul.f32 %v4731, %v4731
        %v4920 = vmul.f32 %v4842, %v4842
        %v4921 = vmul.f32 %v4844, %v4844
        %v4922 = vmul.f32 %v4733, %v4733
        %v4923 = vmul.f32 %v4735, %v4735
        %v4924 = vmul.f32 %v4846, %v4846
        %v4925 = vmul.f32 %v4848, %v4848
        %v4926 = vmul.f32 %v4739, %v4739
        %v4927 = vmul.f32 %v4741, %v4741
        %v4928 = vmul.f32 %v4852, %v4852
        %v4929 = vmul.f32 %v4854, %v4854
        %v4930 = vmul.f32 %v4743, %v4743
        %v4931 = vmul.f32 %v4745, %v4745
        %v4932 = vmul.f32 %v4856, %v4856
        %v4933 = vmul.f32 %v4858, %v4858
        %v4934 = vmul.f32 %v4749, %v4749
        %v4935 = vmul.f32 %v4751, %v4751
        %v4936 = vmul.f32 %v4862, %v4862
        %v4937 = vmul.f32 %v4864, %v4864
        %v4938 = vmul.f32 %v4753, %v4753
        %v4939 = vmul.f32 %v4755, %v4755
        %v4940 = vmul.f32 %v4866, %v4866
        %v4941 = vmul.f32 %v4868, %v4868
        %v4942 = vmul.f32 %v4759, %v4759
        %v4943 = vmul.f32 %v4761, %v4761
        %v4944 = vmul.f32 %v4872, %v4872
        %v4945 = vmul.f32 %v4874, %v4874
        %v4946 = vmul.f32 %v4763, %v4763
        %v4947 = vmul.f32 %v4765, %v4765
        %v4948 = vmul.f32 %v4876, %v4876
        %v4949 = vmul.f32 %v4878, %v4878
        %v4950 = vmul.f32 %v4769, %v4769
        %v4951 = vmul.f32 %v4771, %v4771
        %v4952 = vmul.f32 %v4882, %v4882
        %v4953 = vmul.f32 %v4884, %v4884
        %v4954 = vmul.f32 %v4773, %v4773
        %v4955 = vmul.f32 %v4775, %v4775
        %v4956 = vmul.f32 %v4886, %v4886
        %v4957 = vmul.f32 %v4888, %v4888
        %v4958 = vmul.f32 %v4779, %v4779
        %v4959 = vmul.f32 %v4781, %v4781
        %v4960 = vmul.f32 %v4892, %v4892
        %v4961 = vmul.f32 %v4894, %v4894
        %v4962 = vmul.f32 %v4783, %v4783
        %v4963 = vmul.f32 %v4785, %v4785
        %v4964 = vmul.f32 %v4896, %v4896
        %v4965 = vmul.f32 %v4898, %v4898
        %v4966 = vmul.f32 %v4789, %v4789
        %v4967 = vmul.f32 %v4791, %v4791
        %v4968 = vmul.f32 %v4902, %v4902
        %v4969 = vmul.f32 %v4904, %v4904
        %v4970 = vmul.f32 %v4793, %v4793
        %v4971 = vmul.f32 %v4795, %v4795
        %v4972 = vmul.f32 %v4906, %v4906
        %v4973 = vmul.f32 %v4908, %v4908
        %v4974 = vmul.f32 %v4719, %v4910
        %v4975 = vmul.f32 %v4721, %v4911
        %v4976 = vmul.f32 %v4832, %v4912
        %v4977 = vmul.f32 %v4834, %v4913
        %v4978 = vmul.f32 %v4723, %v4914
        %v4979 = vmul.f32 %v4725, %v4915
        %v4980 = vmul.f32 %v4836, %v4916
        %v4981 = vmul.f32 %v4838, %v4917
        %v4982 = vmul.f32 %v4729, %v4918
        %v4983 = vmul.f32 %v4731, %v4919
        %v4984 = vmul.f32 %v4842, %v4920
        %v4985 = vmul.f32 %v4844, %v4921
        %v4986 = vmul.f32 %v4733, %v4922
        %v4987 = vmul.f32 %v4735, %v4923
        %v4988 = vmul.f32 %v4846, %v4924
        %v4989 = vmul.f32 %v4848, %v4925
        %v4990 = vmul.f32 %v4739, %v4926
        %v4991 = vmul.f32 %v4741, %v4927
        %v4992 = vmul.f32 %v4852, %v4928
        %v4993 = vmul.f32 %v4854, %v4929
        %v4994 = vmul.f32 %v4743, %v4930
        %v4995 = vmul.f32 %v4745, %v4931
        %v4996 = vmul.f32 %v4856, %v4932
        %v4997 = vmul.f32 %v4858, %v4933
        %v4998 = vmul.f32 %v4749, %v4934
        %v4999 = vmul.f32 %v4751, %v4935
        %v5000 = vmul.f32 %v4862, %v4936
        %v5001 = vmul.f32 %v4864, %v4937
        %v5002 = vmul.f32 %v4753, %v4938
        %v5003 = vmul.f32 %v4755, %v4939
        %v5004 = vmul.f32 %v4866, %v4940
        %v5005 = vmul.f32 %v4868, %v4941
        %v5006 = vmul.f32 %v4759, %v4942
        %v5007 = vmul.f32 %v4761, %v4943
        %v5008 = vmul.f32 %v4872, %v4944
        %v5009 = vmul.f32 %v4874, %v4945
        %v5010 = vmul.f32 %v4763, %v4946
        %v5011 = vmul.f32 %v4765, %v4947
        %v5012 = vmul.f32 %v4876, %v4948
        %v5013 = vmul.f32 %v4878, %v4949
        %v5014 = vmul.f32 %v4769, %v4950
        %v5015 = vmul.f32 %v4771, %v4951
        %v5016 = vmul.f32 %v4882, %v4952
        %v5017 = vmul.f32 %v4884, %v4953
        %v5018 = vmul.f32 %v4773, %v4954
        %v5019 = vmul.f32 %v4775, %v4955
        %v5020 = vmul.f32 %v4886, %v4956
        %v5021 = vmul.f32 %v4888, %v4957
        %v5022 = vmul.f32 %v4779, %v4958
        %v5023 = vmul.f32 %v4781, %v4959
        %v5024 = vmul.f32 %v4892, %v4960
        %v5025 = vmul.f32 %v4894, %v4961
        %v5026 = vmul.f32 %v4783, %v4962
        %v5027 = vmul.f32 %v4785, %v4963
        %v5028 = vmul.f32 %v4896, %v4964
        %v5029 = vmul.f32 %v4898, %v4965
        %v5030 = vmul.f32 %v4789, %v4966
        %v5031 = vmul.f32 %v4791, %v4967
        %v5032 = vmul.f32 %v4902, %v4968
        %v5033 = vmul.f32 %v4904, %v4969
        %v5034 = vmul.f32 %v4793, %v4970
        %v5035 = vmul.f32 %v4795, %v4971
        %v5036 = vmul.f32 %v4906, %v4972
        %v5037 = vmul.f32 %v4908, %v4973
        %v5038 = vmul.f32 %v4974, 0.044715
        %v5039 = vmul.f32 %v4975, 0.044715
        %v5040 = vmul.f32 %v4976, 0.044715
        %v5041 = vmul.f32 %v4977, 0.044715
        %v5042 = vmul.f32 %v4978, 0.044715
        %v5043 = vmul.f32 %v4979, 0.044715
        %v5044 = vmul.f32 %v4980, 0.044715
        %v5045 = vmul.f32 %v4981, 0.044715
        %v5046 = vmul.f32 %v4982, 0.044715
        %v5047 = vmul.f32 %v4983, 0.044715
        %v5048 = vmul.f32 %v4984, 0.044715
        %v5049 = vmul.f32 %v4985, 0.044715
        %v5050 = vmul.f32 %v4986, 0.044715
        %v5051 = vmul.f32 %v4987, 0.044715
        %v5052 = vmul.f32 %v4988, 0.044715
        %v5053 = vmul.f32 %v4989, 0.044715
        %v5054 = vmul.f32 %v4990, 0.044715
        %v5055 = vmul.f32 %v4991, 0.044715
        %v5056 = vmul.f32 %v4992, 0.044715
        %v5057 = vmul.f32 %v4993, 0.044715
        %v5058 = vmul.f32 %v4994, 0.044715
        %v5059 = vmul.f32 %v4995, 0.044715
        %v5060 = vmul.f32 %v4996, 0.044715
        %v5061 = vmul.f32 %v4997, 0.044715
        %v5062 = vmul.f32 %v4998, 0.044715
        %v5063 = vmul.f32 %v4999, 0.044715
        %v5064 = vmul.f32 %v5000, 0.044715
        %v5065 = vmul.f32 %v5001, 0.044715
        %v5066 = vmul.f32 %v5002, 0.044715
        %v5067 = vmul.f32 %v5003, 0.044715
        %v5068 = vmul.f32 %v5004, 0.044715
        %v5069 = vmul.f32 %v5005, 0.044715
        %v5070 = vmul.f32 %v5006, 0.044715
        %v5071 = vmul.f32 %v5007, 0.044715
        %v5072 = vmul.f32 %v5008, 0.044715
        %v5073 = vmul.f32 %v5009, 0.044715
        %v5074 = vmul.f32 %v5010, 0.044715
        %v5075 = vmul.f32 %v5011, 0.044715
        %v5076 = vmul.f32 %v5012, 0.044715
        %v5077 = vmul.f32 %v5013, 0.044715
        %v5078 = vmul.f32 %v5014, 0.044715
        %v5079 = vmul.f32 %v5015, 0.044715
        %v5080 = vmul.f32 %v5016, 0.044715
        %v5081 = vmul.f32 %v5017, 0.044715
        %v5082 = vmul.f32 %v5018, 0.044715
        %v5083 = vmul.f32 %v5019, 0.044715
        %v5084 = vmul.f32 %v5020, 0.044715
        %v5085 = vmul.f32 %v5021, 0.044715
        %v5086 = vmul.f32 %v5022, 0.044715
        %v5087 = vmul.f32 %v5023, 0.044715
        %v5088 = vmul.f32 %v5024, 0.044715
        %v5089 = vmul.f32 %v5025, 0.044715
        %v5090 = vmul.f32 %v5026, 0.044715
        %v5091 = vmul.f32 %v5027, 0.044715
        %v5092 = vmul.f32 %v5028, 0.044715
        %v5093 = vmul.f32 %v5029, 0.044715
        %v5094 = vmul.f32 %v5030, 0.044715
        %v5095 = vmul.f32 %v5031, 0.044715
        %v5096 = vmul.f32 %v5032, 0.044715
        %v5097 = vmul.f32 %v5033, 0.044715
        %v5098 = vmul.f32 %v5034, 0.044715
        %v5099 = vmul.f32 %v5035, 0.044715
        %v5100 = vmul.f32 %v5036, 0.044715
        %v5101 = vmul.f32 %v5037, 0.044715
        %v5102 = vadd.f32 %v4719, %v5038
        %v5103 = vadd.f32 %v4721, %v5039
        %v5104 = vadd.f32 %v4832, %v5040
        %v5105 = vadd.f32 %v4834, %v5041
        %v5106 = vadd.f32 %v4723, %v5042
        %v5107 = vadd.f32 %v4725, %v5043
        %v5108 = vadd.f32 %v4836, %v5044
        %v5109 = vadd.f32 %v4838, %v5045
        %v5110 = vadd.f32 %v4729, %v5046
        %v5111 = vadd.f32 %v4731, %v5047
        %v5112 = vadd.f32 %v4842, %v5048
        %v5113 = vadd.f32 %v4844, %v5049
        %v5114 = vadd.f32 %v4733, %v5050
        %v5115 = vadd.f32 %v4735, %v5051
        %v5116 = vadd.f32 %v4846, %v5052
        %v5117 = vadd.f32 %v4848, %v5053
        %v5118 = vadd.f32 %v4739, %v5054
        %v5119 = vadd.f32 %v4741, %v5055
        %v5120 = vadd.f32 %v4852, %v5056
        %v5121 = vadd.f32 %v4854, %v5057
        %v5122 = vadd.f32 %v4743, %v5058
        %v5123 = vadd.f32 %v4745, %v5059
        %v5124 = vadd.f32 %v4856, %v5060
        %v5125 = vadd.f32 %v4858, %v5061
        %v5126 = vadd.f32 %v4749, %v5062
        %v5127 = vadd.f32 %v4751, %v5063
        %v5128 = vadd.f32 %v4862, %v5064
        %v5129 = vadd.f32 %v4864, %v5065
        %v5130 = vadd.f32 %v4753, %v5066
        %v5131 = vadd.f32 %v4755, %v5067
        %v5132 = vadd.f32 %v4866, %v5068
        %v5133 = vadd.f32 %v4868, %v5069
        %v5134 = vadd.f32 %v4759, %v5070
        %v5135 = vadd.f32 %v4761, %v5071
        %v5136 = vadd.f32 %v4872, %v5072
        %v5137 = vadd.f32 %v4874, %v5073
        %v5138 = vadd.f32 %v4763, %v5074
        %v5139 = vadd.f32 %v4765, %v5075
        %v5140 = vadd.f32 %v4876, %v5076
        %v5141 = vadd.f32 %v4878, %v5077
        %v5142 = vadd.f32 %v4769, %v5078
        %v5143 = vadd.f32 %v4771, %v5079
        %v5144 = vadd.f32 %v4882, %v5080
        %v5145 = vadd.f32 %v4884, %v5081
        %v5146 = vadd.f32 %v4773, %v5082
        %v5147 = vadd.f32 %v4775, %v5083
        %v5148 = vadd.f32 %v4886, %v5084
        %v5149 = vadd.f32 %v4888, %v5085
        %v5150 = vadd.f32 %v4779, %v5086
        %v5151 = vadd.f32 %v4781, %v5087
        %v5152 = vadd.f32 %v4892, %v5088
        %v5153 = vadd.f32 %v4894, %v5089
        %v5154 = vadd.f32 %v4783, %v5090
        %v5155 = vadd.f32 %v4785, %v5091
        %v5156 = vadd.f32 %v4896, %v5092
        %v5157 = vadd.f32 %v4898, %v5093
        %v5158 = vadd.f32 %v4789, %v5094
        %v5159 = vadd.f32 %v4791, %v5095
        %v5160 = vadd.f32 %v4902, %v5096
        %v5161 = vadd.f32 %v4904, %v5097
        %v5162 = vadd.f32 %v4793, %v5098
        %v5163 = vadd.f32 %v4795, %v5099
        %v5164 = vadd.f32 %v4906, %v5100
        %v5165 = vadd.f32 %v4908, %v5101
        %v5166 = vmul.f32 %v5102, 0.7978846
        %v5167 = vmul.f32 %v5103, 0.7978846
        %v5168 = vmul.f32 %v5104, 0.7978846
        %v5169 = vmul.f32 %v5105, 0.7978846
        %v5170 = vmul.f32 %v5106, 0.7978846
        %v5171 = vmul.f32 %v5107, 0.7978846
        %v5172 = vmul.f32 %v5108, 0.7978846
        %v5173 = vmul.f32 %v5109, 0.7978846
        %v5174 = vmul.f32 %v5110, 0.7978846
        %v5175 = vmul.f32 %v5111, 0.7978846
        %v5176 = vmul.f32 %v5112, 0.7978846
        %v5177 = vmul.f32 %v5113, 0.7978846
        %v5178 = vmul.f32 %v5114, 0.7978846
        %v5179 = vmul.f32 %v5115, 0.7978846
        %v5180 = vmul.f32 %v5116, 0.7978846
        %v5181 = vmul.f32 %v5117, 0.7978846
        %v5182 = vmul.f32 %v5118, 0.7978846
        %v5183 = vmul.f32 %v5119, 0.7978846
        %v5184 = vmul.f32 %v5120, 0.7978846
        %v5185 = vmul.f32 %v5121, 0.7978846
        %v5186 = vmul.f32 %v5122, 0.7978846
        %v5187 = vmul.f32 %v5123, 0.7978846
        %v5188 = vmul.f32 %v5124, 0.7978846
        %v5189 = vmul.f32 %v5125, 0.7978846
        %v5190 = vmul.f32 %v5126, 0.7978846
        %v5191 = vmul.f32 %v5127, 0.7978846
        %v5192 = vmul.f32 %v5128, 0.7978846
        %v5193 = vmul.f32 %v5129, 0.7978846
        %v5194 = vmul.f32 %v5130, 0.7978846
        %v5195 = vmul.f32 %v5131, 0.7978846
        %v5196 = vmul.f32 %v5132, 0.7978846
        %v5197 = vmul.f32 %v5133, 0.7978846
        %v5198 = vmul.f32 %v5134, 0.7978846
        %v5199 = vmul.f32 %v5135, 0.7978846
        %v5200 = vmul.f32 %v5136, 0.7978846
        %v5201 = vmul.f32 %v5137, 0.7978846
        %v5202 = vmul.f32 %v5138, 0.7978846
        %v5203 = vmul.f32 %v5139, 0.7978846
        %v5204 = vmul.f32 %v5140, 0.7978846
        %v5205 = vmul.f32 %v5141, 0.7978846
        %v5206 = vmul.f32 %v5142, 0.7978846
        %v5207 = vmul.f32 %v5143, 0.7978846
        %v5208 = vmul.f32 %v5144, 0.7978846
        %v5209 = vmul.f32 %v5145, 0.7978846
        %v5210 = vmul.f32 %v5146, 0.7978846
        %v5211 = vmul.f32 %v5147, 0.7978846
        %v5212 = vmul.f32 %v5148, 0.7978846
        %v5213 = vmul.f32 %v5149, 0.7978846
        %v5214 = vmul.f32 %v5150, 0.7978846
        %v5215 = vmul.f32 %v5151, 0.7978846
        %v5216 = vmul.f32 %v5152, 0.7978846
        %v5217 = vmul.f32 %v5153, 0.7978846
        %v5218 = vmul.f32 %v5154, 0.7978846
        %v5219 = vmul.f32 %v5155, 0.7978846
        %v5220 = vmul.f32 %v5156, 0.7978846
        %v5221 = vmul.f32 %v5157, 0.7978846
        %v5222 = vmul.f32 %v5158, 0.7978846
        %v5223 = vmul.f32 %v5159, 0.7978846
        %v5224 = vmul.f32 %v5160, 0.7978846
        %v5225 = vmul.f32 %v5161, 0.7978846
        %v5226 = vmul.f32 %v5162, 0.7978846
        %v5227 = vmul.f32 %v5163, 0.7978846
        %v5228 = vmul.f32 %v5164, 0.7978846
        %v5229 = vmul.f32 %v5165, 0.7978846
        %v5230 = vtanh.pop %v5166
        %v5231 = vtanh.pop %v5167
        %v5232 = vtanh.pop %v5168
        %v5233 = vtanh.pop %v5169
        %v5234 = vtanh.pop %v5170
        %v5235 = vtanh.pop %v5171
        %v5236 = vtanh.pop %v5172
        %v5237 = vtanh.pop %v5173
        %v5238 = vtanh.pop %v5174
        %v5239 = vtanh.pop %v5175
        %v5240 = vtanh.pop %v5176
        %v5241 = vtanh.pop %v5177
        %v5242 = vtanh.pop %v5178
        %v5243 = vtanh.pop %v5179
        %v5244 = vtanh.pop %v5180
        %v5245 = vtanh.pop %v5181
        %v5246 = vtanh.pop %v5182
        %v5247 = vtanh.pop %v5183
        %v5248 = vtanh.pop %v5184
        %v5249 = vtanh.pop %v5185
        %v5250 = vtanh.pop %v5186
        %v5251 = vtanh.pop %v5187
        %v5252 = vtanh.pop %v5188
        %v5253 = vtanh.pop %v5189
        %v5254 = vtanh.pop %v5190
        %v5255 = vtanh.pop %v5191
        %v5256 = vtanh.pop %v5192
        %v5257 = vtanh.pop %v5193
        %v5258 = vtanh.pop %v5194
        %v5259 = vtanh.pop %v5195
        %v5260 = vtanh.pop %v5196
        %v5261 = vtanh.pop %v5197
        %v5262 = vtanh.pop %v5198
        %v5263 = vtanh.pop %v5199
        %v5264 = vtanh.pop %v5200
        %v5265 = vtanh.pop %v5201
        %v5266 = vtanh.pop %v5202
        %v5267 = vtanh.pop %v5203
        %v5268 = vtanh.pop %v5204
        %v5269 = vtanh.pop %v5205
        %v5270 = vtanh.pop %v5206
        %v5271 = vtanh.pop %v5207
        %v5272 = vtanh.pop %v5208
        %v5273 = vtanh.pop %v5209
        %v5274 = vtanh.pop %v5210
        %v5275 = vtanh.pop %v5211
        %v5276 = vtanh.pop %v5212
        %v5277 = vtanh.pop %v5213
        %v5278 = vtanh.pop %v5214
        %v5279 = vtanh.pop %v5215
        %v5280 = vtanh.pop %v5216
        %v5281 = vtanh.pop %v5217
        %v5282 = vtanh.pop %v5218
        %v5283 = vtanh.pop %v5219
        %v5284 = vtanh.pop %v5220
        %v5285 = vtanh.pop %v5221
        %v5286 = vtanh.pop %v5222
        %v5287 = vtanh.pop %v5223
        %v5288 = vtanh.pop %v5224
        %v5289 = vtanh.pop %v5225
        %v5290 = vtanh.pop %v5226
        %v5291 = vtanh.pop %v5227
        %v5292 = vtanh.pop %v5228
        %v5293 = vtanh.pop %v5229
        %v5294 = vadd.f32 %v5230, 1.0
        %v5295 = vadd.f32 %v5231, 1.0
        %v5296 = vadd.f32 %v5232, 1.0
        %v5297 = vadd.f32 %v5233, 1.0
        %v5298 = vadd.f32 %v5234, 1.0
        %v5299 = vadd.f32 %v5235, 1.0
        %v5300 = vadd.f32 %v5236, 1.0
        %v5301 = vadd.f32 %v5237, 1.0
        %v5302 = vadd.f32 %v5238, 1.0
        %v5303 = vadd.f32 %v5239, 1.0
        %v5304 = vadd.f32 %v5240, 1.0
        %v5305 = vadd.f32 %v5241, 1.0
        %v5306 = vadd.f32 %v5242, 1.0
        %v5307 = vadd.f32 %v5243, 1.0
        %v5308 = vadd.f32 %v5244, 1.0
        %v5309 = vadd.f32 %v5245, 1.0
        %v5310 = vadd.f32 %v5246, 1.0
        %v5311 = vadd.f32 %v5247, 1.0
        %v5312 = vadd.f32 %v5248, 1.0
        %v5313 = vadd.f32 %v5249, 1.0
        %v5314 = vadd.f32 %v5250, 1.0
        %v5315 = vadd.f32 %v5251, 1.0
        %v5316 = vadd.f32 %v5252, 1.0
        %v5317 = vadd.f32 %v5253, 1.0
        %v5318 = vadd.f32 %v5254, 1.0
        %v5319 = vadd.f32 %v5255, 1.0
        %v5320 = vadd.f32 %v5256, 1.0
        %v5321 = vadd.f32 %v5257, 1.0
        %v5322 = vadd.f32 %v5258, 1.0
        %v5323 = vadd.f32 %v5259, 1.0
        %v5324 = vadd.f32 %v5260, 1.0
        %v5325 = vadd.f32 %v5261, 1.0
        %v5326 = vadd.f32 %v5262, 1.0
        %v5327 = vadd.f32 %v5263, 1.0
        %v5328 = vadd.f32 %v5264, 1.0
        %v5329 = vadd.f32 %v5265, 1.0
        %v5330 = vadd.f32 %v5266, 1.0
        %v5331 = vadd.f32 %v5267, 1.0
        %v5332 = vadd.f32 %v5268, 1.0
        %v5333 = vadd.f32 %v5269, 1.0
        %v5334 = vadd.f32 %v5270, 1.0
        %v5335 = vadd.f32 %v5271, 1.0
        %v5336 = vadd.f32 %v5272, 1.0
        %v5337 = vadd.f32 %v5273, 1.0
        %v5338 = vadd.f32 %v5274, 1.0
        %v5339 = vadd.f32 %v5275, 1.0
        %v5340 = vadd.f32 %v5276, 1.0
        %v5341 = vadd.f32 %v5277, 1.0
        %v5342 = vadd.f32 %v5278, 1.0
        %v5343 = vadd.f32 %v5279, 1.0
        %v5344 = vadd.f32 %v5280, 1.0
        %v5345 = vadd.f32 %v5281, 1.0
        %v5346 = vadd.f32 %v5282, 1.0
        %v5347 = vadd.f32 %v5283, 1.0
        %v5348 = vadd.f32 %v5284, 1.0
        %v5349 = vadd.f32 %v5285, 1.0
        %v5350 = vadd.f32 %v5286, 1.0
        %v5351 = vadd.f32 %v5287, 1.0
        %v5352 = vadd.f32 %v5288, 1.0
        %v5353 = vadd.f32 %v5289, 1.0
        %v5354 = vadd.f32 %v5290, 1.0
        %v5355 = vadd.f32 %v5291, 1.0
        %v5356 = vadd.f32 %v5292, 1.0
        %v5357 = vadd.f32 %v5293, 1.0
        %v5358 = vmul.f32 %v5294, 0.5
        %v5359 = vmul.f32 %v5295, 0.5
        %v5360 = vmul.f32 %v5296, 0.5
        %v5361 = vmul.f32 %v5297, 0.5
        %v5362 = vmul.f32 %v5298, 0.5
        %v5363 = vmul.f32 %v5299, 0.5
        %v5364 = vmul.f32 %v5300, 0.5
        %v5365 = vmul.f32 %v5301, 0.5
        %v5366 = vmul.f32 %v5302, 0.5
        %v5367 = vmul.f32 %v5303, 0.5
        %v5368 = vmul.f32 %v5304, 0.5
        %v5369 = vmul.f32 %v5305, 0.5
        %v5370 = vmul.f32 %v5306, 0.5
        %v5371 = vmul.f32 %v5307, 0.5
        %v5372 = vmul.f32 %v5308, 0.5
        %v5373 = vmul.f32 %v5309, 0.5
        %v5374 = vmul.f32 %v5310, 0.5
        %v5375 = vmul.f32 %v5311, 0.5
        %v5376 = vmul.f32 %v5312, 0.5
        %v5377 = vmul.f32 %v5313, 0.5
        %v5378 = vmul.f32 %v5314, 0.5
        %v5379 = vmul.f32 %v5315, 0.5
        %v5380 = vmul.f32 %v5316, 0.5
        %v5381 = vmul.f32 %v5317, 0.5
        %v5382 = vmul.f32 %v5318, 0.5
        %v5383 = vmul.f32 %v5319, 0.5
        %v5384 = vmul.f32 %v5320, 0.5
        %v5385 = vmul.f32 %v5321, 0.5
        %v5386 = vmul.f32 %v5322, 0.5
        %v5387 = vmul.f32 %v5323, 0.5
        %v5388 = vmul.f32 %v5324, 0.5
        %v5389 = vmul.f32 %v5325, 0.5
        %v5390 = vmul.f32 %v5326, 0.5
        %v5391 = vmul.f32 %v5327, 0.5
        %v5392 = vmul.f32 %v5328, 0.5
        %v5393 = vmul.f32 %v5329, 0.5
        %v5394 = vmul.f32 %v5330, 0.5
        %v5395 = vmul.f32 %v5331, 0.5
        %v5396 = vmul.f32 %v5332, 0.5
        %v5397 = vmul.f32 %v5333, 0.5
        %v5398 = vmul.f32 %v5334, 0.5
        %v5399 = vmul.f32 %v5335, 0.5
        %v5400 = vmul.f32 %v5336, 0.5
        %v5401 = vmul.f32 %v5337, 0.5
        %v5402 = vmul.f32 %v5338, 0.5
        %v5403 = vmul.f32 %v5339, 0.5
        %v5404 = vmul.f32 %v5340, 0.5
        %v5405 = vmul.f32 %v5341, 0.5
        %v5406 = vmul.f32 %v5342, 0.5
        %v5407 = vmul.f32 %v5343, 0.5
        %v5408 = vmul.f32 %v5344, 0.5
        %v5409 = vmul.f32 %v5345, 0.5
        %v5410 = vmul.f32 %v5346, 0.5
        %v5411 = vmul.f32 %v5347, 0.5
        %v5412 = vmul.f32 %v5348, 0.5
        %v5413 = vmul.f32 %v5349, 0.5
        %v5414 = vmul.f32 %v5350, 0.5
        %v5415 = vmul.f32 %v5351, 0.5
        %v5416 = vmul.f32 %v5352, 0.5
        %v5417 = vmul.f32 %v5353, 0.5
        %v5418 = vmul.f32 %v5354, 0.5
        %v5419 = vmul.f32 %v5355, 0.5
        %v5420 = vmul.f32 %v5356, 0.5
        %v5421 = vmul.f32 %v5357, 0.5
        %v5422 = vmul.f32 %v4719, %v5358
        %v5423 = vmul.f32 %v4721, %v5359
        %v5424 = vmul.f32 %v4832, %v5360
        %v5425 = vmul.f32 %v4834, %v5361
        %v5426 = vmul.f32 %v4723, %v5362
        %v5427 = vmul.f32 %v4725, %v5363
        %v5428 = vmul.f32 %v4836, %v5364
        %v5429 = vmul.f32 %v4838, %v5365
        %v5430 = vmul.f32 %v4729, %v5366
        %v5431 = vmul.f32 %v4731, %v5367
        %v5432 = vmul.f32 %v4842, %v5368
        %v5433 = vmul.f32 %v4844, %v5369
        %v5434 = vmul.f32 %v4733, %v5370
        %v5435 = vmul.f32 %v4735, %v5371
        %v5436 = vmul.f32 %v4846, %v5372
        %v5437 = vmul.f32 %v4848, %v5373
        %v5438 = vmul.f32 %v4739, %v5374
        %v5439 = vmul.f32 %v4741, %v5375
        %v5440 = vmul.f32 %v4852, %v5376
        %v5441 = vmul.f32 %v4854, %v5377
        %v5442 = vmul.f32 %v4743, %v5378
        %v5443 = vmul.f32 %v4745, %v5379
        %v5444 = vmul.f32 %v4856, %v5380
        %v5445 = vmul.f32 %v4858, %v5381
        %v5446 = vmul.f32 %v4749, %v5382
        %v5447 = vmul.f32 %v4751, %v5383
        %v5448 = vmul.f32 %v4862, %v5384
        %v5449 = vmul.f32 %v4864, %v5385
        %v5450 = vmul.f32 %v4753, %v5386
        %v5451 = vmul.f32 %v4755, %v5387
        %v5452 = vmul.f32 %v4866, %v5388
        %v5453 = vmul.f32 %v4868, %v5389
        %v5454 = vmul.f32 %v4759, %v5390
        %v5455 = vmul.f32 %v4761, %v5391
        %v5456 = vmul.f32 %v4872, %v5392
        %v5457 = vmul.f32 %v4874, %v5393
        %v5458 = vmul.f32 %v4763, %v5394
        %v5459 = vmul.f32 %v4765, %v5395
        %v5460 = vmul.f32 %v4876, %v5396
        %v5461 = vmul.f32 %v4878, %v5397
        %v5462 = vmul.f32 %v4769, %v5398
        %v5463 = vmul.f32 %v4771, %v5399
        %v5464 = vmul.f32 %v4882, %v5400
        %v5465 = vmul.f32 %v4884, %v5401
        %v5466 = vmul.f32 %v4773, %v5402
        %v5467 = vmul.f32 %v4775, %v5403
        %v5468 = vmul.f32 %v4886, %v5404
        %v5469 = vmul.f32 %v4888, %v5405
        %v5470 = vmul.f32 %v4779, %v5406
        %v5471 = vmul.f32 %v4781, %v5407
        %v5472 = vmul.f32 %v4892, %v5408
        %v5473 = vmul.f32 %v4894, %v5409
        %v5474 = vmul.f32 %v4783, %v5410
        %v5475 = vmul.f32 %v4785, %v5411
        %v5476 = vmul.f32 %v4896, %v5412
        %v5477 = vmul.f32 %v4898, %v5413
        %v5478 = vmul.f32 %v4789, %v5414
        %v5479 = vmul.f32 %v4791, %v5415
        %v5480 = vmul.f32 %v4902, %v5416
        %v5481 = vmul.f32 %v4904, %v5417
        %v5482 = vmul.f32 %v4793, %v5418
        %v5483 = vmul.f32 %v4795, %v5419
        %v5484 = vmul.f32 %v4906, %v5420
        %v5485 = vmul.f32 %v4908, %v5421
        %v5486 = vpack.c.bf16 %v5426, %v5422
        %v5487 = vpack.c.bf16 %v5427, %v5423
        %v5488 = vpack.c.bf16 %v5428, %v5424
        %v5489 = vpack.c.bf16 %v5429, %v5425
        %v5490 = vpack.c.bf16 %v5434, %v5430
        %v5491 = vpack.c.bf16 %v5435, %v5431
        %v5492 = vpack.c.bf16 %v5436, %v5432
        %v5493 = vpack.c.bf16 %v5437, %v5433
        %v5494 = vpack.c.bf16 %v5442, %v5438
        %v5495 = vpack.c.bf16 %v5443, %v5439
        %v5496 = vpack.c.bf16 %v5444, %v5440
        %v5497 = vpack.c.bf16 %v5445, %v5441
        %v5498 = vpack.c.bf16 %v5450, %v5446
        %v5499 = vpack.c.bf16 %v5451, %v5447
        %v5500 = vpack.c.bf16 %v5452, %v5448
        %v5501 = vpack.c.bf16 %v5453, %v5449
        %v5502 = vpack.c.bf16 %v5458, %v5454
        %v5503 = vpack.c.bf16 %v5459, %v5455
        %v5504 = vpack.c.bf16 %v5460, %v5456
        %v5505 = vpack.c.bf16 %v5461, %v5457
        %v5506 = vpack.c.bf16 %v5466, %v5462
        %v5507 = vpack.c.bf16 %v5467, %v5463
        %v5508 = vpack.c.bf16 %v5468, %v5464
        %v5509 = vpack.c.bf16 %v5469, %v5465
        %v5510 = vpack.c.bf16 %v5474, %v5470
        %v5511 = vpack.c.bf16 %v5475, %v5471
        %v5512 = vpack.c.bf16 %v5476, %v5472
        %v5513 = vpack.c.bf16 %v5477, %v5473
        %v5514 = vpack.c.bf16 %v5482, %v5478
        %v5515 = vpack.c.bf16 %v5483, %v5479
        %v5516 = vpack.c.bf16 %v5484, %v5480
        %v5517 = vpack.c.bf16 %v5485, %v5481
        %v5518 = vld [vmem:[%s10] sm:$0xf]
        %v5519 = vld [vmem:[%s10 + $0x4] sm:$0xf]
        %v5520 = vld [vmem:[%s10 + $0x8] sm:$0xf]
        %v5521 = vld [vmem:[%s10 + $0xc] sm:$0xf]
        %v5522 = vld [vmem:[%s10 + $0x10] sm:$0xf]
        %v5523 = vld [vmem:[%s10 + $0x14] sm:$0xf]
        %v5524 = vld [vmem:[%s10 + $0x18] sm:$0xf]
        %v5525 = vld [vmem:[%s10 + $0x1c] sm:$0xf]
        %v5526 = vld [vmem:[%s10 + $0x20] sm:$0xf]
        %v5527 = vld [vmem:[%s10 + $0x24] sm:$0xf]
        %v5528 = vld [vmem:[%s10 + $0x28] sm:$0xf]
        %v5529 = vld [vmem:[%s10 + $0x2c] sm:$0xf]
        %v5530 = vld [vmem:[%s10 + $0x30] sm:$0xf]
        %v5531 = vld [vmem:[%s10 + $0x34] sm:$0xf]
        %v5532 = vld [vmem:[%s10 + $0x38] sm:$0xf]
        %v5533 = vld [vmem:[%s10 + $0x3c] sm:$0xf]
        %v5534 = vld [vmem:[%s10 + $0x40] sm:$0xf]
        %v5535 = vld [vmem:[%s10 + $0x44] sm:$0xf]
        %v5536 = vld [vmem:[%s10 + $0x48] sm:$0xf]
        %v5537 = vld [vmem:[%s10 + $0x4c] sm:$0xf]
        %v5538 = vld [vmem:[%s10 + $0x50] sm:$0xf]
        %v5539 = vld [vmem:[%s10 + $0x54] sm:$0xf]
        %v5540 = vld [vmem:[%s10 + $0x58] sm:$0xf]
        %v5541 = vld [vmem:[%s10 + $0x5c] sm:$0xf]
        %v5542 = vld [vmem:[%s10 + $0x60] sm:$0xf]
        %v5543 = vld [vmem:[%s10 + $0x64] sm:$0xf]
        %v5544 = vld [vmem:[%s10 + $0x68] sm:$0xf]
        %v5545 = vld [vmem:[%s10 + $0x6c] sm:$0xf]
        %v5546 = vld [vmem:[%s10 + $0x70] sm:$0xf]
        %v5547 = vld [vmem:[%s10 + $0x74] sm:$0xf]
        %v5548 = vld [vmem:[%s10 + $0x78] sm:$0xf]
        %v5549 = vld [vmem:[%s10 + $0x7c] sm:$0xf]
        %v5550 = vld [vmem:[%s10 + $0x80] sm:$0xf]
        %v5551 = vld [vmem:[%s10 + $0x84] sm:$0xf]
        %v5552 = vld [vmem:[%s10 + $0x88] sm:$0xf]
        %v5553 = vld [vmem:[%s10 + $0x8c] sm:$0xf]
        %v5554 = vld [vmem:[%s10 + $0x90] sm:$0xf]
        %v5555 = vld [vmem:[%s10 + $0x94] sm:$0xf]
        %v5556 = vld [vmem:[%s10 + $0x98] sm:$0xf]
        %v5557 = vld [vmem:[%s10 + $0x9c] sm:$0xf]
        %v5558 = vld [vmem:[%s10 + $0xa0] sm:$0xf]
        %v5559 = vld [vmem:[%s10 + $0xa4] sm:$0xf]
        %v5560 = vld [vmem:[%s10 + $0xa8] sm:$0xf]
        %v5561 = vld [vmem:[%s10 + $0xac] sm:$0xf]
        %v5562 = vld [vmem:[%s10 + $0xb0] sm:$0xf]
        %v5563 = vld [vmem:[%s10 + $0xb4] sm:$0xf]
        %v5564 = vld [vmem:[%s10 + $0xb8] sm:$0xf]
        %v5565 = vld [vmem:[%s10 + $0xbc] sm:$0xf]
        %v5566 = vld [vmem:[%s10 + $0xc0] sm:$0xf]
        %v5567 = vld [vmem:[%s10 + $0xc4] sm:$0xf]
        %v5568 = vld [vmem:[%s10 + $0xc8] sm:$0xf]
        %v5569 = vld [vmem:[%s10 + $0xcc] sm:$0xf]
        %v5570 = vld [vmem:[%s10 + $0xd0] sm:$0xf]
        %v5571 = vld [vmem:[%s10 + $0xd4] sm:$0xf]
        %v5572 = vld [vmem:[%s10 + $0xd8] sm:$0xf]
        %v5573 = vld [vmem:[%s10 + $0xdc] sm:$0xf]
        %v5574 = vld [vmem:[%s10 + $0xe0] sm:$0xf]
        %v5575 = vld [vmem:[%s10 + $0xe4] sm:$0xf]
        %v5576 = vld [vmem:[%s10 + $0xe8] sm:$0xf]
        %v5577 = vld [vmem:[%s10 + $0xec] sm:$0xf]
        %v5578 = vld [vmem:[%s10 + $0xf0] sm:$0xf]
        %v5579 = vld [vmem:[%s10 + $0xf4] sm:$0xf]
        %v5580 = vld [vmem:[%s10 + $0xf8] sm:$0xf]
        %v5581 = vld [vmem:[%s10 + $0xfc] sm:$0xf]
        %v5582 = vld [vmem:[%s11] sm:$0x1]
        %v5584 = vlaneseq
        %v5585 = vshrl.u32 %v5584, 7
        %v5586 = vsub.s32 0, %v5585
        %v5587 = vrot.slane %v5582, %v5586
        %v5653 = vunpack.c.l.b16 %v5518
        %v5654 = vunpack.c.l.b16 %v5519
        %v5655 = vunpack.c.l.b16 %v5520
        %v5656 = vunpack.c.l.b16 %v5521
        %v5657 = vunpack.c.l.b16 %v5522
        %v5658 = vunpack.c.l.b16 %v5523
        %v5659 = vunpack.c.l.b16 %v5524
        %v5660 = vunpack.c.l.b16 %v5525
        %v5661 = vunpack.c.l.b16 %v5526
        %v5662 = vunpack.c.l.b16 %v5527
        %v5663 = vunpack.c.l.b16 %v5528
        %v5664 = vunpack.c.l.b16 %v5529
        %v5665 = vunpack.c.l.b16 %v5530
        %v5666 = vunpack.c.l.b16 %v5531
        %v5667 = vunpack.c.l.b16 %v5532
        %v5668 = vunpack.c.l.b16 %v5533
        %v5669 = vunpack.c.l.b16 %v5534
        %v5670 = vunpack.c.l.b16 %v5535
        %v5671 = vunpack.c.l.b16 %v5536
        %v5672 = vunpack.c.l.b16 %v5537
        %v5673 = vunpack.c.l.b16 %v5538
        %v5674 = vunpack.c.l.b16 %v5539
        %v5675 = vunpack.c.l.b16 %v5540
        %v5676 = vunpack.c.l.b16 %v5541
        %v5677 = vunpack.c.l.b16 %v5542
        %v5678 = vunpack.c.l.b16 %v5543
        %v5679 = vunpack.c.l.b16 %v5544
        %v5680 = vunpack.c.l.b16 %v5545
        %v5681 = vunpack.c.l.b16 %v5546
        %v5682 = vunpack.c.l.b16 %v5547
        %v5683 = vunpack.c.l.b16 %v5548
        %v5684 = vunpack.c.l.b16 %v5549
        %v5685 = vunpack.c.l.b16 %v5550
        %v5686 = vunpack.c.l.b16 %v5551
        %v5687 = vunpack.c.l.b16 %v5552
        %v5688 = vunpack.c.l.b16 %v5553
        %v5689 = vunpack.c.l.b16 %v5554
        %v5690 = vunpack.c.l.b16 %v5555
        %v5691 = vunpack.c.l.b16 %v5556
        %v5692 = vunpack.c.l.b16 %v5557
        %v5693 = vunpack.c.l.b16 %v5558
        %v5694 = vunpack.c.l.b16 %v5559
        %v5695 = vunpack.c.l.b16 %v5560
        %v5696 = vunpack.c.l.b16 %v5561
        %v5697 = vunpack.c.l.b16 %v5562
        %v5698 = vunpack.c.l.b16 %v5563
        %v5699 = vunpack.c.l.b16 %v5564
        %v5700 = vunpack.c.l.b16 %v5565
        %v5701 = vunpack.c.l.b16 %v5566
        %v5702 = vunpack.c.l.b16 %v5567
        %v5703 = vunpack.c.l.b16 %v5568
        %v5704 = vunpack.c.l.b16 %v5569
        %v5705 = vunpack.c.l.b16 %v5570
        %v5706 = vunpack.c.l.b16 %v5571
        %v5707 = vunpack.c.l.b16 %v5572
        %v5708 = vunpack.c.l.b16 %v5573
        %v5709 = vunpack.c.l.b16 %v5574
        %v5710 = vunpack.c.l.b16 %v5575
        %v5711 = vunpack.c.l.b16 %v5576
        %v5712 = vunpack.c.l.b16 %v5577
        %v5713 = vunpack.c.l.b16 %v5578
        %v5714 = vunpack.c.l.b16 %v5579
        %v5715 = vunpack.c.l.b16 %v5580
        %v5716 = vunpack.c.l.b16 %v5581
        %v5717 = vpack.c.b16 %v5654, %v5653
        %v5718 = vpack.c.b16 %v5656, %v5655
        %v5719 = vpack.c.b16 %v5658, %v5657
        %v5720 = vpack.c.b16 %v5660, %v5659
        %v5721 = vpack.c.b16 %v5662, %v5661
        %v5722 = vpack.c.b16 %v5664, %v5663
        %v5723 = vpack.c.b16 %v5666, %v5665
        %v5724 = vpack.c.b16 %v5668, %v5667
        %v5725 = vpack.c.b16 %v5670, %v5669
        %v5726 = vpack.c.b16 %v5672, %v5671
        %v5727 = vpack.c.b16 %v5674, %v5673
        %v5728 = vpack.c.b16 %v5676, %v5675
        %v5729 = vpack.c.b16 %v5678, %v5677
        %v5730 = vpack.c.b16 %v5680, %v5679
        %v5731 = vpack.c.b16 %v5682, %v5681
        %v5732 = vpack.c.b16 %v5684, %v5683
        %v5733 = vpack.c.b16 %v5686, %v5685
        %v5734 = vpack.c.b16 %v5688, %v5687
        %v5735 = vpack.c.b16 %v5690, %v5689
        %v5736 = vpack.c.b16 %v5692, %v5691
        %v5737 = vpack.c.b16 %v5694, %v5693
        %v5738 = vpack.c.b16 %v5696, %v5695
        %v5739 = vpack.c.b16 %v5698, %v5697
        %v5740 = vpack.c.b16 %v5700, %v5699
        %v5741 = vpack.c.b16 %v5702, %v5701
        %v5742 = vpack.c.b16 %v5704, %v5703
        %v5743 = vpack.c.b16 %v5706, %v5705
        %v5744 = vpack.c.b16 %v5708, %v5707
        %v5745 = vpack.c.b16 %v5710, %v5709
        %v5746 = vpack.c.b16 %v5712, %v5711
        %v5747 = vpack.c.b16 %v5714, %v5713
        %v5748 = vpack.c.b16 %v5716, %v5715
        %5781 = vmatprep.subr.bf16.mxu0 0
        %5782 = vmatpush1.bf16.msra.mxu0 %v5717
        %5783 = vmatprep.subr.bf16.mxu0 0
        %5784 = vmatpush1.bf16.msra.mxu0 %v5718
        %5785 = vmatprep.subr.bf16.mxu0 0
        %5786 = vmatpush1.bf16.msra.mxu0 %v5719
        %5787 = vmatprep.subr.bf16.mxu0 0
        %5788 = vmatpush1.bf16.msra.mxu0 %v5720
        %5789 = vmatprep.subr.bf16.mxu0 0
        %5790 = vmatpush1.bf16.msra.mxu0 %v5721
        %5791 = vmatprep.subr.bf16.mxu0 0
        %5792 = vmatpush1.bf16.msra.mxu0 %v5722
        %5793 = vmatprep.subr.bf16.mxu0 0
        %5794 = vmatpush1.bf16.msra.mxu0 %v5723
        %5795 = vmatprep.subr.bf16.mxu0 0
        %5796 = vmatpush1.bf16.msra.mxu0 %v5724
        %5797 = vmatprep.subr.bf16.mxu0 0
        %5798 = vmatpush1.bf16.msra.mxu0 %v5725
        %5799 = vmatprep.subr.bf16.mxu0 0
        %5800 = vmatpush1.bf16.msra.mxu0 %v5726
        %5801 = vmatprep.subr.bf16.mxu0 0
        %5802 = vmatpush1.bf16.msra.mxu0 %v5727
        %5803 = vmatprep.subr.bf16.mxu0 0
        %5804 = vmatpush1.bf16.msra.mxu0 %v5728
        %5805 = vmatprep.subr.bf16.mxu0 0
        %5806 = vmatpush1.bf16.msra.mxu0 %v5729
        %5807 = vmatprep.subr.bf16.mxu0 0
        %5808 = vmatpush1.bf16.msra.mxu0 %v5730
        %5809 = vmatprep.subr.bf16.mxu0 0
        %5810 = vmatpush1.bf16.msra.mxu0 %v5731
        %5811 = vmatprep.subr.bf16.mxu0 0
        %5812 = vmatpush1.bf16.msra.mxu0 %v5732
        %5813 = vmatprep.mubr.bf16.mxu0 %v5487
        %5814 = vmatmul.mubr.bf16.gmra.mrb[0].mxu0 %v5486
        %v5815 = vpop.f32.mrb[0].mxu0
        %v5816 = vadd.f32 %v5587, %v5815
        %v5817 = vpop.f32.mrb[0].mxu0
        %v5818 = vpop.f32.mrb[0].mxu0
        %v5819 = vadd.f32 %v5587, %v5818
        %v5820 = vpop.f32.mrb[0].mxu0
        %5821 = vmatprep.mubr.bf16.mxu0 %v5491
        %5822 = vmatmul.mubr.bf16.gmra.mrb[0].mxu0 %v5490
        %v5823 = vpop.f32.mrb[0].mxu0
        %v5824 = vadd.f32 %v5587, %v5823
        %v5825 = vpop.f32.mrb[0].mxu0
        %v5826 = vpop.f32.mrb[0].mxu0
        %v5827 = vadd.f32 %v5587, %v5826
        %v5828 = vpop.f32.mrb[0].mxu0
        %5829 = vmatprep.mubr.bf16.mxu0 %v5495
        %5830 = vmatmul.mubr.bf16.gmra.mrb[0].mxu0 %v5494
        %v5831 = vpop.f32.mrb[0].mxu0
        %v5832 = vadd.f32 %v5587, %v5831
        %v5833 = vpop.f32.mrb[0].mxu0
        %v5834 = vpop.f32.mrb[0].mxu0
        %v5835 = vadd.f32 %v5587, %v5834
        %v5836 = vpop.f32.mrb[0].mxu0
        %5837 = vmatprep.mubr.bf16.mxu0 %v5499
        %5838 = vmatmul.mubr.bf16.gmra.mrb[0].mxu0 %v5498
        %v5839 = vpop.f32.mrb[0].mxu0
        %v5840 = vadd.f32 %v5587, %v5839
        %v5841 = vpop.f32.mrb[0].mxu0
        %v5842 = vpop.f32.mrb[0].mxu0
        %v5843 = vadd.f32 %v5587, %v5842
        %v5844 = vpop.f32.mrb[0].mxu0
        %5845 = vmatprep.mubr.bf16.mxu0 %v5503
        %5846 = vmatmul.mubr.bf16.gmra.mrb[0].mxu0 %v5502
        %v5847 = vpop.f32.mrb[0].mxu0
        %v5848 = vadd.f32 %v5587, %v5847
        %v5849 = vpop.f32.mrb[0].mxu0
        %v5850 = vpop.f32.mrb[0].mxu0
        %v5851 = vadd.f32 %v5587, %v5850
        %v5852 = vpop.f32.mrb[0].mxu0
        %5853 = vmatprep.mubr.bf16.mxu0 %v5507
        %5854 = vmatmul.mubr.bf16.gmra.mrb[0].mxu0 %v5506
        %v5855 = vpop.f32.mrb[0].mxu0
        %v5856 = vadd.f32 %v5587, %v5855
        %v5857 = vpop.f32.mrb[0].mxu0
        %v5858 = vpop.f32.mrb[0].mxu0
        %v5859 = vadd.f32 %v5587, %v5858
        %v5860 = vpop.f32.mrb[0].mxu0
        %5861 = vmatprep.mubr.bf16.mxu0 %v5511
        %5862 = vmatmul.mubr.bf16.gmra.mrb[0].mxu0 %v5510
        %v5863 = vpop.f32.mrb[0].mxu0
        %v5864 = vadd.f32 %v5587, %v5863
        %v5865 = vpop.f32.mrb[0].mxu0
        %v5866 = vpop.f32.mrb[0].mxu0
        %v5867 = vadd.f32 %v5587, %v5866
        %v5868 = vpop.f32.mrb[0].mxu0
        %5869 = vmatprep.mubr.bf16.mxu0 %v5515
        %5870 = vmatmul.mubr.bf16.gmra.mrb[0].mxu0 %v5514
        %v5871 = vpop.f32.mrb[0].mxu0
        %v5872 = vadd.f32 %v5587, %v5871
        %v5873 = vpop.f32.mrb[0].mxu0
        %v5874 = vpop.f32.mrb[0].mxu0
        %v5875 = vadd.f32 %v5587, %v5874
        %v5876 = vpop.f32.mrb[0].mxu0
        %5877 = vdwg.mxu0
        %5878 = vmatprep.subr.bf16.mxu0 0
        %5879 = vmatpush1.bf16.msra.mxu0 %v5733
        %5880 = vmatprep.subr.bf16.mxu0 0
        %5881 = vmatpush1.bf16.msra.mxu0 %v5734
        %5882 = vmatprep.subr.bf16.mxu0 0
        %5883 = vmatpush1.bf16.msra.mxu0 %v5735
        %5884 = vmatprep.subr.bf16.mxu0 0
        %5885 = vmatpush1.bf16.msra.mxu0 %v5736
        %5886 = vmatprep.subr.bf16.mxu0 0
        %5887 = vmatpush1.bf16.msra.mxu0 %v5737
        %5888 = vmatprep.subr.bf16.mxu0 0
        %5889 = vmatpush1.bf16.msra.mxu0 %v5738
        %5890 = vmatprep.subr.bf16.mxu0 0
        %5891 = vmatpush1.bf16.msra.mxu0 %v5739
        %5892 = vmatprep.subr.bf16.mxu0 0
        %5893 = vmatpush1.bf16.msra.mxu0 %v5740
        %5894 = vmatprep.subr.bf16.mxu0 0
        %5895 = vmatpush1.bf16.msra.mxu0 %v5741
        %5896 = vmatprep.subr.bf16.mxu0 0
        %5897 = vmatpush1.bf16.msra.mxu0 %v5742
        %5898 = vmatprep.subr.bf16.mxu0 0
        %5899 = vmatpush1.bf16.msra.mxu0 %v5743
        %5900 = vmatprep.subr.bf16.mxu0 0
        %5901 = vmatpush1.bf16.msra.mxu0 %v5744
        %5902 = vmatprep.subr.bf16.mxu0 0
        %5903 = vmatpush1.bf16.msra.mxu0 %v5745
        %5904 = vmatprep.subr.bf16.mxu0 0
        %5905 = vmatpush1.bf16.msra.mxu0 %v5746
        %5906 = vmatprep.subr.bf16.mxu0 0
        %5907 = vmatpush1.bf16.msra.mxu0 %v5747
        %5908 = vmatprep.subr.bf16.mxu0 0
        %5909 = vmatpush1.bf16.msra.mxu0 %v5748
        %5910 = vmatprep.mubr.bf16.mxu0 %v5489
        %5911 = vmatmul.mubr.bf16.gmra.mrb[0].mxu0 %v5488
        %v5912 = vpop.f32.mrb[0].mxu0
        %v5913 = vadd.f32 %v5816, %v5912
        %v5914 = vpop.f32.mrb[0].mxu0
        %v5915 = vpop.f32.mrb[0].mxu0
        %v5916 = vadd.f32 %v5819, %v5915
        %v5917 = vpop.f32.mrb[0].mxu0
        %5918 = vmatprep.mubr.bf16.mxu0 %v5493
        %5919 = vmatmul.mubr.bf16.gmra.mrb[0].mxu0 %v5492
        %v5920 = vpop.f32.mrb[0].mxu0
        %v5921 = vadd.f32 %v5824, %v5920
        %v5922 = vpop.f32.mrb[0].mxu0
        %v5923 = vpop.f32.mrb[0].mxu0
        %v5924 = vadd.f32 %v5827, %v5923
        %v5925 = vpop.f32.mrb[0].mxu0
        %5926 = vmatprep.mubr.bf16.mxu0 %v5497
        %5927 = vmatmul.mubr.bf16.gmra.mrb[0].mxu0 %v5496
        %v5928 = vpop.f32.mrb[0].mxu0
        %v5929 = vadd.f32 %v5832, %v5928
        %v5930 = vpop.f32.mrb[0].mxu0
        %v5931 = vpop.f32.mrb[0].mxu0
        %v5932 = vadd.f32 %v5835, %v5931
        %v5933 = vpop.f32.mrb[0].mxu0
        %5934 = vmatprep.mubr.bf16.mxu0 %v5501
        %5935 = vmatmul.mubr.bf16.gmra.mrb[0].mxu0 %v5500
        %v5936 = vpop.f32.mrb[0].mxu0
        %v5937 = vadd.f32 %v5840, %v5936
        %v5938 = vpop.f32.mrb[0].mxu0
        %v5939 = vpop.f32.mrb[0].mxu0
        %v5940 = vadd.f32 %v5843, %v5939
        %v5941 = vpop.f32.mrb[0].mxu0
        %5942 = vmatprep.mubr.bf16.mxu0 %v5505
        %5943 = vmatmul.mubr.bf16.gmra.mrb[0].mxu0 %v5504
        %v5944 = vpop.f32.mrb[0].mxu0
        %v5945 = vadd.f32 %v5848, %v5944
        %v5946 = vpop.f32.mrb[0].mxu0
        %v5947 = vpop.f32.mrb[0].mxu0
        %v5948 = vadd.f32 %v5851, %v5947
        %v5949 = vpop.f32.mrb[0].mxu0
        %5950 = vmatprep.mubr.bf16.mxu0 %v5509
        %5951 = vmatmul.mubr.bf16.gmra.mrb[0].mxu0 %v5508
        %v5952 = vpop.f32.mrb[0].mxu0
        %v5953 = vadd.f32 %v5856, %v5952
        %v5954 = vpop.f32.mrb[0].mxu0
        %v5955 = vpop.f32.mrb[0].mxu0
        %v5956 = vadd.f32 %v5859, %v5955
        %v5957 = vpop.f32.mrb[0].mxu0
        %5958 = vmatprep.mubr.bf16.mxu0 %v5513
        %5959 = vmatmul.mubr.bf16.gmra.mrb[0].mxu0 %v5512
        %v5960 = vpop.f32.mrb[0].mxu0
        %v5961 = vadd.f32 %v5864, %v5960
        %v5962 = vpop.f32.mrb[0].mxu0
        %v5963 = vpop.f32.mrb[0].mxu0
        %v5964 = vadd.f32 %v5867, %v5963
        %v5965 = vpop.f32.mrb[0].mxu0
        %5966 = vmatprep.mubr.bf16.mxu0 %v5517
        %5967 = vmatmul.mubr.bf16.gmra.mrb[0].mxu0 %v5516
        %v5968 = vpop.f32.mrb[0].mxu0
        %v5969 = vadd.f32 %v5872, %v5968
        %v5970 = vpop.f32.mrb[0].mxu0
        %v5971 = vpop.f32.mrb[0].mxu0
        %v5972 = vadd.f32 %v5875, %v5971
        %v5973 = vpop.f32.mrb[0].mxu0
        %5974 = vdwg.mxu0
        %v5975 = vadd.f32 %v4238, %v5913
        %v5976 = vadd.f32 %v4239, %v5916
        %v5977 = vadd.f32 %v4240, %v5921
        %v5978 = vadd.f32 %v4241, %v5924
        %v5979 = vadd.f32 %v4242, %v5929
        %v5980 = vadd.f32 %v4243, %v5932
        %v5981 = vadd.f32 %v4244, %v5937
        %v5982 = vadd.f32 %v4245, %v5940
        %v5983 = vadd.f32 %v4246, %v5945
        %v5984 = vadd.f32 %v4247, %v5948
        %v5985 = vadd.f32 %v4248, %v5953
        %v5986 = vadd.f32 %v4249, %v5956
        %v5987 = vadd.f32 %v4250, %v5961
        %v5988 = vadd.f32 %v4251, %v5964
        %v5989 = vadd.f32 %v4252, %v5969
        %v5990 = vadd.f32 %v4253, %v5972
        %5991 = vxpose.xlu0.b32.start [1/16] %v5975, 128
        %5992 = vxpose.xlu0.b32.cont [2/16] %v5976, 128
        %5993 = vxpose.xlu0.b32.cont [3/16] %v5977, 128
        %5994 = vxpose.xlu0.b32.cont [4/16] %v5978, 128
        %5995 = vxpose.xlu0.b32.cont [5/16] %v5979, 128
        %5996 = vxpose.xlu0.b32.cont [6/16] %v5980, 128
        %5997 = vxpose.xlu0.b32.cont [7/16] %v5981, 128
        %5998 = vxpose.xlu0.b32.cont [8/16] %v5982, 128
        %5999 = vxpose.xlu0.b32.cont [9/16] %v5983, 128
        %6000 = vxpose.xlu0.b32.cont [10/16] %v5984, 128
        %6001 = vxpose.xlu0.b32.cont [11/16] %v5985, 128
        %6002 = vxpose.xlu0.b32.cont [12/16] %v5986, 128
        %6003 = vxpose.xlu0.b32.cont [13/16] %v5987, 128
        %6004 = vxpose.xlu0.b32.cont [14/16] %v5988, 128
        %6005 = vxpose.xlu0.b32.cont [15/16] %v5989, 128
        %6006 = vxpose.xlu0.b32.end [16/16] %v5990, 128
        %v6007 = vpop.trf.xlu0
        %v6008 = vpop.trf.xlu0
        %v6009 = vpop.trf.xlu0
        %v6010 = vpop.trf.xlu0
        %v6011 = vpop.trf.xlu0
        %v6012 = vpop.trf.xlu0
        %v6013 = vpop.trf.xlu0
        %v6014 = vpop.trf.xlu0
        %v6015 = vpop.trf.xlu0
        %v6016 = vpop.trf.xlu0
        %v6017 = vpop.trf.xlu0
        %v6018 = vpop.trf.xlu0
        %v6019 = vpop.trf.xlu0
        %v6020 = vpop.trf.xlu0
        %v6021 = vpop.trf.xlu0
        %v6022 = vpop.trf.xlu0
        %6023 = vst [vmem:[%s457] sm:$0xff] %v6007
        %6024 = vst [vmem:[%s457 + $0x8] sm:$0xff] %v6008
        %6025 = vst [vmem:[%s457 + $0x10] sm:$0xff] %v6009
        %6026 = vst [vmem:[%s457 + $0x18] sm:$0xff] %v6010
        %6027 = vst [vmem:[%s457 + $0x20] sm:$0xff] %v6011
        %6028 = vst [vmem:[%s457 + $0x28] sm:$0xff] %v6012
        %6029 = vst [vmem:[%s457 + $0x30] sm:$0xff] %v6013
        %6030 = vst [vmem:[%s457 + $0x38] sm:$0xff] %v6014
        %6031 = vst [vmem:[%s457 + $0x40] sm:$0xff] %v6015
        %6032 = vst [vmem:[%s457 + $0x48] sm:$0xff] %v6016
        %6033 = vst [vmem:[%s457 + $0x50] sm:$0xff] %v6017
        %6034 = vst [vmem:[%s457 + $0x58] sm:$0xff] %v6018
        %6035 = vst [vmem:[%s457 + $0x60] sm:$0xff] %v6019
        %6036 = vst [vmem:[%s457 + $0x68] sm:$0xff] %v6020
        %6037 = vst [vmem:[%s457 + $0x70] sm:$0xff] %v6021
        %6038 = vst [vmem:[%s457 + $0x78] sm:$0xff] %v6022
        %s6039 = sand.u32 %s314, 1
        %s6040 = sand.u32 %s314, 1
        %s6041 = smul.addr %s6040, 128
        %s6042 = scalar_lea.vmem [#allocation2], %s6041
        // Predicated region
        $region69: #{context_self_block.5} parent=67 // pred_check
          %p6043 = pneg %p324
        $region70: #{context_self_block.5} parent=67 // pred_check_branch
          %6045 = sbr.rel (%p6043) target = $region72
        $region71: #{context_self_block.5} parent=67 // pred_region
          %s6046 = smul.addr %s27, 32
          %s6047 = sadd.s32 %s28, %s6046
          %s6048 = smul.addr %s6047, 8
          %s6049 = scalar_lea.vmem %s12, %s6048
          // Predicated region
          $region73: #{context_self_block.5} parent=71 // pred_check
            _
          $region74: #{context_self_block.5} parent=71 // pred_check_branch
            %6051 = sbr.rel (0) target = $region76
          $region75: #{context_self_block.5} parent=71 // pred_region
            // Predicated region
            $region77: #{context_self_block.5} parent=75 // pred_check
              _
            $region78: #{context_self_block.5} parent=75 // pred_check_branch
              %6053 = sbr.rel (0) target = $region80
            $region79: #{context_self_block.5} parent=75 // pred_region
              // Predicated region
              $region92: #{context_self_block.5} parent=79 // pred_check
                _
              $region93: #{context_self_block.5} parent=79 // pred_check_branch
                %6098 = sbr.rel (0) target = $region95
              $region94: #{context_self_block.5} parent=79 // pred_region
                loop: start=0, step=1, limit=1
                $region96: #{context_self_block.5} parent=94 // loop_pre_header
                  _
                $region97: #{context_self_block.5} parent=94 // loop_header
                  %s6100 = sphi 0, %s6104
                  %p6101 = scmp.ge.s32.totalorder %s6100, 1
                  %s6105 = sphi %s6042, %s6042
                  %s6106 = sphi %s6049, %s6049
                $region98: #{context_self_block.5} parent=94 // loop_header_branch
                  %6103 = sbr.rel (%p6101) target = $region102
                $region99: #{context_self_block.5} parent=94 // loop_body
                  %v6107 = vld [vmem:[%s6105] sm:$0xff]
                  %6108 = vst [vmem:[%s6106] sm:$0xff] %v6107
                  %v6109 = vld [vmem:[%s6105 + $0x8] sm:$0xff]
                  %6110 = vst [vmem:[%s6106 + $0x10] sm:$0xff] %v6109
                  %v6111 = vld [vmem:[%s6105 + $0x10] sm:$0xff]
                  %6112 = vst [vmem:[%s6106 + $0x20] sm:$0xff] %v6111
                  %v6113 = vld [vmem:[%s6105 + $0x18] sm:$0xff]
                  %6114 = vst [vmem:[%s6106 + $0x30] sm:$0xff] %v6113
                  %v6115 = vld [vmem:[%s6105 + $0x20] sm:$0xff]
                  %6116 = vst [vmem:[%s6106 + $0x40] sm:$0xff] %v6115
                  %v6117 = vld [vmem:[%s6105 + $0x28] sm:$0xff]
                  %6118 = vst [vmem:[%s6106 + $0x50] sm:$0xff] %v6117
                  %v6119 = vld [vmem:[%s6105 + $0x30] sm:$0xff]
                  %6120 = vst [vmem:[%s6106 + $0x60] sm:$0xff] %v6119
                  %v6121 = vld [vmem:[%s6105 + $0x38] sm:$0xff]
                  %6122 = vst [vmem:[%s6106 + $0x70] sm:$0xff] %v6121
                  %v6123 = vld [vmem:[%s6105 + $0x40] sm:$0xff]
                  %6124 = vst [vmem:[%s6106 + $0x80] sm:$0xff] %v6123
                  %v6125 = vld [vmem:[%s6105 + $0x48] sm:$0xff]
                  %6126 = vst [vmem:[%s6106 + $0x90] sm:$0xff] %v6125
                  %v6127 = vld [vmem:[%s6105 + $0x50] sm:$0xff]
                  %6128 = vst [vmem:[%s6106 + $0xa0] sm:$0xff] %v6127
                  %v6129 = vld [vmem:[%s6105 + $0x58] sm:$0xff]
                  %6130 = vst [vmem:[%s6106 + $0xb0] sm:$0xff] %v6129
                  %v6131 = vld [vmem:[%s6105 + $0x60] sm:$0xff]
                  %6132 = vst [vmem:[%s6106 + $0xc0] sm:$0xff] %v6131
                  %v6133 = vld [vmem:[%s6105 + $0x68] sm:$0xff]
                  %6134 = vst [vmem:[%s6106 + $0xd0] sm:$0xff] %v6133
                  %v6135 = vld [vmem:[%s6105 + $0x70] sm:$0xff]
                  %6136 = vst [vmem:[%s6106 + $0xe0] sm:$0xff] %v6135
                  %v6137 = vld [vmem:[%s6105 + $0x78] sm:$0xff]
                  %6138 = vst [vmem:[%s6106 + $0xf0] sm:$0xff] %v6137
                $region100: #{context_self_block.5} parent=94 // loop_footer
                  %s6104 = sadd.s32 1, %s6100
                $region101: #{context_self_block.5} parent=94 // loop_footer_branch
                  %6099 = sbr.rel target = $region97
                $region102: #{context_self_block.5} parent=94 // loop_exit
                  _
              $region95: #{context_self_block.5} parent=79 // pred_fallthru
                _
              // Predicated region
              $region103: #{context_self_block.5} parent=79 // pred_check
                _
              $region104: #{context_self_block.5} parent=79 // pred_check_branch
                %6140 = sbr.rel target = $region106
              $region105: #{context_self_block.5} parent=79 // pred_region
                _
              $region106: #{context_self_block.5} parent=79 // pred_fallthru
                _
            $region80: #{context_self_block.5} parent=75 // pred_fallthru
              _
            // Predicated region
            $region81: #{context_self_block.5} parent=75 // pred_check
              _
            $region82: #{context_self_block.5} parent=75 // pred_check_branch
              %6055 = sbr.rel target = $region84
            $region83: #{context_self_block.5} parent=75 // pred_region
              loop: start=0, step=1, limit=1
              $region85: #{context_self_block.5} parent=83 // loop_pre_header
                _
              $region86: #{context_self_block.5} parent=83 // loop_header
                %s6058 = sphi 0, %s6062
                %p6059 = scmp.ge.s32.totalorder %s6058, 1
                %s6063 = sphi %s6042, %s6042
                %s6064 = sphi %s6049, %s6049
              $region87: #{context_self_block.5} parent=83 // loop_header_branch
                %6061 = sbr.rel (%p6059) target = $region91
              $region88: #{context_self_block.5} parent=83 // loop_body
                %v6065 = vld [vmem:[%s6063] sm:$0xff]
                %6066 = vst [vmem:[%s6064] sm:$0xff] %v6065
                %v6067 = vld [vmem:[%s6063 + $0x8] sm:$0xff]
                %6068 = vst [vmem:[%s6064 + $0x10] sm:$0xff] %v6067
                %v6069 = vld [vmem:[%s6063 + $0x10] sm:$0xff]
                %6070 = vst [vmem:[%s6064 + $0x20] sm:$0xff] %v6069
                %v6071 = vld [vmem:[%s6063 + $0x18] sm:$0xff]
                %6072 = vst [vmem:[%s6064 + $0x30] sm:$0xff] %v6071
                %v6073 = vld [vmem:[%s6063 + $0x20] sm:$0xff]
                %6074 = vst [vmem:[%s6064 + $0x40] sm:$0xff] %v6073
                %v6075 = vld [vmem:[%s6063 + $0x28] sm:$0xff]
                %6076 = vst [vmem:[%s6064 + $0x50] sm:$0xff] %v6075
                %v6077 = vld [vmem:[%s6063 + $0x30] sm:$0xff]
                %6078 = vst [vmem:[%s6064 + $0x60] sm:$0xff] %v6077
                %v6079 = vld [vmem:[%s6063 + $0x38] sm:$0xff]
                %6080 = vst [vmem:[%s6064 + $0x70] sm:$0xff] %v6079
                %v6081 = vld [vmem:[%s6063 + $0x40] sm:$0xff]
                %6082 = vst [vmem:[%s6064 + $0x80] sm:$0xff] %v6081
                %v6083 = vld [vmem:[%s6063 + $0x48] sm:$0xff]
                %6084 = vst [vmem:[%s6064 + $0x90] sm:$0xff] %v6083
                %v6085 = vld [vmem:[%s6063 + $0x50] sm:$0xff]
                %6086 = vst [vmem:[%s6064 + $0xa0] sm:$0xff] %v6085
                %v6087 = vld [vmem:[%s6063 + $0x58] sm:$0xff]
                %6088 = vst [vmem:[%s6064 + $0xb0] sm:$0xff] %v6087
                %v6089 = vld [vmem:[%s6063 + $0x60] sm:$0xff]
                %6090 = vst [vmem:[%s6064 + $0xc0] sm:$0xff] %v6089
                %v6091 = vld [vmem:[%s6063 + $0x68] sm:$0xff]
                %6092 = vst [vmem:[%s6064 + $0xd0] sm:$0xff] %v6091
                %v6093 = vld [vmem:[%s6063 + $0x70] sm:$0xff]
                %6094 = vst [vmem:[%s6064 + $0xe0] sm:$0xff] %v6093
                %v6095 = vld [vmem:[%s6063 + $0x78] sm:$0xff]
                %6096 = vst [vmem:[%s6064 + $0xf0] sm:$0xff] %v6095
              $region89: #{context_self_block.5} parent=83 // loop_footer
                %s6062 = sadd.s32 1, %s6058
              $region90: #{context_self_block.5} parent=83 // loop_footer_branch
                %6057 = sbr.rel target = $region86
              $region91: #{context_self_block.5} parent=83 // loop_exit
                _
            $region84: #{context_self_block.5} parent=75 // pred_fallthru
              _
          $region76: #{context_self_block.5} parent=71 // pred_fallthru
            _
          %6141 = vnop
        $region72: #{context_self_block.5} parent=67 // pred_fallthru
          _
      $region68: #{context_self_block.5} parent=5 // pred_fallthru
        _
      %p6142 = scmp.le.s32.totalorder 2, %s18
      // Predicated region
      $region107: #{context_self_block.5} parent=5 // pred_check
        %p6143 = pneg %p6142
      $region108: #{context_self_block.5} parent=5 // pred_check_branch
        %6145 = sbr.rel (%p6143) target = $region110
      $region109: #{context_self_block.5} parent=5 // pred_region
        %s6146 = ssub.s32 %s18, 2
        // Predicated region
        $region111: #{context_self_block.5} parent=109 // pred_check
          %p6147 = pneg %p330
        $region112: #{context_self_block.5} parent=109 // pred_check_branch
          %6149 = sbr.rel (%p6147) target = $region114
        $region113: #{context_self_block.5} parent=109 // pred_region
          %s6150 = sand.u32 %s315, 1
          %s6151 = sand.u32 %s315, 1
          %s6152 = smul.addr %s6151, 128
          %s6153 = scalar_lea.vmem [#allocation2], %s6152
        $region114: #{context_self_block.5} parent=109 // pred_fallthru
          _
      $region110: #{context_self_block.5} parent=5 // pred_fallthru
        _
    $region6: #{context_self_block.5} parent=1 // loop_footer
      %s22 = sadd.s32 1, %s18
    $region7: #{context_self_block.5} parent=1 // loop_footer_branch
      %17 = sbr.rel target = $region3
    $region8: #{context_self_block.5} parent=1 // loop_exit
      _

</llo_original>
